<compile_context>
chip_gen: v7x
topology: tpu7x:2x2x1
jax: 0.10.0
libtpu: 0.0.40
codegen_flags: <defaults>
</compile_context>

<pallas_src>
import functools
import math

import jax
import jax.numpy as jnp
from jax.experimental import pallas as pl
from jax.experimental.pallas import tpu as pltpu


# ----------------------------------------------------------------------------
# Fused kernel factory
# ----------------------------------------------------------------------------
def make_fused_kernel(*, conv_depth, gru_depth, ker_size, dilation, T, B):
    total_pad = dilation * (ker_size - 1)
    left = total_pad // 2          # PyTorch 'same': left = total // 2
    right = total_pad - left

    def kernel(*refs):
        it = iter(refs)
        # ---- unpack inputs (order must match the wrapper's flatten order) ---
        x_ref = next(it)
        bn_s = next(it)
        bn_sh = next(it)
        conv_p = [(next(it), next(it)) for _ in range(conv_depth)]
        # per layer: (w_ih_cat, b_x_cat, w_hh_f, w_hh_b, b_hn_f, b_hn_b)
        gru_p = [tuple(next(it) for _ in range(6)) for _ in range(gru_depth)]
        head_w = next(it)
        head_b = next(it)
        # ---- output ----
        out_ref = next(it)
        # ---- scratch ----
        conv_pad = [next(it) for _ in range(conv_depth)]
        gru_scr = [(next(it), next(it)) for _ in range(gru_depth)]
        assert not list(it)  # all refs consumed (trace-time check)

        # ============== input BatchNorm (inference scale/shift) =============
        cur = x_ref[...] * bn_s[...] + bn_sh[...]            # (T, B, F) f32
        cur_bf = cur.astype(jnp.bfloat16)

        # ============== conv blocks: Conv1d('same') + folded BN + ReLU ======
        for l in range(conv_depth):
            w_ref, b_ref = conv_p[l]                         # w: (K, Cin, Cout) bf16
            xpad_ref = conv_pad[l]                           # (T + pad, B, Cin) f32
            cin = xpad_ref.shape[-1]
            cout = w_ref.shape[-1]
            # zero ONLY the pad rows, then write the body once
            if left > 0:
                xpad_ref[0:left] = jnp.zeros((left, B, cin), jnp.float32)
            if right > 0:
                xpad_ref[left + T:left + T + right] = jnp.zeros(
                    (right, B, cin), jnp.float32)
            xpad_ref[left:left + T] = cur
            xpad_bf = xpad_ref[...].astype(jnp.bfloat16)     # cast once, slice taps
            acc = jnp.zeros((T * B, cout), jnp.float32)
            for k in range(ker_size):                        # K static & small
                tap = xpad_bf[k * dilation:k * dilation + T].reshape(T * B, cin)
                acc = acc + jnp.dot(tap, w_ref[k],
                                    preferred_element_type=jnp.float32)
            cur = jnp.maximum(acc.reshape(T, B, cout) + b_ref[...], 0.0)
            cur_bf = cur.astype(jnp.bfloat16)

        # ============== bidirectional multi-layer GRU ========================
        for l in range(gru_depth):
            w_ih_cat, b_x_cat, whf, whb, bhnf, bhnb = gru_p[l]
            xp_ref, out_scr = gru_scr[l]                     # (T,B,6H) bf16, (T,B,2H) f32
            H = whf.shape[0]
            cin = w_ih_cat.shape[0]

            # -- fused hoisted input projection: ONE wide matmul for all 3
            #    gates of both directions; lane-dense 6H output.
            x2d = cur_bf.reshape(T * B, cin)
            xp = jnp.dot(x2d, w_ih_cat[...],
                         preferred_element_type=jnp.float32) + b_x_cat[...]
            xp_ref[...] = xp.reshape(T, B, 6 * H).astype(jnp.bfloat16)

            # loop-invariant recurrent weights/biases (loaded once)
            whf_v = whf[...]                                 # (H, 3H) bf16
            whb_v = whb[...]
            bhnf_v = bhnf[...]                               # (1, H) f32
            bhnb_v = bhnb[...]

            # -- sequential recurrence, fully unrolled (T small), directions
            #    interleaved so the two independent chains hide each other's
            #    MXU/EUP latency.  One recurrent matmul per direction per step.
            h_f = jnp.zeros((B, H), jnp.float32)
            h_b = jnp.zeros((B, H), jnp.float32)
            for i in range(T):
                tb = T - 1 - i
                xf = xp_ref[i].astype(jnp.float32)           # (B, 6H)
                xb = xp_ref[tb].astype(jnp.float32)
                hdot_f = jnp.dot(h_f.astype(jnp.bfloat16), whf_v,
                                 preferred_element_type=jnp.float32)  # (B, 3H)
                hdot_b = jnp.dot(h_b.astype(jnp.bfloat16), whb_v,
                                 preferred_element_type=jnp.float32)
                rz_f = jax.nn.sigmoid(xf[:, :2 * H] + hdot_f[:, :2 * H])
                rz_b = jax.nn.sigmoid(xb[:, 3 * H:5 * H] + hdot_b[:, :2 * H])
                n_f = jnp.tanh(xf[:, 2 * H:3 * H]
                               + rz_f[:, :H] * (hdot_f[:, 2 * H:] + bhnf_v))
                n_b = jnp.tanh(xb[:, 5 * H:]
                               + rz_b[:, :H] * (hdot_b[:, 2 * H:] + bhnb_v))
                z_f = rz_f[:, H:]
                z_b = rz_b[:, H:]
                h_f = (1.0 - z_f) * n_f + z_f * h_f
                h_b = (1.0 - z_b) * n_b + z_b * h_b
                out_scr[i, :, :H] = h_f                      # fwd half
                out_scr[tb, :, H:] = h_b                     # bwd half
            cur_bf = out_scr[...].astype(jnp.bfloat16)       # (T, B, 2H)

        # ============== linear head (single matmul) ==========================
        c_head = head_w.shape[0]
        x2d = cur_bf.reshape(T * B, c_head)
        logits = jnp.dot(x2d, head_w[...], preferred_element_type=jnp.float32)
        out_ref[...] = logits.reshape(T, B, out_ref.shape[-1]) + head_b[...]

    return kernel


# ----------------------------------------------------------------------------
# Parameter initialization (synthetic, deterministic, BN pre-folded,
# GRU gate/direction weights pre-concatenated)
# ----------------------------------------------------------------------------
def init_params(key, n_features, n_classes, conv_depth, ker_size, hidden_size,
                gru_depth, gru_hidden):
    eps = 1e-5

    def bn_fold(k, c):
        k1, k2, k3 = jax.random.split(k, 3)
        gamma = 1.0 + 0.1 * jax.random.normal(k1, (c,), jnp.float32)
        beta = 0.1 * jax.random.normal(k2, (c,), jnp.float32)
        mean = 0.1 * jax.random.normal(k3, (c,), jnp.float32)
        var = jnp.ones((c,), jnp.float32)
        scale = gamma / jnp.sqrt(var + eps)
        shift = beta - mean * scale
        return scale, shift

    params = {}
    key, kb = jax.random.split(key)
    s, sh = bn_fold(kb, n_features)
    params["bn_scale"] = s.reshape(1, 1, n_features)
    params["bn_shift"] = sh.reshape(1, 1, n_features)

    convs = []
    c_in = n_features
    for _ in range(conv_depth):
        key, kw, kbn = jax.random.split(key, 3)
        w = 0.2 * jax.random.normal(kw, (ker_size, c_in, hidden_size), jnp.float32)
        s, sh = bn_fold(kbn, hidden_size)
        # fold BN scale into the conv weight, BN shift becomes a bias
        convs.append({"w": (w * s[None, None, :]).astype(jnp.bfloat16),
                      "b": sh.reshape(1, 1, hidden_size)})
        c_in = hidden_size
    params["convs"] = convs

    gru = []
    i_size = c_in  # n_features if conv_depth == 0
    H = gru_hidden
    for _l in range(gru_depth):
        w_ih_dirs, b_x_dirs, whh_dirs, bhn_dirs = [], [], [], []
        for _d in range(2):  # forward, backward
            key, k1, k2, k3, k4 = jax.random.split(key, 5)
            w_ih = 0.2 * jax.random.normal(k1, (3, i_size, H), jnp.float32)
            w_hh = 0.2 * jax.random.normal(k2, (3, H, H), jnp.float32)
            b_ih = 0.1 * jax.random.normal(k3, (3, H), jnp.float32)
            b_hh = 0.1 * jax.random.normal(k4, (3, H), jnp.float32)
            # fold b_ih (all gates) + b_hh (r, z) into the hoisted projection
            # bias; b_hn must stay inside the r * (.) term.
            b_x = b_ih.at[0].add(b_hh[0]).at[1].add(b_hh[1])          # (3, H)
            w_ih_dirs.append(jnp.concatenate([w_ih[0], w_ih[1], w_ih[2]], axis=1))
            b_x_dirs.append(b_x.reshape(1, 3 * H))
            whh_dirs.append(jnp.concatenate([w_hh[0], w_hh[1], w_hh[2]],
                                            axis=1).astype(jnp.bfloat16))
            bhn_dirs.append(b_hh[2].reshape(1, H))
        gru.append({
            "w_ih_cat": jnp.concatenate(w_ih_dirs, axis=1).astype(jnp.bfloat16),
            "b_x_cat": jnp.concatenate(b_x_dirs, axis=1),             # (1, 6H)
            "w_hh_f": whh_dirs[0], "w_hh_b": whh_dirs[1],             # (H, 3H) bf16
            "b_hn_f": bhn_dirs[0], "b_hn_b": bhn_dirs[1],             # (1, H) f32
        })
        i_size = 2 * H
    params["gru"] = gru

    key, kw, kb2 = jax.random.split(key, 3)
    head_w = 0.2 * jax.random.normal(kw, (i_size, n_classes), jnp.float32)
    params["head_w"] = head_w.astype(jnp.bfloat16)                    # (Cin, n_classes)
    params["head_b"] = 0.1 * jax.random.normal(kb2, (1, 1, n_classes), jnp.float32)
    return params


# ----------------------------------------------------------------------------
# Forward pass: one fused pallas_call
# ----------------------------------------------------------------------------
def _full_spec(shape):
    ndim = len(shape)
    return pl.BlockSpec(tuple(shape), lambda *_: (0,) * ndim)


def _padded_vmem_bytes(shape, dtype):
    """Approximate VMEM footprint with (sublane, lane) tile padding."""
    itemsize = jnp.dtype(dtype).itemsize
    dims = list(shape) if shape else [1]
    dims[-1] = -(-dims[-1] // 128) * 128
    if len(dims) >= 2:
        sub = max(8, 8 * (4 // itemsize))
        dims[-2] = -(-dims[-2] // sub) * sub
    return math.prod(dims) * itemsize


def classifier_forward(x, params, *, ker_size, dilation):
    # x: (B, seq_len, n_features) as in the PyTorch module's forward
    B, T, _F = x.shape
    conv_depth = len(params["convs"])
    gru_depth = len(params["gru"])
    n_classes = params["head_b"].shape[-1]
    H = params["gru"][0]["w_hh_f"].shape[0] if gru_depth > 0 else 0

    x_tm = jnp.transpose(x, (1, 0, 2))  # time-major (T, B, F)

    # ---- flatten inputs in the exact order the kernel unpacks them ----------
    inputs = [x_tm, params["bn_scale"], params["bn_shift"]]
    for c in params["convs"]:
        inputs += [c["w"], c["b"]]
    for g in params["gru"]:
        inputs += [g["w_ih_cat"], g["b_x_cat"], g["w_hh_f"], g["w_hh_b"],
                   g["b_hn_f"], g["b_hn_b"]]
    inputs += [params["head_w"], params["head_b"]]

    # ---- VMEM scratch: padded conv buffers + fused GRU projection / output --
    total_pad = dilation * (ker_size - 1)
    scratch_specs, scratch_meta = [], []
    for c in params["convs"]:
        cin = c["w"].shape[1]
        scratch_specs.append(pltpu.VMEM((T + total_pad, B, cin), jnp.float32))
        scratch_meta.append(((T + total_pad, B, cin), jnp.float32))
    for _ in range(gru_depth):
        scratch_specs.append(pltpu.VMEM((T, B, 6 * H), jnp.bfloat16))  # fused xp
        scratch_meta.append(((T, B, 6 * H), jnp.bfloat16))
        scratch_specs.append(pltpu.VMEM((T, B, 2 * H), jnp.float32))   # fwd|bwd out
        scratch_meta.append(((T, B, 2 * H), jnp.float32))

    # ---- explicit VMEM budget (inputs + output + scratch, x2, + headroom) ---
    footprint = sum(_padded_vmem_bytes(a.shape, a.dtype) for a in inputs)
    footprint += _padded_vmem_bytes((T, B, n_classes), jnp.float32)
    footprint += sum(_padded_vmem_bytes(s, d) for s, d in scratch_meta)
    vmem_limit = int(min(max(2 * footprint + (8 << 20), 16 << 20), 56 << 20))

    kernel = make_fused_kernel(conv_depth=conv_depth, gru_depth=gru_depth,
                               ker_size=ker_size, dilation=dilation, T=T, B=B)

    out_tm = pl.pallas_call(
        kernel,
        out_shape=jax.ShapeDtypeStruct((T, B, n_classes), jnp.float32),
        grid=(1,),
        in_specs=[_full_spec(a.shape) for a in inputs],
        out_specs=_full_spec((T, B, n_classes)),
        scratch_shapes=scratch_specs,
        compiler_params=pltpu.CompilerParams(
            dimension_semantics=("arbitrary",),
            vmem_limit_bytes=vmem_limit),
    )(*inputs)

    # (T, B, C) -> (B, C, T), matching the PyTorch module's output layout
    return jnp.transpose(out_tm, (1, 2, 0))


# ----------------------------------------------------------------------------
if __name__ == "__main__":
    # small, forward-consistent config
    B, T = 8, 16
    n_features, n_classes = 8, 4
    conv_depth, ker_size, hidden_size, dilation = 2, 3, 32, 2
    gru_depth, gru_hidden = 2, 32

    key = jax.random.PRNGKey(0)
    key, kx = jax.random.split(key)
    x = jax.random.normal(kx, (B, T, n_features), jnp.float32)

    params = init_params(key, n_features, n_classes, conv_depth, ker_size,
                         hidden_size, gru_depth, gru_hidden)

    fwd = jax.jit(functools.partial(classifier_forward,
                                    ker_size=ker_size, dilation=dilation))
    out = fwd(x, params)
    out = jax.block_until_ready(out)

    assert out.shape == (B, n_classes, T), out.shape
    assert bool(jnp.all(jnp.isfinite(out)))
    print("KERNEL_OK")
</pallas_src>

<mosaic_0001>
module attributes {stable_mosaic.version = 11 : i64} {
  func.func @kernel(%arg0: i32, %arg1: memref<16x8x8xf32, #tpu.memory_space<vmem>>, %arg2: memref<1x1x8xf32, #tpu.memory_space<vmem>>, %arg3: memref<1x1x8xf32, #tpu.memory_space<vmem>>, %arg4: memref<3x8x32xbf16, #tpu.memory_space<vmem>>, %arg5: memref<1x1x32xf32, #tpu.memory_space<vmem>>, %arg6: memref<3x32x32xbf16, #tpu.memory_space<vmem>>, %arg7: memref<1x1x32xf32, #tpu.memory_space<vmem>>, %arg8: memref<32x192xbf16, #tpu.memory_space<vmem>>, %arg9: memref<1x192xf32, #tpu.memory_space<vmem>>, %arg10: memref<32x96xbf16, #tpu.memory_space<vmem>>, %arg11: memref<32x96xbf16, #tpu.memory_space<vmem>>, %arg12: memref<1x32xf32, #tpu.memory_space<vmem>>, %arg13: memref<1x32xf32, #tpu.memory_space<vmem>>, %arg14: memref<64x192xbf16, #tpu.memory_space<vmem>>, %arg15: memref<1x192xf32, #tpu.memory_space<vmem>>, %arg16: memref<32x96xbf16, #tpu.memory_space<vmem>>, %arg17: memref<32x96xbf16, #tpu.memory_space<vmem>>, %arg18: memref<1x32xf32, #tpu.memory_space<vmem>>, %arg19: memref<1x32xf32, #tpu.memory_space<vmem>>, %arg20: memref<64x4xbf16, #tpu.memory_space<vmem>>, %arg21: memref<1x1x4xf32, #tpu.memory_space<vmem>>, %arg22: memref<16x8x4xf32, #tpu.memory_space<vmem>>, %arg23: memref<20x8x8xf32, #tpu.memory_space<vmem>>, %arg24: memref<20x8x32xf32, #tpu.memory_space<vmem>>, %arg25: memref<16x8x192xbf16, #tpu.memory_space<vmem>>, %arg26: memref<16x8x64xf32, #tpu.memory_space<vmem>>, %arg27: memref<16x8x192xbf16, #tpu.memory_space<vmem>>, %arg28: memref<16x8x64xf32, #tpu.memory_space<vmem>>) attributes {dimension_semantics = [#tpu.dimension_semantics<arbitrary>], iteration_bounds = array<i64: 1>, scalar_prefetch = 0 : i64, scratch_operands = 6 : i64, tpu.core_type = #tpu.core_type<tc>, window_params = [{pipeline_mode = #tpu.pipeline_mode<synchronous>, transform_indices = @transform_0, window_bounds = array<i64: 16, 8, 8>}, {pipeline_mode = #tpu.pipeline_mode<synchronous>, transform_indices = @transform_1, window_bounds = array<i64: 1, 1, 8>}, {pipeline_mode = #tpu.pipeline_mode<synchronous>, transform_indices = @transform_2, window_bounds = array<i64: 1, 1, 8>}, {pipeline_mode = #tpu.pipeline_mode<synchronous>, transform_indices = @transform_3, window_bounds = array<i64: 3, 8, 32>}, {pipeline_mode = #tpu.pipeline_mode<synchronous>, transform_indices = @transform_4, window_bounds = array<i64: 1, 1, 32>}, {pipeline_mode = #tpu.pipeline_mode<synchronous>, transform_indices = @transform_5, window_bounds = array<i64: 3, 32, 32>}, {pipeline_mode = #tpu.pipeline_mode<synchronous>, transform_indices = @transform_6, window_bounds = array<i64: 1, 1, 32>}, {pipeline_mode = #tpu.pipeline_mode<synchronous>, transform_indices = @transform_7, window_bounds = array<i64: 32, 192>}, {pipeline_mode = #tpu.pipeline_mode<synchronous>, transform_indices = @transform_8, window_bounds = array<i64: 1, 192>}, {pipeline_mode = #tpu.pipeline_mode<synchronous>, transform_indices = @transform_9, window_bounds = array<i64: 32, 96>}, {pipeline_mode = #tpu.pipeline_mode<synchronous>, transform_indices = @transform_10, window_bounds = array<i64: 32, 96>}, {pipeline_mode = #tpu.pipeline_mode<synchronous>, transform_indices = @transform_11, window_bounds = array<i64: 1, 32>}, {pipeline_mode = #tpu.pipeline_mode<synchronous>, transform_indices = @transform_12, window_bounds = array<i64: 1, 32>}, {pipeline_mode = #tpu.pipeline_mode<synchronous>, transform_indices = @transform_13, window_bounds = array<i64: 64, 192>}, {pipeline_mode = #tpu.pipeline_mode<synchronous>, transform_indices = @transform_14, window_bounds = array<i64: 1, 192>}, {pipeline_mode = #tpu.pipeline_mode<synchronous>, transform_indices = @transform_15, window_bounds = array<i64: 32, 96>}, {pipeline_mode = #tpu.pipeline_mode<synchronous>, transform_indices = @transform_16, window_bounds = array<i64: 32, 96>}, {pipeline_mode = #tpu.pipeline_mode<synchronous>, transform_indices = @transform_17, window_bounds = array<i64: 1, 32>}, {pipeline_mode = #tpu.pipeline_mode<synchronous>, transform_indices = @transform_18, window_bounds = array<i64: 1, 32>}, {pipeline_mode = #tpu.pipeline_mode<synchronous>, transform_indices = @transform_19, window_bounds = array<i64: 64, 4>}, {pipeline_mode = #tpu.pipeline_mode<synchronous>, transform_indices = @transform_20, window_bounds = array<i64: 1, 1, 4>}, {pipeline_mode = #tpu.pipeline_mode<synchronous>, transform_indices = @transform_21, window_bounds = array<i64: 16, 8, 4>}]} {
    %c0 = arith.constant 0 : index
    %c0_0 = arith.constant 0 : index
    %c0_1 = arith.constant 0 : index
    %0 = vector.load %arg1[%c0, %c0_0, %c0_1] : memref<16x8x8xf32, #tpu.memory_space<vmem>>, vector<16x8x8xf32>
    %c0_2 = arith.constant 0 : index
    %c0_3 = arith.constant 0 : index
    %c0_4 = arith.constant 0 : index
    %1 = vector.load %arg2[%c0_2, %c0_3, %c0_4] : memref<1x1x8xf32, #tpu.memory_space<vmem>>, vector<1x1x8xf32>
    %2 = vector.broadcast %1 : vector<1x1x8xf32> to vector<16x8x8xf32>
    %3 = arith.mulf %0, %2 : vector<16x8x8xf32>
    %c0_5 = arith.constant 0 : index
    %c0_6 = arith.constant 0 : index
    %c0_7 = arith.constant 0 : index
    %4 = vector.load %arg3[%c0_5, %c0_6, %c0_7] : memref<1x1x8xf32, #tpu.memory_space<vmem>>, vector<1x1x8xf32>
    %5 = vector.broadcast %4 : vector<1x1x8xf32> to vector<16x8x8xf32>
    %6 = arith.addf %3, %5 : vector<16x8x8xf32>
    %cst = arith.constant 0.000000e+00 : f32
    %7 = vector.broadcast %cst : f32 to vector<2x8x8xf32>
    %c0_8 = arith.constant 0 : index
    %c0_9 = arith.constant 0 : index
    %c0_10 = arith.constant 0 : index
    %8 = vector.load %arg23[%c0_8, %c0_9, %c0_10] : memref<20x8x8xf32, #tpu.memory_space<vmem>>, vector<2x8x8xf32>
    tpu.vector_store %arg23[%c0_8, %c0_9, %c0_10], %7 {strides = array<i32>} : memref<20x8x8xf32, #tpu.memory_space<vmem>>, vector<2x8x8xf32>,
    %cst_11 = arith.constant 0.000000e+00 : f32
    %9 = vector.broadcast %cst_11 : f32 to vector<2x8x8xf32>
    %c18 = arith.constant 18 : index
    %c0_12 = arith.constant 0 : index
    %c0_13 = arith.constant 0 : index
    %10 = vector.load %arg23[%c18, %c0_12, %c0_13] : memref<20x8x8xf32, #tpu.memory_space<vmem>>, vector<2x8x8xf32>
    tpu.vector_store %arg23[%c18, %c0_12, %c0_13], %9 {strides = array<i32>} : memref<20x8x8xf32, #tpu.memory_space<vmem>>, vector<2x8x8xf32>,
    %c2 = arith.constant 2 : index
    %c0_14 = arith.constant 0 : index
    %c0_15 = arith.constant 0 : index
    %11 = vector.load %arg23[%c2, %c0_14, %c0_15] : memref<20x8x8xf32, #tpu.memory_space<vmem>>, vector<16x8x8xf32>
    tpu.vector_store %arg23[%c2, %c0_14, %c0_15], %6 {strides = array<i32>} : memref<20x8x8xf32, #tpu.memory_space<vmem>>, vector<16x8x8xf32>,
    %c0_16 = arith.constant 0 : index
    %c0_17 = arith.constant 0 : index
    %c0_18 = arith.constant 0 : index
    %12 = vector.load %arg23[%c0_16, %c0_17, %c0_18] : memref<20x8x8xf32, #tpu.memory_space<vmem>>, vector<20x8x8xf32>
    %13 = arith.truncf %12 : vector<20x8x8xf32> to vector<20x8x8xbf16>
    %cst_19 = arith.constant 0.000000e+00 : f32
    %14 = vector.broadcast %cst_19 : f32 to vector<128x32xf32>
    %15 = vector.extract_strided_slice %13 {offsets = [0, 0, 0], sizes = [16, 8, 8], strides = [1, 1, 1]} : vector<20x8x8xbf16> to vector<16x8x8xbf16>
    %16 = vector.shape_cast %15 : vector<16x8x8xbf16> to vector<128x8xbf16>
    %c0_20 = arith.constant 0 : index
    %c0_21 = arith.constant 0 : index
    %c0_22 = arith.constant 0 : index
    %17 = vector.load %arg4[%c0_20, %c0_21, %c0_22] : memref<3x8x32xbf16, #tpu.memory_space<vmem>>, vector<1x8x32xbf16>
    %18 = vector.shape_cast %17 : vector<1x8x32xbf16> to vector<8x32xbf16>
    %cst_23 = arith.constant dense<0.000000e+00> : vector<128x32xf32>
    %19 = tpu.matmul %16, %18, %cst_23 {dimension_numbers = #tpu.dot_dimension_numbers<[1], [0], [0], [1], [0, 0, 1, 1], [], []>} : vector<128x8xbf16>, vector<8x32xbf16>, vector<128x32xf32> -> vector<128x32xf32>
    %20 = arith.addf %14, %19 : vector<128x32xf32>
    %21 = vector.extract_strided_slice %13 {offsets = [2, 0, 0], sizes = [16, 8, 8], strides = [1, 1, 1]} : vector<20x8x8xbf16> to vector<16x8x8xbf16>
    %22 = vector.shape_cast %21 : vector<16x8x8xbf16> to vector<128x8xbf16>
    %c1 = arith.constant 1 : index
    %c0_24 = arith.constant 0 : index
    %c0_25 = arith.constant 0 : index
    %23 = vector.load %arg4[%c1, %c0_24, %c0_25] : memref<3x8x32xbf16, #tpu.memory_space<vmem>>, vector<1x8x32xbf16>
    %24 = vector.shape_cast %23 : vector<1x8x32xbf16> to vector<8x32xbf16>
    %cst_26 = arith.constant dense<0.000000e+00> : vector<128x32xf32>
    %25 = tpu.matmul %22, %24, %cst_26 {dimension_numbers = #tpu.dot_dimension_numbers<[1], [0], [0], [1], [0, 0, 1, 1], [], []>} : vector<128x8xbf16>, vector<8x32xbf16>, vector<128x32xf32> -> vector<128x32xf32>
    %26 = arith.addf %20, %25 : vector<128x32xf32>
    %27 = vector.extract_strided_slice %13 {offsets = [4, 0, 0], sizes = [16, 8, 8], strides = [1, 1, 1]} : vector<20x8x8xbf16> to vector<16x8x8xbf16>
    %28 = vector.shape_cast %27 : vector<16x8x8xbf16> to vector<128x8xbf16>
    %c2_27 = arith.constant 2 : index
    %c0_28 = arith.constant 0 : index
    %c0_29 = arith.constant 0 : index
    %29 = vector.load %arg4[%c2_27, %c0_28, %c0_29] : memref<3x8x32xbf16, #tpu.memory_space<vmem>>, vector<1x8x32xbf16>
    %30 = vector.shape_cast %29 : vector<1x8x32xbf16> to vector<8x32xbf16>
    %cst_30 = arith.constant dense<0.000000e+00> : vector<128x32xf32>
    %31 = tpu.matmul %28, %30, %cst_30 {dimension_numbers = #tpu.dot_dimension_numbers<[1], [0], [0], [1], [0, 0, 1, 1], [], []>} : vector<128x8xbf16>, vector<8x32xbf16>, vector<128x32xf32> -> vector<128x32xf32>
    %32 = arith.addf %26, %31 : vector<128x32xf32>
    %33 = vector.shape_cast %32 : vector<128x32xf32> to vector<16x8x32xf32>
    %c0_31 = arith.constant 0 : index
    %c0_32 = arith.constant 0 : index
    %c0_33 = arith.constant 0 : index
    %34 = vector.load %arg5[%c0_31, %c0_32, %c0_33] : memref<1x1x32xf32, #tpu.memory_space<vmem>>, vector<1x1x32xf32>
    %35 = vector.broadcast %34 : vector<1x1x32xf32> to vector<16x8x32xf32>
    %36 = arith.addf %33, %35 : vector<16x8x32xf32>
    %cst_34 = arith.constant 0.000000e+00 : f32
    %37 = vector.broadcast %cst_34 : f32 to vector<16x8x32xf32>
    %38 = arith.maximumf %36, %37 : vector<16x8x32xf32>
    %cst_35 = arith.constant 0.000000e+00 : f32
    %39 = vector.broadcast %cst_35 : f32 to vector<2x8x32xf32>
    %c0_36 = arith.constant 0 : index
    %c0_37 = arith.constant 0 : index
    %c0_38 = arith.constant 0 : index
    %40 = vector.load %arg24[%c0_36, %c0_37, %c0_38] : memref<20x8x32xf32, #tpu.memory_space<vmem>>, vector<2x8x32xf32>
    tpu.vector_store %arg24[%c0_36, %c0_37, %c0_38], %39 {strides = array<i32>} : memref<20x8x32xf32, #tpu.memory_space<vmem>>, vector<2x8x32xf32>,
    %cst_39 = arith.constant 0.000000e+00 : f32
    %41 = vector.broadcast %cst_39 : f32 to vector<2x8x32xf32>
    %c18_40 = arith.constant 18 : index
    %c0_41 = arith.constant 0 : index
    %c0_42 = arith.constant 0 : index
    %42 = vector.load %arg24[%c18_40, %c0_41, %c0_42] : memref<20x8x32xf32, #tpu.memory_space<vmem>>, vector<2x8x32xf32>
    tpu.vector_store %arg24[%c18_40, %c0_41, %c0_42], %41 {strides = array<i32>} : memref<20x8x32xf32, #tpu.memory_space<vmem>>, vector<2x8x32xf32>,
    %c2_43 = arith.constant 2 : index
    %c0_44 = arith.constant 0 : index
    %c0_45 = arith.constant 0 : index
    %43 = vector.load %arg24[%c2_43, %c0_44, %c0_45] : memref<20x8x32xf32, #tpu.memory_space<vmem>>, vector<16x8x32xf32>
    tpu.vector_store %arg24[%c2_43, %c0_44, %c0_45], %38 {strides = array<i32>} : memref<20x8x32xf32, #tpu.memory_space<vmem>>, vector<16x8x32xf32>,
    %c0_46 = arith.constant 0 : index
    %c0_47 = arith.constant 0 : index
    %c0_48 = arith.constant 0 : index
    %44 = vector.load %arg24[%c0_46, %c0_47, %c0_48] : memref<20x8x32xf32, #tpu.memory_space<vmem>>, vector<20x8x32xf32>
    %45 = arith.truncf %44 : vector<20x8x32xf32> to vector<20x8x32xbf16>
    %cst_49 = arith.constant 0.000000e+00 : f32
    %46 = vector.broadcast %cst_49 : f32 to vector<128x32xf32>
    %47 = vector.extract_strided_slice %45 {offsets = [0, 0, 0], sizes = [16, 8, 32], strides = [1, 1, 1]} : vector<20x8x32xbf16> to vector<16x8x32xbf16>
    %48 = vector.shape_cast %47 : vector<16x8x32xbf16> to vector<128x32xbf16>
    %c0_50 = arith.constant 0 : index
    %c0_51 = arith.constant 0 : index
    %c0_52 = arith.constant 0 : index
    %49 = vector.load %arg6[%c0_50, %c0_51, %c0_52] : memref<3x32x32xbf16, #tpu.memory_space<vmem>>, vector<1x32x32xbf16>
    %50 = vector.shape_cast %49 : vector<1x32x32xbf16> to vector<32x32xbf16>
    %cst_53 = arith.constant dense<0.000000e+00> : vector<128x32xf32>
    %51 = tpu.matmul %48, %50, %cst_53 {dimension_numbers = #tpu.dot_dimension_numbers<[1], [0], [0], [1], [0, 0, 1, 1], [], []>} : vector<128x32xbf16>, vector<32x32xbf16>, vector<128x32xf32> -> vector<128x32xf32>
    %52 = arith.addf %46, %51 : vector<128x32xf32>
    %53 = vector.extract_strided_slice %45 {offsets = [2, 0, 0], sizes = [16, 8, 32], strides = [1, 1, 1]} : vector<20x8x32xbf16> to vector<16x8x32xbf16>
    %54 = vector.shape_cast %53 : vector<16x8x32xbf16> to vector<128x32xbf16>
    %c1_54 = arith.constant 1 : index
    %c0_55 = arith.constant 0 : index
    %c0_56 = arith.constant 0 : index
    %55 = vector.load %arg6[%c1_54, %c0_55, %c0_56] : memref<3x32x32xbf16, #tpu.memory_space<vmem>>, vector<1x32x32xbf16>
    %56 = vector.shape_cast %55 : vector<1x32x32xbf16> to vector<32x32xbf16>
    %cst_57 = arith.constant dense<0.000000e+00> : vector<128x32xf32>
    %57 = tpu.matmul %54, %56, %cst_57 {dimension_numbers = #tpu.dot_dimension_numbers<[1], [0], [0], [1], [0, 0, 1, 1], [], []>} : vector<128x32xbf16>, vector<32x32xbf16>, vector<128x32xf32> -> vector<128x32xf32>
    %58 = arith.addf %52, %57 : vector<128x32xf32>
    %59 = vector.extract_strided_slice %45 {offsets = [4, 0, 0], sizes = [16, 8, 32], strides = [1, 1, 1]} : vector<20x8x32xbf16> to vector<16x8x32xbf16>
    %60 = vector.shape_cast %59 : vector<16x8x32xbf16> to vector<128x32xbf16>
    %c2_58 = arith.constant 2 : index
    %c0_59 = arith.constant 0 : index
    %c0_60 = arith.constant 0 : index
    %61 = vector.load %arg6[%c2_58, %c0_59, %c0_60] : memref<3x32x32xbf16, #tpu.memory_space<vmem>>, vector<1x32x32xbf16>
    %62 = vector.shape_cast %61 : vector<1x32x32xbf16> to vector<32x32xbf16>
    %cst_61 = arith.constant dense<0.000000e+00> : vector<128x32xf32>
    %63 = tpu.matmul %60, %62, %cst_61 {dimension_numbers = #tpu.dot_dimension_numbers<[1], [0], [0], [1], [0, 0, 1, 1], [], []>} : vector<128x32xbf16>, vector<32x32xbf16>, vector<128x32xf32> -> vector<128x32xf32>
    %64 = arith.addf %58, %63 : vector<128x32xf32>
    %65 = vector.shape_cast %64 : vector<128x32xf32> to vector<16x8x32xf32>
    %c0_62 = arith.constant 0 : index
    %c0_63 = arith.constant 0 : index
    %c0_64 = arith.constant 0 : index
    %66 = vector.load %arg7[%c0_62, %c0_63, %c0_64] : memref<1x1x32xf32, #tpu.memory_space<vmem>>, vector<1x1x32xf32>
    %67 = vector.broadcast %66 : vector<1x1x32xf32> to vector<16x8x32xf32>
    %68 = arith.addf %65, %67 : vector<16x8x32xf32>
    %cst_65 = arith.constant 0.000000e+00 : f32
    %69 = vector.broadcast %cst_65 : f32 to vector<16x8x32xf32>
    %70 = arith.maximumf %68, %69 : vector<16x8x32xf32>
    %71 = arith.truncf %70 : vector<16x8x32xf32> to vector<16x8x32xbf16>
    %72 = vector.shape_cast %71 : vector<16x8x32xbf16> to vector<128x32xbf16>
    %c0_66 = arith.constant 0 : index
    %c0_67 = arith.constant 0 : index
    %73 = vector.load %arg8[%c0_66, %c0_67] : memref<32x192xbf16, #tpu.memory_space<vmem>>, vector<32x192xbf16>
    %cst_68 = arith.constant dense<0.000000e+00> : vector<128x192xf32>
    %74 = tpu.matmul %72, %73, %cst_68 {dimension_numbers = #tpu.dot_dimension_numbers<[1], [0], [0], [1], [0, 0, 1, 1], [], []>} : vector<128x32xbf16>, vector<32x192xbf16>, vector<128x192xf32> -> vector<128x192xf32>
    %c0_69 = arith.constant 0 : index
    %c0_70 = arith.constant 0 : index
    %75 = vector.load %arg9[%c0_69, %c0_70] : memref<1x192xf32, #tpu.memory_space<vmem>>, vector<1x192xf32>
    %76 = vector.broadcast %75 : vector<1x192xf32> to vector<128x192xf32>
    %77 = arith.addf %74, %76 : vector<128x192xf32>
    %78 = vector.shape_cast %77 : vector<128x192xf32> to vector<16x8x192xf32>
    %79 = arith.truncf %78 : vector<16x8x192xf32> to vector<16x8x192xbf16>
    %c0_71 = arith.constant 0 : index
    %c0_72 = arith.constant 0 : index
    %c0_73 = arith.constant 0 : index
    %80 = vector.load %arg25[%c0_71, %c0_72, %c0_73] : memref<16x8x192xbf16, #tpu.memory_space<vmem>>, vector<16x8x192xbf16>
    tpu.vector_store %arg25[%c0_71, %c0_72, %c0_73], %79 {strides = array<i32>} : memref<16x8x192xbf16, #tpu.memory_space<vmem>>, vector<16x8x192xbf16>,
    %c0_74 = arith.constant 0 : index
    %c0_75 = arith.constant 0 : index
    %81 = vector.load %arg10[%c0_74, %c0_75] : memref<32x96xbf16, #tpu.memory_space<vmem>>, vector<32x96xbf16>
    %c0_76 = arith.constant 0 : index
    %c0_77 = arith.constant 0 : index
    %82 = vector.load %arg11[%c0_76, %c0_77] : memref<32x96xbf16, #tpu.memory_space<vmem>>, vector<32x96xbf16>
    %c0_78 = arith.constant 0 : index
    %c0_79 = arith.constant 0 : index
    %83 = vector.load %arg12[%c0_78, %c0_79] : memref<1x32xf32, #tpu.memory_space<vmem>>, vector<1x32xf32>
    %c0_80 = arith.constant 0 : index
    %c0_81 = arith.constant 0 : index
    %84 = vector.load %arg13[%c0_80, %c0_81] : memref<1x32xf32, #tpu.memory_space<vmem>>, vector<1x32xf32>
    %cst_82 = arith.constant 0.000000e+00 : f32
    %85 = vector.broadcast %cst_82 : f32 to vector<8x32xf32>
    %cst_83 = arith.constant 0.000000e+00 : f32
    %86 = vector.broadcast %cst_83 : f32 to vector<8x32xf32>
    %c0_84 = arith.constant 0 : index
    %c0_85 = arith.constant 0 : index
    %c0_86 = arith.constant 0 : index
    %87 = vector.load %arg25[%c0_84, %c0_85, %c0_86] : memref<16x8x192xbf16, #tpu.memory_space<vmem>>, vector<1x8x192xbf16>
    %88 = vector.shape_cast %87 : vector<1x8x192xbf16> to vector<8x192xbf16>
    %89 = arith.extf %88 : vector<8x192xbf16> to vector<8x192xf32>
    %c15 = arith.constant 15 : index
    %c0_87 = arith.constant 0 : index
    %c0_88 = arith.constant 0 : index
    %90 = vector.load %arg25[%c15, %c0_87, %c0_88] : memref<16x8x192xbf16, #tpu.memory_space<vmem>>, vector<1x8x192xbf16>
    %91 = vector.shape_cast %90 : vector<1x8x192xbf16> to vector<8x192xbf16>
    %92 = arith.extf %91 : vector<8x192xbf16> to vector<8x192xf32>
    %93 = arith.truncf %85 : vector<8x32xf32> to vector<8x32xbf16>
    %cst_89 = arith.constant dense<0.000000e+00> : vector<8x96xf32>
    %94 = tpu.matmul %93, %81, %cst_89 {dimension_numbers = #tpu.dot_dimension_numbers<[1], [0], [0], [1], [0, 0, 1, 1], [], []>} : vector<8x32xbf16>, vector<32x96xbf16>, vector<8x96xf32> -> vector<8x96xf32>
    %95 = arith.truncf %86 : vector<8x32xf32> to vector<8x32xbf16>
    %cst_90 = arith.constant dense<0.000000e+00> : vector<8x96xf32>
    %96 = tpu.matmul %95, %82, %cst_90 {dimension_numbers = #tpu.dot_dimension_numbers<[1], [0], [0], [1], [0, 0, 1, 1], [], []>} : vector<8x32xbf16>, vector<32x96xbf16>, vector<8x96xf32> -> vector<8x96xf32>
    %97 = vector.extract_strided_slice %89 {offsets = [0, 0], sizes = [8, 64], strides = [1, 1]} : vector<8x192xf32> to vector<8x64xf32>
    %98 = vector.extract_strided_slice %94 {offsets = [0, 0], sizes = [8, 64], strides = [1, 1]} : vector<8x96xf32> to vector<8x64xf32>
    %99 = arith.addf %97, %98 : vector<8x64xf32>
    %100 = arith.negf %99 : vector<8x64xf32>
    %101 = math.exp %100 : vector<8x64xf32>
    %cst_91 = arith.constant 1.000000e+00 : f32
    %102 = vector.broadcast %cst_91 : f32 to vector<8x64xf32>
    %103 = arith.addf %102, %101 : vector<8x64xf32>
    %104 = arith.divf %102, %103 : vector<8x64xf32>
    %105 = vector.extract_strided_slice %92 {offsets = [0, 96], sizes = [8, 64], strides = [1, 1]} : vector<8x192xf32> to vector<8x64xf32>
    %106 = vector.extract_strided_slice %96 {offsets = [0, 0], sizes = [8, 64], strides = [1, 1]} : vector<8x96xf32> to vector<8x64xf32>
    %107 = arith.addf %105, %106 : vector<8x64xf32>
    %108 = arith.negf %107 : vector<8x64xf32>
    %109 = math.exp %108 : vector<8x64xf32>
    %cst_92 = arith.constant 1.000000e+00 : f32
    %110 = vector.broadcast %cst_92 : f32 to vector<8x64xf32>
    %111 = arith.addf %110, %109 : vector<8x64xf32>
    %112 = arith.divf %110, %111 : vector<8x64xf32>
    %113 = vector.extract_strided_slice %89 {offsets = [0, 64], sizes = [8, 32], strides = [1, 1]} : vector<8x192xf32> to vector<8x32xf32>
    %114 = vector.extract_strided_slice %104 {offsets = [0, 0], sizes = [8, 32], strides = [1, 1]} : vector<8x64xf32> to vector<8x32xf32>
    %115 = vector.extract_strided_slice %94 {offsets = [0, 64], sizes = [8, 32], strides = [1, 1]} : vector<8x96xf32> to vector<8x32xf32>
    %116 = vector.broadcast %83 : vector<1x32xf32> to vector<8x32xf32>
    %117 = arith.addf %115, %116 : vector<8x32xf32>
    %118 = arith.mulf %114, %117 : vector<8x32xf32>
    %119 = arith.addf %113, %118 : vector<8x32xf32>
    %120 = math.tanh %119 : vector<8x32xf32>
    %121 = vector.extract_strided_slice %92 {offsets = [0, 160], sizes = [8, 32], strides = [1, 1]} : vector<8x192xf32> to vector<8x32xf32>
    %122 = vector.extract_strided_slice %112 {offsets = [0, 0], sizes = [8, 32], strides = [1, 1]} : vector<8x64xf32> to vector<8x32xf32>
    %123 = vector.extract_strided_slice %96 {offsets = [0, 64], sizes = [8, 32], strides = [1, 1]} : vector<8x96xf32> to vector<8x32xf32>
    %124 = vector.broadcast %84 : vector<1x32xf32> to vector<8x32xf32>
    %125 = arith.addf %123, %124 : vector<8x32xf32>
    %126 = arith.mulf %122, %125 : vector<8x32xf32>
    %127 = arith.addf %121, %126 : vector<8x32xf32>
    %128 = math.tanh %127 : vector<8x32xf32>
    %129 = vector.extract_strided_slice %104 {offsets = [0, 32], sizes = [8, 32], strides = [1, 1]} : vector<8x64xf32> to vector<8x32xf32>
    %130 = vector.extract_strided_slice %112 {offsets = [0, 32], sizes = [8, 32], strides = [1, 1]} : vector<8x64xf32> to vector<8x32xf32>
    %cst_93 = arith.constant 1.000000e+00 : f32
    %131 = vector.broadcast %cst_93 : f32 to vector<8x32xf32>
    %132 = arith.subf %131, %129 : vector<8x32xf32>
    %133 = arith.mulf %132, %120 : vector<8x32xf32>
    %134 = arith.mulf %129, %85 : vector<8x32xf32>
    %135 = arith.addf %133, %134 : vector<8x32xf32>
    %cst_94 = arith.constant 1.000000e+00 : f32
    %136 = vector.broadcast %cst_94 : f32 to vector<8x32xf32>
    %137 = arith.subf %136, %130 : vector<8x32xf32>
    %138 = arith.mulf %137, %128 : vector<8x32xf32>
    %139 = arith.mulf %130, %86 : vector<8x32xf32>
    %140 = arith.addf %138, %139 : vector<8x32xf32>
    %c0_95 = arith.constant 0 : index
    %c0_96 = arith.constant 0 : index
    %c0_97 = arith.constant 0 : index
    %141 = vector.load %arg26[%c0_95, %c0_96, %c0_97] : memref<16x8x64xf32, #tpu.memory_space<vmem>>, vector<1x8x32xf32>
    %142 = vector.shape_cast %141 : vector<1x8x32xf32> to vector<8x32xf32>
    %143 = vector.shape_cast %135 : vector<8x32xf32> to vector<1x8x32xf32>
    tpu.vector_store %arg26[%c0_95, %c0_96, %c0_97], %143 {strides = array<i32>} : memref<16x8x64xf32, #tpu.memory_space<vmem>>, vector<1x8x32xf32>,
    %c15_98 = arith.constant 15 : index
    %c0_99 = arith.constant 0 : index
    %c32 = arith.constant 32 : index
    %144 = vector.load %arg26[%c15_98, %c0_99, %c32] : memref<16x8x64xf32, #tpu.memory_space<vmem>>, vector<1x8x32xf32>
    %145 = vector.shape_cast %144 : vector<1x8x32xf32> to vector<8x32xf32>
    %146 = vector.shape_cast %140 : vector<8x32xf32> to vector<1x8x32xf32>
    tpu.vector_store %arg26[%c15_98, %c0_99, %c32], %146 {strides = array<i32>} : memref<16x8x64xf32, #tpu.memory_space<vmem>>, vector<1x8x32xf32>,
    %c1_100 = arith.constant 1 : index
    %c0_101 = arith.constant 0 : index
    %c0_102 = arith.constant 0 : index
    %147 = vector.load %arg25[%c1_100, %c0_101, %c0_102] : memref<16x8x192xbf16, #tpu.memory_space<vmem>>, vector<1x8x192xbf16>
    %148 = vector.shape_cast %147 : vector<1x8x192xbf16> to vector<8x192xbf16>
    %149 = arith.extf %148 : vector<8x192xbf16> to vector<8x192xf32>
    %c14 = arith.constant 14 : index
    %c0_103 = arith.constant 0 : index
    %c0_104 = arith.constant 0 : index
    %150 = vector.load %arg25[%c14, %c0_103, %c0_104] : memref<16x8x192xbf16, #tpu.memory_space<vmem>>, vector<1x8x192xbf16>
    %151 = vector.shape_cast %150 : vector<1x8x192xbf16> to vector<8x192xbf16>
    %152 = arith.extf %151 : vector<8x192xbf16> to vector<8x192xf32>
    %153 = arith.truncf %135 : vector<8x32xf32> to vector<8x32xbf16>
    %cst_105 = arith.constant dense<0.000000e+00> : vector<8x96xf32>
    %154 = tpu.matmul %153, %81, %cst_105 {dimension_numbers = #tpu.dot_dimension_numbers<[1], [0], [0], [1], [0, 0, 1, 1], [], []>} : vector<8x32xbf16>, vector<32x96xbf16>, vector<8x96xf32> -> vector<8x96xf32>
    %155 = arith.truncf %140 : vector<8x32xf32> to vector<8x32xbf16>
    %cst_106 = arith.constant dense<0.000000e+00> : vector<8x96xf32>
    %156 = tpu.matmul %155, %82, %cst_106 {dimension_numbers = #tpu.dot_dimension_numbers<[1], [0], [0], [1], [0, 0, 1, 1], [], []>} : vector<8x32xbf16>, vector<32x96xbf16>, vector<8x96xf32> -> vector<8x96xf32>
    %157 = vector.extract_strided_slice %149 {offsets = [0, 0], sizes = [8, 64], strides = [1, 1]} : vector<8x192xf32> to vector<8x64xf32>
    %158 = vector.extract_strided_slice %154 {offsets = [0, 0], sizes = [8, 64], strides = [1, 1]} : vector<8x96xf32> to vector<8x64xf32>
    %159 = arith.addf %157, %158 : vector<8x64xf32>
    %160 = arith.negf %159 : vector<8x64xf32>
    %161 = math.exp %160 : vector<8x64xf32>
    %cst_107 = arith.constant 1.000000e+00 : f32
    %162 = vector.broadcast %cst_107 : f32 to vector<8x64xf32>
    %163 = arith.addf %162, %161 : vector<8x64xf32>
    %164 = arith.divf %162, %163 : vector<8x64xf32>
    %165 = vector.extract_strided_slice %152 {offsets = [0, 96], sizes = [8, 64], strides = [1, 1]} : vector<8x192xf32> to vector<8x64xf32>
    %166 = vector.extract_strided_slice %156 {offsets = [0, 0], sizes = [8, 64], strides = [1, 1]} : vector<8x96xf32> to vector<8x64xf32>
    %167 = arith.addf %165, %166 : vector<8x64xf32>
    %168 = arith.negf %167 : vector<8x64xf32>
    %169 = math.exp %168 : vector<8x64xf32>
    %cst_108 = arith.constant 1.000000e+00 : f32
    %170 = vector.broadcast %cst_108 : f32 to vector<8x64xf32>
    %171 = arith.addf %170, %169 : vector<8x64xf32>
    %172 = arith.divf %170, %171 : vector<8x64xf32>
    %173 = vector.extract_strided_slice %149 {offsets = [0, 64], sizes = [8, 32], strides = [1, 1]} : vector<8x192xf32> to vector<8x32xf32>
    %174 = vector.extract_strided_slice %164 {offsets = [0, 0], sizes = [8, 32], strides = [1, 1]} : vector<8x64xf32> to vector<8x32xf32>
    %175 = vector.extract_strided_slice %154 {offsets = [0, 64], sizes = [8, 32], strides = [1, 1]} : vector<8x96xf32> to vector<8x32xf32>
    %176 = vector.broadcast %83 : vector<1x32xf32> to vector<8x32xf32>
    %177 = arith.addf %175, %176 : vector<8x32xf32>
    %178 = arith.mulf %174, %177 : vector<8x32xf32>
    %179 = arith.addf %173, %178 : vector<8x32xf32>
    %180 = math.tanh %179 : vector<8x32xf32>
    %181 = vector.extract_strided_slice %152 {offsets = [0, 160], sizes = [8, 32], strides = [1, 1]} : vector<8x192xf32> to vector<8x32xf32>
    %182 = vector.extract_strided_slice %172 {offsets = [0, 0], sizes = [8, 32], strides = [1, 1]} : vector<8x64xf32> to vector<8x32xf32>
    %183 = vector.extract_strided_slice %156 {offsets = [0, 64], sizes = [8, 32], strides = [1, 1]} : vector<8x96xf32> to vector<8x32xf32>
    %184 = vector.broadcast %84 : vector<1x32xf32> to vector<8x32xf32>
    %185 = arith.addf %183, %184 : vector<8x32xf32>
    %186 = arith.mulf %182, %185 : vector<8x32xf32>
    %187 = arith.addf %181, %186 : vector<8x32xf32>
    %188 = math.tanh %187 : vector<8x32xf32>
    %189 = vector.extract_strided_slice %164 {offsets = [0, 32], sizes = [8, 32], strides = [1, 1]} : vector<8x64xf32> to vector<8x32xf32>
    %190 = vector.extract_strided_slice %172 {offsets = [0, 32], sizes = [8, 32], strides = [1, 1]} : vector<8x64xf32> to vector<8x32xf32>
    %cst_109 = arith.constant 1.000000e+00 : f32
    %191 = vector.broadcast %cst_109 : f32 to vector<8x32xf32>
    %192 = arith.subf %191, %189 : vector<8x32xf32>
    %193 = arith.mulf %192, %180 : vector<8x32xf32>
    %194 = arith.mulf %189, %135 : vector<8x32xf32>
    %195 = arith.addf %193, %194 : vector<8x32xf32>
    %cst_110 = arith.constant 1.000000e+00 : f32
    %196 = vector.broadcast %cst_110 : f32 to vector<8x32xf32>
    %197 = arith.subf %196, %190 : vector<8x32xf32>
    %198 = arith.mulf %197, %188 : vector<8x32xf32>
    %199 = arith.mulf %190, %140 : vector<8x32xf32>
    %200 = arith.addf %198, %199 : vector<8x32xf32>
    %c1_111 = arith.constant 1 : index
    %c0_112 = arith.constant 0 : index
    %c0_113 = arith.constant 0 : index
    %201 = vector.load %arg26[%c1_111, %c0_112, %c0_113] : memref<16x8x64xf32, #tpu.memory_space<vmem>>, vector<1x8x32xf32>
    %202 = vector.shape_cast %201 : vector<1x8x32xf32> to vector<8x32xf32>
    %203 = vector.shape_cast %195 : vector<8x32xf32> to vector<1x8x32xf32>
    tpu.vector_store %arg26[%c1_111, %c0_112, %c0_113], %203 {strides = array<i32>} : memref<16x8x64xf32, #tpu.memory_space<vmem>>, vector<1x8x32xf32>,
    %c14_114 = arith.constant 14 : index
    %c0_115 = arith.constant 0 : index
    %c32_116 = arith.constant 32 : index
    %204 = vector.load %arg26[%c14_114, %c0_115, %c32_116] : memref<16x8x64xf32, #tpu.memory_space<vmem>>, vector<1x8x32xf32>
    %205 = vector.shape_cast %204 : vector<1x8x32xf32> to vector<8x32xf32>
    %206 = vector.shape_cast %200 : vector<8x32xf32> to vector<1x8x32xf32>
    tpu.vector_store %arg26[%c14_114, %c0_115, %c32_116], %206 {strides = array<i32>} : memref<16x8x64xf32, #tpu.memory_space<vmem>>, vector<1x8x32xf32>,
    %c2_117 = arith.constant 2 : index
    %c0_118 = arith.constant 0 : index
    %c0_119 = arith.constant 0 : index
    %207 = vector.load %arg25[%c2_117, %c0_118, %c0_119] : memref<16x8x192xbf16, #tpu.memory_space<vmem>>, vector<1x8x192xbf16>
    %208 = vector.shape_cast %207 : vector<1x8x192xbf16> to vector<8x192xbf16>
    %209 = arith.extf %208 : vector<8x192xbf16> to vector<8x192xf32>
    %c13 = arith.constant 13 : index
    %c0_120 = arith.constant 0 : index
    %c0_121 = arith.constant 0 : index
    %210 = vector.load %arg25[%c13, %c0_120, %c0_121] : memref<16x8x192xbf16, #tpu.memory_space<vmem>>, vector<1x8x192xbf16>
    %211 = vector.shape_cast %210 : vector<1x8x192xbf16> to vector<8x192xbf16>
    %212 = arith.extf %211 : vector<8x192xbf16> to vector<8x192xf32>
    %213 = arith.truncf %195 : vector<8x32xf32> to vector<8x32xbf16>
    %cst_122 = arith.constant dense<0.000000e+00> : vector<8x96xf32>
    %214 = tpu.matmul %213, %81, %cst_122 {dimension_numbers = #tpu.dot_dimension_numbers<[1], [0], [0], [1], [0, 0, 1, 1], [], []>} : vector<8x32xbf16>, vector<32x96xbf16>, vector<8x96xf32> -> vector<8x96xf32>
    %215 = arith.truncf %200 : vector<8x32xf32> to vector<8x32xbf16>
    %cst_123 = arith.constant dense<0.000000e+00> : vector<8x96xf32>
    %216 = tpu.matmul %215, %82, %cst_123 {dimension_numbers = #tpu.dot_dimension_numbers<[1], [0], [0], [1], [0, 0, 1, 1], [], []>} : vector<8x32xbf16>, vector<32x96xbf16>, vector<8x96xf32> -> vector<8x96xf32>
    %217 = vector.extract_strided_slice %209 {offsets = [0, 0], sizes = [8, 64], strides = [1, 1]} : vector<8x192xf32> to vector<8x64xf32>
    %218 = vector.extract_strided_slice %214 {offsets = [0, 0], sizes = [8, 64], strides = [1, 1]} : vector<8x96xf32> to vector<8x64xf32>
    %219 = arith.addf %217, %218 : vector<8x64xf32>
    %220 = arith.negf %219 : vector<8x64xf32>
    %221 = math.exp %220 : vector<8x64xf32>
    %cst_124 = arith.constant 1.000000e+00 : f32
    %222 = vector.broadcast %cst_124 : f32 to vector<8x64xf32>
    %223 = arith.addf %222, %221 : vector<8x64xf32>
    %224 = arith.divf %222, %223 : vector<8x64xf32>
    %225 = vector.extract_strided_slice %212 {offsets = [0, 96], sizes = [8, 64], strides = [1, 1]} : vector<8x192xf32> to vector<8x64xf32>
    %226 = vector.extract_strided_slice %216 {offsets = [0, 0], sizes = [8, 64], strides = [1, 1]} : vector<8x96xf32> to vector<8x64xf32>
    %227 = arith.addf %225, %226 : vector<8x64xf32>
    %228 = arith.negf %227 : vector<8x64xf32>
    %229 = math.exp %228 : vector<8x64xf32>
    %cst_125 = arith.constant 1.000000e+00 : f32
    %230 = vector.broadcast %cst_125 : f32 to vector<8x64xf32>
    %231 = arith.addf %230, %229 : vector<8x64xf32>
    %232 = arith.divf %230, %231 : vector<8x64xf32>
    %233 = vector.extract_strided_slice %209 {offsets = [0, 64], sizes = [8, 32], strides = [1, 1]} : vector<8x192xf32> to vector<8x32xf32>
    %234 = vector.extract_strided_slice %224 {offsets = [0, 0], sizes = [8, 32], strides = [1, 1]} : vector<8x64xf32> to vector<8x32xf32>
    %235 = vector.extract_strided_slice %214 {offsets = [0, 64], sizes = [8, 32], strides = [1, 1]} : vector<8x96xf32> to vector<8x32xf32>
    %236 = vector.broadcast %83 : vector<1x32xf32> to vector<8x32xf32>
    %237 = arith.addf %235, %236 : vector<8x32xf32>
    %238 = arith.mulf %234, %237 : vector<8x32xf32>
    %239 = arith.addf %233, %238 : vector<8x32xf32>
    %240 = math.tanh %239 : vector<8x32xf32>
    %241 = vector.extract_strided_slice %212 {offsets = [0, 160], sizes = [8, 32], strides = [1, 1]} : vector<8x192xf32> to vector<8x32xf32>
    %242 = vector.extract_strided_slice %232 {offsets = [0, 0], sizes = [8, 32], strides = [1, 1]} : vector<8x64xf32> to vector<8x32xf32>
    %243 = vector.extract_strided_slice %216 {offsets = [0, 64], sizes = [8, 32], strides = [1, 1]} : vector<8x96xf32> to vector<8x32xf32>
    %244 = vector.broadcast %84 : vector<1x32xf32> to vector<8x32xf32>
    %245 = arith.addf %243, %244 : vector<8x32xf32>
    %246 = arith.mulf %242, %245 : vector<8x32xf32>
    %247 = arith.addf %241, %246 : vector<8x32xf32>
    %248 = math.tanh %247 : vector<8x32xf32>
    %249 = vector.extract_strided_slice %224 {offsets = [0, 32], sizes = [8, 32], strides = [1, 1]} : vector<8x64xf32> to vector<8x32xf32>
    %250 = vector.extract_strided_slice %232 {offsets = [0, 32], sizes = [8, 32], strides = [1, 1]} : vector<8x64xf32> to vector<8x32xf32>
    %cst_126 = arith.constant 1.000000e+00 : f32
    %251 = vector.broadcast %cst_126 : f32 to vector<8x32xf32>
    %252 = arith.subf %251, %249 : vector<8x32xf32>
    %253 = arith.mulf %252, %240 : vector<8x32xf32>
    %254 = arith.mulf %249, %195 : vector<8x32xf32>
    %255 = arith.addf %253, %254 : vector<8x32xf32>
    %cst_127 = arith.constant 1.000000e+00 : f32
    %256 = vector.broadcast %cst_127 : f32 to vector<8x32xf32>
    %257 = arith.subf %256, %250 : vector<8x32xf32>
    %258 = arith.mulf %257, %248 : vector<8x32xf32>
    %259 = arith.mulf %250, %200 : vector<8x32xf32>
    %260 = arith.addf %258, %259 : vector<8x32xf32>
    %c2_128 = arith.constant 2 : index
    %c0_129 = arith.constant 0 : index
    %c0_130 = arith.constant 0 : index
    %261 = vector.load %arg26[%c2_128, %c0_129, %c0_130] : memref<16x8x64xf32, #tpu.memory_space<vmem>>, vector<1x8x32xf32>
    %262 = vector.shape_cast %261 : vector<1x8x32xf32> to vector<8x32xf32>
    %263 = vector.shape_cast %255 : vector<8x32xf32> to vector<1x8x32xf32>
    tpu.vector_store %arg26[%c2_128, %c0_129, %c0_130], %263 {strides = array<i32>} : memref<16x8x64xf32, #tpu.memory_space<vmem>>, vector<1x8x32xf32>,
    %c13_131 = arith.constant 13 : index
    %c0_132 = arith.constant 0 : index
    %c32_133 = arith.constant 32 : index
    %264 = vector.load %arg26[%c13_131, %c0_132, %c32_133] : memref<16x8x64xf32, #tpu.memory_space<vmem>>, vector<1x8x32xf32>
    %265 = vector.shape_cast %264 : vector<1x8x32xf32> to vector<8x32xf32>
    %266 = vector.shape_cast %260 : vector<8x32xf32> to vector<1x8x32xf32>
    tpu.vector_store %arg26[%c13_131, %c0_132, %c32_133], %266 {strides = array<i32>} : memref<16x8x64xf32, #tpu.memory_space<vmem>>, vector<1x8x32xf32>,
    %c3 = arith.constant 3 : index
    %c0_134 = arith.constant 0 : index
    %c0_135 = arith.constant 0 : index
    %267 = vector.load %arg25[%c3, %c0_134, %c0_135] : memref<16x8x192xbf16, #tpu.memory_space<vmem>>, vector<1x8x192xbf16>
    %268 = vector.shape_cast %267 : vector<1x8x192xbf16> to vector<8x192xbf16>
    %269 = arith.extf %268 : vector<8x192xbf16> to vector<8x192xf32>
    %c12 = arith.constant 12 : index
    %c0_136 = arith.constant 0 : index
    %c0_137 = arith.constant 0 : index
    %270 = vector.load %arg25[%c12, %c0_136, %c0_137] : memref<16x8x192xbf16, #tpu.memory_space<vmem>>, vector<1x8x192xbf16>
    %271 = vector.shape_cast %270 : vector<1x8x192xbf16> to vector<8x192xbf16>
    %272 = arith.extf %271 : vector<8x192xbf16> to vector<8x192xf32>
    %273 = arith.truncf %255 : vector<8x32xf32> to vector<8x32xbf16>
    %cst_138 = arith.constant dense<0.000000e+00> : vector<8x96xf32>
    %274 = tpu.matmul %273, %81, %cst_138 {dimension_numbers = #tpu.dot_dimension_numbers<[1], [0], [0], [1], [0, 0, 1, 1], [], []>} : vector<8x32xbf16>, vector<32x96xbf16>, vector<8x96xf32> -> vector<8x96xf32>
    %275 = arith.truncf %260 : vector<8x32xf32> to vector<8x32xbf16>
    %cst_139 = arith.constant dense<0.000000e+00> : vector<8x96xf32>
    %276 = tpu.matmul %275, %82, %cst_139 {dimension_numbers = #tpu.dot_dimension_numbers<[1], [0], [0], [1], [0, 0, 1, 1], [], []>} : vector<8x32xbf16>, vector<32x96xbf16>, vector<8x96xf32> -> vector<8x96xf32>
    %277 = vector.extract_strided_slice %269 {offsets = [0, 0], sizes = [8, 64], strides = [1, 1]} : vector<8x192xf32> to vector<8x64xf32>
    %278 = vector.extract_strided_slice %274 {offsets = [0, 0], sizes = [8, 64], strides = [1, 1]} : vector<8x96xf32> to vector<8x64xf32>
    %279 = arith.addf %277, %278 : vector<8x64xf32>
    %280 = arith.negf %279 : vector<8x64xf32>
    %281 = math.exp %280 : vector<8x64xf32>
    %cst_140 = arith.constant 1.000000e+00 : f32
    %282 = vector.broadcast %cst_140 : f32 to vector<8x64xf32>
    %283 = arith.addf %282, %281 : vector<8x64xf32>
    %284 = arith.divf %282, %283 : vector<8x64xf32>
    %285 = vector.extract_strided_slice %272 {offsets = [0, 96], sizes = [8, 64], strides = [1, 1]} : vector<8x192xf32> to vector<8x64xf32>
    %286 = vector.extract_strided_slice %276 {offsets = [0, 0], sizes = [8, 64], strides = [1, 1]} : vector<8x96xf32> to vector<8x64xf32>
    %287 = arith.addf %285, %286 : vector<8x64xf32>
    %288 = arith.negf %287 : vector<8x64xf32>
    %289 = math.exp %288 : vector<8x64xf32>
    %cst_141 = arith.constant 1.000000e+00 : f32
    %290 = vector.broadcast %cst_141 : f32 to vector<8x64xf32>
    %291 = arith.addf %290, %289 : vector<8x64xf32>
    %292 = arith.divf %290, %291 : vector<8x64xf32>
    %293 = vector.extract_strided_slice %269 {offsets = [0, 64], sizes = [8, 32], strides = [1, 1]} : vector<8x192xf32> to vector<8x32xf32>
    %294 = vector.extract_strided_slice %284 {offsets = [0, 0], sizes = [8, 32], strides = [1, 1]} : vector<8x64xf32> to vector<8x32xf32>
    %295 = vector.extract_strided_slice %274 {offsets = [0, 64], sizes = [8, 32], strides = [1, 1]} : vector<8x96xf32> to vector<8x32xf32>
    %296 = vector.broadcast %83 : vector<1x32xf32> to vector<8x32xf32>
    %297 = arith.addf %295, %296 : vector<8x32xf32>
    %298 = arith.mulf %294, %297 : vector<8x32xf32>
    %299 = arith.addf %293, %298 : vector<8x32xf32>
    %300 = math.tanh %299 : vector<8x32xf32>
    %301 = vector.extract_strided_slice %272 {offsets = [0, 160], sizes = [8, 32], strides = [1, 1]} : vector<8x192xf32> to vector<8x32xf32>
    %302 = vector.extract_strided_slice %292 {offsets = [0, 0], sizes = [8, 32], strides = [1, 1]} : vector<8x64xf32> to vector<8x32xf32>
    %303 = vector.extract_strided_slice %276 {offsets = [0, 64], sizes = [8, 32], strides = [1, 1]} : vector<8x96xf32> to vector<8x32xf32>
    %304 = vector.broadcast %84 : vector<1x32xf32> to vector<8x32xf32>
    %305 = arith.addf %303, %304 : vector<8x32xf32>
    %306 = arith.mulf %302, %305 : vector<8x32xf32>
    %307 = arith.addf %301, %306 : vector<8x32xf32>
    %308 = math.tanh %307 : vector<8x32xf32>
    %309 = vector.extract_strided_slice %284 {offsets = [0, 32], sizes = [8, 32], strides = [1, 1]} : vector<8x64xf32> to vector<8x32xf32>
    %310 = vector.extract_strided_slice %292 {offsets = [0, 32], sizes = [8, 32], strides = [1, 1]} : vector<8x64xf32> to vector<8x32xf32>
    %cst_142 = arith.constant 1.000000e+00 : f32
    %311 = vector.broadcast %cst_142 : f32 to vector<8x32xf32>
    %312 = arith.subf %311, %309 : vector<8x32xf32>
    %313 = arith.mulf %312, %300 : vector<8x32xf32>
    %314 = arith.mulf %309, %255 : vector<8x32xf32>
    %315 = arith.addf %313, %314 : vector<8x32xf32>
    %cst_143 = arith.constant 1.000000e+00 : f32
    %316 = vector.broadcast %cst_143 : f32 to vector<8x32xf32>
    %317 = arith.subf %316, %310 : vector<8x32xf32>
    %318 = arith.mulf %317, %308 : vector<8x32xf32>
    %319 = arith.mulf %310, %260 : vector<8x32xf32>
    %320 = arith.addf %318, %319 : vector<8x32xf32>
    %c3_144 = arith.constant 3 : index
    %c0_145 = arith.constant 0 : index
    %c0_146 = arith.constant 0 : index
    %321 = vector.load %arg26[%c3_144, %c0_145, %c0_146] : memref<16x8x64xf32, #tpu.memory_space<vmem>>, vector<1x8x32xf32>
    %322 = vector.shape_cast %321 : vector<1x8x32xf32> to vector<8x32xf32>
    %323 = vector.shape_cast %315 : vector<8x32xf32> to vector<1x8x32xf32>
    tpu.vector_store %arg26[%c3_144, %c0_145, %c0_146], %323 {strides = array<i32>} : memref<16x8x64xf32, #tpu.memory_space<vmem>>, vector<1x8x32xf32>,
    %c12_147 = arith.constant 12 : index
    %c0_148 = arith.constant 0 : index
    %c32_149 = arith.constant 32 : index
    %324 = vector.load %arg26[%c12_147, %c0_148, %c32_149] : memref<16x8x64xf32, #tpu.memory_space<vmem>>, vector<1x8x32xf32>
    %325 = vector.shape_cast %324 : vector<1x8x32xf32> to vector<8x32xf32>
    %326 = vector.shape_cast %320 : vector<8x32xf32> to vector<1x8x32xf32>
    tpu.vector_store %arg26[%c12_147, %c0_148, %c32_149], %326 {strides = array<i32>} : memref<16x8x64xf32, #tpu.memory_space<vmem>>, vector<1x8x32xf32>,
    %c4 = arith.constant 4 : index
    %c0_150 = arith.constant 0 : index
    %c0_151 = arith.constant 0 : index
    %327 = vector.load %arg25[%c4, %c0_150, %c0_151] : memref<16x8x192xbf16, #tpu.memory_space<vmem>>, vector<1x8x192xbf16>
    %328 = vector.shape_cast %327 : vector<1x8x192xbf16> to vector<8x192xbf16>
    %329 = arith.extf %328 : vector<8x192xbf16> to vector<8x192xf32>
    %c11 = arith.constant 11 : index
    %c0_152 = arith.constant 0 : index
    %c0_153 = arith.constant 0 : index
    %330 = vector.load %arg25[%c11, %c0_152, %c0_153] : memref<16x8x192xbf16, #tpu.memory_space<vmem>>, vector<1x8x192xbf16>
    %331 = vector.shape_cast %330 : vector<1x8x192xbf16> to vector<8x192xbf16>
    %332 = arith.extf %331 : vector<8x192xbf16> to vector<8x192xf32>
    %333 = arith.truncf %315 : vector<8x32xf32> to vector<8x32xbf16>
    %cst_154 = arith.constant dense<0.000000e+00> : vector<8x96xf32>
    %334 = tpu.matmul %333, %81, %cst_154 {dimension_numbers = #tpu.dot_dimension_numbers<[1], [0], [0], [1], [0, 0, 1, 1], [], []>} : vector<8x32xbf16>, vector<32x96xbf16>, vector<8x96xf32> -> vector<8x96xf32>
    %335 = arith.truncf %320 : vector<8x32xf32> to vector<8x32xbf16>
    %cst_155 = arith.constant dense<0.000000e+00> : vector<8x96xf32>
    %336 = tpu.matmul %335, %82, %cst_155 {dimension_numbers = #tpu.dot_dimension_numbers<[1], [0], [0], [1], [0, 0, 1, 1], [], []>} : vector<8x32xbf16>, vector<32x96xbf16>, vector<8x96xf32> -> vector<8x96xf32>
    %337 = vector.extract_strided_slice %329 {offsets = [0, 0], sizes = [8, 64], strides = [1, 1]} : vector<8x192xf32> to vector<8x64xf32>
    %338 = vector.extract_strided_slice %334 {offsets = [0, 0], sizes = [8, 64], strides = [1, 1]} : vector<8x96xf32> to vector<8x64xf32>
    %339 = arith.addf %337, %338 : vector<8x64xf32>
    %340 = arith.negf %339 : vector<8x64xf32>
    %341 = math.exp %340 : vector<8x64xf32>
    %cst_156 = arith.constant 1.000000e+00 : f32
    %342 = vector.broadcast %cst_156 : f32 to vector<8x64xf32>
    %343 = arith.addf %342, %341 : vector<8x64xf32>
    %344 = arith.divf %342, %343 : vector<8x64xf32>
    %345 = vector.extract_strided_slice %332 {offsets = [0, 96], sizes = [8, 64], strides = [1, 1]} : vector<8x192xf32> to vector<8x64xf32>
    %346 = vector.extract_strided_slice %336 {offsets = [0, 0], sizes = [8, 64], strides = [1, 1]} : vector<8x96xf32> to vector<8x64xf32>
    %347 = arith.addf %345, %346 : vector<8x64xf32>
    %348 = arith.negf %347 : vector<8x64xf32>
    %349 = math.exp %348 : vector<8x64xf32>
    %cst_157 = arith.constant 1.000000e+00 : f32
    %350 = vector.broadcast %cst_157 : f32 to vector<8x64xf32>
    %351 = arith.addf %350, %349 : vector<8x64xf32>
    %352 = arith.divf %350, %351 : vector<8x64xf32>
    %353 = vector.extract_strided_slice %329 {offsets = [0, 64], sizes = [8, 32], strides = [1, 1]} : vector<8x192xf32> to vector<8x32xf32>
    %354 = vector.extract_strided_slice %344 {offsets = [0, 0], sizes = [8, 32], strides = [1, 1]} : vector<8x64xf32> to vector<8x32xf32>
    %355 = vector.extract_strided_slice %334 {offsets = [0, 64], sizes = [8, 32], strides = [1, 1]} : vector<8x96xf32> to vector<8x32xf32>
    %356 = vector.broadcast %83 : vector<1x32xf32> to vector<8x32xf32>
    %357 = arith.addf %355, %356 : vector<8x32xf32>
    %358 = arith.mulf %354, %357 : vector<8x32xf32>
    %359 = arith.addf %353, %358 : vector<8x32xf32>
    %360 = math.tanh %359 : vector<8x32xf32>
    %361 = vector.extract_strided_slice %332 {offsets = [0, 160], sizes = [8, 32], strides = [1, 1]} : vector<8x192xf32> to vector<8x32xf32>
    %362 = vector.extract_strided_slice %352 {offsets = [0, 0], sizes = [8, 32], strides = [1, 1]} : vector<8x64xf32> to vector<8x32xf32>
    %363 = vector.extract_strided_slice %336 {offsets = [0, 64], sizes = [8, 32], strides = [1, 1]} : vector<8x96xf32> to vector<8x32xf32>
    %364 = vector.broadcast %84 : vector<1x32xf32> to vector<8x32xf32>
    %365 = arith.addf %363, %364 : vector<8x32xf32>
    %366 = arith.mulf %362, %365 : vector<8x32xf32>
    %367 = arith.addf %361, %366 : vector<8x32xf32>
    %368 = math.tanh %367 : vector<8x32xf32>
    %369 = vector.extract_strided_slice %344 {offsets = [0, 32], sizes = [8, 32], strides = [1, 1]} : vector<8x64xf32> to vector<8x32xf32>
    %370 = vector.extract_strided_slice %352 {offsets = [0, 32], sizes = [8, 32], strides = [1, 1]} : vector<8x64xf32> to vector<8x32xf32>
    %cst_158 = arith.constant 1.000000e+00 : f32
    %371 = vector.broadcast %cst_158 : f32 to vector<8x32xf32>
    %372 = arith.subf %371, %369 : vector<8x32xf32>
    %373 = arith.mulf %372, %360 : vector<8x32xf32>
    %374 = arith.mulf %369, %315 : vector<8x32xf32>
    %375 = arith.addf %373, %374 : vector<8x32xf32>
    %cst_159 = arith.constant 1.000000e+00 : f32
    %376 = vector.broadcast %cst_159 : f32 to vector<8x32xf32>
    %377 = arith.subf %376, %370 : vector<8x32xf32>
    %378 = arith.mulf %377, %368 : vector<8x32xf32>
    %379 = arith.mulf %370, %320 : vector<8x32xf32>
    %380 = arith.addf %378, %379 : vector<8x32xf32>
    %c4_160 = arith.constant 4 : index
    %c0_161 = arith.constant 0 : index
    %c0_162 = arith.constant 0 : index
    %381 = vector.load %arg26[%c4_160, %c0_161, %c0_162] : memref<16x8x64xf32, #tpu.memory_space<vmem>>, vector<1x8x32xf32>
    %382 = vector.shape_cast %381 : vector<1x8x32xf32> to vector<8x32xf32>
    %383 = vector.shape_cast %375 : vector<8x32xf32> to vector<1x8x32xf32>
    tpu.vector_store %arg26[%c4_160, %c0_161, %c0_162], %383 {strides = array<i32>} : memref<16x8x64xf32, #tpu.memory_space<vmem>>, vector<1x8x32xf32>,
    %c11_163 = arith.constant 11 : index
    %c0_164 = arith.constant 0 : index
    %c32_165 = arith.constant 32 : index
    %384 = vector.load %arg26[%c11_163, %c0_164, %c32_165] : memref<16x8x64xf32, #tpu.memory_space<vmem>>, vector<1x8x32xf32>
    %385 = vector.shape_cast %384 : vector<1x8x32xf32> to vector<8x32xf32>
    %386 = vector.shape_cast %380 : vector<8x32xf32> to vector<1x8x32xf32>
    tpu.vector_store %arg26[%c11_163, %c0_164, %c32_165], %386 {strides = array<i32>} : memref<16x8x64xf32, #tpu.memory_space<vmem>>, vector<1x8x32xf32>,
    %c5 = arith.constant 5 : index
    %c0_166 = arith.constant 0 : index
    %c0_167 = arith.constant 0 : index
    %387 = vector.load %arg25[%c5, %c0_166, %c0_167] : memref<16x8x192xbf16, #tpu.memory_space<vmem>>, vector<1x8x192xbf16>
    %388 = vector.shape_cast %387 : vector<1x8x192xbf16> to vector<8x192xbf16>
    %389 = arith.extf %388 : vector<8x192xbf16> to vector<8x192xf32>
    %c10 = arith.constant 10 : index
    %c0_168 = arith.constant 0 : index
    %c0_169 = arith.constant 0 : index
    %390 = vector.load %arg25[%c10, %c0_168, %c0_169] : memref<16x8x192xbf16, #tpu.memory_space<vmem>>, vector<1x8x192xbf16>
    %391 = vector.shape_cast %390 : vector<1x8x192xbf16> to vector<8x192xbf16>
    %392 = arith.extf %391 : vector<8x192xbf16> to vector<8x192xf32>
    %393 = arith.truncf %375 : vector<8x32xf32> to vector<8x32xbf16>
    %cst_170 = arith.constant dense<0.000000e+00> : vector<8x96xf32>
    %394 = tpu.matmul %393, %81, %cst_170 {dimension_numbers = #tpu.dot_dimension_numbers<[1], [0], [0], [1], [0, 0, 1, 1], [], []>} : vector<8x32xbf16>, vector<32x96xbf16>, vector<8x96xf32> -> vector<8x96xf32>
    %395 = arith.truncf %380 : vector<8x32xf32> to vector<8x32xbf16>
    %cst_171 = arith.constant dense<0.000000e+00> : vector<8x96xf32>
    %396 = tpu.matmul %395, %82, %cst_171 {dimension_numbers = #tpu.dot_dimension_numbers<[1], [0], [0], [1], [0, 0, 1, 1], [], []>} : vector<8x32xbf16>, vector<32x96xbf16>, vector<8x96xf32> -> vector<8x96xf32>
    %397 = vector.extract_strided_slice %389 {offsets = [0, 0], sizes = [8, 64], strides = [1, 1]} : vector<8x192xf32> to vector<8x64xf32>
    %398 = vector.extract_strided_slice %394 {offsets = [0, 0], sizes = [8, 64], strides = [1, 1]} : vector<8x96xf32> to vector<8x64xf32>
    %399 = arith.addf %397, %398 : vector<8x64xf32>
    %400 = arith.negf %399 : vector<8x64xf32>
    %401 = math.exp %400 : vector<8x64xf32>
    %cst_172 = arith.constant 1.000000e+00 : f32
    %402 = vector.broadcast %cst_172 : f32 to vector<8x64xf32>
    %403 = arith.addf %402, %401 : vector<8x64xf32>
    %404 = arith.divf %402, %403 : vector<8x64xf32>
    %405 = vector.extract_strided_slice %392 {offsets = [0, 96], sizes = [8, 64], strides = [1, 1]} : vector<8x192xf32> to vector<8x64xf32>
    %406 = vector.extract_strided_slice %396 {offsets = [0, 0], sizes = [8, 64], strides = [1, 1]} : vector<8x96xf32> to vector<8x64xf32>
    %407 = arith.addf %405, %406 : vector<8x64xf32>
    %408 = arith.negf %407 : vector<8x64xf32>
    %409 = math.exp %408 : vector<8x64xf32>
    %cst_173 = arith.constant 1.000000e+00 : f32
    %410 = vector.broadcast %cst_173 : f32 to vector<8x64xf32>
    %411 = arith.addf %410, %409 : vector<8x64xf32>
    %412 = arith.divf %410, %411 : vector<8x64xf32>
    %413 = vector.extract_strided_slice %389 {offsets = [0, 64], sizes = [8, 32], strides = [1, 1]} : vector<8x192xf32> to vector<8x32xf32>
    %414 = vector.extract_strided_slice %404 {offsets = [0, 0], sizes = [8, 32], strides = [1, 1]} : vector<8x64xf32> to vector<8x32xf32>
    %415 = vector.extract_strided_slice %394 {offsets = [0, 64], sizes = [8, 32], strides = [1, 1]} : vector<8x96xf32> to vector<8x32xf32>
    %416 = vector.broadcast %83 : vector<1x32xf32> to vector<8x32xf32>
    %417 = arith.addf %415, %416 : vector<8x32xf32>
    %418 = arith.mulf %414, %417 : vector<8x32xf32>
    %419 = arith.addf %413, %418 : vector<8x32xf32>
    %420 = math.tanh %419 : vector<8x32xf32>
    %421 = vector.extract_strided_slice %392 {offsets = [0, 160], sizes = [8, 32], strides = [1, 1]} : vector<8x192xf32> to vector<8x32xf32>
    %422 = vector.extract_strided_slice %412 {offsets = [0, 0], sizes = [8, 32], strides = [1, 1]} : vector<8x64xf32> to vector<8x32xf32>
    %423 = vector.extract_strided_slice %396 {offsets = [0, 64], sizes = [8, 32], strides = [1, 1]} : vector<8x96xf32> to vector<8x32xf32>
    %424 = vector.broadcast %84 : vector<1x32xf32> to vector<8x32xf32>
    %425 = arith.addf %423, %424 : vector<8x32xf32>
    %426 = arith.mulf %422, %425 : vector<8x32xf32>
    %427 = arith.addf %421, %426 : vector<8x32xf32>
    %428 = math.tanh %427 : vector<8x32xf32>
    %429 = vector.extract_strided_slice %404 {offsets = [0, 32], sizes = [8, 32], strides = [1, 1]} : vector<8x64xf32> to vector<8x32xf32>
    %430 = vector.extract_strided_slice %412 {offsets = [0, 32], sizes = [8, 32], strides = [1, 1]} : vector<8x64xf32> to vector<8x32xf32>
    %cst_174 = arith.constant 1.000000e+00 : f32
    %431 = vector.broadcast %cst_174 : f32 to vector<8x32xf32>
    %432 = arith.subf %431, %429 : vector<8x32xf32>
    %433 = arith.mulf %432, %420 : vector<8x32xf32>
    %434 = arith.mulf %429, %375 : vector<8x32xf32>
    %435 = arith.addf %433, %434 : vector<8x32xf32>
    %cst_175 = arith.constant 1.000000e+00 : f32
    %436 = vector.broadcast %cst_175 : f32 to vector<8x32xf32>
    %437 = arith.subf %436, %430 : vector<8x32xf32>
    %438 = arith.mulf %437, %428 : vector<8x32xf32>
    %439 = arith.mulf %430, %380 : vector<8x32xf32>
    %440 = arith.addf %438, %439 : vector<8x32xf32>
    %c5_176 = arith.constant 5 : index
    %c0_177 = arith.constant 0 : index
    %c0_178 = arith.constant 0 : index
    %441 = vector.load %arg26[%c5_176, %c0_177, %c0_178] : memref<16x8x64xf32, #tpu.memory_space<vmem>>, vector<1x8x32xf32>
    %442 = vector.shape_cast %441 : vector<1x8x32xf32> to vector<8x32xf32>
    %443 = vector.shape_cast %435 : vector<8x32xf32> to vector<1x8x32xf32>
    tpu.vector_store %arg26[%c5_176, %c0_177, %c0_178], %443 {strides = array<i32>} : memref<16x8x64xf32, #tpu.memory_space<vmem>>, vector<1x8x32xf32>,
    %c10_179 = arith.constant 10 : index
    %c0_180 = arith.constant 0 : index
    %c32_181 = arith.constant 32 : index
    %444 = vector.load %arg26[%c10_179, %c0_180, %c32_181] : memref<16x8x64xf32, #tpu.memory_space<vmem>>, vector<1x8x32xf32>
    %445 = vector.shape_cast %444 : vector<1x8x32xf32> to vector<8x32xf32>
    %446 = vector.shape_cast %440 : vector<8x32xf32> to vector<1x8x32xf32>
    tpu.vector_store %arg26[%c10_179, %c0_180, %c32_181], %446 {strides = array<i32>} : memref<16x8x64xf32, #tpu.memory_space<vmem>>, vector<1x8x32xf32>,
    %c6 = arith.constant 6 : index
    %c0_182 = arith.constant 0 : index
    %c0_183 = arith.constant 0 : index
    %447 = vector.load %arg25[%c6, %c0_182, %c0_183] : memref<16x8x192xbf16, #tpu.memory_space<vmem>>, vector<1x8x192xbf16>
    %448 = vector.shape_cast %447 : vector<1x8x192xbf16> to vector<8x192xbf16>
    %449 = arith.extf %448 : vector<8x192xbf16> to vector<8x192xf32>
    %c9 = arith.constant 9 : index
    %c0_184 = arith.constant 0 : index
    %c0_185 = arith.constant 0 : index
    %450 = vector.load %arg25[%c9, %c0_184, %c0_185] : memref<16x8x192xbf16, #tpu.memory_space<vmem>>, vector<1x8x192xbf16>
    %451 = vector.shape_cast %450 : vector<1x8x192xbf16> to vector<8x192xbf16>
    %452 = arith.extf %451 : vector<8x192xbf16> to vector<8x192xf32>
    %453 = arith.truncf %435 : vector<8x32xf32> to vector<8x32xbf16>
    %cst_186 = arith.constant dense<0.000000e+00> : vector<8x96xf32>
    %454 = tpu.matmul %453, %81, %cst_186 {dimension_numbers = #tpu.dot_dimension_numbers<[1], [0], [0], [1], [0, 0, 1, 1], [], []>} : vector<8x32xbf16>, vector<32x96xbf16>, vector<8x96xf32> -> vector<8x96xf32>
    %455 = arith.truncf %440 : vector<8x32xf32> to vector<8x32xbf16>
    %cst_187 = arith.constant dense<0.000000e+00> : vector<8x96xf32>
    %456 = tpu.matmul %455, %82, %cst_187 {dimension_numbers = #tpu.dot_dimension_numbers<[1], [0], [0], [1], [0, 0, 1, 1], [], []>} : vector<8x32xbf16>, vector<32x96xbf16>, vector<8x96xf32> -> vector<8x96xf32>
    %457 = vector.extract_strided_slice %449 {offsets = [0, 0], sizes = [8, 64], strides = [1, 1]} : vector<8x192xf32> to vector<8x64xf32>
    %458 = vector.extract_strided_slice %454 {offsets = [0, 0], sizes = [8, 64], strides = [1, 1]} : vector<8x96xf32> to vector<8x64xf32>
    %459 = arith.addf %457, %458 : vector<8x64xf32>
    %460 = arith.negf %459 : vector<8x64xf32>
    %461 = math.exp %460 : vector<8x64xf32>
    %cst_188 = arith.constant 1.000000e+00 : f32
    %462 = vector.broadcast %cst_188 : f32 to vector<8x64xf32>
    %463 = arith.addf %462, %461 : vector<8x64xf32>
    %464 = arith.divf %462, %463 : vector<8x64xf32>
    %465 = vector.extract_strided_slice %452 {offsets = [0, 96], sizes = [8, 64], strides = [1, 1]} : vector<8x192xf32> to vector<8x64xf32>
    %466 = vector.extract_strided_slice %456 {offsets = [0, 0], sizes = [8, 64], strides = [1, 1]} : vector<8x96xf32> to vector<8x64xf32>
    %467 = arith.addf %465, %466 : vector<8x64xf32>
    %468 = arith.negf %467 : vector<8x64xf32>
    %469 = math.exp %468 : vector<8x64xf32>
    %cst_189 = arith.constant 1.000000e+00 : f32
    %470 = vector.broadcast %cst_189 : f32 to vector<8x64xf32>
    %471 = arith.addf %470, %469 : vector<8x64xf32>
    %472 = arith.divf %470, %471 : vector<8x64xf32>
    %473 = vector.extract_strided_slice %449 {offsets = [0, 64], sizes = [8, 32], strides = [1, 1]} : vector<8x192xf32> to vector<8x32xf32>
    %474 = vector.extract_strided_slice %464 {offsets = [0, 0], sizes = [8, 32], strides = [1, 1]} : vector<8x64xf32> to vector<8x32xf32>
    %475 = vector.extract_strided_slice %454 {offsets = [0, 64], sizes = [8, 32], strides = [1, 1]} : vector<8x96xf32> to vector<8x32xf32>
    %476 = vector.broadcast %83 : vector<1x32xf32> to vector<8x32xf32>
    %477 = arith.addf %475, %476 : vector<8x32xf32>
    %478 = arith.mulf %474, %477 : vector<8x32xf32>
    %479 = arith.addf %473, %478 : vector<8x32xf32>
    %480 = math.tanh %479 : vector<8x32xf32>
    %481 = vector.extract_strided_slice %452 {offsets = [0, 160], sizes = [8, 32], strides = [1, 1]} : vector<8x192xf32> to vector<8x32xf32>
    %482 = vector.extract_strided_slice %472 {offsets = [0, 0], sizes = [8, 32], strides = [1, 1]} : vector<8x64xf32> to vector<8x32xf32>
    %483 = vector.extract_strided_slice %456 {offsets = [0, 64], sizes = [8, 32], strides = [1, 1]} : vector<8x96xf32> to vector<8x32xf32>
    %484 = vector.broadcast %84 : vector<1x32xf32> to vector<8x32xf32>
    %485 = arith.addf %483, %484 : vector<8x32xf32>
    %486 = arith.mulf %482, %485 : vector<8x32xf32>
    %487 = arith.addf %481, %486 : vector<8x32xf32>
    %488 = math.tanh %487 : vector<8x32xf32>
    %489 = vector.extract_strided_slice %464 {offsets = [0, 32], sizes = [8, 32], strides = [1, 1]} : vector<8x64xf32> to vector<8x32xf32>
    %490 = vector.extract_strided_slice %472 {offsets = [0, 32], sizes = [8, 32], strides = [1, 1]} : vector<8x64xf32> to vector<8x32xf32>
    %cst_190 = arith.constant 1.000000e+00 : f32
    %491 = vector.broadcast %cst_190 : f32 to vector<8x32xf32>
    %492 = arith.subf %491, %489 : vector<8x32xf32>
    %493 = arith.mulf %492, %480 : vector<8x32xf32>
    %494 = arith.mulf %489, %435 : vector<8x32xf32>
    %495 = arith.addf %493, %494 : vector<8x32xf32>
    %cst_191 = arith.constant 1.000000e+00 : f32
    %496 = vector.broadcast %cst_191 : f32 to vector<8x32xf32>
    %497 = arith.subf %496, %490 : vector<8x32xf32>
    %498 = arith.mulf %497, %488 : vector<8x32xf32>
    %499 = arith.mulf %490, %440 : vector<8x32xf32>
    %500 = arith.addf %498, %499 : vector<8x32xf32>
    %c6_192 = arith.constant 6 : index
    %c0_193 = arith.constant 0 : index
    %c0_194 = arith.constant 0 : index
    %501 = vector.load %arg26[%c6_192, %c0_193, %c0_194] : memref<16x8x64xf32, #tpu.memory_space<vmem>>, vector<1x8x32xf32>
    %502 = vector.shape_cast %501 : vector<1x8x32xf32> to vector<8x32xf32>
    %503 = vector.shape_cast %495 : vector<8x32xf32> to vector<1x8x32xf32>
    tpu.vector_store %arg26[%c6_192, %c0_193, %c0_194], %503 {strides = array<i32>} : memref<16x8x64xf32, #tpu.memory_space<vmem>>, vector<1x8x32xf32>,
    %c9_195 = arith.constant 9 : index
    %c0_196 = arith.constant 0 : index
    %c32_197 = arith.constant 32 : index
    %504 = vector.load %arg26[%c9_195, %c0_196, %c32_197] : memref<16x8x64xf32, #tpu.memory_space<vmem>>, vector<1x8x32xf32>
    %505 = vector.shape_cast %504 : vector<1x8x32xf32> to vector<8x32xf32>
    %506 = vector.shape_cast %500 : vector<8x32xf32> to vector<1x8x32xf32>
    tpu.vector_store %arg26[%c9_195, %c0_196, %c32_197], %506 {strides = array<i32>} : memref<16x8x64xf32, #tpu.memory_space<vmem>>, vector<1x8x32xf32>,
    %c7 = arith.constant 7 : index
    %c0_198 = arith.constant 0 : index
    %c0_199 = arith.constant 0 : index
    %507 = vector.load %arg25[%c7, %c0_198, %c0_199] : memref<16x8x192xbf16, #tpu.memory_space<vmem>>, vector<1x8x192xbf16>
    %508 = vector.shape_cast %507 : vector<1x8x192xbf16> to vector<8x192xbf16>
    %509 = arith.extf %508 : vector<8x192xbf16> to vector<8x192xf32>
    %c8 = arith.constant 8 : index
    %c0_200 = arith.constant 0 : index
    %c0_201 = arith.constant 0 : index
    %510 = vector.load %arg25[%c8, %c0_200, %c0_201] : memref<16x8x192xbf16, #tpu.memory_space<vmem>>, vector<1x8x192xbf16>
    %511 = vector.shape_cast %510 : vector<1x8x192xbf16> to vector<8x192xbf16>
    %512 = arith.extf %511 : vector<8x192xbf16> to vector<8x192xf32>
    %513 = arith.truncf %495 : vector<8x32xf32> to vector<8x32xbf16>
    %cst_202 = arith.constant dense<0.000000e+00> : vector<8x96xf32>
    %514 = tpu.matmul %513, %81, %cst_202 {dimension_numbers = #tpu.dot_dimension_numbers<[1], [0], [0], [1], [0, 0, 1, 1], [], []>} : vector<8x32xbf16>, vector<32x96xbf16>, vector<8x96xf32> -> vector<8x96xf32>
    %515 = arith.truncf %500 : vector<8x32xf32> to vector<8x32xbf16>
    %cst_203 = arith.constant dense<0.000000e+00> : vector<8x96xf32>
    %516 = tpu.matmul %515, %82, %cst_203 {dimension_numbers = #tpu.dot_dimension_numbers<[1], [0], [0], [1], [0, 0, 1, 1], [], []>} : vector<8x32xbf16>, vector<32x96xbf16>, vector<8x96xf32> -> vector<8x96xf32>
    %517 = vector.extract_strided_slice %509 {offsets = [0, 0], sizes = [8, 64], strides = [1, 1]} : vector<8x192xf32> to vector<8x64xf32>
    %518 = vector.extract_strided_slice %514 {offsets = [0, 0], sizes = [8, 64], strides = [1, 1]} : vector<8x96xf32> to vector<8x64xf32>
    %519 = arith.addf %517, %518 : vector<8x64xf32>
    %520 = arith.negf %519 : vector<8x64xf32>
    %521 = math.exp %520 : vector<8x64xf32>
    %cst_204 = arith.constant 1.000000e+00 : f32
    %522 = vector.broadcast %cst_204 : f32 to vector<8x64xf32>
    %523 = arith.addf %522, %521 : vector<8x64xf32>
    %524 = arith.divf %522, %523 : vector<8x64xf32>
    %525 = vector.extract_strided_slice %512 {offsets = [0, 96], sizes = [8, 64], strides = [1, 1]} : vector<8x192xf32> to vector<8x64xf32>
    %526 = vector.extract_strided_slice %516 {offsets = [0, 0], sizes = [8, 64], strides = [1, 1]} : vector<8x96xf32> to vector<8x64xf32>
    %527 = arith.addf %525, %526 : vector<8x64xf32>
    %528 = arith.negf %527 : vector<8x64xf32>
    %529 = math.exp %528 : vector<8x64xf32>
    %cst_205 = arith.constant 1.000000e+00 : f32
    %530 = vector.broadcast %cst_205 : f32 to vector<8x64xf32>
    %531 = arith.addf %530, %529 : vector<8x64xf32>
    %532 = arith.divf %530, %531 : vector<8x64xf32>
    %533 = vector.extract_strided_slice %509 {offsets = [0, 64], sizes = [8, 32], strides = [1, 1]} : vector<8x192xf32> to vector<8x32xf32>
    %534 = vector.extract_strided_slice %524 {offsets = [0, 0], sizes = [8, 32], strides = [1, 1]} : vector<8x64xf32> to vector<8x32xf32>
    %535 = vector.extract_strided_slice %514 {offsets = [0, 64], sizes = [8, 32], strides = [1, 1]} : vector<8x96xf32> to vector<8x32xf32>
    %536 = vector.broadcast %83 : vector<1x32xf32> to vector<8x32xf32>
    %537 = arith.addf %535, %536 : vector<8x32xf32>
    %538 = arith.mulf %534, %537 : vector<8x32xf32>
    %539 = arith.addf %533, %538 : vector<8x32xf32>
    %540 = math.tanh %539 : vector<8x32xf32>
    %541 = vector.extract_strided_slice %512 {offsets = [0, 160], sizes = [8, 32], strides = [1, 1]} : vector<8x192xf32> to vector<8x32xf32>
    %542 = vector.extract_strided_slice %532 {offsets = [0, 0], sizes = [8, 32], strides = [1, 1]} : vector<8x64xf32> to vector<8x32xf32>
    %543 = vector.extract_strided_slice %516 {offsets = [0, 64], sizes = [8, 32], strides = [1, 1]} : vector<8x96xf32> to vector<8x32xf32>
    %544 = vector.broadcast %84 : vector<1x32xf32> to vector<8x32xf32>
    %545 = arith.addf %543, %544 : vector<8x32xf32>
    %546 = arith.mulf %542, %545 : vector<8x32xf32>
    %547 = arith.addf %541, %546 : vector<8x32xf32>
    %548 = math.tanh %547 : vector<8x32xf32>
    %549 = vector.extract_strided_slice %524 {offsets = [0, 32], sizes = [8, 32], strides = [1, 1]} : vector<8x64xf32> to vector<8x32xf32>
    %550 = vector.extract_strided_slice %532 {offsets = [0, 32], sizes = [8, 32], strides = [1, 1]} : vector<8x64xf32> to vector<8x32xf32>
    %cst_206 = arith.constant 1.000000e+00 : f32
    %551 = vector.broadcast %cst_206 : f32 to vector<8x32xf32>
    %552 = arith.subf %551, %549 : vector<8x32xf32>
    %553 = arith.mulf %552, %540 : vector<8x32xf32>
    %554 = arith.mulf %549, %495 : vector<8x32xf32>
    %555 = arith.addf %553, %554 : vector<8x32xf32>
    %cst_207 = arith.constant 1.000000e+00 : f32
    %556 = vector.broadcast %cst_207 : f32 to vector<8x32xf32>
    %557 = arith.subf %556, %550 : vector<8x32xf32>
    %558 = arith.mulf %557, %548 : vector<8x32xf32>
    %559 = arith.mulf %550, %500 : vector<8x32xf32>
    %560 = arith.addf %558, %559 : vector<8x32xf32>
    %c7_208 = arith.constant 7 : index
    %c0_209 = arith.constant 0 : index
    %c0_210 = arith.constant 0 : index
    %561 = vector.load %arg26[%c7_208, %c0_209, %c0_210] : memref<16x8x64xf32, #tpu.memory_space<vmem>>, vector<1x8x32xf32>
    %562 = vector.shape_cast %561 : vector<1x8x32xf32> to vector<8x32xf32>
    %563 = vector.shape_cast %555 : vector<8x32xf32> to vector<1x8x32xf32>
    tpu.vector_store %arg26[%c7_208, %c0_209, %c0_210], %563 {strides = array<i32>} : memref<16x8x64xf32, #tpu.memory_space<vmem>>, vector<1x8x32xf32>,
    %c8_211 = arith.constant 8 : index
    %c0_212 = arith.constant 0 : index
    %c32_213 = arith.constant 32 : index
    %564 = vector.load %arg26[%c8_211, %c0_212, %c32_213] : memref<16x8x64xf32, #tpu.memory_space<vmem>>, vector<1x8x32xf32>
    %565 = vector.shape_cast %564 : vector<1x8x32xf32> to vector<8x32xf32>
    %566 = vector.shape_cast %560 : vector<8x32xf32> to vector<1x8x32xf32>
    tpu.vector_store %arg26[%c8_211, %c0_212, %c32_213], %566 {strides = array<i32>} : memref<16x8x64xf32, #tpu.memory_space<vmem>>, vector<1x8x32xf32>,
    %c8_214 = arith.constant 8 : index
    %c0_215 = arith.constant 0 : index
    %c0_216 = arith.constant 0 : index
    %567 = vector.load %arg25[%c8_214, %c0_215, %c0_216] : memref<16x8x192xbf16, #tpu.memory_space<vmem>>, vector<1x8x192xbf16>
    %568 = vector.shape_cast %567 : vector<1x8x192xbf16> to vector<8x192xbf16>
    %569 = arith.extf %568 : vector<8x192xbf16> to vector<8x192xf32>
    %c7_217 = arith.constant 7 : index
    %c0_218 = arith.constant 0 : index
    %c0_219 = arith.constant 0 : index
    %570 = vector.load %arg25[%c7_217, %c0_218, %c0_219] : memref<16x8x192xbf16, #tpu.memory_space<vmem>>, vector<1x8x192xbf16>
    %571 = vector.shape_cast %570 : vector<1x8x192xbf16> to vector<8x192xbf16>
    %572 = arith.extf %571 : vector<8x192xbf16> to vector<8x192xf32>
    %573 = arith.truncf %555 : vector<8x32xf32> to vector<8x32xbf16>
    %cst_220 = arith.constant dense<0.000000e+00> : vector<8x96xf32>
    %574 = tpu.matmul %573, %81, %cst_220 {dimension_numbers = #tpu.dot_dimension_numbers<[1], [0], [0], [1], [0, 0, 1, 1], [], []>} : vector<8x32xbf16>, vector<32x96xbf16>, vector<8x96xf32> -> vector<8x96xf32>
    %575 = arith.truncf %560 : vector<8x32xf32> to vector<8x32xbf16>
    %cst_221 = arith.constant dense<0.000000e+00> : vector<8x96xf32>
    %576 = tpu.matmul %575, %82, %cst_221 {dimension_numbers = #tpu.dot_dimension_numbers<[1], [0], [0], [1], [0, 0, 1, 1], [], []>} : vector<8x32xbf16>, vector<32x96xbf16>, vector<8x96xf32> -> vector<8x96xf32>
    %577 = vector.extract_strided_slice %569 {offsets = [0, 0], sizes = [8, 64], strides = [1, 1]} : vector<8x192xf32> to vector<8x64xf32>
    %578 = vector.extract_strided_slice %574 {offsets = [0, 0], sizes = [8, 64], strides = [1, 1]} : vector<8x96xf32> to vector<8x64xf32>
    %579 = arith.addf %577, %578 : vector<8x64xf32>
    %580 = arith.negf %579 : vector<8x64xf32>
    %581 = math.exp %580 : vector<8x64xf32>
    %cst_222 = arith.constant 1.000000e+00 : f32
    %582 = vector.broadcast %cst_222 : f32 to vector<8x64xf32>
    %583 = arith.addf %582, %581 : vector<8x64xf32>
    %584 = arith.divf %582, %583 : vector<8x64xf32>
    %585 = vector.extract_strided_slice %572 {offsets = [0, 96], sizes = [8, 64], strides = [1, 1]} : vector<8x192xf32> to vector<8x64xf32>
    %586 = vector.extract_strided_slice %576 {offsets = [0, 0], sizes = [8, 64], strides = [1, 1]} : vector<8x96xf32> to vector<8x64xf32>
    %587 = arith.addf %585, %586 : vector<8x64xf32>
    %588 = arith.negf %587 : vector<8x64xf32>
    %589 = math.exp %588 : vector<8x64xf32>
    %cst_223 = arith.constant 1.000000e+00 : f32
    %590 = vector.broadcast %cst_223 : f32 to vector<8x64xf32>
    %591 = arith.addf %590, %589 : vector<8x64xf32>
    %592 = arith.divf %590, %591 : vector<8x64xf32>
    %593 = vector.extract_strided_slice %569 {offsets = [0, 64], sizes = [8, 32], strides = [1, 1]} : vector<8x192xf32> to vector<8x32xf32>
    %594 = vector.extract_strided_slice %584 {offsets = [0, 0], sizes = [8, 32], strides = [1, 1]} : vector<8x64xf32> to vector<8x32xf32>
    %595 = vector.extract_strided_slice %574 {offsets = [0, 64], sizes = [8, 32], strides = [1, 1]} : vector<8x96xf32> to vector<8x32xf32>
    %596 = vector.broadcast %83 : vector<1x32xf32> to vector<8x32xf32>
    %597 = arith.addf %595, %596 : vector<8x32xf32>
    %598 = arith.mulf %594, %597 : vector<8x32xf32>
    %599 = arith.addf %593, %598 : vector<8x32xf32>
    %600 = math.tanh %599 : vector<8x32xf32>
    %601 = vector.extract_strided_slice %572 {offsets = [0, 160], sizes = [8, 32], strides = [1, 1]} : vector<8x192xf32> to vector<8x32xf32>
    %602 = vector.extract_strided_slice %592 {offsets = [0, 0], sizes = [8, 32], strides = [1, 1]} : vector<8x64xf32> to vector<8x32xf32>
    %603 = vector.extract_strided_slice %576 {offsets = [0, 64], sizes = [8, 32], strides = [1, 1]} : vector<8x96xf32> to vector<8x32xf32>
    %604 = vector.broadcast %84 : vector<1x32xf32> to vector<8x32xf32>
    %605 = arith.addf %603, %604 : vector<8x32xf32>
    %606 = arith.mulf %602, %605 : vector<8x32xf32>
    %607 = arith.addf %601, %606 : vector<8x32xf32>
    %608 = math.tanh %607 : vector<8x32xf32>
    %609 = vector.extract_strided_slice %584 {offsets = [0, 32], sizes = [8, 32], strides = [1, 1]} : vector<8x64xf32> to vector<8x32xf32>
    %610 = vector.extract_strided_slice %592 {offsets = [0, 32], sizes = [8, 32], strides = [1, 1]} : vector<8x64xf32> to vector<8x32xf32>
    %cst_224 = arith.constant 1.000000e+00 : f32
    %611 = vector.broadcast %cst_224 : f32 to vector<8x32xf32>
    %612 = arith.subf %611, %609 : vector<8x32xf32>
    %613 = arith.mulf %612, %600 : vector<8x32xf32>
    %614 = arith.mulf %609, %555 : vector<8x32xf32>
    %615 = arith.addf %613, %614 : vector<8x32xf32>
    %cst_225 = arith.constant 1.000000e+00 : f32
    %616 = vector.broadcast %cst_225 : f32 to vector<8x32xf32>
    %617 = arith.subf %616, %610 : vector<8x32xf32>
    %618 = arith.mulf %617, %608 : vector<8x32xf32>
    %619 = arith.mulf %610, %560 : vector<8x32xf32>
    %620 = arith.addf %618, %619 : vector<8x32xf32>
    %c8_226 = arith.constant 8 : index
    %c0_227 = arith.constant 0 : index
    %c0_228 = arith.constant 0 : index
    %621 = vector.load %arg26[%c8_226, %c0_227, %c0_228] : memref<16x8x64xf32, #tpu.memory_space<vmem>>, vector<1x8x32xf32>
    %622 = vector.shape_cast %621 : vector<1x8x32xf32> to vector<8x32xf32>
    %623 = vector.shape_cast %615 : vector<8x32xf32> to vector<1x8x32xf32>
    tpu.vector_store %arg26[%c8_226, %c0_227, %c0_228], %623 {strides = array<i32>} : memref<16x8x64xf32, #tpu.memory_space<vmem>>, vector<1x8x32xf32>,
    %c7_229 = arith.constant 7 : index
    %c0_230 = arith.constant 0 : index
    %c32_231 = arith.constant 32 : index
    %624 = vector.load %arg26[%c7_229, %c0_230, %c32_231] : memref<16x8x64xf32, #tpu.memory_space<vmem>>, vector<1x8x32xf32>
    %625 = vector.shape_cast %624 : vector<1x8x32xf32> to vector<8x32xf32>
    %626 = vector.shape_cast %620 : vector<8x32xf32> to vector<1x8x32xf32>
    tpu.vector_store %arg26[%c7_229, %c0_230, %c32_231], %626 {strides = array<i32>} : memref<16x8x64xf32, #tpu.memory_space<vmem>>, vector<1x8x32xf32>,
    %c9_232 = arith.constant 9 : index
    %c0_233 = arith.constant 0 : index
    %c0_234 = arith.constant 0 : index
    %627 = vector.load %arg25[%c9_232, %c0_233, %c0_234] : memref<16x8x192xbf16, #tpu.memory_space<vmem>>, vector<1x8x192xbf16>
    %628 = vector.shape_cast %627 : vector<1x8x192xbf16> to vector<8x192xbf16>
    %629 = arith.extf %628 : vector<8x192xbf16> to vector<8x192xf32>
    %c6_235 = arith.constant 6 : index
    %c0_236 = arith.constant 0 : index
    %c0_237 = arith.constant 0 : index
    %630 = vector.load %arg25[%c6_235, %c0_236, %c0_237] : memref<16x8x192xbf16, #tpu.memory_space<vmem>>, vector<1x8x192xbf16>
    %631 = vector.shape_cast %630 : vector<1x8x192xbf16> to vector<8x192xbf16>
    %632 = arith.extf %631 : vector<8x192xbf16> to vector<8x192xf32>
    %633 = arith.truncf %615 : vector<8x32xf32> to vector<8x32xbf16>
    %cst_238 = arith.constant dense<0.000000e+00> : vector<8x96xf32>
    %634 = tpu.matmul %633, %81, %cst_238 {dimension_numbers = #tpu.dot_dimension_numbers<[1], [0], [0], [1], [0, 0, 1, 1], [], []>} : vector<8x32xbf16>, vector<32x96xbf16>, vector<8x96xf32> -> vector<8x96xf32>
    %635 = arith.truncf %620 : vector<8x32xf32> to vector<8x32xbf16>
    %cst_239 = arith.constant dense<0.000000e+00> : vector<8x96xf32>
    %636 = tpu.matmul %635, %82, %cst_239 {dimension_numbers = #tpu.dot_dimension_numbers<[1], [0], [0], [1], [0, 0, 1, 1], [], []>} : vector<8x32xbf16>, vector<32x96xbf16>, vector<8x96xf32> -> vector<8x96xf32>
    %637 = vector.extract_strided_slice %629 {offsets = [0, 0], sizes = [8, 64], strides = [1, 1]} : vector<8x192xf32> to vector<8x64xf32>
    %638 = vector.extract_strided_slice %634 {offsets = [0, 0], sizes = [8, 64], strides = [1, 1]} : vector<8x96xf32> to vector<8x64xf32>
    %639 = arith.addf %637, %638 : vector<8x64xf32>
    %640 = arith.negf %639 : vector<8x64xf32>
    %641 = math.exp %640 : vector<8x64xf32>
    %cst_240 = arith.constant 1.000000e+00 : f32
    %642 = vector.broadcast %cst_240 : f32 to vector<8x64xf32>
    %643 = arith.addf %642, %641 : vector<8x64xf32>
    %644 = arith.divf %642, %643 : vector<8x64xf32>
    %645 = vector.extract_strided_slice %632 {offsets = [0, 96], sizes = [8, 64], strides = [1, 1]} : vector<8x192xf32> to vector<8x64xf32>
    %646 = vector.extract_strided_slice %636 {offsets = [0, 0], sizes = [8, 64], strides = [1, 1]} : vector<8x96xf32> to vector<8x64xf32>
    %647 = arith.addf %645, %646 : vector<8x64xf32>
    %648 = arith.negf %647 : vector<8x64xf32>
    %649 = math.exp %648 : vector<8x64xf32>
    %cst_241 = arith.constant 1.000000e+00 : f32
    %650 = vector.broadcast %cst_241 : f32 to vector<8x64xf32>
    %651 = arith.addf %650, %649 : vector<8x64xf32>
    %652 = arith.divf %650, %651 : vector<8x64xf32>
    %653 = vector.extract_strided_slice %629 {offsets = [0, 64], sizes = [8, 32], strides = [1, 1]} : vector<8x192xf32> to vector<8x32xf32>
    %654 = vector.extract_strided_slice %644 {offsets = [0, 0], sizes = [8, 32], strides = [1, 1]} : vector<8x64xf32> to vector<8x32xf32>
    %655 = vector.extract_strided_slice %634 {offsets = [0, 64], sizes = [8, 32], strides = [1, 1]} : vector<8x96xf32> to vector<8x32xf32>
    %656 = vector.broadcast %83 : vector<1x32xf32> to vector<8x32xf32>
    %657 = arith.addf %655, %656 : vector<8x32xf32>
    %658 = arith.mulf %654, %657 : vector<8x32xf32>
    %659 = arith.addf %653, %658 : vector<8x32xf32>
    %660 = math.tanh %659 : vector<8x32xf32>
    %661 = vector.extract_strided_slice %632 {offsets = [0, 160], sizes = [8, 32], strides = [1, 1]} : vector<8x192xf32> to vector<8x32xf32>
    %662 = vector.extract_strided_slice %652 {offsets = [0, 0], sizes = [8, 32], strides = [1, 1]} : vector<8x64xf32> to vector<8x32xf32>
    %663 = vector.extract_strided_slice %636 {offsets = [0, 64], sizes = [8, 32], strides = [1, 1]} : vector<8x96xf32> to vector<8x32xf32>
    %664 = vector.broadcast %84 : vector<1x32xf32> to vector<8x32xf32>
    %665 = arith.addf %663, %664 : vector<8x32xf32>
    %666 = arith.mulf %662, %665 : vector<8x32xf32>
    %667 = arith.addf %661, %666 : vector<8x32xf32>
    %668 = math.tanh %667 : vector<8x32xf32>
    %669 = vector.extract_strided_slice %644 {offsets = [0, 32], sizes = [8, 32], strides = [1, 1]} : vector<8x64xf32> to vector<8x32xf32>
    %670 = vector.extract_strided_slice %652 {offsets = [0, 32], sizes = [8, 32], strides = [1, 1]} : vector<8x64xf32> to vector<8x32xf32>
    %cst_242 = arith.constant 1.000000e+00 : f32
    %671 = vector.broadcast %cst_242 : f32 to vector<8x32xf32>
    %672 = arith.subf %671, %669 : vector<8x32xf32>
    %673 = arith.mulf %672, %660 : vector<8x32xf32>
    %674 = arith.mulf %669, %615 : vector<8x32xf32>
    %675 = arith.addf %673, %674 : vector<8x32xf32>
    %cst_243 = arith.constant 1.000000e+00 : f32
    %676 = vector.broadcast %cst_243 : f32 to vector<8x32xf32>
    %677 = arith.subf %676, %670 : vector<8x32xf32>
    %678 = arith.mulf %677, %668 : vector<8x32xf32>
    %679 = arith.mulf %670, %620 : vector<8x32xf32>
    %680 = arith.addf %678, %679 : vector<8x32xf32>
    %c9_244 = arith.constant 9 : index
    %c0_245 = arith.constant 0 : index
    %c0_246 = arith.constant 0 : index
    %681 = vector.load %arg26[%c9_244, %c0_245, %c0_246] : memref<16x8x64xf32, #tpu.memory_space<vmem>>, vector<1x8x32xf32>
    %682 = vector.shape_cast %681 : vector<1x8x32xf32> to vector<8x32xf32>
    %683 = vector.shape_cast %675 : vector<8x32xf32> to vector<1x8x32xf32>
    tpu.vector_store %arg26[%c9_244, %c0_245, %c0_246], %683 {strides = array<i32>} : memref<16x8x64xf32, #tpu.memory_space<vmem>>, vector<1x8x32xf32>,
    %c6_247 = arith.constant 6 : index
    %c0_248 = arith.constant 0 : index
    %c32_249 = arith.constant 32 : index
    %684 = vector.load %arg26[%c6_247, %c0_248, %c32_249] : memref<16x8x64xf32, #tpu.memory_space<vmem>>, vector<1x8x32xf32>
    %685 = vector.shape_cast %684 : vector<1x8x32xf32> to vector<8x32xf32>
    %686 = vector.shape_cast %680 : vector<8x32xf32> to vector<1x8x32xf32>
    tpu.vector_store %arg26[%c6_247, %c0_248, %c32_249], %686 {strides = array<i32>} : memref<16x8x64xf32, #tpu.memory_space<vmem>>, vector<1x8x32xf32>,
    %c10_250 = arith.constant 10 : index
    %c0_251 = arith.constant 0 : index
    %c0_252 = arith.constant 0 : index
    %687 = vector.load %arg25[%c10_250, %c0_251, %c0_252] : memref<16x8x192xbf16, #tpu.memory_space<vmem>>, vector<1x8x192xbf16>
    %688 = vector.shape_cast %687 : vector<1x8x192xbf16> to vector<8x192xbf16>
    %689 = arith.extf %688 : vector<8x192xbf16> to vector<8x192xf32>
    %c5_253 = arith.constant 5 : index
    %c0_254 = arith.constant 0 : index
    %c0_255 = arith.constant 0 : index
    %690 = vector.load %arg25[%c5_253, %c0_254, %c0_255] : memref<16x8x192xbf16, #tpu.memory_space<vmem>>, vector<1x8x192xbf16>
    %691 = vector.shape_cast %690 : vector<1x8x192xbf16> to vector<8x192xbf16>
    %692 = arith.extf %691 : vector<8x192xbf16> to vector<8x192xf32>
    %693 = arith.truncf %675 : vector<8x32xf32> to vector<8x32xbf16>
    %cst_256 = arith.constant dense<0.000000e+00> : vector<8x96xf32>
    %694 = tpu.matmul %693, %81, %cst_256 {dimension_numbers = #tpu.dot_dimension_numbers<[1], [0], [0], [1], [0, 0, 1, 1], [], []>} : vector<8x32xbf16>, vector<32x96xbf16>, vector<8x96xf32> -> vector<8x96xf32>
    %695 = arith.truncf %680 : vector<8x32xf32> to vector<8x32xbf16>
    %cst_257 = arith.constant dense<0.000000e+00> : vector<8x96xf32>
    %696 = tpu.matmul %695, %82, %cst_257 {dimension_numbers = #tpu.dot_dimension_numbers<[1], [0], [0], [1], [0, 0, 1, 1], [], []>} : vector<8x32xbf16>, vector<32x96xbf16>, vector<8x96xf32> -> vector<8x96xf32>
    %697 = vector.extract_strided_slice %689 {offsets = [0, 0], sizes = [8, 64], strides = [1, 1]} : vector<8x192xf32> to vector<8x64xf32>
    %698 = vector.extract_strided_slice %694 {offsets = [0, 0], sizes = [8, 64], strides = [1, 1]} : vector<8x96xf32> to vector<8x64xf32>
    %699 = arith.addf %697, %698 : vector<8x64xf32>
    %700 = arith.negf %699 : vector<8x64xf32>
    %701 = math.exp %700 : vector<8x64xf32>
    %cst_258 = arith.constant 1.000000e+00 : f32
    %702 = vector.broadcast %cst_258 : f32 to vector<8x64xf32>
    %703 = arith.addf %702, %701 : vector<8x64xf32>
    %704 = arith.divf %702, %703 : vector<8x64xf32>
    %705 = vector.extract_strided_slice %692 {offsets = [0, 96], sizes = [8, 64], strides = [1, 1]} : vector<8x192xf32> to vector<8x64xf32>
    %706 = vector.extract_strided_slice %696 {offsets = [0, 0], sizes = [8, 64], strides = [1, 1]} : vector<8x96xf32> to vector<8x64xf32>
    %707 = arith.addf %705, %706 : vector<8x64xf32>
    %708 = arith.negf %707 : vector<8x64xf32>
    %709 = math.exp %708 : vector<8x64xf32>
    %cst_259 = arith.constant 1.000000e+00 : f32
    %710 = vector.broadcast %cst_259 : f32 to vector<8x64xf32>
    %711 = arith.addf %710, %709 : vector<8x64xf32>
    %712 = arith.divf %710, %711 : vector<8x64xf32>
    %713 = vector.extract_strided_slice %689 {offsets = [0, 64], sizes = [8, 32], strides = [1, 1]} : vector<8x192xf32> to vector<8x32xf32>
    %714 = vector.extract_strided_slice %704 {offsets = [0, 0], sizes = [8, 32], strides = [1, 1]} : vector<8x64xf32> to vector<8x32xf32>
    %715 = vector.extract_strided_slice %694 {offsets = [0, 64], sizes = [8, 32], strides = [1, 1]} : vector<8x96xf32> to vector<8x32xf32>
    %716 = vector.broadcast %83 : vector<1x32xf32> to vector<8x32xf32>
    %717 = arith.addf %715, %716 : vector<8x32xf32>
    %718 = arith.mulf %714, %717 : vector<8x32xf32>
    %719 = arith.addf %713, %718 : vector<8x32xf32>
    %720 = math.tanh %719 : vector<8x32xf32>
    %721 = vector.extract_strided_slice %692 {offsets = [0, 160], sizes = [8, 32], strides = [1, 1]} : vector<8x192xf32> to vector<8x32xf32>
    %722 = vector.extract_strided_slice %712 {offsets = [0, 0], sizes = [8, 32], strides = [1, 1]} : vector<8x64xf32> to vector<8x32xf32>
    %723 = vector.extract_strided_slice %696 {offsets = [0, 64], sizes = [8, 32], strides = [1, 1]} : vector<8x96xf32> to vector<8x32xf32>
    %724 = vector.broadcast %84 : vector<1x32xf32> to vector<8x32xf32>
    %725 = arith.addf %723, %724 : vector<8x32xf32>
    %726 = arith.mulf %722, %725 : vector<8x32xf32>
    %727 = arith.addf %721, %726 : vector<8x32xf32>
    %728 = math.tanh %727 : vector<8x32xf32>
    %729 = vector.extract_strided_slice %704 {offsets = [0, 32], sizes = [8, 32], strides = [1, 1]} : vector<8x64xf32> to vector<8x32xf32>
    %730 = vector.extract_strided_slice %712 {offsets = [0, 32], sizes = [8, 32], strides = [1, 1]} : vector<8x64xf32> to vector<8x32xf32>
    %cst_260 = arith.constant 1.000000e+00 : f32
    %731 = vector.broadcast %cst_260 : f32 to vector<8x32xf32>
    %732 = arith.subf %731, %729 : vector<8x32xf32>
    %733 = arith.mulf %732, %720 : vector<8x32xf32>
    %734 = arith.mulf %729, %675 : vector<8x32xf32>
    %735 = arith.addf %733, %734 : vector<8x32xf32>
    %cst_261 = arith.constant 1.000000e+00 : f32
    %736 = vector.broadcast %cst_261 : f32 to vector<8x32xf32>
    %737 = arith.subf %736, %730 : vector<8x32xf32>
    %738 = arith.mulf %737, %728 : vector<8x32xf32>
    %739 = arith.mulf %730, %680 : vector<8x32xf32>
    %740 = arith.addf %738, %739 : vector<8x32xf32>
    %c10_262 = arith.constant 10 : index
    %c0_263 = arith.constant 0 : index
    %c0_264 = arith.constant 0 : index
    %741 = vector.load %arg26[%c10_262, %c0_263, %c0_264] : memref<16x8x64xf32, #tpu.memory_space<vmem>>, vector<1x8x32xf32>
    %742 = vector.shape_cast %741 : vector<1x8x32xf32> to vector<8x32xf32>
    %743 = vector.shape_cast %735 : vector<8x32xf32> to vector<1x8x32xf32>
    tpu.vector_store %arg26[%c10_262, %c0_263, %c0_264], %743 {strides = array<i32>} : memref<16x8x64xf32, #tpu.memory_space<vmem>>, vector<1x8x32xf32>,
    %c5_265 = arith.constant 5 : index
    %c0_266 = arith.constant 0 : index
    %c32_267 = arith.constant 32 : index
    %744 = vector.load %arg26[%c5_265, %c0_266, %c32_267] : memref<16x8x64xf32, #tpu.memory_space<vmem>>, vector<1x8x32xf32>
    %745 = vector.shape_cast %744 : vector<1x8x32xf32> to vector<8x32xf32>
    %746 = vector.shape_cast %740 : vector<8x32xf32> to vector<1x8x32xf32>
    tpu.vector_store %arg26[%c5_265, %c0_266, %c32_267], %746 {strides = array<i32>} : memref<16x8x64xf32, #tpu.memory_space<vmem>>, vector<1x8x32xf32>,
    %c11_268 = arith.constant 11 : index
    %c0_269 = arith.constant 0 : index
    %c0_270 = arith.constant 0 : index
    %747 = vector.load %arg25[%c11_268, %c0_269, %c0_270] : memref<16x8x192xbf16, #tpu.memory_space<vmem>>, vector<1x8x192xbf16>
    %748 = vector.shape_cast %747 : vector<1x8x192xbf16> to vector<8x192xbf16>
    %749 = arith.extf %748 : vector<8x192xbf16> to vector<8x192xf32>
    %c4_271 = arith.constant 4 : index
    %c0_272 = arith.constant 0 : index
    %c0_273 = arith.constant 0 : index
    %750 = vector.load %arg25[%c4_271, %c0_272, %c0_273] : memref<16x8x192xbf16, #tpu.memory_space<vmem>>, vector<1x8x192xbf16>
    %751 = vector.shape_cast %750 : vector<1x8x192xbf16> to vector<8x192xbf16>
    %752 = arith.extf %751 : vector<8x192xbf16> to vector<8x192xf32>
    %753 = arith.truncf %735 : vector<8x32xf32> to vector<8x32xbf16>
    %cst_274 = arith.constant dense<0.000000e+00> : vector<8x96xf32>
    %754 = tpu.matmul %753, %81, %cst_274 {dimension_numbers = #tpu.dot_dimension_numbers<[1], [0], [0], [1], [0, 0, 1, 1], [], []>} : vector<8x32xbf16>, vector<32x96xbf16>, vector<8x96xf32> -> vector<8x96xf32>
    %755 = arith.truncf %740 : vector<8x32xf32> to vector<8x32xbf16>
    %cst_275 = arith.constant dense<0.000000e+00> : vector<8x96xf32>
    %756 = tpu.matmul %755, %82, %cst_275 {dimension_numbers = #tpu.dot_dimension_numbers<[1], [0], [0], [1], [0, 0, 1, 1], [], []>} : vector<8x32xbf16>, vector<32x96xbf16>, vector<8x96xf32> -> vector<8x96xf32>
    %757 = vector.extract_strided_slice %749 {offsets = [0, 0], sizes = [8, 64], strides = [1, 1]} : vector<8x192xf32> to vector<8x64xf32>
    %758 = vector.extract_strided_slice %754 {offsets = [0, 0], sizes = [8, 64], strides = [1, 1]} : vector<8x96xf32> to vector<8x64xf32>
    %759 = arith.addf %757, %758 : vector<8x64xf32>
    %760 = arith.negf %759 : vector<8x64xf32>
    %761 = math.exp %760 : vector<8x64xf32>
    %cst_276 = arith.constant 1.000000e+00 : f32
    %762 = vector.broadcast %cst_276 : f32 to vector<8x64xf32>
    %763 = arith.addf %762, %761 : vector<8x64xf32>
    %764 = arith.divf %762, %763 : vector<8x64xf32>
    %765 = vector.extract_strided_slice %752 {offsets = [0, 96], sizes = [8, 64], strides = [1, 1]} : vector<8x192xf32> to vector<8x64xf32>
    %766 = vector.extract_strided_slice %756 {offsets = [0, 0], sizes = [8, 64], strides = [1, 1]} : vector<8x96xf32> to vector<8x64xf32>
    %767 = arith.addf %765, %766 : vector<8x64xf32>
    %768 = arith.negf %767 : vector<8x64xf32>
    %769 = math.exp %768 : vector<8x64xf32>
    %cst_277 = arith.constant 1.000000e+00 : f32
    %770 = vector.broadcast %cst_277 : f32 to vector<8x64xf32>
    %771 = arith.addf %770, %769 : vector<8x64xf32>
    %772 = arith.divf %770, %771 : vector<8x64xf32>
    %773 = vector.extract_strided_slice %749 {offsets = [0, 64], sizes = [8, 32], strides = [1, 1]} : vector<8x192xf32> to vector<8x32xf32>
    %774 = vector.extract_strided_slice %764 {offsets = [0, 0], sizes = [8, 32], strides = [1, 1]} : vector<8x64xf32> to vector<8x32xf32>
    %775 = vector.extract_strided_slice %754 {offsets = [0, 64], sizes = [8, 32], strides = [1, 1]} : vector<8x96xf32> to vector<8x32xf32>
    %776 = vector.broadcast %83 : vector<1x32xf32> to vector<8x32xf32>
    %777 = arith.addf %775, %776 : vector<8x32xf32>
    %778 = arith.mulf %774, %777 : vector<8x32xf32>
    %779 = arith.addf %773, %778 : vector<8x32xf32>
    %780 = math.tanh %779 : vector<8x32xf32>
    %781 = vector.extract_strided_slice %752 {offsets = [0, 160], sizes = [8, 32], strides = [1, 1]} : vector<8x192xf32> to vector<8x32xf32>
    %782 = vector.extract_strided_slice %772 {offsets = [0, 0], sizes = [8, 32], strides = [1, 1]} : vector<8x64xf32> to vector<8x32xf32>
    %783 = vector.extract_strided_slice %756 {offsets = [0, 64], sizes = [8, 32], strides = [1, 1]} : vector<8x96xf32> to vector<8x32xf32>
    %784 = vector.broadcast %84 : vector<1x32xf32> to vector<8x32xf32>
    %785 = arith.addf %783, %784 : vector<8x32xf32>
    %786 = arith.mulf %782, %785 : vector<8x32xf32>
    %787 = arith.addf %781, %786 : vector<8x32xf32>
    %788 = math.tanh %787 : vector<8x32xf32>
    %789 = vector.extract_strided_slice %764 {offsets = [0, 32], sizes = [8, 32], strides = [1, 1]} : vector<8x64xf32> to vector<8x32xf32>
    %790 = vector.extract_strided_slice %772 {offsets = [0, 32], sizes = [8, 32], strides = [1, 1]} : vector<8x64xf32> to vector<8x32xf32>
    %cst_278 = arith.constant 1.000000e+00 : f32
    %791 = vector.broadcast %cst_278 : f32 to vector<8x32xf32>
    %792 = arith.subf %791, %789 : vector<8x32xf32>
    %793 = arith.mulf %792, %780 : vector<8x32xf32>
    %794 = arith.mulf %789, %735 : vector<8x32xf32>
    %795 = arith.addf %793, %794 : vector<8x32xf32>
    %cst_279 = arith.constant 1.000000e+00 : f32
    %796 = vector.broadcast %cst_279 : f32 to vector<8x32xf32>
    %797 = arith.subf %796, %790 : vector<8x32xf32>
    %798 = arith.mulf %797, %788 : vector<8x32xf32>
    %799 = arith.mulf %790, %740 : vector<8x32xf32>
    %800 = arith.addf %798, %799 : vector<8x32xf32>
    %c11_280 = arith.constant 11 : index
    %c0_281 = arith.constant 0 : index
    %c0_282 = arith.constant 0 : index
    %801 = vector.load %arg26[%c11_280, %c0_281, %c0_282] : memref<16x8x64xf32, #tpu.memory_space<vmem>>, vector<1x8x32xf32>
    %802 = vector.shape_cast %801 : vector<1x8x32xf32> to vector<8x32xf32>
    %803 = vector.shape_cast %795 : vector<8x32xf32> to vector<1x8x32xf32>
    tpu.vector_store %arg26[%c11_280, %c0_281, %c0_282], %803 {strides = array<i32>} : memref<16x8x64xf32, #tpu.memory_space<vmem>>, vector<1x8x32xf32>,
    %c4_283 = arith.constant 4 : index
    %c0_284 = arith.constant 0 : index
    %c32_285 = arith.constant 32 : index
    %804 = vector.load %arg26[%c4_283, %c0_284, %c32_285] : memref<16x8x64xf32, #tpu.memory_space<vmem>>, vector<1x8x32xf32>
    %805 = vector.shape_cast %804 : vector<1x8x32xf32> to vector<8x32xf32>
    %806 = vector.shape_cast %800 : vector<8x32xf32> to vector<1x8x32xf32>
    tpu.vector_store %arg26[%c4_283, %c0_284, %c32_285], %806 {strides = array<i32>} : memref<16x8x64xf32, #tpu.memory_space<vmem>>, vector<1x8x32xf32>,
    %c12_286 = arith.constant 12 : index
    %c0_287 = arith.constant 0 : index
    %c0_288 = arith.constant 0 : index
    %807 = vector.load %arg25[%c12_286, %c0_287, %c0_288] : memref<16x8x192xbf16, #tpu.memory_space<vmem>>, vector<1x8x192xbf16>
    %808 = vector.shape_cast %807 : vector<1x8x192xbf16> to vector<8x192xbf16>
    %809 = arith.extf %808 : vector<8x192xbf16> to vector<8x192xf32>
    %c3_289 = arith.constant 3 : index
    %c0_290 = arith.constant 0 : index
    %c0_291 = arith.constant 0 : index
    %810 = vector.load %arg25[%c3_289, %c0_290, %c0_291] : memref<16x8x192xbf16, #tpu.memory_space<vmem>>, vector<1x8x192xbf16>
    %811 = vector.shape_cast %810 : vector<1x8x192xbf16> to vector<8x192xbf16>
    %812 = arith.extf %811 : vector<8x192xbf16> to vector<8x192xf32>
    %813 = arith.truncf %795 : vector<8x32xf32> to vector<8x32xbf16>
    %cst_292 = arith.constant dense<0.000000e+00> : vector<8x96xf32>
    %814 = tpu.matmul %813, %81, %cst_292 {dimension_numbers = #tpu.dot_dimension_numbers<[1], [0], [0], [1], [0, 0, 1, 1], [], []>} : vector<8x32xbf16>, vector<32x96xbf16>, vector<8x96xf32> -> vector<8x96xf32>
    %815 = arith.truncf %800 : vector<8x32xf32> to vector<8x32xbf16>
    %cst_293 = arith.constant dense<0.000000e+00> : vector<8x96xf32>
    %816 = tpu.matmul %815, %82, %cst_293 {dimension_numbers = #tpu.dot_dimension_numbers<[1], [0], [0], [1], [0, 0, 1, 1], [], []>} : vector<8x32xbf16>, vector<32x96xbf16>, vector<8x96xf32> -> vector<8x96xf32>
    %817 = vector.extract_strided_slice %809 {offsets = [0, 0], sizes = [8, 64], strides = [1, 1]} : vector<8x192xf32> to vector<8x64xf32>
    %818 = vector.extract_strided_slice %814 {offsets = [0, 0], sizes = [8, 64], strides = [1, 1]} : vector<8x96xf32> to vector<8x64xf32>
    %819 = arith.addf %817, %818 : vector<8x64xf32>
    %820 = arith.negf %819 : vector<8x64xf32>
    %821 = math.exp %820 : vector<8x64xf32>
    %cst_294 = arith.constant 1.000000e+00 : f32
    %822 = vector.broadcast %cst_294 : f32 to vector<8x64xf32>
    %823 = arith.addf %822, %821 : vector<8x64xf32>
    %824 = arith.divf %822, %823 : vector<8x64xf32>
    %825 = vector.extract_strided_slice %812 {offsets = [0, 96], sizes = [8, 64], strides = [1, 1]} : vector<8x192xf32> to vector<8x64xf32>
    %826 = vector.extract_strided_slice %816 {offsets = [0, 0], sizes = [8, 64], strides = [1, 1]} : vector<8x96xf32> to vector<8x64xf32>
    %827 = arith.addf %825, %826 : vector<8x64xf32>
    %828 = arith.negf %827 : vector<8x64xf32>
    %829 = math.exp %828 : vector<8x64xf32>
    %cst_295 = arith.constant 1.000000e+00 : f32
    %830 = vector.broadcast %cst_295 : f32 to vector<8x64xf32>
    %831 = arith.addf %830, %829 : vector<8x64xf32>
    %832 = arith.divf %830, %831 : vector<8x64xf32>
    %833 = vector.extract_strided_slice %809 {offsets = [0, 64], sizes = [8, 32], strides = [1, 1]} : vector<8x192xf32> to vector<8x32xf32>
    %834 = vector.extract_strided_slice %824 {offsets = [0, 0], sizes = [8, 32], strides = [1, 1]} : vector<8x64xf32> to vector<8x32xf32>
    %835 = vector.extract_strided_slice %814 {offsets = [0, 64], sizes = [8, 32], strides = [1, 1]} : vector<8x96xf32> to vector<8x32xf32>
    %836 = vector.broadcast %83 : vector<1x32xf32> to vector<8x32xf32>
    %837 = arith.addf %835, %836 : vector<8x32xf32>
    %838 = arith.mulf %834, %837 : vector<8x32xf32>
    %839 = arith.addf %833, %838 : vector<8x32xf32>
    %840 = math.tanh %839 : vector<8x32xf32>
    %841 = vector.extract_strided_slice %812 {offsets = [0, 160], sizes = [8, 32], strides = [1, 1]} : vector<8x192xf32> to vector<8x32xf32>
    %842 = vector.extract_strided_slice %832 {offsets = [0, 0], sizes = [8, 32], strides = [1, 1]} : vector<8x64xf32> to vector<8x32xf32>
    %843 = vector.extract_strided_slice %816 {offsets = [0, 64], sizes = [8, 32], strides = [1, 1]} : vector<8x96xf32> to vector<8x32xf32>
    %844 = vector.broadcast %84 : vector<1x32xf32> to vector<8x32xf32>
    %845 = arith.addf %843, %844 : vector<8x32xf32>
    %846 = arith.mulf %842, %845 : vector<8x32xf32>
    %847 = arith.addf %841, %846 : vector<8x32xf32>
    %848 = math.tanh %847 : vector<8x32xf32>
    %849 = vector.extract_strided_slice %824 {offsets = [0, 32], sizes = [8, 32], strides = [1, 1]} : vector<8x64xf32> to vector<8x32xf32>
    %850 = vector.extract_strided_slice %832 {offsets = [0, 32], sizes = [8, 32], strides = [1, 1]} : vector<8x64xf32> to vector<8x32xf32>
    %cst_296 = arith.constant 1.000000e+00 : f32
    %851 = vector.broadcast %cst_296 : f32 to vector<8x32xf32>
    %852 = arith.subf %851, %849 : vector<8x32xf32>
    %853 = arith.mulf %852, %840 : vector<8x32xf32>
    %854 = arith.mulf %849, %795 : vector<8x32xf32>
    %855 = arith.addf %853, %854 : vector<8x32xf32>
    %cst_297 = arith.constant 1.000000e+00 : f32
    %856 = vector.broadcast %cst_297 : f32 to vector<8x32xf32>
    %857 = arith.subf %856, %850 : vector<8x32xf32>
    %858 = arith.mulf %857, %848 : vector<8x32xf32>
    %859 = arith.mulf %850, %800 : vector<8x32xf32>
    %860 = arith.addf %858, %859 : vector<8x32xf32>
    %c12_298 = arith.constant 12 : index
    %c0_299 = arith.constant 0 : index
    %c0_300 = arith.constant 0 : index
    %861 = vector.load %arg26[%c12_298, %c0_299, %c0_300] : memref<16x8x64xf32, #tpu.memory_space<vmem>>, vector<1x8x32xf32>
    %862 = vector.shape_cast %861 : vector<1x8x32xf32> to vector<8x32xf32>
    %863 = vector.shape_cast %855 : vector<8x32xf32> to vector<1x8x32xf32>
    tpu.vector_store %arg26[%c12_298, %c0_299, %c0_300], %863 {strides = array<i32>} : memref<16x8x64xf32, #tpu.memory_space<vmem>>, vector<1x8x32xf32>,
    %c3_301 = arith.constant 3 : index
    %c0_302 = arith.constant 0 : index
    %c32_303 = arith.constant 32 : index
    %864 = vector.load %arg26[%c3_301, %c0_302, %c32_303] : memref<16x8x64xf32, #tpu.memory_space<vmem>>, vector<1x8x32xf32>
    %865 = vector.shape_cast %864 : vector<1x8x32xf32> to vector<8x32xf32>
    %866 = vector.shape_cast %860 : vector<8x32xf32> to vector<1x8x32xf32>
    tpu.vector_store %arg26[%c3_301, %c0_302, %c32_303], %866 {strides = array<i32>} : memref<16x8x64xf32, #tpu.memory_space<vmem>>, vector<1x8x32xf32>,
    %c13_304 = arith.constant 13 : index
    %c0_305 = arith.constant 0 : index
    %c0_306 = arith.constant 0 : index
    %867 = vector.load %arg25[%c13_304, %c0_305, %c0_306] : memref<16x8x192xbf16, #tpu.memory_space<vmem>>, vector<1x8x192xbf16>
    %868 = vector.shape_cast %867 : vector<1x8x192xbf16> to vector<8x192xbf16>
    %869 = arith.extf %868 : vector<8x192xbf16> to vector<8x192xf32>
    %c2_307 = arith.constant 2 : index
    %c0_308 = arith.constant 0 : index
    %c0_309 = arith.constant 0 : index
    %870 = vector.load %arg25[%c2_307, %c0_308, %c0_309] : memref<16x8x192xbf16, #tpu.memory_space<vmem>>, vector<1x8x192xbf16>
    %871 = vector.shape_cast %870 : vector<1x8x192xbf16> to vector<8x192xbf16>
    %872 = arith.extf %871 : vector<8x192xbf16> to vector<8x192xf32>
    %873 = arith.truncf %855 : vector<8x32xf32> to vector<8x32xbf16>
    %cst_310 = arith.constant dense<0.000000e+00> : vector<8x96xf32>
    %874 = tpu.matmul %873, %81, %cst_310 {dimension_numbers = #tpu.dot_dimension_numbers<[1], [0], [0], [1], [0, 0, 1, 1], [], []>} : vector<8x32xbf16>, vector<32x96xbf16>, vector<8x96xf32> -> vector<8x96xf32>
    %875 = arith.truncf %860 : vector<8x32xf32> to vector<8x32xbf16>
    %cst_311 = arith.constant dense<0.000000e+00> : vector<8x96xf32>
    %876 = tpu.matmul %875, %82, %cst_311 {dimension_numbers = #tpu.dot_dimension_numbers<[1], [0], [0], [1], [0, 0, 1, 1], [], []>} : vector<8x32xbf16>, vector<32x96xbf16>, vector<8x96xf32> -> vector<8x96xf32>
    %877 = vector.extract_strided_slice %869 {offsets = [0, 0], sizes = [8, 64], strides = [1, 1]} : vector<8x192xf32> to vector<8x64xf32>
    %878 = vector.extract_strided_slice %874 {offsets = [0, 0], sizes = [8, 64], strides = [1, 1]} : vector<8x96xf32> to vector<8x64xf32>
    %879 = arith.addf %877, %878 : vector<8x64xf32>
    %880 = arith.negf %879 : vector<8x64xf32>
    %881 = math.exp %880 : vector<8x64xf32>
    %cst_312 = arith.constant 1.000000e+00 : f32
    %882 = vector.broadcast %cst_312 : f32 to vector<8x64xf32>
    %883 = arith.addf %882, %881 : vector<8x64xf32>
    %884 = arith.divf %882, %883 : vector<8x64xf32>
    %885 = vector.extract_strided_slice %872 {offsets = [0, 96], sizes = [8, 64], strides = [1, 1]} : vector<8x192xf32> to vector<8x64xf32>
    %886 = vector.extract_strided_slice %876 {offsets = [0, 0], sizes = [8, 64], strides = [1, 1]} : vector<8x96xf32> to vector<8x64xf32>
    %887 = arith.addf %885, %886 : vector<8x64xf32>
    %888 = arith.negf %887 : vector<8x64xf32>
    %889 = math.exp %888 : vector<8x64xf32>
    %cst_313 = arith.constant 1.000000e+00 : f32
    %890 = vector.broadcast %cst_313 : f32 to vector<8x64xf32>
    %891 = arith.addf %890, %889 : vector<8x64xf32>
    %892 = arith.divf %890, %891 : vector<8x64xf32>
    %893 = vector.extract_strided_slice %869 {offsets = [0, 64], sizes = [8, 32], strides = [1, 1]} : vector<8x192xf32> to vector<8x32xf32>
    %894 = vector.extract_strided_slice %884 {offsets = [0, 0], sizes = [8, 32], strides = [1, 1]} : vector<8x64xf32> to vector<8x32xf32>
    %895 = vector.extract_strided_slice %874 {offsets = [0, 64], sizes = [8, 32], strides = [1, 1]} : vector<8x96xf32> to vector<8x32xf32>
    %896 = vector.broadcast %83 : vector<1x32xf32> to vector<8x32xf32>
    %897 = arith.addf %895, %896 : vector<8x32xf32>
    %898 = arith.mulf %894, %897 : vector<8x32xf32>
    %899 = arith.addf %893, %898 : vector<8x32xf32>
    %900 = math.tanh %899 : vector<8x32xf32>
    %901 = vector.extract_strided_slice %872 {offsets = [0, 160], sizes = [8, 32], strides = [1, 1]} : vector<8x192xf32> to vector<8x32xf32>
    %902 = vector.extract_strided_slice %892 {offsets = [0, 0], sizes = [8, 32], strides = [1, 1]} : vector<8x64xf32> to vector<8x32xf32>
    %903 = vector.extract_strided_slice %876 {offsets = [0, 64], sizes = [8, 32], strides = [1, 1]} : vector<8x96xf32> to vector<8x32xf32>
    %904 = vector.broadcast %84 : vector<1x32xf32> to vector<8x32xf32>
    %905 = arith.addf %903, %904 : vector<8x32xf32>
    %906 = arith.mulf %902, %905 : vector<8x32xf32>
    %907 = arith.addf %901, %906 : vector<8x32xf32>
    %908 = math.tanh %907 : vector<8x32xf32>
    %909 = vector.extract_strided_slice %884 {offsets = [0, 32], sizes = [8, 32], strides = [1, 1]} : vector<8x64xf32> to vector<8x32xf32>
    %910 = vector.extract_strided_slice %892 {offsets = [0, 32], sizes = [8, 32], strides = [1, 1]} : vector<8x64xf32> to vector<8x32xf32>
    %cst_314 = arith.constant 1.000000e+00 : f32
    %911 = vector.broadcast %cst_314 : f32 to vector<8x32xf32>
    %912 = arith.subf %911, %909 : vector<8x32xf32>
    %913 = arith.mulf %912, %900 : vector<8x32xf32>
    %914 = arith.mulf %909, %855 : vector<8x32xf32>
    %915 = arith.addf %913, %914 : vector<8x32xf32>
    %cst_315 = arith.constant 1.000000e+00 : f32
    %916 = vector.broadcast %cst_315 : f32 to vector<8x32xf32>
    %917 = arith.subf %916, %910 : vector<8x32xf32>
    %918 = arith.mulf %917, %908 : vector<8x32xf32>
    %919 = arith.mulf %910, %860 : vector<8x32xf32>
    %920 = arith.addf %918, %919 : vector<8x32xf32>
    %c13_316 = arith.constant 13 : index
    %c0_317 = arith.constant 0 : index
    %c0_318 = arith.constant 0 : index
    %921 = vector.load %arg26[%c13_316, %c0_317, %c0_318] : memref<16x8x64xf32, #tpu.memory_space<vmem>>, vector<1x8x32xf32>
    %922 = vector.shape_cast %921 : vector<1x8x32xf32> to vector<8x32xf32>
    %923 = vector.shape_cast %915 : vector<8x32xf32> to vector<1x8x32xf32>
    tpu.vector_store %arg26[%c13_316, %c0_317, %c0_318], %923 {strides = array<i32>} : memref<16x8x64xf32, #tpu.memory_space<vmem>>, vector<1x8x32xf32>,
    %c2_319 = arith.constant 2 : index
    %c0_320 = arith.constant 0 : index
    %c32_321 = arith.constant 32 : index
    %924 = vector.load %arg26[%c2_319, %c0_320, %c32_321] : memref<16x8x64xf32, #tpu.memory_space<vmem>>, vector<1x8x32xf32>
    %925 = vector.shape_cast %924 : vector<1x8x32xf32> to vector<8x32xf32>
    %926 = vector.shape_cast %920 : vector<8x32xf32> to vector<1x8x32xf32>
    tpu.vector_store %arg26[%c2_319, %c0_320, %c32_321], %926 {strides = array<i32>} : memref<16x8x64xf32, #tpu.memory_space<vmem>>, vector<1x8x32xf32>,
    %c14_322 = arith.constant 14 : index
    %c0_323 = arith.constant 0 : index
    %c0_324 = arith.constant 0 : index
    %927 = vector.load %arg25[%c14_322, %c0_323, %c0_324] : memref<16x8x192xbf16, #tpu.memory_space<vmem>>, vector<1x8x192xbf16>
    %928 = vector.shape_cast %927 : vector<1x8x192xbf16> to vector<8x192xbf16>
    %929 = arith.extf %928 : vector<8x192xbf16> to vector<8x192xf32>
    %c1_325 = arith.constant 1 : index
    %c0_326 = arith.constant 0 : index
    %c0_327 = arith.constant 0 : index
    %930 = vector.load %arg25[%c1_325, %c0_326, %c0_327] : memref<16x8x192xbf16, #tpu.memory_space<vmem>>, vector<1x8x192xbf16>
    %931 = vector.shape_cast %930 : vector<1x8x192xbf16> to vector<8x192xbf16>
    %932 = arith.extf %931 : vector<8x192xbf16> to vector<8x192xf32>
    %933 = arith.truncf %915 : vector<8x32xf32> to vector<8x32xbf16>
    %cst_328 = arith.constant dense<0.000000e+00> : vector<8x96xf32>
    %934 = tpu.matmul %933, %81, %cst_328 {dimension_numbers = #tpu.dot_dimension_numbers<[1], [0], [0], [1], [0, 0, 1, 1], [], []>} : vector<8x32xbf16>, vector<32x96xbf16>, vector<8x96xf32> -> vector<8x96xf32>
    %935 = arith.truncf %920 : vector<8x32xf32> to vector<8x32xbf16>
    %cst_329 = arith.constant dense<0.000000e+00> : vector<8x96xf32>
    %936 = tpu.matmul %935, %82, %cst_329 {dimension_numbers = #tpu.dot_dimension_numbers<[1], [0], [0], [1], [0, 0, 1, 1], [], []>} : vector<8x32xbf16>, vector<32x96xbf16>, vector<8x96xf32> -> vector<8x96xf32>
    %937 = vector.extract_strided_slice %929 {offsets = [0, 0], sizes = [8, 64], strides = [1, 1]} : vector<8x192xf32> to vector<8x64xf32>
    %938 = vector.extract_strided_slice %934 {offsets = [0, 0], sizes = [8, 64], strides = [1, 1]} : vector<8x96xf32> to vector<8x64xf32>
    %939 = arith.addf %937, %938 : vector<8x64xf32>
    %940 = arith.negf %939 : vector<8x64xf32>
    %941 = math.exp %940 : vector<8x64xf32>
    %cst_330 = arith.constant 1.000000e+00 : f32
    %942 = vector.broadcast %cst_330 : f32 to vector<8x64xf32>
    %943 = arith.addf %942, %941 : vector<8x64xf32>
    %944 = arith.divf %942, %943 : vector<8x64xf32>
    %945 = vector.extract_strided_slice %932 {offsets = [0, 96], sizes = [8, 64], strides = [1, 1]} : vector<8x192xf32> to vector<8x64xf32>
    %946 = vector.extract_strided_slice %936 {offsets = [0, 0], sizes = [8, 64], strides = [1, 1]} : vector<8x96xf32> to vector<8x64xf32>
    %947 = arith.addf %945, %946 : vector<8x64xf32>
    %948 = arith.negf %947 : vector<8x64xf32>
    %949 = math.exp %948 : vector<8x64xf32>
    %cst_331 = arith.constant 1.000000e+00 : f32
    %950 = vector.broadcast %cst_331 : f32 to vector<8x64xf32>
    %951 = arith.addf %950, %949 : vector<8x64xf32>
    %952 = arith.divf %950, %951 : vector<8x64xf32>
    %953 = vector.extract_strided_slice %929 {offsets = [0, 64], sizes = [8, 32], strides = [1, 1]} : vector<8x192xf32> to vector<8x32xf32>
    %954 = vector.extract_strided_slice %944 {offsets = [0, 0], sizes = [8, 32], strides = [1, 1]} : vector<8x64xf32> to vector<8x32xf32>
    %955 = vector.extract_strided_slice %934 {offsets = [0, 64], sizes = [8, 32], strides = [1, 1]} : vector<8x96xf32> to vector<8x32xf32>
    %956 = vector.broadcast %83 : vector<1x32xf32> to vector<8x32xf32>
    %957 = arith.addf %955, %956 : vector<8x32xf32>
    %958 = arith.mulf %954, %957 : vector<8x32xf32>
    %959 = arith.addf %953, %958 : vector<8x32xf32>
    %960 = math.tanh %959 : vector<8x32xf32>
    %961 = vector.extract_strided_slice %932 {offsets = [0, 160], sizes = [8, 32], strides = [1, 1]} : vector<8x192xf32> to vector<8x32xf32>
    %962 = vector.extract_strided_slice %952 {offsets = [0, 0], sizes = [8, 32], strides = [1, 1]} : vector<8x64xf32> to vector<8x32xf32>
    %963 = vector.extract_strided_slice %936 {offsets = [0, 64], sizes = [8, 32], strides = [1, 1]} : vector<8x96xf32> to vector<8x32xf32>
    %964 = vector.broadcast %84 : vector<1x32xf32> to vector<8x32xf32>
    %965 = arith.addf %963, %964 : vector<8x32xf32>
    %966 = arith.mulf %962, %965 : vector<8x32xf32>
    %967 = arith.addf %961, %966 : vector<8x32xf32>
    %968 = math.tanh %967 : vector<8x32xf32>
    %969 = vector.extract_strided_slice %944 {offsets = [0, 32], sizes = [8, 32], strides = [1, 1]} : vector<8x64xf32> to vector<8x32xf32>
    %970 = vector.extract_strided_slice %952 {offsets = [0, 32], sizes = [8, 32], strides = [1, 1]} : vector<8x64xf32> to vector<8x32xf32>
    %cst_332 = arith.constant 1.000000e+00 : f32
    %971 = vector.broadcast %cst_332 : f32 to vector<8x32xf32>
    %972 = arith.subf %971, %969 : vector<8x32xf32>
    %973 = arith.mulf %972, %960 : vector<8x32xf32>
    %974 = arith.mulf %969, %915 : vector<8x32xf32>
    %975 = arith.addf %973, %974 : vector<8x32xf32>
    %cst_333 = arith.constant 1.000000e+00 : f32
    %976 = vector.broadcast %cst_333 : f32 to vector<8x32xf32>
    %977 = arith.subf %976, %970 : vector<8x32xf32>
    %978 = arith.mulf %977, %968 : vector<8x32xf32>
    %979 = arith.mulf %970, %920 : vector<8x32xf32>
    %980 = arith.addf %978, %979 : vector<8x32xf32>
    %c14_334 = arith.constant 14 : index
    %c0_335 = arith.constant 0 : index
    %c0_336 = arith.constant 0 : index
    %981 = vector.load %arg26[%c14_334, %c0_335, %c0_336] : memref<16x8x64xf32, #tpu.memory_space<vmem>>, vector<1x8x32xf32>
    %982 = vector.shape_cast %981 : vector<1x8x32xf32> to vector<8x32xf32>
    %983 = vector.shape_cast %975 : vector<8x32xf32> to vector<1x8x32xf32>
    tpu.vector_store %arg26[%c14_334, %c0_335, %c0_336], %983 {strides = array<i32>} : memref<16x8x64xf32, #tpu.memory_space<vmem>>, vector<1x8x32xf32>,
    %c1_337 = arith.constant 1 : index
    %c0_338 = arith.constant 0 : index
    %c32_339 = arith.constant 32 : index
    %984 = vector.load %arg26[%c1_337, %c0_338, %c32_339] : memref<16x8x64xf32, #tpu.memory_space<vmem>>, vector<1x8x32xf32>
    %985 = vector.shape_cast %984 : vector<1x8x32xf32> to vector<8x32xf32>
    %986 = vector.shape_cast %980 : vector<8x32xf32> to vector<1x8x32xf32>
    tpu.vector_store %arg26[%c1_337, %c0_338, %c32_339], %986 {strides = array<i32>} : memref<16x8x64xf32, #tpu.memory_space<vmem>>, vector<1x8x32xf32>,
    %c15_340 = arith.constant 15 : index
    %c0_341 = arith.constant 0 : index
    %c0_342 = arith.constant 0 : index
    %987 = vector.load %arg25[%c15_340, %c0_341, %c0_342] : memref<16x8x192xbf16, #tpu.memory_space<vmem>>, vector<1x8x192xbf16>
    %988 = vector.shape_cast %987 : vector<1x8x192xbf16> to vector<8x192xbf16>
    %989 = arith.extf %988 : vector<8x192xbf16> to vector<8x192xf32>
    %c0_343 = arith.constant 0 : index
    %c0_344 = arith.constant 0 : index
    %c0_345 = arith.constant 0 : index
    %990 = vector.load %arg25[%c0_343, %c0_344, %c0_345] : memref<16x8x192xbf16, #tpu.memory_space<vmem>>, vector<1x8x192xbf16>
    %991 = vector.shape_cast %990 : vector<1x8x192xbf16> to vector<8x192xbf16>
    %992 = arith.extf %991 : vector<8x192xbf16> to vector<8x192xf32>
    %993 = arith.truncf %975 : vector<8x32xf32> to vector<8x32xbf16>
    %cst_346 = arith.constant dense<0.000000e+00> : vector<8x96xf32>
    %994 = tpu.matmul %993, %81, %cst_346 {dimension_numbers = #tpu.dot_dimension_numbers<[1], [0], [0], [1], [0, 0, 1, 1], [], []>} : vector<8x32xbf16>, vector<32x96xbf16>, vector<8x96xf32> -> vector<8x96xf32>
    %995 = arith.truncf %980 : vector<8x32xf32> to vector<8x32xbf16>
    %cst_347 = arith.constant dense<0.000000e+00> : vector<8x96xf32>
    %996 = tpu.matmul %995, %82, %cst_347 {dimension_numbers = #tpu.dot_dimension_numbers<[1], [0], [0], [1], [0, 0, 1, 1], [], []>} : vector<8x32xbf16>, vector<32x96xbf16>, vector<8x96xf32> -> vector<8x96xf32>
    %997 = vector.extract_strided_slice %989 {offsets = [0, 0], sizes = [8, 64], strides = [1, 1]} : vector<8x192xf32> to vector<8x64xf32>
    %998 = vector.extract_strided_slice %994 {offsets = [0, 0], sizes = [8, 64], strides = [1, 1]} : vector<8x96xf32> to vector<8x64xf32>
    %999 = arith.addf %997, %998 : vector<8x64xf32>
    %1000 = arith.negf %999 : vector<8x64xf32>
    %1001 = math.exp %1000 : vector<8x64xf32>
    %cst_348 = arith.constant 1.000000e+00 : f32
    %1002 = vector.broadcast %cst_348 : f32 to vector<8x64xf32>
    %1003 = arith.addf %1002, %1001 : vector<8x64xf32>
    %1004 = arith.divf %1002, %1003 : vector<8x64xf32>
    %1005 = vector.extract_strided_slice %992 {offsets = [0, 96], sizes = [8, 64], strides = [1, 1]} : vector<8x192xf32> to vector<8x64xf32>
    %1006 = vector.extract_strided_slice %996 {offsets = [0, 0], sizes = [8, 64], strides = [1, 1]} : vector<8x96xf32> to vector<8x64xf32>
    %1007 = arith.addf %1005, %1006 : vector<8x64xf32>
    %1008 = arith.negf %1007 : vector<8x64xf32>
    %1009 = math.exp %1008 : vector<8x64xf32>
    %cst_349 = arith.constant 1.000000e+00 : f32
    %1010 = vector.broadcast %cst_349 : f32 to vector<8x64xf32>
    %1011 = arith.addf %1010, %1009 : vector<8x64xf32>
    %1012 = arith.divf %1010, %1011 : vector<8x64xf32>
    %1013 = vector.extract_strided_slice %989 {offsets = [0, 64], sizes = [8, 32], strides = [1, 1]} : vector<8x192xf32> to vector<8x32xf32>
    %1014 = vector.extract_strided_slice %1004 {offsets = [0, 0], sizes = [8, 32], strides = [1, 1]} : vector<8x64xf32> to vector<8x32xf32>
    %1015 = vector.extract_strided_slice %994 {offsets = [0, 64], sizes = [8, 32], strides = [1, 1]} : vector<8x96xf32> to vector<8x32xf32>
    %1016 = vector.broadcast %83 : vector<1x32xf32> to vector<8x32xf32>
    %1017 = arith.addf %1015, %1016 : vector<8x32xf32>
    %1018 = arith.mulf %1014, %1017 : vector<8x32xf32>
    %1019 = arith.addf %1013, %1018 : vector<8x32xf32>
    %1020 = math.tanh %1019 : vector<8x32xf32>
    %1021 = vector.extract_strided_slice %992 {offsets = [0, 160], sizes = [8, 32], strides = [1, 1]} : vector<8x192xf32> to vector<8x32xf32>
    %1022 = vector.extract_strided_slice %1012 {offsets = [0, 0], sizes = [8, 32], strides = [1, 1]} : vector<8x64xf32> to vector<8x32xf32>
    %1023 = vector.extract_strided_slice %996 {offsets = [0, 64], sizes = [8, 32], strides = [1, 1]} : vector<8x96xf32> to vector<8x32xf32>
    %1024 = vector.broadcast %84 : vector<1x32xf32> to vector<8x32xf32>
    %1025 = arith.addf %1023, %1024 : vector<8x32xf32>
    %1026 = arith.mulf %1022, %1025 : vector<8x32xf32>
    %1027 = arith.addf %1021, %1026 : vector<8x32xf32>
    %1028 = math.tanh %1027 : vector<8x32xf32>
    %1029 = vector.extract_strided_slice %1004 {offsets = [0, 32], sizes = [8, 32], strides = [1, 1]} : vector<8x64xf32> to vector<8x32xf32>
    %1030 = vector.extract_strided_slice %1012 {offsets = [0, 32], sizes = [8, 32], strides = [1, 1]} : vector<8x64xf32> to vector<8x32xf32>
    %cst_350 = arith.constant 1.000000e+00 : f32
    %1031 = vector.broadcast %cst_350 : f32 to vector<8x32xf32>
    %1032 = arith.subf %1031, %1029 : vector<8x32xf32>
    %1033 = arith.mulf %1032, %1020 : vector<8x32xf32>
    %1034 = arith.mulf %1029, %975 : vector<8x32xf32>
    %1035 = arith.addf %1033, %1034 : vector<8x32xf32>
    %cst_351 = arith.constant 1.000000e+00 : f32
    %1036 = vector.broadcast %cst_351 : f32 to vector<8x32xf32>
    %1037 = arith.subf %1036, %1030 : vector<8x32xf32>
    %1038 = arith.mulf %1037, %1028 : vector<8x32xf32>
    %1039 = arith.mulf %1030, %980 : vector<8x32xf32>
    %1040 = arith.addf %1038, %1039 : vector<8x32xf32>
    %c15_352 = arith.constant 15 : index
    %c0_353 = arith.constant 0 : index
    %c0_354 = arith.constant 0 : index
    %1041 = vector.load %arg26[%c15_352, %c0_353, %c0_354] : memref<16x8x64xf32, #tpu.memory_space<vmem>>, vector<1x8x32xf32>
    %1042 = vector.shape_cast %1041 : vector<1x8x32xf32> to vector<8x32xf32>
    %1043 = vector.shape_cast %1035 : vector<8x32xf32> to vector<1x8x32xf32>
    tpu.vector_store %arg26[%c15_352, %c0_353, %c0_354], %1043 {strides = array<i32>} : memref<16x8x64xf32, #tpu.memory_space<vmem>>, vector<1x8x32xf32>,
    %c0_355 = arith.constant 0 : index
    %c0_356 = arith.constant 0 : index
    %c32_357 = arith.constant 32 : index
    %1044 = vector.load %arg26[%c0_355, %c0_356, %c32_357] : memref<16x8x64xf32, #tpu.memory_space<vmem>>, vector<1x8x32xf32>
    %1045 = vector.shape_cast %1044 : vector<1x8x32xf32> to vector<8x32xf32>
    %1046 = vector.shape_cast %1040 : vector<8x32xf32> to vector<1x8x32xf32>
    tpu.vector_store %arg26[%c0_355, %c0_356, %c32_357], %1046 {strides = array<i32>} : memref<16x8x64xf32, #tpu.memory_space<vmem>>, vector<1x8x32xf32>,
    %c0_358 = arith.constant 0 : index
    %c0_359 = arith.constant 0 : index
    %c0_360 = arith.constant 0 : index
    %1047 = vector.load %arg26[%c0_358, %c0_359, %c0_360] : memref<16x8x64xf32, #tpu.memory_space<vmem>>, vector<16x8x64xf32>
    %1048 = arith.truncf %1047 : vector<16x8x64xf32> to vector<16x8x64xbf16>
    %1049 = vector.shape_cast %1048 : vector<16x8x64xbf16> to vector<128x64xbf16>
    %c0_361 = arith.constant 0 : index
    %c0_362 = arith.constant 0 : index
    %1050 = vector.load %arg14[%c0_361, %c0_362] : memref<64x192xbf16, #tpu.memory_space<vmem>>, vector<64x192xbf16>
    %cst_363 = arith.constant dense<0.000000e+00> : vector<128x192xf32>
    %1051 = tpu.matmul %1049, %1050, %cst_363 {dimension_numbers = #tpu.dot_dimension_numbers<[1], [0], [0], [1], [0, 0, 1, 1], [], []>} : vector<128x64xbf16>, vector<64x192xbf16>, vector<128x192xf32> -> vector<128x192xf32>
    %c0_364 = arith.constant 0 : index
    %c0_365 = arith.constant 0 : index
    %1052 = vector.load %arg15[%c0_364, %c0_365] : memref<1x192xf32, #tpu.memory_space<vmem>>, vector<1x192xf32>
    %1053 = vector.broadcast %1052 : vector<1x192xf32> to vector<128x192xf32>
    %1054 = arith.addf %1051, %1053 : vector<128x192xf32>
    %1055 = vector.shape_cast %1054 : vector<128x192xf32> to vector<16x8x192xf32>
    %1056 = arith.truncf %1055 : vector<16x8x192xf32> to vector<16x8x192xbf16>
    %c0_366 = arith.constant 0 : index
    %c0_367 = arith.constant 0 : index
    %c0_368 = arith.constant 0 : index
    %1057 = vector.load %arg27[%c0_366, %c0_367, %c0_368] : memref<16x8x192xbf16, #tpu.memory_space<vmem>>, vector<16x8x192xbf16>
    tpu.vector_store %arg27[%c0_366, %c0_367, %c0_368], %1056 {strides = array<i32>} : memref<16x8x192xbf16, #tpu.memory_space<vmem>>, vector<16x8x192xbf16>,
    %c0_369 = arith.constant 0 : index
    %c0_370 = arith.constant 0 : index
    %1058 = vector.load %arg16[%c0_369, %c0_370] : memref<32x96xbf16, #tpu.memory_space<vmem>>, vector<32x96xbf16>
    %c0_371 = arith.constant 0 : index
    %c0_372 = arith.constant 0 : index
    %1059 = vector.load %arg17[%c0_371, %c0_372] : memref<32x96xbf16, #tpu.memory_space<vmem>>, vector<32x96xbf16>
    %c0_373 = arith.constant 0 : index
    %c0_374 = arith.constant 0 : index
    %1060 = vector.load %arg18[%c0_373, %c0_374] : memref<1x32xf32, #tpu.memory_space<vmem>>, vector<1x32xf32>
    %c0_375 = arith.constant 0 : index
    %c0_376 = arith.constant 0 : index
    %1061 = vector.load %arg19[%c0_375, %c0_376] : memref<1x32xf32, #tpu.memory_space<vmem>>, vector<1x32xf32>
    %cst_377 = arith.constant 0.000000e+00 : f32
    %1062 = vector.broadcast %cst_377 : f32 to vector<8x32xf32>
    %cst_378 = arith.constant 0.000000e+00 : f32
    %1063 = vector.broadcast %cst_378 : f32 to vector<8x32xf32>
    %c0_379 = arith.constant 0 : index
    %c0_380 = arith.constant 0 : index
    %c0_381 = arith.constant 0 : index
    %1064 = vector.load %arg27[%c0_379, %c0_380, %c0_381] : memref<16x8x192xbf16, #tpu.memory_space<vmem>>, vector<1x8x192xbf16>
    %1065 = vector.shape_cast %1064 : vector<1x8x192xbf16> to vector<8x192xbf16>
    %1066 = arith.extf %1065 : vector<8x192xbf16> to vector<8x192xf32>
    %c15_382 = arith.constant 15 : index
    %c0_383 = arith.constant 0 : index
    %c0_384 = arith.constant 0 : index
    %1067 = vector.load %arg27[%c15_382, %c0_383, %c0_384] : memref<16x8x192xbf16, #tpu.memory_space<vmem>>, vector<1x8x192xbf16>
    %1068 = vector.shape_cast %1067 : vector<1x8x192xbf16> to vector<8x192xbf16>
    %1069 = arith.extf %1068 : vector<8x192xbf16> to vector<8x192xf32>
    %1070 = arith.truncf %1062 : vector<8x32xf32> to vector<8x32xbf16>
    %cst_385 = arith.constant dense<0.000000e+00> : vector<8x96xf32>
    %1071 = tpu.matmul %1070, %1058, %cst_385 {dimension_numbers = #tpu.dot_dimension_numbers<[1], [0], [0], [1], [0, 0, 1, 1], [], []>} : vector<8x32xbf16>, vector<32x96xbf16>, vector<8x96xf32> -> vector<8x96xf32>
    %1072 = arith.truncf %1063 : vector<8x32xf32> to vector<8x32xbf16>
    %cst_386 = arith.constant dense<0.000000e+00> : vector<8x96xf32>
    %1073 = tpu.matmul %1072, %1059, %cst_386 {dimension_numbers = #tpu.dot_dimension_numbers<[1], [0], [0], [1], [0, 0, 1, 1], [], []>} : vector<8x32xbf16>, vector<32x96xbf16>, vector<8x96xf32> -> vector<8x96xf32>
    %1074 = vector.extract_strided_slice %1066 {offsets = [0, 0], sizes = [8, 64], strides = [1, 1]} : vector<8x192xf32> to vector<8x64xf32>
    %1075 = vector.extract_strided_slice %1071 {offsets = [0, 0], sizes = [8, 64], strides = [1, 1]} : vector<8x96xf32> to vector<8x64xf32>
    %1076 = arith.addf %1074, %1075 : vector<8x64xf32>
    %1077 = arith.negf %1076 : vector<8x64xf32>
    %1078 = math.exp %1077 : vector<8x64xf32>
    %cst_387 = arith.constant 1.000000e+00 : f32
    %1079 = vector.broadcast %cst_387 : f32 to vector<8x64xf32>
    %1080 = arith.addf %1079, %1078 : vector<8x64xf32>
    %1081 = arith.divf %1079, %1080 : vector<8x64xf32>
    %1082 = vector.extract_strided_slice %1069 {offsets = [0, 96], sizes = [8, 64], strides = [1, 1]} : vector<8x192xf32> to vector<8x64xf32>
    %1083 = vector.extract_strided_slice %1073 {offsets = [0, 0], sizes = [8, 64], strides = [1, 1]} : vector<8x96xf32> to vector<8x64xf32>
    %1084 = arith.addf %1082, %1083 : vector<8x64xf32>
    %1085 = arith.negf %1084 : vector<8x64xf32>
    %1086 = math.exp %1085 : vector<8x64xf32>
    %cst_388 = arith.constant 1.000000e+00 : f32
    %1087 = vector.broadcast %cst_388 : f32 to vector<8x64xf32>
    %1088 = arith.addf %1087, %1086 : vector<8x64xf32>
    %1089 = arith.divf %1087, %1088 : vector<8x64xf32>
    %1090 = vector.extract_strided_slice %1066 {offsets = [0, 64], sizes = [8, 32], strides = [1, 1]} : vector<8x192xf32> to vector<8x32xf32>
    %1091 = vector.extract_strided_slice %1081 {offsets = [0, 0], sizes = [8, 32], strides = [1, 1]} : vector<8x64xf32> to vector<8x32xf32>
    %1092 = vector.extract_strided_slice %1071 {offsets = [0, 64], sizes = [8, 32], strides = [1, 1]} : vector<8x96xf32> to vector<8x32xf32>
    %1093 = vector.broadcast %1060 : vector<1x32xf32> to vector<8x32xf32>
    %1094 = arith.addf %1092, %1093 : vector<8x32xf32>
    %1095 = arith.mulf %1091, %1094 : vector<8x32xf32>
    %1096 = arith.addf %1090, %1095 : vector<8x32xf32>
    %1097 = math.tanh %1096 : vector<8x32xf32>
    %1098 = vector.extract_strided_slice %1069 {offsets = [0, 160], sizes = [8, 32], strides = [1, 1]} : vector<8x192xf32> to vector<8x32xf32>
    %1099 = vector.extract_strided_slice %1089 {offsets = [0, 0], sizes = [8, 32], strides = [1, 1]} : vector<8x64xf32> to vector<8x32xf32>
    %1100 = vector.extract_strided_slice %1073 {offsets = [0, 64], sizes = [8, 32], strides = [1, 1]} : vector<8x96xf32> to vector<8x32xf32>
    %1101 = vector.broadcast %1061 : vector<1x32xf32> to vector<8x32xf32>
    %1102 = arith.addf %1100, %1101 : vector<8x32xf32>
    %1103 = arith.mulf %1099, %1102 : vector<8x32xf32>
    %1104 = arith.addf %1098, %1103 : vector<8x32xf32>
    %1105 = math.tanh %1104 : vector<8x32xf32>
    %1106 = vector.extract_strided_slice %1081 {offsets = [0, 32], sizes = [8, 32], strides = [1, 1]} : vector<8x64xf32> to vector<8x32xf32>
    %1107 = vector.extract_strided_slice %1089 {offsets = [0, 32], sizes = [8, 32], strides = [1, 1]} : vector<8x64xf32> to vector<8x32xf32>
    %cst_389 = arith.constant 1.000000e+00 : f32
    %1108 = vector.broadcast %cst_389 : f32 to vector<8x32xf32>
    %1109 = arith.subf %1108, %1106 : vector<8x32xf32>
    %1110 = arith.mulf %1109, %1097 : vector<8x32xf32>
    %1111 = arith.mulf %1106, %1062 : vector<8x32xf32>
    %1112 = arith.addf %1110, %1111 : vector<8x32xf32>
    %cst_390 = arith.constant 1.000000e+00 : f32
    %1113 = vector.broadcast %cst_390 : f32 to vector<8x32xf32>
    %1114 = arith.subf %1113, %1107 : vector<8x32xf32>
    %1115 = arith.mulf %1114, %1105 : vector<8x32xf32>
    %1116 = arith.mulf %1107, %1063 : vector<8x32xf32>
    %1117 = arith.addf %1115, %1116 : vector<8x32xf32>
    %c0_391 = arith.constant 0 : index
    %c0_392 = arith.constant 0 : index
    %c0_393 = arith.constant 0 : index
    %1118 = vector.load %arg28[%c0_391, %c0_392, %c0_393] : memref<16x8x64xf32, #tpu.memory_space<vmem>>, vector<1x8x32xf32>
    %1119 = vector.shape_cast %1118 : vector<1x8x32xf32> to vector<8x32xf32>
    %1120 = vector.shape_cast %1112 : vector<8x32xf32> to vector<1x8x32xf32>
    tpu.vector_store %arg28[%c0_391, %c0_392, %c0_393], %1120 {strides = array<i32>} : memref<16x8x64xf32, #tpu.memory_space<vmem>>, vector<1x8x32xf32>,
    %c15_394 = arith.constant 15 : index
    %c0_395 = arith.constant 0 : index
    %c32_396 = arith.constant 32 : index
    %1121 = vector.load %arg28[%c15_394, %c0_395, %c32_396] : memref<16x8x64xf32, #tpu.memory_space<vmem>>, vector<1x8x32xf32>
    %1122 = vector.shape_cast %1121 : vector<1x8x32xf32> to vector<8x32xf32>
    %1123 = vector.shape_cast %1117 : vector<8x32xf32> to vector<1x8x32xf32>
    tpu.vector_store %arg28[%c15_394, %c0_395, %c32_396], %1123 {strides = array<i32>} : memref<16x8x64xf32, #tpu.memory_space<vmem>>, vector<1x8x32xf32>,
    %c1_397 = arith.constant 1 : index
    %c0_398 = arith.constant 0 : index
    %c0_399 = arith.constant 0 : index
    %1124 = vector.load %arg27[%c1_397, %c0_398, %c0_399] : memref<16x8x192xbf16, #tpu.memory_space<vmem>>, vector<1x8x192xbf16>
    %1125 = vector.shape_cast %1124 : vector<1x8x192xbf16> to vector<8x192xbf16>
    %1126 = arith.extf %1125 : vector<8x192xbf16> to vector<8x192xf32>
    %c14_400 = arith.constant 14 : index
    %c0_401 = arith.constant 0 : index
    %c0_402 = arith.constant 0 : index
    %1127 = vector.load %arg27[%c14_400, %c0_401, %c0_402] : memref<16x8x192xbf16, #tpu.memory_space<vmem>>, vector<1x8x192xbf16>
    %1128 = vector.shape_cast %1127 : vector<1x8x192xbf16> to vector<8x192xbf16>
    %1129 = arith.extf %1128 : vector<8x192xbf16> to vector<8x192xf32>
    %1130 = arith.truncf %1112 : vector<8x32xf32> to vector<8x32xbf16>
    %cst_403 = arith.constant dense<0.000000e+00> : vector<8x96xf32>
    %1131 = tpu.matmul %1130, %1058, %cst_403 {dimension_numbers = #tpu.dot_dimension_numbers<[1], [0], [0], [1], [0, 0, 1, 1], [], []>} : vector<8x32xbf16>, vector<32x96xbf16>, vector<8x96xf32> -> vector<8x96xf32>
    %1132 = arith.truncf %1117 : vector<8x32xf32> to vector<8x32xbf16>
    %cst_404 = arith.constant dense<0.000000e+00> : vector<8x96xf32>
    %1133 = tpu.matmul %1132, %1059, %cst_404 {dimension_numbers = #tpu.dot_dimension_numbers<[1], [0], [0], [1], [0, 0, 1, 1], [], []>} : vector<8x32xbf16>, vector<32x96xbf16>, vector<8x96xf32> -> vector<8x96xf32>
    %1134 = vector.extract_strided_slice %1126 {offsets = [0, 0], sizes = [8, 64], strides = [1, 1]} : vector<8x192xf32> to vector<8x64xf32>
    %1135 = vector.extract_strided_slice %1131 {offsets = [0, 0], sizes = [8, 64], strides = [1, 1]} : vector<8x96xf32> to vector<8x64xf32>
    %1136 = arith.addf %1134, %1135 : vector<8x64xf32>
    %1137 = arith.negf %1136 : vector<8x64xf32>
    %1138 = math.exp %1137 : vector<8x64xf32>
    %cst_405 = arith.constant 1.000000e+00 : f32
    %1139 = vector.broadcast %cst_405 : f32 to vector<8x64xf32>
    %1140 = arith.addf %1139, %1138 : vector<8x64xf32>
    %1141 = arith.divf %1139, %1140 : vector<8x64xf32>
    %1142 = vector.extract_strided_slice %1129 {offsets = [0, 96], sizes = [8, 64], strides = [1, 1]} : vector<8x192xf32> to vector<8x64xf32>
    %1143 = vector.extract_strided_slice %1133 {offsets = [0, 0], sizes = [8, 64], strides = [1, 1]} : vector<8x96xf32> to vector<8x64xf32>
    %1144 = arith.addf %1142, %1143 : vector<8x64xf32>
    %1145 = arith.negf %1144 : vector<8x64xf32>
    %1146 = math.exp %1145 : vector<8x64xf32>
    %cst_406 = arith.constant 1.000000e+00 : f32
    %1147 = vector.broadcast %cst_406 : f32 to vector<8x64xf32>
    %1148 = arith.addf %1147, %1146 : vector<8x64xf32>
    %1149 = arith.divf %1147, %1148 : vector<8x64xf32>
    %1150 = vector.extract_strided_slice %1126 {offsets = [0, 64], sizes = [8, 32], strides = [1, 1]} : vector<8x192xf32> to vector<8x32xf32>
    %1151 = vector.extract_strided_slice %1141 {offsets = [0, 0], sizes = [8, 32], strides = [1, 1]} : vector<8x64xf32> to vector<8x32xf32>
    %1152 = vector.extract_strided_slice %1131 {offsets = [0, 64], sizes = [8, 32], strides = [1, 1]} : vector<8x96xf32> to vector<8x32xf32>
    %1153 = vector.broadcast %1060 : vector<1x32xf32> to vector<8x32xf32>
    %1154 = arith.addf %1152, %1153 : vector<8x32xf32>
    %1155 = arith.mulf %1151, %1154 : vector<8x32xf32>
    %1156 = arith.addf %1150, %1155 : vector<8x32xf32>
    %1157 = math.tanh %1156 : vector<8x32xf32>
    %1158 = vector.extract_strided_slice %1129 {offsets = [0, 160], sizes = [8, 32], strides = [1, 1]} : vector<8x192xf32> to vector<8x32xf32>
    %1159 = vector.extract_strided_slice %1149 {offsets = [0, 0], sizes = [8, 32], strides = [1, 1]} : vector<8x64xf32> to vector<8x32xf32>
    %1160 = vector.extract_strided_slice %1133 {offsets = [0, 64], sizes = [8, 32], strides = [1, 1]} : vector<8x96xf32> to vector<8x32xf32>
    %1161 = vector.broadcast %1061 : vector<1x32xf32> to vector<8x32xf32>
    %1162 = arith.addf %1160, %1161 : vector<8x32xf32>
    %1163 = arith.mulf %1159, %1162 : vector<8x32xf32>
    %1164 = arith.addf %1158, %1163 : vector<8x32xf32>
    %1165 = math.tanh %1164 : vector<8x32xf32>
    %1166 = vector.extract_strided_slice %1141 {offsets = [0, 32], sizes = [8, 32], strides = [1, 1]} : vector<8x64xf32> to vector<8x32xf32>
    %1167 = vector.extract_strided_slice %1149 {offsets = [0, 32], sizes = [8, 32], strides = [1, 1]} : vector<8x64xf32> to vector<8x32xf32>
    %cst_407 = arith.constant 1.000000e+00 : f32
    %1168 = vector.broadcast %cst_407 : f32 to vector<8x32xf32>
    %1169 = arith.subf %1168, %1166 : vector<8x32xf32>
    %1170 = arith.mulf %1169, %1157 : vector<8x32xf32>
    %1171 = arith.mulf %1166, %1112 : vector<8x32xf32>
    %1172 = arith.addf %1170, %1171 : vector<8x32xf32>
    %cst_408 = arith.constant 1.000000e+00 : f32
    %1173 = vector.broadcast %cst_408 : f32 to vector<8x32xf32>
    %1174 = arith.subf %1173, %1167 : vector<8x32xf32>
    %1175 = arith.mulf %1174, %1165 : vector<8x32xf32>
    %1176 = arith.mulf %1167, %1117 : vector<8x32xf32>
    %1177 = arith.addf %1175, %1176 : vector<8x32xf32>
    %c1_409 = arith.constant 1 : index
    %c0_410 = arith.constant 0 : index
    %c0_411 = arith.constant 0 : index
    %1178 = vector.load %arg28[%c1_409, %c0_410, %c0_411] : memref<16x8x64xf32, #tpu.memory_space<vmem>>, vector<1x8x32xf32>
    %1179 = vector.shape_cast %1178 : vector<1x8x32xf32> to vector<8x32xf32>
    %1180 = vector.shape_cast %1172 : vector<8x32xf32> to vector<1x8x32xf32>
    tpu.vector_store %arg28[%c1_409, %c0_410, %c0_411], %1180 {strides = array<i32>} : memref<16x8x64xf32, #tpu.memory_space<vmem>>, vector<1x8x32xf32>,
    %c14_412 = arith.constant 14 : index
    %c0_413 = arith.constant 0 : index
    %c32_414 = arith.constant 32 : index
    %1181 = vector.load %arg28[%c14_412, %c0_413, %c32_414] : memref<16x8x64xf32, #tpu.memory_space<vmem>>, vector<1x8x32xf32>
    %1182 = vector.shape_cast %1181 : vector<1x8x32xf32> to vector<8x32xf32>
    %1183 = vector.shape_cast %1177 : vector<8x32xf32> to vector<1x8x32xf32>
    tpu.vector_store %arg28[%c14_412, %c0_413, %c32_414], %1183 {strides = array<i32>} : memref<16x8x64xf32, #tpu.memory_space<vmem>>, vector<1x8x32xf32>,
    %c2_415 = arith.constant 2 : index
    %c0_416 = arith.constant 0 : index
    %c0_417 = arith.constant 0 : index
    %1184 = vector.load %arg27[%c2_415, %c0_416, %c0_417] : memref<16x8x192xbf16, #tpu.memory_space<vmem>>, vector<1x8x192xbf16>
    %1185 = vector.shape_cast %1184 : vector<1x8x192xbf16> to vector<8x192xbf16>
    %1186 = arith.extf %1185 : vector<8x192xbf16> to vector<8x192xf32>
    %c13_418 = arith.constant 13 : index
    %c0_419 = arith.constant 0 : index
    %c0_420 = arith.constant 0 : index
    %1187 = vector.load %arg27[%c13_418, %c0_419, %c0_420] : memref<16x8x192xbf16, #tpu.memory_space<vmem>>, vector<1x8x192xbf16>
    %1188 = vector.shape_cast %1187 : vector<1x8x192xbf16> to vector<8x192xbf16>
    %1189 = arith.extf %1188 : vector<8x192xbf16> to vector<8x192xf32>
    %1190 = arith.truncf %1172 : vector<8x32xf32> to vector<8x32xbf16>
    %cst_421 = arith.constant dense<0.000000e+00> : vector<8x96xf32>
    %1191 = tpu.matmul %1190, %1058, %cst_421 {dimension_numbers = #tpu.dot_dimension_numbers<[1], [0], [0], [1], [0, 0, 1, 1], [], []>} : vector<8x32xbf16>, vector<32x96xbf16>, vector<8x96xf32> -> vector<8x96xf32>
    %1192 = arith.truncf %1177 : vector<8x32xf32> to vector<8x32xbf16>
    %cst_422 = arith.constant dense<0.000000e+00> : vector<8x96xf32>
    %1193 = tpu.matmul %1192, %1059, %cst_422 {dimension_numbers = #tpu.dot_dimension_numbers<[1], [0], [0], [1], [0, 0, 1, 1], [], []>} : vector<8x32xbf16>, vector<32x96xbf16>, vector<8x96xf32> -> vector<8x96xf32>
    %1194 = vector.extract_strided_slice %1186 {offsets = [0, 0], sizes = [8, 64], strides = [1, 1]} : vector<8x192xf32> to vector<8x64xf32>
    %1195 = vector.extract_strided_slice %1191 {offsets = [0, 0], sizes = [8, 64], strides = [1, 1]} : vector<8x96xf32> to vector<8x64xf32>
    %1196 = arith.addf %1194, %1195 : vector<8x64xf32>
    %1197 = arith.negf %1196 : vector<8x64xf32>
    %1198 = math.exp %1197 : vector<8x64xf32>
    %cst_423 = arith.constant 1.000000e+00 : f32
    %1199 = vector.broadcast %cst_423 : f32 to vector<8x64xf32>
    %1200 = arith.addf %1199, %1198 : vector<8x64xf32>
    %1201 = arith.divf %1199, %1200 : vector<8x64xf32>
    %1202 = vector.extract_strided_slice %1189 {offsets = [0, 96], sizes = [8, 64], strides = [1, 1]} : vector<8x192xf32> to vector<8x64xf32>
    %1203 = vector.extract_strided_slice %1193 {offsets = [0, 0], sizes = [8, 64], strides = [1, 1]} : vector<8x96xf32> to vector<8x64xf32>
    %1204 = arith.addf %1202, %1203 : vector<8x64xf32>
    %1205 = arith.negf %1204 : vector<8x64xf32>
    %1206 = math.exp %1205 : vector<8x64xf32>
    %cst_424 = arith.constant 1.000000e+00 : f32
    %1207 = vector.broadcast %cst_424 : f32 to vector<8x64xf32>
    %1208 = arith.addf %1207, %1206 : vector<8x64xf32>
    %1209 = arith.divf %1207, %1208 : vector<8x64xf32>
    %1210 = vector.extract_strided_slice %1186 {offsets = [0, 64], sizes = [8, 32], strides = [1, 1]} : vector<8x192xf32> to vector<8x32xf32>
    %1211 = vector.extract_strided_slice %1201 {offsets = [0, 0], sizes = [8, 32], strides = [1, 1]} : vector<8x64xf32> to vector<8x32xf32>
    %1212 = vector.extract_strided_slice %1191 {offsets = [0, 64], sizes = [8, 32], strides = [1, 1]} : vector<8x96xf32> to vector<8x32xf32>
    %1213 = vector.broadcast %1060 : vector<1x32xf32> to vector<8x32xf32>
    %1214 = arith.addf %1212, %1213 : vector<8x32xf32>
    %1215 = arith.mulf %1211, %1214 : vector<8x32xf32>
    %1216 = arith.addf %1210, %1215 : vector<8x32xf32>
    %1217 = math.tanh %1216 : vector<8x32xf32>
    %1218 = vector.extract_strided_slice %1189 {offsets = [0, 160], sizes = [8, 32], strides = [1, 1]} : vector<8x192xf32> to vector<8x32xf32>
    %1219 = vector.extract_strided_slice %1209 {offsets = [0, 0], sizes = [8, 32], strides = [1, 1]} : vector<8x64xf32> to vector<8x32xf32>
    %1220 = vector.extract_strided_slice %1193 {offsets = [0, 64], sizes = [8, 32], strides = [1, 1]} : vector<8x96xf32> to vector<8x32xf32>
    %1221 = vector.broadcast %1061 : vector<1x32xf32> to vector<8x32xf32>
    %1222 = arith.addf %1220, %1221 : vector<8x32xf32>
    %1223 = arith.mulf %1219, %1222 : vector<8x32xf32>
    %1224 = arith.addf %1218, %1223 : vector<8x32xf32>
    %1225 = math.tanh %1224 : vector<8x32xf32>
    %1226 = vector.extract_strided_slice %1201 {offsets = [0, 32], sizes = [8, 32], strides = [1, 1]} : vector<8x64xf32> to vector<8x32xf32>
    %1227 = vector.extract_strided_slice %1209 {offsets = [0, 32], sizes = [8, 32], strides = [1, 1]} : vector<8x64xf32> to vector<8x32xf32>
    %cst_425 = arith.constant 1.000000e+00 : f32
    %1228 = vector.broadcast %cst_425 : f32 to vector<8x32xf32>
    %1229 = arith.subf %1228, %1226 : vector<8x32xf32>
    %1230 = arith.mulf %1229, %1217 : vector<8x32xf32>
    %1231 = arith.mulf %1226, %1172 : vector<8x32xf32>
    %1232 = arith.addf %1230, %1231 : vector<8x32xf32>
    %cst_426 = arith.constant 1.000000e+00 : f32
    %1233 = vector.broadcast %cst_426 : f32 to vector<8x32xf32>
    %1234 = arith.subf %1233, %1227 : vector<8x32xf32>
    %1235 = arith.mulf %1234, %1225 : vector<8x32xf32>
    %1236 = arith.mulf %1227, %1177 : vector<8x32xf32>
    %1237 = arith.addf %1235, %1236 : vector<8x32xf32>
    %c2_427 = arith.constant 2 : index
    %c0_428 = arith.constant 0 : index
    %c0_429 = arith.constant 0 : index
    %1238 = vector.load %arg28[%c2_427, %c0_428, %c0_429] : memref<16x8x64xf32, #tpu.memory_space<vmem>>, vector<1x8x32xf32>
    %1239 = vector.shape_cast %1238 : vector<1x8x32xf32> to vector<8x32xf32>
    %1240 = vector.shape_cast %1232 : vector<8x32xf32> to vector<1x8x32xf32>
    tpu.vector_store %arg28[%c2_427, %c0_428, %c0_429], %1240 {strides = array<i32>} : memref<16x8x64xf32, #tpu.memory_space<vmem>>, vector<1x8x32xf32>,
    %c13_430 = arith.constant 13 : index
    %c0_431 = arith.constant 0 : index
    %c32_432 = arith.constant 32 : index
    %1241 = vector.load %arg28[%c13_430, %c0_431, %c32_432] : memref<16x8x64xf32, #tpu.memory_space<vmem>>, vector<1x8x32xf32>
    %1242 = vector.shape_cast %1241 : vector<1x8x32xf32> to vector<8x32xf32>
    %1243 = vector.shape_cast %1237 : vector<8x32xf32> to vector<1x8x32xf32>
    tpu.vector_store %arg28[%c13_430, %c0_431, %c32_432], %1243 {strides = array<i32>} : memref<16x8x64xf32, #tpu.memory_space<vmem>>, vector<1x8x32xf32>,
    %c3_433 = arith.constant 3 : index
    %c0_434 = arith.constant 0 : index
    %c0_435 = arith.constant 0 : index
    %1244 = vector.load %arg27[%c3_433, %c0_434, %c0_435] : memref<16x8x192xbf16, #tpu.memory_space<vmem>>, vector<1x8x192xbf16>
    %1245 = vector.shape_cast %1244 : vector<1x8x192xbf16> to vector<8x192xbf16>
    %1246 = arith.extf %1245 : vector<8x192xbf16> to vector<8x192xf32>
    %c12_436 = arith.constant 12 : index
    %c0_437 = arith.constant 0 : index
    %c0_438 = arith.constant 0 : index
    %1247 = vector.load %arg27[%c12_436, %c0_437, %c0_438] : memref<16x8x192xbf16, #tpu.memory_space<vmem>>, vector<1x8x192xbf16>
    %1248 = vector.shape_cast %1247 : vector<1x8x192xbf16> to vector<8x192xbf16>
    %1249 = arith.extf %1248 : vector<8x192xbf16> to vector<8x192xf32>
    %1250 = arith.truncf %1232 : vector<8x32xf32> to vector<8x32xbf16>
    %cst_439 = arith.constant dense<0.000000e+00> : vector<8x96xf32>
    %1251 = tpu.matmul %1250, %1058, %cst_439 {dimension_numbers = #tpu.dot_dimension_numbers<[1], [0], [0], [1], [0, 0, 1, 1], [], []>} : vector<8x32xbf16>, vector<32x96xbf16>, vector<8x96xf32> -> vector<8x96xf32>
    %1252 = arith.truncf %1237 : vector<8x32xf32> to vector<8x32xbf16>
    %cst_440 = arith.constant dense<0.000000e+00> : vector<8x96xf32>
    %1253 = tpu.matmul %1252, %1059, %cst_440 {dimension_numbers = #tpu.dot_dimension_numbers<[1], [0], [0], [1], [0, 0, 1, 1], [], []>} : vector<8x32xbf16>, vector<32x96xbf16>, vector<8x96xf32> -> vector<8x96xf32>
    %1254 = vector.extract_strided_slice %1246 {offsets = [0, 0], sizes = [8, 64], strides = [1, 1]} : vector<8x192xf32> to vector<8x64xf32>
    %1255 = vector.extract_strided_slice %1251 {offsets = [0, 0], sizes = [8, 64], strides = [1, 1]} : vector<8x96xf32> to vector<8x64xf32>
    %1256 = arith.addf %1254, %1255 : vector<8x64xf32>
    %1257 = arith.negf %1256 : vector<8x64xf32>
    %1258 = math.exp %1257 : vector<8x64xf32>
    %cst_441 = arith.constant 1.000000e+00 : f32
    %1259 = vector.broadcast %cst_441 : f32 to vector<8x64xf32>
    %1260 = arith.addf %1259, %1258 : vector<8x64xf32>
    %1261 = arith.divf %1259, %1260 : vector<8x64xf32>
    %1262 = vector.extract_strided_slice %1249 {offsets = [0, 96], sizes = [8, 64], strides = [1, 1]} : vector<8x192xf32> to vector<8x64xf32>
    %1263 = vector.extract_strided_slice %1253 {offsets = [0, 0], sizes = [8, 64], strides = [1, 1]} : vector<8x96xf32> to vector<8x64xf32>
    %1264 = arith.addf %1262, %1263 : vector<8x64xf32>
    %1265 = arith.negf %1264 : vector<8x64xf32>
    %1266 = math.exp %1265 : vector<8x64xf32>
    %cst_442 = arith.constant 1.000000e+00 : f32
    %1267 = vector.broadcast %cst_442 : f32 to vector<8x64xf32>
    %1268 = arith.addf %1267, %1266 : vector<8x64xf32>
    %1269 = arith.divf %1267, %1268 : vector<8x64xf32>
    %1270 = vector.extract_strided_slice %1246 {offsets = [0, 64], sizes = [8, 32], strides = [1, 1]} : vector<8x192xf32> to vector<8x32xf32>
    %1271 = vector.extract_strided_slice %1261 {offsets = [0, 0], sizes = [8, 32], strides = [1, 1]} : vector<8x64xf32> to vector<8x32xf32>
    %1272 = vector.extract_strided_slice %1251 {offsets = [0, 64], sizes = [8, 32], strides = [1, 1]} : vector<8x96xf32> to vector<8x32xf32>
    %1273 = vector.broadcast %1060 : vector<1x32xf32> to vector<8x32xf32>
    %1274 = arith.addf %1272, %1273 : vector<8x32xf32>
    %1275 = arith.mulf %1271, %1274 : vector<8x32xf32>
    %1276 = arith.addf %1270, %1275 : vector<8x32xf32>
    %1277 = math.tanh %1276 : vector<8x32xf32>
    %1278 = vector.extract_strided_slice %1249 {offsets = [0, 160], sizes = [8, 32], strides = [1, 1]} : vector<8x192xf32> to vector<8x32xf32>
    %1279 = vector.extract_strided_slice %1269 {offsets = [0, 0], sizes = [8, 32], strides = [1, 1]} : vector<8x64xf32> to vector<8x32xf32>
    %1280 = vector.extract_strided_slice %1253 {offsets = [0, 64], sizes = [8, 32], strides = [1, 1]} : vector<8x96xf32> to vector<8x32xf32>
    %1281 = vector.broadcast %1061 : vector<1x32xf32> to vector<8x32xf32>
    %1282 = arith.addf %1280, %1281 : vector<8x32xf32>
    %1283 = arith.mulf %1279, %1282 : vector<8x32xf32>
    %1284 = arith.addf %1278, %1283 : vector<8x32xf32>
    %1285 = math.tanh %1284 : vector<8x32xf32>
    %1286 = vector.extract_strided_slice %1261 {offsets = [0, 32], sizes = [8, 32], strides = [1, 1]} : vector<8x64xf32> to vector<8x32xf32>
    %1287 = vector.extract_strided_slice %1269 {offsets = [0, 32], sizes = [8, 32], strides = [1, 1]} : vector<8x64xf32> to vector<8x32xf32>
    %cst_443 = arith.constant 1.000000e+00 : f32
    %1288 = vector.broadcast %cst_443 : f32 to vector<8x32xf32>
    %1289 = arith.subf %1288, %1286 : vector<8x32xf32>
    %1290 = arith.mulf %1289, %1277 : vector<8x32xf32>
    %1291 = arith.mulf %1286, %1232 : vector<8x32xf32>
    %1292 = arith.addf %1290, %1291 : vector<8x32xf32>
    %cst_444 = arith.constant 1.000000e+00 : f32
    %1293 = vector.broadcast %cst_444 : f32 to vector<8x32xf32>
    %1294 = arith.subf %1293, %1287 : vector<8x32xf32>
    %1295 = arith.mulf %1294, %1285 : vector<8x32xf32>
    %1296 = arith.mulf %1287, %1237 : vector<8x32xf32>
    %1297 = arith.addf %1295, %1296 : vector<8x32xf32>
    %c3_445 = arith.constant 3 : index
    %c0_446 = arith.constant 0 : index
    %c0_447 = arith.constant 0 : index
    %1298 = vector.load %arg28[%c3_445, %c0_446, %c0_447] : memref<16x8x64xf32, #tpu.memory_space<vmem>>, vector<1x8x32xf32>
    %1299 = vector.shape_cast %1298 : vector<1x8x32xf32> to vector<8x32xf32>
    %1300 = vector.shape_cast %1292 : vector<8x32xf32> to vector<1x8x32xf32>
    tpu.vector_store %arg28[%c3_445, %c0_446, %c0_447], %1300 {strides = array<i32>} : memref<16x8x64xf32, #tpu.memory_space<vmem>>, vector<1x8x32xf32>,
    %c12_448 = arith.constant 12 : index
    %c0_449 = arith.constant 0 : index
    %c32_450 = arith.constant 32 : index
    %1301 = vector.load %arg28[%c12_448, %c0_449, %c32_450] : memref<16x8x64xf32, #tpu.memory_space<vmem>>, vector<1x8x32xf32>
    %1302 = vector.shape_cast %1301 : vector<1x8x32xf32> to vector<8x32xf32>
    %1303 = vector.shape_cast %1297 : vector<8x32xf32> to vector<1x8x32xf32>
    tpu.vector_store %arg28[%c12_448, %c0_449, %c32_450], %1303 {strides = array<i32>} : memref<16x8x64xf32, #tpu.memory_space<vmem>>, vector<1x8x32xf32>,
    %c4_451 = arith.constant 4 : index
    %c0_452 = arith.constant 0 : index
    %c0_453 = arith.constant 0 : index
    %1304 = vector.load %arg27[%c4_451, %c0_452, %c0_453] : memref<16x8x192xbf16, #tpu.memory_space<vmem>>, vector<1x8x192xbf16>
    %1305 = vector.shape_cast %1304 : vector<1x8x192xbf16> to vector<8x192xbf16>
    %1306 = arith.extf %1305 : vector<8x192xbf16> to vector<8x192xf32>
    %c11_454 = arith.constant 11 : index
    %c0_455 = arith.constant 0 : index
    %c0_456 = arith.constant 0 : index
    %1307 = vector.load %arg27[%c11_454, %c0_455, %c0_456] : memref<16x8x192xbf16, #tpu.memory_space<vmem>>, vector<1x8x192xbf16>
    %1308 = vector.shape_cast %1307 : vector<1x8x192xbf16> to vector<8x192xbf16>
    %1309 = arith.extf %1308 : vector<8x192xbf16> to vector<8x192xf32>
    %1310 = arith.truncf %1292 : vector<8x32xf32> to vector<8x32xbf16>
    %cst_457 = arith.constant dense<0.000000e+00> : vector<8x96xf32>
    %1311 = tpu.matmul %1310, %1058, %cst_457 {dimension_numbers = #tpu.dot_dimension_numbers<[1], [0], [0], [1], [0, 0, 1, 1], [], []>} : vector<8x32xbf16>, vector<32x96xbf16>, vector<8x96xf32> -> vector<8x96xf32>
    %1312 = arith.truncf %1297 : vector<8x32xf32> to vector<8x32xbf16>
    %cst_458 = arith.constant dense<0.000000e+00> : vector<8x96xf32>
    %1313 = tpu.matmul %1312, %1059, %cst_458 {dimension_numbers = #tpu.dot_dimension_numbers<[1], [0], [0], [1], [0, 0, 1, 1], [], []>} : vector<8x32xbf16>, vector<32x96xbf16>, vector<8x96xf32> -> vector<8x96xf32>
    %1314 = vector.extract_strided_slice %1306 {offsets = [0, 0], sizes = [8, 64], strides = [1, 1]} : vector<8x192xf32> to vector<8x64xf32>
    %1315 = vector.extract_strided_slice %1311 {offsets = [0, 0], sizes = [8, 64], strides = [1, 1]} : vector<8x96xf32> to vector<8x64xf32>
    %1316 = arith.addf %1314, %1315 : vector<8x64xf32>
    %1317 = arith.negf %1316 : vector<8x64xf32>
    %1318 = math.exp %1317 : vector<8x64xf32>
    %cst_459 = arith.constant 1.000000e+00 : f32
    %1319 = vector.broadcast %cst_459 : f32 to vector<8x64xf32>
    %1320 = arith.addf %1319, %1318 : vector<8x64xf32>
    %1321 = arith.divf %1319, %1320 : vector<8x64xf32>
    %1322 = vector.extract_strided_slice %1309 {offsets = [0, 96], sizes = [8, 64], strides = [1, 1]} : vector<8x192xf32> to vector<8x64xf32>
    %1323 = vector.extract_strided_slice %1313 {offsets = [0, 0], sizes = [8, 64], strides = [1, 1]} : vector<8x96xf32> to vector<8x64xf32>
    %1324 = arith.addf %1322, %1323 : vector<8x64xf32>
    %1325 = arith.negf %1324 : vector<8x64xf32>
    %1326 = math.exp %1325 : vector<8x64xf32>
    %cst_460 = arith.constant 1.000000e+00 : f32
    %1327 = vector.broadcast %cst_460 : f32 to vector<8x64xf32>
    %1328 = arith.addf %1327, %1326 : vector<8x64xf32>
    %1329 = arith.divf %1327, %1328 : vector<8x64xf32>
    %1330 = vector.extract_strided_slice %1306 {offsets = [0, 64], sizes = [8, 32], strides = [1, 1]} : vector<8x192xf32> to vector<8x32xf32>
    %1331 = vector.extract_strided_slice %1321 {offsets = [0, 0], sizes = [8, 32], strides = [1, 1]} : vector<8x64xf32> to vector<8x32xf32>
    %1332 = vector.extract_strided_slice %1311 {offsets = [0, 64], sizes = [8, 32], strides = [1, 1]} : vector<8x96xf32> to vector<8x32xf32>
    %1333 = vector.broadcast %1060 : vector<1x32xf32> to vector<8x32xf32>
    %1334 = arith.addf %1332, %1333 : vector<8x32xf32>
    %1335 = arith.mulf %1331, %1334 : vector<8x32xf32>
    %1336 = arith.addf %1330, %1335 : vector<8x32xf32>
    %1337 = math.tanh %1336 : vector<8x32xf32>
    %1338 = vector.extract_strided_slice %1309 {offsets = [0, 160], sizes = [8, 32], strides = [1, 1]} : vector<8x192xf32> to vector<8x32xf32>
    %1339 = vector.extract_strided_slice %1329 {offsets = [0, 0], sizes = [8, 32], strides = [1, 1]} : vector<8x64xf32> to vector<8x32xf32>
    %1340 = vector.extract_strided_slice %1313 {offsets = [0, 64], sizes = [8, 32], strides = [1, 1]} : vector<8x96xf32> to vector<8x32xf32>
    %1341 = vector.broadcast %1061 : vector<1x32xf32> to vector<8x32xf32>
    %1342 = arith.addf %1340, %1341 : vector<8x32xf32>
    %1343 = arith.mulf %1339, %1342 : vector<8x32xf32>
    %1344 = arith.addf %1338, %1343 : vector<8x32xf32>
    %1345 = math.tanh %1344 : vector<8x32xf32>
    %1346 = vector.extract_strided_slice %1321 {offsets = [0, 32], sizes = [8, 32], strides = [1, 1]} : vector<8x64xf32> to vector<8x32xf32>
    %1347 = vector.extract_strided_slice %1329 {offsets = [0, 32], sizes = [8, 32], strides = [1, 1]} : vector<8x64xf32> to vector<8x32xf32>
    %cst_461 = arith.constant 1.000000e+00 : f32
    %1348 = vector.broadcast %cst_461 : f32 to vector<8x32xf32>
    %1349 = arith.subf %1348, %1346 : vector<8x32xf32>
    %1350 = arith.mulf %1349, %1337 : vector<8x32xf32>
    %1351 = arith.mulf %1346, %1292 : vector<8x32xf32>
    %1352 = arith.addf %1350, %1351 : vector<8x32xf32>
    %cst_462 = arith.constant 1.000000e+00 : f32
    %1353 = vector.broadcast %cst_462 : f32 to vector<8x32xf32>
    %1354 = arith.subf %1353, %1347 : vector<8x32xf32>
    %1355 = arith.mulf %1354, %1345 : vector<8x32xf32>
    %1356 = arith.mulf %1347, %1297 : vector<8x32xf32>
    %1357 = arith.addf %1355, %1356 : vector<8x32xf32>
    %c4_463 = arith.constant 4 : index
    %c0_464 = arith.constant 0 : index
    %c0_465 = arith.constant 0 : index
    %1358 = vector.load %arg28[%c4_463, %c0_464, %c0_465] : memref<16x8x64xf32, #tpu.memory_space<vmem>>, vector<1x8x32xf32>
    %1359 = vector.shape_cast %1358 : vector<1x8x32xf32> to vector<8x32xf32>
    %1360 = vector.shape_cast %1352 : vector<8x32xf32> to vector<1x8x32xf32>
    tpu.vector_store %arg28[%c4_463, %c0_464, %c0_465], %1360 {strides = array<i32>} : memref<16x8x64xf32, #tpu.memory_space<vmem>>, vector<1x8x32xf32>,
    %c11_466 = arith.constant 11 : index
    %c0_467 = arith.constant 0 : index
    %c32_468 = arith.constant 32 : index
    %1361 = vector.load %arg28[%c11_466, %c0_467, %c32_468] : memref<16x8x64xf32, #tpu.memory_space<vmem>>, vector<1x8x32xf32>
    %1362 = vector.shape_cast %1361 : vector<1x8x32xf32> to vector<8x32xf32>
    %1363 = vector.shape_cast %1357 : vector<8x32xf32> to vector<1x8x32xf32>
    tpu.vector_store %arg28[%c11_466, %c0_467, %c32_468], %1363 {strides = array<i32>} : memref<16x8x64xf32, #tpu.memory_space<vmem>>, vector<1x8x32xf32>,
    %c5_469 = arith.constant 5 : index
    %c0_470 = arith.constant 0 : index
    %c0_471 = arith.constant 0 : index
    %1364 = vector.load %arg27[%c5_469, %c0_470, %c0_471] : memref<16x8x192xbf16, #tpu.memory_space<vmem>>, vector<1x8x192xbf16>
    %1365 = vector.shape_cast %1364 : vector<1x8x192xbf16> to vector<8x192xbf16>
    %1366 = arith.extf %1365 : vector<8x192xbf16> to vector<8x192xf32>
    %c10_472 = arith.constant 10 : index
    %c0_473 = arith.constant 0 : index
    %c0_474 = arith.constant 0 : index
    %1367 = vector.load %arg27[%c10_472, %c0_473, %c0_474] : memref<16x8x192xbf16, #tpu.memory_space<vmem>>, vector<1x8x192xbf16>
    %1368 = vector.shape_cast %1367 : vector<1x8x192xbf16> to vector<8x192xbf16>
    %1369 = arith.extf %1368 : vector<8x192xbf16> to vector<8x192xf32>
    %1370 = arith.truncf %1352 : vector<8x32xf32> to vector<8x32xbf16>
    %cst_475 = arith.constant dense<0.000000e+00> : vector<8x96xf32>
    %1371 = tpu.matmul %1370, %1058, %cst_475 {dimension_numbers = #tpu.dot_dimension_numbers<[1], [0], [0], [1], [0, 0, 1, 1], [], []>} : vector<8x32xbf16>, vector<32x96xbf16>, vector<8x96xf32> -> vector<8x96xf32>
    %1372 = arith.truncf %1357 : vector<8x32xf32> to vector<8x32xbf16>
    %cst_476 = arith.constant dense<0.000000e+00> : vector<8x96xf32>
    %1373 = tpu.matmul %1372, %1059, %cst_476 {dimension_numbers = #tpu.dot_dimension_numbers<[1], [0], [0], [1], [0, 0, 1, 1], [], []>} : vector<8x32xbf16>, vector<32x96xbf16>, vector<8x96xf32> -> vector<8x96xf32>
    %1374 = vector.extract_strided_slice %1366 {offsets = [0, 0], sizes = [8, 64], strides = [1, 1]} : vector<8x192xf32> to vector<8x64xf32>
    %1375 = vector.extract_strided_slice %1371 {offsets = [0, 0], sizes = [8, 64], strides = [1, 1]} : vector<8x96xf32> to vector<8x64xf32>
    %1376 = arith.addf %1374, %1375 : vector<8x64xf32>
    %1377 = arith.negf %1376 : vector<8x64xf32>
    %1378 = math.exp %1377 : vector<8x64xf32>
    %cst_477 = arith.constant 1.000000e+00 : f32
    %1379 = vector.broadcast %cst_477 : f32 to vector<8x64xf32>
    %1380 = arith.addf %1379, %1378 : vector<8x64xf32>
    %1381 = arith.divf %1379, %1380 : vector<8x64xf32>
    %1382 = vector.extract_strided_slice %1369 {offsets = [0, 96], sizes = [8, 64], strides = [1, 1]} : vector<8x192xf32> to vector<8x64xf32>
    %1383 = vector.extract_strided_slice %1373 {offsets = [0, 0], sizes = [8, 64], strides = [1, 1]} : vector<8x96xf32> to vector<8x64xf32>
    %1384 = arith.addf %1382, %1383 : vector<8x64xf32>
    %1385 = arith.negf %1384 : vector<8x64xf32>
    %1386 = math.exp %1385 : vector<8x64xf32>
    %cst_478 = arith.constant 1.000000e+00 : f32
    %1387 = vector.broadcast %cst_478 : f32 to vector<8x64xf32>
    %1388 = arith.addf %1387, %1386 : vector<8x64xf32>
    %1389 = arith.divf %1387, %1388 : vector<8x64xf32>
    %1390 = vector.extract_strided_slice %1366 {offsets = [0, 64], sizes = [8, 32], strides = [1, 1]} : vector<8x192xf32> to vector<8x32xf32>
    %1391 = vector.extract_strided_slice %1381 {offsets = [0, 0], sizes = [8, 32], strides = [1, 1]} : vector<8x64xf32> to vector<8x32xf32>
    %1392 = vector.extract_strided_slice %1371 {offsets = [0, 64], sizes = [8, 32], strides = [1, 1]} : vector<8x96xf32> to vector<8x32xf32>
    %1393 = vector.broadcast %1060 : vector<1x32xf32> to vector<8x32xf32>
    %1394 = arith.addf %1392, %1393 : vector<8x32xf32>
    %1395 = arith.mulf %1391, %1394 : vector<8x32xf32>
    %1396 = arith.addf %1390, %1395 : vector<8x32xf32>
    %1397 = math.tanh %1396 : vector<8x32xf32>
    %1398 = vector.extract_strided_slice %1369 {offsets = [0, 160], sizes = [8, 32], strides = [1, 1]} : vector<8x192xf32> to vector<8x32xf32>
    %1399 = vector.extract_strided_slice %1389 {offsets = [0, 0], sizes = [8, 32], strides = [1, 1]} : vector<8x64xf32> to vector<8x32xf32>
    %1400 = vector.extract_strided_slice %1373 {offsets = [0, 64], sizes = [8, 32], strides = [1, 1]} : vector<8x96xf32> to vector<8x32xf32>
    %1401 = vector.broadcast %1061 : vector<1x32xf32> to vector<8x32xf32>
    %1402 = arith.addf %1400, %1401 : vector<8x32xf32>
    %1403 = arith.mulf %1399, %1402 : vector<8x32xf32>
    %1404 = arith.addf %1398, %1403 : vector<8x32xf32>
    %1405 = math.tanh %1404 : vector<8x32xf32>
    %1406 = vector.extract_strided_slice %1381 {offsets = [0, 32], sizes = [8, 32], strides = [1, 1]} : vector<8x64xf32> to vector<8x32xf32>
    %1407 = vector.extract_strided_slice %1389 {offsets = [0, 32], sizes = [8, 32], strides = [1, 1]} : vector<8x64xf32> to vector<8x32xf32>
    %cst_479 = arith.constant 1.000000e+00 : f32
    %1408 = vector.broadcast %cst_479 : f32 to vector<8x32xf32>
    %1409 = arith.subf %1408, %1406 : vector<8x32xf32>
    %1410 = arith.mulf %1409, %1397 : vector<8x32xf32>
    %1411 = arith.mulf %1406, %1352 : vector<8x32xf32>
    %1412 = arith.addf %1410, %1411 : vector<8x32xf32>
    %cst_480 = arith.constant 1.000000e+00 : f32
    %1413 = vector.broadcast %cst_480 : f32 to vector<8x32xf32>
    %1414 = arith.subf %1413, %1407 : vector<8x32xf32>
    %1415 = arith.mulf %1414, %1405 : vector<8x32xf32>
    %1416 = arith.mulf %1407, %1357 : vector<8x32xf32>
    %1417 = arith.addf %1415, %1416 : vector<8x32xf32>
    %c5_481 = arith.constant 5 : index
    %c0_482 = arith.constant 0 : index
    %c0_483 = arith.constant 0 : index
    %1418 = vector.load %arg28[%c5_481, %c0_482, %c0_483] : memref<16x8x64xf32, #tpu.memory_space<vmem>>, vector<1x8x32xf32>
    %1419 = vector.shape_cast %1418 : vector<1x8x32xf32> to vector<8x32xf32>
    %1420 = vector.shape_cast %1412 : vector<8x32xf32> to vector<1x8x32xf32>
    tpu.vector_store %arg28[%c5_481, %c0_482, %c0_483], %1420 {strides = array<i32>} : memref<16x8x64xf32, #tpu.memory_space<vmem>>, vector<1x8x32xf32>,
    %c10_484 = arith.constant 10 : index
    %c0_485 = arith.constant 0 : index
    %c32_486 = arith.constant 32 : index
    %1421 = vector.load %arg28[%c10_484, %c0_485, %c32_486] : memref<16x8x64xf32, #tpu.memory_space<vmem>>, vector<1x8x32xf32>
    %1422 = vector.shape_cast %1421 : vector<1x8x32xf32> to vector<8x32xf32>
    %1423 = vector.shape_cast %1417 : vector<8x32xf32> to vector<1x8x32xf32>
    tpu.vector_store %arg28[%c10_484, %c0_485, %c32_486], %1423 {strides = array<i32>} : memref<16x8x64xf32, #tpu.memory_space<vmem>>, vector<1x8x32xf32>,
    %c6_487 = arith.constant 6 : index
    %c0_488 = arith.constant 0 : index
    %c0_489 = arith.constant 0 : index
    %1424 = vector.load %arg27[%c6_487, %c0_488, %c0_489] : memref<16x8x192xbf16, #tpu.memory_space<vmem>>, vector<1x8x192xbf16>
    %1425 = vector.shape_cast %1424 : vector<1x8x192xbf16> to vector<8x192xbf16>
    %1426 = arith.extf %1425 : vector<8x192xbf16> to vector<8x192xf32>
    %c9_490 = arith.constant 9 : index
    %c0_491 = arith.constant 0 : index
    %c0_492 = arith.constant 0 : index
    %1427 = vector.load %arg27[%c9_490, %c0_491, %c0_492] : memref<16x8x192xbf16, #tpu.memory_space<vmem>>, vector<1x8x192xbf16>
    %1428 = vector.shape_cast %1427 : vector<1x8x192xbf16> to vector<8x192xbf16>
    %1429 = arith.extf %1428 : vector<8x192xbf16> to vector<8x192xf32>
    %1430 = arith.truncf %1412 : vector<8x32xf32> to vector<8x32xbf16>
    %cst_493 = arith.constant dense<0.000000e+00> : vector<8x96xf32>
    %1431 = tpu.matmul %1430, %1058, %cst_493 {dimension_numbers = #tpu.dot_dimension_numbers<[1], [0], [0], [1], [0, 0, 1, 1], [], []>} : vector<8x32xbf16>, vector<32x96xbf16>, vector<8x96xf32> -> vector<8x96xf32>
    %1432 = arith.truncf %1417 : vector<8x32xf32> to vector<8x32xbf16>
    %cst_494 = arith.constant dense<0.000000e+00> : vector<8x96xf32>
    %1433 = tpu.matmul %1432, %1059, %cst_494 {dimension_numbers = #tpu.dot_dimension_numbers<[1], [0], [0], [1], [0, 0, 1, 1], [], []>} : vector<8x32xbf16>, vector<32x96xbf16>, vector<8x96xf32> -> vector<8x96xf32>
    %1434 = vector.extract_strided_slice %1426 {offsets = [0, 0], sizes = [8, 64], strides = [1, 1]} : vector<8x192xf32> to vector<8x64xf32>
    %1435 = vector.extract_strided_slice %1431 {offsets = [0, 0], sizes = [8, 64], strides = [1, 1]} : vector<8x96xf32> to vector<8x64xf32>
    %1436 = arith.addf %1434, %1435 : vector<8x64xf32>
    %1437 = arith.negf %1436 : vector<8x64xf32>
    %1438 = math.exp %1437 : vector<8x64xf32>
    %cst_495 = arith.constant 1.000000e+00 : f32
    %1439 = vector.broadcast %cst_495 : f32 to vector<8x64xf32>
    %1440 = arith.addf %1439, %1438 : vector<8x64xf32>
    %1441 = arith.divf %1439, %1440 : vector<8x64xf32>
    %1442 = vector.extract_strided_slice %1429 {offsets = [0, 96], sizes = [8, 64], strides = [1, 1]} : vector<8x192xf32> to vector<8x64xf32>
    %1443 = vector.extract_strided_slice %1433 {offsets = [0, 0], sizes = [8, 64], strides = [1, 1]} : vector<8x96xf32> to vector<8x64xf32>
    %1444 = arith.addf %1442, %1443 : vector<8x64xf32>
    %1445 = arith.negf %1444 : vector<8x64xf32>
    %1446 = math.exp %1445 : vector<8x64xf32>
    %cst_496 = arith.constant 1.000000e+00 : f32
    %1447 = vector.broadcast %cst_496 : f32 to vector<8x64xf32>
    %1448 = arith.addf %1447, %1446 : vector<8x64xf32>
    %1449 = arith.divf %1447, %1448 : vector<8x64xf32>
    %1450 = vector.extract_strided_slice %1426 {offsets = [0, 64], sizes = [8, 32], strides = [1, 1]} : vector<8x192xf32> to vector<8x32xf32>
    %1451 = vector.extract_strided_slice %1441 {offsets = [0, 0], sizes = [8, 32], strides = [1, 1]} : vector<8x64xf32> to vector<8x32xf32>
    %1452 = vector.extract_strided_slice %1431 {offsets = [0, 64], sizes = [8, 32], strides = [1, 1]} : vector<8x96xf32> to vector<8x32xf32>
    %1453 = vector.broadcast %1060 : vector<1x32xf32> to vector<8x32xf32>
    %1454 = arith.addf %1452, %1453 : vector<8x32xf32>
    %1455 = arith.mulf %1451, %1454 : vector<8x32xf32>
    %1456 = arith.addf %1450, %1455 : vector<8x32xf32>
    %1457 = math.tanh %1456 : vector<8x32xf32>
    %1458 = vector.extract_strided_slice %1429 {offsets = [0, 160], sizes = [8, 32], strides = [1, 1]} : vector<8x192xf32> to vector<8x32xf32>
    %1459 = vector.extract_strided_slice %1449 {offsets = [0, 0], sizes = [8, 32], strides = [1, 1]} : vector<8x64xf32> to vector<8x32xf32>
    %1460 = vector.extract_strided_slice %1433 {offsets = [0, 64], sizes = [8, 32], strides = [1, 1]} : vector<8x96xf32> to vector<8x32xf32>
    %1461 = vector.broadcast %1061 : vector<1x32xf32> to vector<8x32xf32>
    %1462 = arith.addf %1460, %1461 : vector<8x32xf32>
    %1463 = arith.mulf %1459, %1462 : vector<8x32xf32>
    %1464 = arith.addf %1458, %1463 : vector<8x32xf32>
    %1465 = math.tanh %1464 : vector<8x32xf32>
    %1466 = vector.extract_strided_slice %1441 {offsets = [0, 32], sizes = [8, 32], strides = [1, 1]} : vector<8x64xf32> to vector<8x32xf32>
    %1467 = vector.extract_strided_slice %1449 {offsets = [0, 32], sizes = [8, 32], strides = [1, 1]} : vector<8x64xf32> to vector<8x32xf32>
    %cst_497 = arith.constant 1.000000e+00 : f32
    %1468 = vector.broadcast %cst_497 : f32 to vector<8x32xf32>
    %1469 = arith.subf %1468, %1466 : vector<8x32xf32>
    %1470 = arith.mulf %1469, %1457 : vector<8x32xf32>
    %1471 = arith.mulf %1466, %1412 : vector<8x32xf32>
    %1472 = arith.addf %1470, %1471 : vector<8x32xf32>
    %cst_498 = arith.constant 1.000000e+00 : f32
    %1473 = vector.broadcast %cst_498 : f32 to vector<8x32xf32>
    %1474 = arith.subf %1473, %1467 : vector<8x32xf32>
    %1475 = arith.mulf %1474, %1465 : vector<8x32xf32>
    %1476 = arith.mulf %1467, %1417 : vector<8x32xf32>
    %1477 = arith.addf %1475, %1476 : vector<8x32xf32>
    %c6_499 = arith.constant 6 : index
    %c0_500 = arith.constant 0 : index
    %c0_501 = arith.constant 0 : index
    %1478 = vector.load %arg28[%c6_499, %c0_500, %c0_501] : memref<16x8x64xf32, #tpu.memory_space<vmem>>, vector<1x8x32xf32>
    %1479 = vector.shape_cast %1478 : vector<1x8x32xf32> to vector<8x32xf32>
    %1480 = vector.shape_cast %1472 : vector<8x32xf32> to vector<1x8x32xf32>
    tpu.vector_store %arg28[%c6_499, %c0_500, %c0_501], %1480 {strides = array<i32>} : memref<16x8x64xf32, #tpu.memory_space<vmem>>, vector<1x8x32xf32>,
    %c9_502 = arith.constant 9 : index
    %c0_503 = arith.constant 0 : index
    %c32_504 = arith.constant 32 : index
    %1481 = vector.load %arg28[%c9_502, %c0_503, %c32_504] : memref<16x8x64xf32, #tpu.memory_space<vmem>>, vector<1x8x32xf32>
    %1482 = vector.shape_cast %1481 : vector<1x8x32xf32> to vector<8x32xf32>
    %1483 = vector.shape_cast %1477 : vector<8x32xf32> to vector<1x8x32xf32>
    tpu.vector_store %arg28[%c9_502, %c0_503, %c32_504], %1483 {strides = array<i32>} : memref<16x8x64xf32, #tpu.memory_space<vmem>>, vector<1x8x32xf32>,
    %c7_505 = arith.constant 7 : index
    %c0_506 = arith.constant 0 : index
    %c0_507 = arith.constant 0 : index
    %1484 = vector.load %arg27[%c7_505, %c0_506, %c0_507] : memref<16x8x192xbf16, #tpu.memory_space<vmem>>, vector<1x8x192xbf16>
    %1485 = vector.shape_cast %1484 : vector<1x8x192xbf16> to vector<8x192xbf16>
    %1486 = arith.extf %1485 : vector<8x192xbf16> to vector<8x192xf32>
    %c8_508 = arith.constant 8 : index
    %c0_509 = arith.constant 0 : index
    %c0_510 = arith.constant 0 : index
    %1487 = vector.load %arg27[%c8_508, %c0_509, %c0_510] : memref<16x8x192xbf16, #tpu.memory_space<vmem>>, vector<1x8x192xbf16>
    %1488 = vector.shape_cast %1487 : vector<1x8x192xbf16> to vector<8x192xbf16>
    %1489 = arith.extf %1488 : vector<8x192xbf16> to vector<8x192xf32>
    %1490 = arith.truncf %1472 : vector<8x32xf32> to vector<8x32xbf16>
    %cst_511 = arith.constant dense<0.000000e+00> : vector<8x96xf32>
    %1491 = tpu.matmul %1490, %1058, %cst_511 {dimension_numbers = #tpu.dot_dimension_numbers<[1], [0], [0], [1], [0, 0, 1, 1], [], []>} : vector<8x32xbf16>, vector<32x96xbf16>, vector<8x96xf32> -> vector<8x96xf32>
    %1492 = arith.truncf %1477 : vector<8x32xf32> to vector<8x32xbf16>
    %cst_512 = arith.constant dense<0.000000e+00> : vector<8x96xf32>
    %1493 = tpu.matmul %1492, %1059, %cst_512 {dimension_numbers = #tpu.dot_dimension_numbers<[1], [0], [0], [1], [0, 0, 1, 1], [], []>} : vector<8x32xbf16>, vector<32x96xbf16>, vector<8x96xf32> -> vector<8x96xf32>
    %1494 = vector.extract_strided_slice %1486 {offsets = [0, 0], sizes = [8, 64], strides = [1, 1]} : vector<8x192xf32> to vector<8x64xf32>
    %1495 = vector.extract_strided_slice %1491 {offsets = [0, 0], sizes = [8, 64], strides = [1, 1]} : vector<8x96xf32> to vector<8x64xf32>
    %1496 = arith.addf %1494, %1495 : vector<8x64xf32>
    %1497 = arith.negf %1496 : vector<8x64xf32>
    %1498 = math.exp %1497 : vector<8x64xf32>
    %cst_513 = arith.constant 1.000000e+00 : f32
    %1499 = vector.broadcast %cst_513 : f32 to vector<8x64xf32>
    %1500 = arith.addf %1499, %1498 : vector<8x64xf32>
    %1501 = arith.divf %1499, %1500 : vector<8x64xf32>
    %1502 = vector.extract_strided_slice %1489 {offsets = [0, 96], sizes = [8, 64], strides = [1, 1]} : vector<8x192xf32> to vector<8x64xf32>
    %1503 = vector.extract_strided_slice %1493 {offsets = [0, 0], sizes = [8, 64], strides = [1, 1]} : vector<8x96xf32> to vector<8x64xf32>
    %1504 = arith.addf %1502, %1503 : vector<8x64xf32>
    %1505 = arith.negf %1504 : vector<8x64xf32>
    %1506 = math.exp %1505 : vector<8x64xf32>
    %cst_514 = arith.constant 1.000000e+00 : f32
    %1507 = vector.broadcast %cst_514 : f32 to vector<8x64xf32>
    %1508 = arith.addf %1507, %1506 : vector<8x64xf32>
    %1509 = arith.divf %1507, %1508 : vector<8x64xf32>
    %1510 = vector.extract_strided_slice %1486 {offsets = [0, 64], sizes = [8, 32], strides = [1, 1]} : vector<8x192xf32> to vector<8x32xf32>
    %1511 = vector.extract_strided_slice %1501 {offsets = [0, 0], sizes = [8, 32], strides = [1, 1]} : vector<8x64xf32> to vector<8x32xf32>
    %1512 = vector.extract_strided_slice %1491 {offsets = [0, 64], sizes = [8, 32], strides = [1, 1]} : vector<8x96xf32> to vector<8x32xf32>
    %1513 = vector.broadcast %1060 : vector<1x32xf32> to vector<8x32xf32>
    %1514 = arith.addf %1512, %1513 : vector<8x32xf32>
    %1515 = arith.mulf %1511, %1514 : vector<8x32xf32>
    %1516 = arith.addf %1510, %1515 : vector<8x32xf32>
    %1517 = math.tanh %1516 : vector<8x32xf32>
    %1518 = vector.extract_strided_slice %1489 {offsets = [0, 160], sizes = [8, 32], strides = [1, 1]} : vector<8x192xf32> to vector<8x32xf32>
    %1519 = vector.extract_strided_slice %1509 {offsets = [0, 0], sizes = [8, 32], strides = [1, 1]} : vector<8x64xf32> to vector<8x32xf32>
    %1520 = vector.extract_strided_slice %1493 {offsets = [0, 64], sizes = [8, 32], strides = [1, 1]} : vector<8x96xf32> to vector<8x32xf32>
    %1521 = vector.broadcast %1061 : vector<1x32xf32> to vector<8x32xf32>
    %1522 = arith.addf %1520, %1521 : vector<8x32xf32>
    %1523 = arith.mulf %1519, %1522 : vector<8x32xf32>
    %1524 = arith.addf %1518, %1523 : vector<8x32xf32>
    %1525 = math.tanh %1524 : vector<8x32xf32>
    %1526 = vector.extract_strided_slice %1501 {offsets = [0, 32], sizes = [8, 32], strides = [1, 1]} : vector<8x64xf32> to vector<8x32xf32>
    %1527 = vector.extract_strided_slice %1509 {offsets = [0, 32], sizes = [8, 32], strides = [1, 1]} : vector<8x64xf32> to vector<8x32xf32>
    %cst_515 = arith.constant 1.000000e+00 : f32
    %1528 = vector.broadcast %cst_515 : f32 to vector<8x32xf32>
    %1529 = arith.subf %1528, %1526 : vector<8x32xf32>
    %1530 = arith.mulf %1529, %1517 : vector<8x32xf32>
    %1531 = arith.mulf %1526, %1472 : vector<8x32xf32>
    %1532 = arith.addf %1530, %1531 : vector<8x32xf32>
    %cst_516 = arith.constant 1.000000e+00 : f32
    %1533 = vector.broadcast %cst_516 : f32 to vector<8x32xf32>
    %1534 = arith.subf %1533, %1527 : vector<8x32xf32>
    %1535 = arith.mulf %1534, %1525 : vector<8x32xf32>
    %1536 = arith.mulf %1527, %1477 : vector<8x32xf32>
    %1537 = arith.addf %1535, %1536 : vector<8x32xf32>
    %c7_517 = arith.constant 7 : index
    %c0_518 = arith.constant 0 : index
    %c0_519 = arith.constant 0 : index
    %1538 = vector.load %arg28[%c7_517, %c0_518, %c0_519] : memref<16x8x64xf32, #tpu.memory_space<vmem>>, vector<1x8x32xf32>
    %1539 = vector.shape_cast %1538 : vector<1x8x32xf32> to vector<8x32xf32>
    %1540 = vector.shape_cast %1532 : vector<8x32xf32> to vector<1x8x32xf32>
    tpu.vector_store %arg28[%c7_517, %c0_518, %c0_519], %1540 {strides = array<i32>} : memref<16x8x64xf32, #tpu.memory_space<vmem>>, vector<1x8x32xf32>,
    %c8_520 = arith.constant 8 : index
    %c0_521 = arith.constant 0 : index
    %c32_522 = arith.constant 32 : index
    %1541 = vector.load %arg28[%c8_520, %c0_521, %c32_522] : memref<16x8x64xf32, #tpu.memory_space<vmem>>, vector<1x8x32xf32>
    %1542 = vector.shape_cast %1541 : vector<1x8x32xf32> to vector<8x32xf32>
    %1543 = vector.shape_cast %1537 : vector<8x32xf32> to vector<1x8x32xf32>
    tpu.vector_store %arg28[%c8_520, %c0_521, %c32_522], %1543 {strides = array<i32>} : memref<16x8x64xf32, #tpu.memory_space<vmem>>, vector<1x8x32xf32>,
    %c8_523 = arith.constant 8 : index
    %c0_524 = arith.constant 0 : index
    %c0_525 = arith.constant 0 : index
    %1544 = vector.load %arg27[%c8_523, %c0_524, %c0_525] : memref<16x8x192xbf16, #tpu.memory_space<vmem>>, vector<1x8x192xbf16>
    %1545 = vector.shape_cast %1544 : vector<1x8x192xbf16> to vector<8x192xbf16>
    %1546 = arith.extf %1545 : vector<8x192xbf16> to vector<8x192xf32>
    %c7_526 = arith.constant 7 : index
    %c0_527 = arith.constant 0 : index
    %c0_528 = arith.constant 0 : index
    %1547 = vector.load %arg27[%c7_526, %c0_527, %c0_528] : memref<16x8x192xbf16, #tpu.memory_space<vmem>>, vector<1x8x192xbf16>
    %1548 = vector.shape_cast %1547 : vector<1x8x192xbf16> to vector<8x192xbf16>
    %1549 = arith.extf %1548 : vector<8x192xbf16> to vector<8x192xf32>
    %1550 = arith.truncf %1532 : vector<8x32xf32> to vector<8x32xbf16>
    %cst_529 = arith.constant dense<0.000000e+00> : vector<8x96xf32>
    %1551 = tpu.matmul %1550, %1058, %cst_529 {dimension_numbers = #tpu.dot_dimension_numbers<[1], [0], [0], [1], [0, 0, 1, 1], [], []>} : vector<8x32xbf16>, vector<32x96xbf16>, vector<8x96xf32> -> vector<8x96xf32>
    %1552 = arith.truncf %1537 : vector<8x32xf32> to vector<8x32xbf16>
    %cst_530 = arith.constant dense<0.000000e+00> : vector<8x96xf32>
    %1553 = tpu.matmul %1552, %1059, %cst_530 {dimension_numbers = #tpu.dot_dimension_numbers<[1], [0], [0], [1], [0, 0, 1, 1], [], []>} : vector<8x32xbf16>, vector<32x96xbf16>, vector<8x96xf32> -> vector<8x96xf32>
    %1554 = vector.extract_strided_slice %1546 {offsets = [0, 0], sizes = [8, 64], strides = [1, 1]} : vector<8x192xf32> to vector<8x64xf32>
    %1555 = vector.extract_strided_slice %1551 {offsets = [0, 0], sizes = [8, 64], strides = [1, 1]} : vector<8x96xf32> to vector<8x64xf32>
    %1556 = arith.addf %1554, %1555 : vector<8x64xf32>
    %1557 = arith.negf %1556 : vector<8x64xf32>
    %1558 = math.exp %1557 : vector<8x64xf32>
    %cst_531 = arith.constant 1.000000e+00 : f32
    %1559 = vector.broadcast %cst_531 : f32 to vector<8x64xf32>
    %1560 = arith.addf %1559, %1558 : vector<8x64xf32>
    %1561 = arith.divf %1559, %1560 : vector<8x64xf32>
    %1562 = vector.extract_strided_slice %1549 {offsets = [0, 96], sizes = [8, 64], strides = [1, 1]} : vector<8x192xf32> to vector<8x64xf32>
    %1563 = vector.extract_strided_slice %1553 {offsets = [0, 0], sizes = [8, 64], strides = [1, 1]} : vector<8x96xf32> to vector<8x64xf32>
    %1564 = arith.addf %1562, %1563 : vector<8x64xf32>
    %1565 = arith.negf %1564 : vector<8x64xf32>
    %1566 = math.exp %1565 : vector<8x64xf32>
    %cst_532 = arith.constant 1.000000e+00 : f32
    %1567 = vector.broadcast %cst_532 : f32 to vector<8x64xf32>
    %1568 = arith.addf %1567, %1566 : vector<8x64xf32>
    %1569 = arith.divf %1567, %1568 : vector<8x64xf32>
    %1570 = vector.extract_strided_slice %1546 {offsets = [0, 64], sizes = [8, 32], strides = [1, 1]} : vector<8x192xf32> to vector<8x32xf32>
    %1571 = vector.extract_strided_slice %1561 {offsets = [0, 0], sizes = [8, 32], strides = [1, 1]} : vector<8x64xf32> to vector<8x32xf32>
    %1572 = vector.extract_strided_slice %1551 {offsets = [0, 64], sizes = [8, 32], strides = [1, 1]} : vector<8x96xf32> to vector<8x32xf32>
    %1573 = vector.broadcast %1060 : vector<1x32xf32> to vector<8x32xf32>
    %1574 = arith.addf %1572, %1573 : vector<8x32xf32>
    %1575 = arith.mulf %1571, %1574 : vector<8x32xf32>
    %1576 = arith.addf %1570, %1575 : vector<8x32xf32>
    %1577 = math.tanh %1576 : vector<8x32xf32>
    %1578 = vector.extract_strided_slice %1549 {offsets = [0, 160], sizes = [8, 32], strides = [1, 1]} : vector<8x192xf32> to vector<8x32xf32>
    %1579 = vector.extract_strided_slice %1569 {offsets = [0, 0], sizes = [8, 32], strides = [1, 1]} : vector<8x64xf32> to vector<8x32xf32>
    %1580 = vector.extract_strided_slice %1553 {offsets = [0, 64], sizes = [8, 32], strides = [1, 1]} : vector<8x96xf32> to vector<8x32xf32>
    %1581 = vector.broadcast %1061 : vector<1x32xf32> to vector<8x32xf32>
    %1582 = arith.addf %1580, %1581 : vector<8x32xf32>
    %1583 = arith.mulf %1579, %1582 : vector<8x32xf32>
    %1584 = arith.addf %1578, %1583 : vector<8x32xf32>
    %1585 = math.tanh %1584 : vector<8x32xf32>
    %1586 = vector.extract_strided_slice %1561 {offsets = [0, 32], sizes = [8, 32], strides = [1, 1]} : vector<8x64xf32> to vector<8x32xf32>
    %1587 = vector.extract_strided_slice %1569 {offsets = [0, 32], sizes = [8, 32], strides = [1, 1]} : vector<8x64xf32> to vector<8x32xf32>
    %cst_533 = arith.constant 1.000000e+00 : f32
    %1588 = vector.broadcast %cst_533 : f32 to vector<8x32xf32>
    %1589 = arith.subf %1588, %1586 : vector<8x32xf32>
    %1590 = arith.mulf %1589, %1577 : vector<8x32xf32>
    %1591 = arith.mulf %1586, %1532 : vector<8x32xf32>
    %1592 = arith.addf %1590, %1591 : vector<8x32xf32>
    %cst_534 = arith.constant 1.000000e+00 : f32
    %1593 = vector.broadcast %cst_534 : f32 to vector<8x32xf32>
    %1594 = arith.subf %1593, %1587 : vector<8x32xf32>
    %1595 = arith.mulf %1594, %1585 : vector<8x32xf32>
    %1596 = arith.mulf %1587, %1537 : vector<8x32xf32>
    %1597 = arith.addf %1595, %1596 : vector<8x32xf32>
    %c8_535 = arith.constant 8 : index
    %c0_536 = arith.constant 0 : index
    %c0_537 = arith.constant 0 : index
    %1598 = vector.load %arg28[%c8_535, %c0_536, %c0_537] : memref<16x8x64xf32, #tpu.memory_space<vmem>>, vector<1x8x32xf32>
    %1599 = vector.shape_cast %1598 : vector<1x8x32xf32> to vector<8x32xf32>
    %1600 = vector.shape_cast %1592 : vector<8x32xf32> to vector<1x8x32xf32>
    tpu.vector_store %arg28[%c8_535, %c0_536, %c0_537], %1600 {strides = array<i32>} : memref<16x8x64xf32, #tpu.memory_space<vmem>>, vector<1x8x32xf32>,
    %c7_538 = arith.constant 7 : index
    %c0_539 = arith.constant 0 : index
    %c32_540 = arith.constant 32 : index
    %1601 = vector.load %arg28[%c7_538, %c0_539, %c32_540] : memref<16x8x64xf32, #tpu.memory_space<vmem>>, vector<1x8x32xf32>
    %1602 = vector.shape_cast %1601 : vector<1x8x32xf32> to vector<8x32xf32>
    %1603 = vector.shape_cast %1597 : vector<8x32xf32> to vector<1x8x32xf32>
    tpu.vector_store %arg28[%c7_538, %c0_539, %c32_540], %1603 {strides = array<i32>} : memref<16x8x64xf32, #tpu.memory_space<vmem>>, vector<1x8x32xf32>,
    %c9_541 = arith.constant 9 : index
    %c0_542 = arith.constant 0 : index
    %c0_543 = arith.constant 0 : index
    %1604 = vector.load %arg27[%c9_541, %c0_542, %c0_543] : memref<16x8x192xbf16, #tpu.memory_space<vmem>>, vector<1x8x192xbf16>
    %1605 = vector.shape_cast %1604 : vector<1x8x192xbf16> to vector<8x192xbf16>
    %1606 = arith.extf %1605 : vector<8x192xbf16> to vector<8x192xf32>
    %c6_544 = arith.constant 6 : index
    %c0_545 = arith.constant 0 : index
    %c0_546 = arith.constant 0 : index
    %1607 = vector.load %arg27[%c6_544, %c0_545, %c0_546] : memref<16x8x192xbf16, #tpu.memory_space<vmem>>, vector<1x8x192xbf16>
    %1608 = vector.shape_cast %1607 : vector<1x8x192xbf16> to vector<8x192xbf16>
    %1609 = arith.extf %1608 : vector<8x192xbf16> to vector<8x192xf32>
    %1610 = arith.truncf %1592 : vector<8x32xf32> to vector<8x32xbf16>
    %cst_547 = arith.constant dense<0.000000e+00> : vector<8x96xf32>
    %1611 = tpu.matmul %1610, %1058, %cst_547 {dimension_numbers = #tpu.dot_dimension_numbers<[1], [0], [0], [1], [0, 0, 1, 1], [], []>} : vector<8x32xbf16>, vector<32x96xbf16>, vector<8x96xf32> -> vector<8x96xf32>
    %1612 = arith.truncf %1597 : vector<8x32xf32> to vector<8x32xbf16>
    %cst_548 = arith.constant dense<0.000000e+00> : vector<8x96xf32>
    %1613 = tpu.matmul %1612, %1059, %cst_548 {dimension_numbers = #tpu.dot_dimension_numbers<[1], [0], [0], [1], [0, 0, 1, 1], [], []>} : vector<8x32xbf16>, vector<32x96xbf16>, vector<8x96xf32> -> vector<8x96xf32>
    %1614 = vector.extract_strided_slice %1606 {offsets = [0, 0], sizes = [8, 64], strides = [1, 1]} : vector<8x192xf32> to vector<8x64xf32>
    %1615 = vector.extract_strided_slice %1611 {offsets = [0, 0], sizes = [8, 64], strides = [1, 1]} : vector<8x96xf32> to vector<8x64xf32>
    %1616 = arith.addf %1614, %1615 : vector<8x64xf32>
    %1617 = arith.negf %1616 : vector<8x64xf32>
    %1618 = math.exp %1617 : vector<8x64xf32>
    %cst_549 = arith.constant 1.000000e+00 : f32
    %1619 = vector.broadcast %cst_549 : f32 to vector<8x64xf32>
    %1620 = arith.addf %1619, %1618 : vector<8x64xf32>
    %1621 = arith.divf %1619, %1620 : vector<8x64xf32>
    %1622 = vector.extract_strided_slice %1609 {offsets = [0, 96], sizes = [8, 64], strides = [1, 1]} : vector<8x192xf32> to vector<8x64xf32>
    %1623 = vector.extract_strided_slice %1613 {offsets = [0, 0], sizes = [8, 64], strides = [1, 1]} : vector<8x96xf32> to vector<8x64xf32>
    %1624 = arith.addf %1622, %1623 : vector<8x64xf32>
    %1625 = arith.negf %1624 : vector<8x64xf32>
    %1626 = math.exp %1625 : vector<8x64xf32>
    %cst_550 = arith.constant 1.000000e+00 : f32
    %1627 = vector.broadcast %cst_550 : f32 to vector<8x64xf32>
    %1628 = arith.addf %1627, %1626 : vector<8x64xf32>
    %1629 = arith.divf %1627, %1628 : vector<8x64xf32>
    %1630 = vector.extract_strided_slice %1606 {offsets = [0, 64], sizes = [8, 32], strides = [1, 1]} : vector<8x192xf32> to vector<8x32xf32>
    %1631 = vector.extract_strided_slice %1621 {offsets = [0, 0], sizes = [8, 32], strides = [1, 1]} : vector<8x64xf32> to vector<8x32xf32>
    %1632 = vector.extract_strided_slice %1611 {offsets = [0, 64], sizes = [8, 32], strides = [1, 1]} : vector<8x96xf32> to vector<8x32xf32>
    %1633 = vector.broadcast %1060 : vector<1x32xf32> to vector<8x32xf32>
    %1634 = arith.addf %1632, %1633 : vector<8x32xf32>
    %1635 = arith.mulf %1631, %1634 : vector<8x32xf32>
    %1636 = arith.addf %1630, %1635 : vector<8x32xf32>
    %1637 = math.tanh %1636 : vector<8x32xf32>
    %1638 = vector.extract_strided_slice %1609 {offsets = [0, 160], sizes = [8, 32], strides = [1, 1]} : vector<8x192xf32> to vector<8x32xf32>
    %1639 = vector.extract_strided_slice %1629 {offsets = [0, 0], sizes = [8, 32], strides = [1, 1]} : vector<8x64xf32> to vector<8x32xf32>
    %1640 = vector.extract_strided_slice %1613 {offsets = [0, 64], sizes = [8, 32], strides = [1, 1]} : vector<8x96xf32> to vector<8x32xf32>
    %1641 = vector.broadcast %1061 : vector<1x32xf32> to vector<8x32xf32>
    %1642 = arith.addf %1640, %1641 : vector<8x32xf32>
    %1643 = arith.mulf %1639, %1642 : vector<8x32xf32>
    %1644 = arith.addf %1638, %1643 : vector<8x32xf32>
    %1645 = math.tanh %1644 : vector<8x32xf32>
    %1646 = vector.extract_strided_slice %1621 {offsets = [0, 32], sizes = [8, 32], strides = [1, 1]} : vector<8x64xf32> to vector<8x32xf32>
    %1647 = vector.extract_strided_slice %1629 {offsets = [0, 32], sizes = [8, 32], strides = [1, 1]} : vector<8x64xf32> to vector<8x32xf32>
    %cst_551 = arith.constant 1.000000e+00 : f32
    %1648 = vector.broadcast %cst_551 : f32 to vector<8x32xf32>
    %1649 = arith.subf %1648, %1646 : vector<8x32xf32>
    %1650 = arith.mulf %1649, %1637 : vector<8x32xf32>
    %1651 = arith.mulf %1646, %1592 : vector<8x32xf32>
    %1652 = arith.addf %1650, %1651 : vector<8x32xf32>
    %cst_552 = arith.constant 1.000000e+00 : f32
    %1653 = vector.broadcast %cst_552 : f32 to vector<8x32xf32>
    %1654 = arith.subf %1653, %1647 : vector<8x32xf32>
    %1655 = arith.mulf %1654, %1645 : vector<8x32xf32>
    %1656 = arith.mulf %1647, %1597 : vector<8x32xf32>
    %1657 = arith.addf %1655, %1656 : vector<8x32xf32>
    %c9_553 = arith.constant 9 : index
    %c0_554 = arith.constant 0 : index
    %c0_555 = arith.constant 0 : index
    %1658 = vector.load %arg28[%c9_553, %c0_554, %c0_555] : memref<16x8x64xf32, #tpu.memory_space<vmem>>, vector<1x8x32xf32>
    %1659 = vector.shape_cast %1658 : vector<1x8x32xf32> to vector<8x32xf32>
    %1660 = vector.shape_cast %1652 : vector<8x32xf32> to vector<1x8x32xf32>
    tpu.vector_store %arg28[%c9_553, %c0_554, %c0_555], %1660 {strides = array<i32>} : memref<16x8x64xf32, #tpu.memory_space<vmem>>, vector<1x8x32xf32>,
    %c6_556 = arith.constant 6 : index
    %c0_557 = arith.constant 0 : index
    %c32_558 = arith.constant 32 : index
    %1661 = vector.load %arg28[%c6_556, %c0_557, %c32_558] : memref<16x8x64xf32, #tpu.memory_space<vmem>>, vector<1x8x32xf32>
    %1662 = vector.shape_cast %1661 : vector<1x8x32xf32> to vector<8x32xf32>
    %1663 = vector.shape_cast %1657 : vector<8x32xf32> to vector<1x8x32xf32>
    tpu.vector_store %arg28[%c6_556, %c0_557, %c32_558], %1663 {strides = array<i32>} : memref<16x8x64xf32, #tpu.memory_space<vmem>>, vector<1x8x32xf32>,
    %c10_559 = arith.constant 10 : index
    %c0_560 = arith.constant 0 : index
    %c0_561 = arith.constant 0 : index
    %1664 = vector.load %arg27[%c10_559, %c0_560, %c0_561] : memref<16x8x192xbf16, #tpu.memory_space<vmem>>, vector<1x8x192xbf16>
    %1665 = vector.shape_cast %1664 : vector<1x8x192xbf16> to vector<8x192xbf16>
    %1666 = arith.extf %1665 : vector<8x192xbf16> to vector<8x192xf32>
    %c5_562 = arith.constant 5 : index
    %c0_563 = arith.constant 0 : index
    %c0_564 = arith.constant 0 : index
    %1667 = vector.load %arg27[%c5_562, %c0_563, %c0_564] : memref<16x8x192xbf16, #tpu.memory_space<vmem>>, vector<1x8x192xbf16>
    %1668 = vector.shape_cast %1667 : vector<1x8x192xbf16> to vector<8x192xbf16>
    %1669 = arith.extf %1668 : vector<8x192xbf16> to vector<8x192xf32>
    %1670 = arith.truncf %1652 : vector<8x32xf32> to vector<8x32xbf16>
    %cst_565 = arith.constant dense<0.000000e+00> : vector<8x96xf32>
    %1671 = tpu.matmul %1670, %1058, %cst_565 {dimension_numbers = #tpu.dot_dimension_numbers<[1], [0], [0], [1], [0, 0, 1, 1], [], []>} : vector<8x32xbf16>, vector<32x96xbf16>, vector<8x96xf32> -> vector<8x96xf32>
    %1672 = arith.truncf %1657 : vector<8x32xf32> to vector<8x32xbf16>
    %cst_566 = arith.constant dense<0.000000e+00> : vector<8x96xf32>
    %1673 = tpu.matmul %1672, %1059, %cst_566 {dimension_numbers = #tpu.dot_dimension_numbers<[1], [0], [0], [1], [0, 0, 1, 1], [], []>} : vector<8x32xbf16>, vector<32x96xbf16>, vector<8x96xf32> -> vector<8x96xf32>
    %1674 = vector.extract_strided_slice %1666 {offsets = [0, 0], sizes = [8, 64], strides = [1, 1]} : vector<8x192xf32> to vector<8x64xf32>
    %1675 = vector.extract_strided_slice %1671 {offsets = [0, 0], sizes = [8, 64], strides = [1, 1]} : vector<8x96xf32> to vector<8x64xf32>
    %1676 = arith.addf %1674, %1675 : vector<8x64xf32>
    %1677 = arith.negf %1676 : vector<8x64xf32>
    %1678 = math.exp %1677 : vector<8x64xf32>
    %cst_567 = arith.constant 1.000000e+00 : f32
    %1679 = vector.broadcast %cst_567 : f32 to vector<8x64xf32>
    %1680 = arith.addf %1679, %1678 : vector<8x64xf32>
    %1681 = arith.divf %1679, %1680 : vector<8x64xf32>
    %1682 = vector.extract_strided_slice %1669 {offsets = [0, 96], sizes = [8, 64], strides = [1, 1]} : vector<8x192xf32> to vector<8x64xf32>
    %1683 = vector.extract_strided_slice %1673 {offsets = [0, 0], sizes = [8, 64], strides = [1, 1]} : vector<8x96xf32> to vector<8x64xf32>
    %1684 = arith.addf %1682, %1683 : vector<8x64xf32>
    %1685 = arith.negf %1684 : vector<8x64xf32>
    %1686 = math.exp %1685 : vector<8x64xf32>
    %cst_568 = arith.constant 1.000000e+00 : f32
    %1687 = vector.broadcast %cst_568 : f32 to vector<8x64xf32>
    %1688 = arith.addf %1687, %1686 : vector<8x64xf32>
    %1689 = arith.divf %1687, %1688 : vector<8x64xf32>
    %1690 = vector.extract_strided_slice %1666 {offsets = [0, 64], sizes = [8, 32], strides = [1, 1]} : vector<8x192xf32> to vector<8x32xf32>
    %1691 = vector.extract_strided_slice %1681 {offsets = [0, 0], sizes = [8, 32], strides = [1, 1]} : vector<8x64xf32> to vector<8x32xf32>
    %1692 = vector.extract_strided_slice %1671 {offsets = [0, 64], sizes = [8, 32], strides = [1, 1]} : vector<8x96xf32> to vector<8x32xf32>
    %1693 = vector.broadcast %1060 : vector<1x32xf32> to vector<8x32xf32>
    %1694 = arith.addf %1692, %1693 : vector<8x32xf32>
    %1695 = arith.mulf %1691, %1694 : vector<8x32xf32>
    %1696 = arith.addf %1690, %1695 : vector<8x32xf32>
    %1697 = math.tanh %1696 : vector<8x32xf32>
    %1698 = vector.extract_strided_slice %1669 {offsets = [0, 160], sizes = [8, 32], strides = [1, 1]} : vector<8x192xf32> to vector<8x32xf32>
    %1699 = vector.extract_strided_slice %1689 {offsets = [0, 0], sizes = [8, 32], strides = [1, 1]} : vector<8x64xf32> to vector<8x32xf32>
    %1700 = vector.extract_strided_slice %1673 {offsets = [0, 64], sizes = [8, 32], strides = [1, 1]} : vector<8x96xf32> to vector<8x32xf32>
    %1701 = vector.broadcast %1061 : vector<1x32xf32> to vector<8x32xf32>
    %1702 = arith.addf %1700, %1701 : vector<8x32xf32>
    %1703 = arith.mulf %1699, %1702 : vector<8x32xf32>
    %1704 = arith.addf %1698, %1703 : vector<8x32xf32>
    %1705 = math.tanh %1704 : vector<8x32xf32>
    %1706 = vector.extract_strided_slice %1681 {offsets = [0, 32], sizes = [8, 32], strides = [1, 1]} : vector<8x64xf32> to vector<8x32xf32>
    %1707 = vector.extract_strided_slice %1689 {offsets = [0, 32], sizes = [8, 32], strides = [1, 1]} : vector<8x64xf32> to vector<8x32xf32>
    %cst_569 = arith.constant 1.000000e+00 : f32
    %1708 = vector.broadcast %cst_569 : f32 to vector<8x32xf32>
    %1709 = arith.subf %1708, %1706 : vector<8x32xf32>
    %1710 = arith.mulf %1709, %1697 : vector<8x32xf32>
    %1711 = arith.mulf %1706, %1652 : vector<8x32xf32>
    %1712 = arith.addf %1710, %1711 : vector<8x32xf32>
    %cst_570 = arith.constant 1.000000e+00 : f32
    %1713 = vector.broadcast %cst_570 : f32 to vector<8x32xf32>
    %1714 = arith.subf %1713, %1707 : vector<8x32xf32>
    %1715 = arith.mulf %1714, %1705 : vector<8x32xf32>
    %1716 = arith.mulf %1707, %1657 : vector<8x32xf32>
    %1717 = arith.addf %1715, %1716 : vector<8x32xf32>
    %c10_571 = arith.constant 10 : index
    %c0_572 = arith.constant 0 : index
    %c0_573 = arith.constant 0 : index
    %1718 = vector.load %arg28[%c10_571, %c0_572, %c0_573] : memref<16x8x64xf32, #tpu.memory_space<vmem>>, vector<1x8x32xf32>
    %1719 = vector.shape_cast %1718 : vector<1x8x32xf32> to vector<8x32xf32>
    %1720 = vector.shape_cast %1712 : vector<8x32xf32> to vector<1x8x32xf32>
    tpu.vector_store %arg28[%c10_571, %c0_572, %c0_573], %1720 {strides = array<i32>} : memref<16x8x64xf32, #tpu.memory_space<vmem>>, vector<1x8x32xf32>,
    %c5_574 = arith.constant 5 : index
    %c0_575 = arith.constant 0 : index
    %c32_576 = arith.constant 32 : index
    %1721 = vector.load %arg28[%c5_574, %c0_575, %c32_576] : memref<16x8x64xf32, #tpu.memory_space<vmem>>, vector<1x8x32xf32>
    %1722 = vector.shape_cast %1721 : vector<1x8x32xf32> to vector<8x32xf32>
    %1723 = vector.shape_cast %1717 : vector<8x32xf32> to vector<1x8x32xf32>
    tpu.vector_store %arg28[%c5_574, %c0_575, %c32_576], %1723 {strides = array<i32>} : memref<16x8x64xf32, #tpu.memory_space<vmem>>, vector<1x8x32xf32>,
    %c11_577 = arith.constant 11 : index
    %c0_578 = arith.constant 0 : index
    %c0_579 = arith.constant 0 : index
    %1724 = vector.load %arg27[%c11_577, %c0_578, %c0_579] : memref<16x8x192xbf16, #tpu.memory_space<vmem>>, vector<1x8x192xbf16>
    %1725 = vector.shape_cast %1724 : vector<1x8x192xbf16> to vector<8x192xbf16>
    %1726 = arith.extf %1725 : vector<8x192xbf16> to vector<8x192xf32>
    %c4_580 = arith.constant 4 : index
    %c0_581 = arith.constant 0 : index
    %c0_582 = arith.constant 0 : index
    %1727 = vector.load %arg27[%c4_580, %c0_581, %c0_582] : memref<16x8x192xbf16, #tpu.memory_space<vmem>>, vector<1x8x192xbf16>
    %1728 = vector.shape_cast %1727 : vector<1x8x192xbf16> to vector<8x192xbf16>
    %1729 = arith.extf %1728 : vector<8x192xbf16> to vector<8x192xf32>
    %1730 = arith.truncf %1712 : vector<8x32xf32> to vector<8x32xbf16>
    %cst_583 = arith.constant dense<0.000000e+00> : vector<8x96xf32>
    %1731 = tpu.matmul %1730, %1058, %cst_583 {dimension_numbers = #tpu.dot_dimension_numbers<[1], [0], [0], [1], [0, 0, 1, 1], [], []>} : vector<8x32xbf16>, vector<32x96xbf16>, vector<8x96xf32> -> vector<8x96xf32>
    %1732 = arith.truncf %1717 : vector<8x32xf32> to vector<8x32xbf16>
    %cst_584 = arith.constant dense<0.000000e+00> : vector<8x96xf32>
    %1733 = tpu.matmul %1732, %1059, %cst_584 {dimension_numbers = #tpu.dot_dimension_numbers<[1], [0], [0], [1], [0, 0, 1, 1], [], []>} : vector<8x32xbf16>, vector<32x96xbf16>, vector<8x96xf32> -> vector<8x96xf32>
    %1734 = vector.extract_strided_slice %1726 {offsets = [0, 0], sizes = [8, 64], strides = [1, 1]} : vector<8x192xf32> to vector<8x64xf32>
    %1735 = vector.extract_strided_slice %1731 {offsets = [0, 0], sizes = [8, 64], strides = [1, 1]} : vector<8x96xf32> to vector<8x64xf32>
    %1736 = arith.addf %1734, %1735 : vector<8x64xf32>
    %1737 = arith.negf %1736 : vector<8x64xf32>
    %1738 = math.exp %1737 : vector<8x64xf32>
    %cst_585 = arith.constant 1.000000e+00 : f32
    %1739 = vector.broadcast %cst_585 : f32 to vector<8x64xf32>
    %1740 = arith.addf %1739, %1738 : vector<8x64xf32>
    %1741 = arith.divf %1739, %1740 : vector<8x64xf32>
    %1742 = vector.extract_strided_slice %1729 {offsets = [0, 96], sizes = [8, 64], strides = [1, 1]} : vector<8x192xf32> to vector<8x64xf32>
    %1743 = vector.extract_strided_slice %1733 {offsets = [0, 0], sizes = [8, 64], strides = [1, 1]} : vector<8x96xf32> to vector<8x64xf32>
    %1744 = arith.addf %1742, %1743 : vector<8x64xf32>
    %1745 = arith.negf %1744 : vector<8x64xf32>
    %1746 = math.exp %1745 : vector<8x64xf32>
    %cst_586 = arith.constant 1.000000e+00 : f32
    %1747 = vector.broadcast %cst_586 : f32 to vector<8x64xf32>
    %1748 = arith.addf %1747, %1746 : vector<8x64xf32>
    %1749 = arith.divf %1747, %1748 : vector<8x64xf32>
    %1750 = vector.extract_strided_slice %1726 {offsets = [0, 64], sizes = [8, 32], strides = [1, 1]} : vector<8x192xf32> to vector<8x32xf32>
    %1751 = vector.extract_strided_slice %1741 {offsets = [0, 0], sizes = [8, 32], strides = [1, 1]} : vector<8x64xf32> to vector<8x32xf32>
    %1752 = vector.extract_strided_slice %1731 {offsets = [0, 64], sizes = [8, 32], strides = [1, 1]} : vector<8x96xf32> to vector<8x32xf32>
    %1753 = vector.broadcast %1060 : vector<1x32xf32> to vector<8x32xf32>
    %1754 = arith.addf %1752, %1753 : vector<8x32xf32>
    %1755 = arith.mulf %1751, %1754 : vector<8x32xf32>
    %1756 = arith.addf %1750, %1755 : vector<8x32xf32>
    %1757 = math.tanh %1756 : vector<8x32xf32>
    %1758 = vector.extract_strided_slice %1729 {offsets = [0, 160], sizes = [8, 32], strides = [1, 1]} : vector<8x192xf32> to vector<8x32xf32>
    %1759 = vector.extract_strided_slice %1749 {offsets = [0, 0], sizes = [8, 32], strides = [1, 1]} : vector<8x64xf32> to vector<8x32xf32>
    %1760 = vector.extract_strided_slice %1733 {offsets = [0, 64], sizes = [8, 32], strides = [1, 1]} : vector<8x96xf32> to vector<8x32xf32>
    %1761 = vector.broadcast %1061 : vector<1x32xf32> to vector<8x32xf32>
    %1762 = arith.addf %1760, %1761 : vector<8x32xf32>
    %1763 = arith.mulf %1759, %1762 : vector<8x32xf32>
    %1764 = arith.addf %1758, %1763 : vector<8x32xf32>
    %1765 = math.tanh %1764 : vector<8x32xf32>
    %1766 = vector.extract_strided_slice %1741 {offsets = [0, 32], sizes = [8, 32], strides = [1, 1]} : vector<8x64xf32> to vector<8x32xf32>
    %1767 = vector.extract_strided_slice %1749 {offsets = [0, 32], sizes = [8, 32], strides = [1, 1]} : vector<8x64xf32> to vector<8x32xf32>
    %cst_587 = arith.constant 1.000000e+00 : f32
    %1768 = vector.broadcast %cst_587 : f32 to vector<8x32xf32>
    %1769 = arith.subf %1768, %1766 : vector<8x32xf32>
    %1770 = arith.mulf %1769, %1757 : vector<8x32xf32>
    %1771 = arith.mulf %1766, %1712 : vector<8x32xf32>
    %1772 = arith.addf %1770, %1771 : vector<8x32xf32>
    %cst_588 = arith.constant 1.000000e+00 : f32
    %1773 = vector.broadcast %cst_588 : f32 to vector<8x32xf32>
    %1774 = arith.subf %1773, %1767 : vector<8x32xf32>
    %1775 = arith.mulf %1774, %1765 : vector<8x32xf32>
    %1776 = arith.mulf %1767, %1717 : vector<8x32xf32>
    %1777 = arith.addf %1775, %1776 : vector<8x32xf32>
    %c11_589 = arith.constant 11 : index
    %c0_590 = arith.constant 0 : index
    %c0_591 = arith.constant 0 : index
    %1778 = vector.load %arg28[%c11_589, %c0_590, %c0_591] : memref<16x8x64xf32, #tpu.memory_space<vmem>>, vector<1x8x32xf32>
    %1779 = vector.shape_cast %1778 : vector<1x8x32xf32> to vector<8x32xf32>
    %1780 = vector.shape_cast %1772 : vector<8x32xf32> to vector<1x8x32xf32>
    tpu.vector_store %arg28[%c11_589, %c0_590, %c0_591], %1780 {strides = array<i32>} : memref<16x8x64xf32, #tpu.memory_space<vmem>>, vector<1x8x32xf32>,
    %c4_592 = arith.constant 4 : index
    %c0_593 = arith.constant 0 : index
    %c32_594 = arith.constant 32 : index
    %1781 = vector.load %arg28[%c4_592, %c0_593, %c32_594] : memref<16x8x64xf32, #tpu.memory_space<vmem>>, vector<1x8x32xf32>
    %1782 = vector.shape_cast %1781 : vector<1x8x32xf32> to vector<8x32xf32>
    %1783 = vector.shape_cast %1777 : vector<8x32xf32> to vector<1x8x32xf32>
    tpu.vector_store %arg28[%c4_592, %c0_593, %c32_594], %1783 {strides = array<i32>} : memref<16x8x64xf32, #tpu.memory_space<vmem>>, vector<1x8x32xf32>,
    %c12_595 = arith.constant 12 : index
    %c0_596 = arith.constant 0 : index
    %c0_597 = arith.constant 0 : index
    %1784 = vector.load %arg27[%c12_595, %c0_596, %c0_597] : memref<16x8x192xbf16, #tpu.memory_space<vmem>>, vector<1x8x192xbf16>
    %1785 = vector.shape_cast %1784 : vector<1x8x192xbf16> to vector<8x192xbf16>
    %1786 = arith.extf %1785 : vector<8x192xbf16> to vector<8x192xf32>
    %c3_598 = arith.constant 3 : index
    %c0_599 = arith.constant 0 : index
    %c0_600 = arith.constant 0 : index
    %1787 = vector.load %arg27[%c3_598, %c0_599, %c0_600] : memref<16x8x192xbf16, #tpu.memory_space<vmem>>, vector<1x8x192xbf16>
    %1788 = vector.shape_cast %1787 : vector<1x8x192xbf16> to vector<8x192xbf16>
    %1789 = arith.extf %1788 : vector<8x192xbf16> to vector<8x192xf32>
    %1790 = arith.truncf %1772 : vector<8x32xf32> to vector<8x32xbf16>
    %cst_601 = arith.constant dense<0.000000e+00> : vector<8x96xf32>
    %1791 = tpu.matmul %1790, %1058, %cst_601 {dimension_numbers = #tpu.dot_dimension_numbers<[1], [0], [0], [1], [0, 0, 1, 1], [], []>} : vector<8x32xbf16>, vector<32x96xbf16>, vector<8x96xf32> -> vector<8x96xf32>
    %1792 = arith.truncf %1777 : vector<8x32xf32> to vector<8x32xbf16>
    %cst_602 = arith.constant dense<0.000000e+00> : vector<8x96xf32>
    %1793 = tpu.matmul %1792, %1059, %cst_602 {dimension_numbers = #tpu.dot_dimension_numbers<[1], [0], [0], [1], [0, 0, 1, 1], [], []>} : vector<8x32xbf16>, vector<32x96xbf16>, vector<8x96xf32> -> vector<8x96xf32>
    %1794 = vector.extract_strided_slice %1786 {offsets = [0, 0], sizes = [8, 64], strides = [1, 1]} : vector<8x192xf32> to vector<8x64xf32>
    %1795 = vector.extract_strided_slice %1791 {offsets = [0, 0], sizes = [8, 64], strides = [1, 1]} : vector<8x96xf32> to vector<8x64xf32>
    %1796 = arith.addf %1794, %1795 : vector<8x64xf32>
    %1797 = arith.negf %1796 : vector<8x64xf32>
    %1798 = math.exp %1797 : vector<8x64xf32>
    %cst_603 = arith.constant 1.000000e+00 : f32
    %1799 = vector.broadcast %cst_603 : f32 to vector<8x64xf32>
    %1800 = arith.addf %1799, %1798 : vector<8x64xf32>
    %1801 = arith.divf %1799, %1800 : vector<8x64xf32>
    %1802 = vector.extract_strided_slice %1789 {offsets = [0, 96], sizes = [8, 64], strides = [1, 1]} : vector<8x192xf32> to vector<8x64xf32>
    %1803 = vector.extract_strided_slice %1793 {offsets = [0, 0], sizes = [8, 64], strides = [1, 1]} : vector<8x96xf32> to vector<8x64xf32>
    %1804 = arith.addf %1802, %1803 : vector<8x64xf32>
    %1805 = arith.negf %1804 : vector<8x64xf32>
    %1806 = math.exp %1805 : vector<8x64xf32>
    %cst_604 = arith.constant 1.000000e+00 : f32
    %1807 = vector.broadcast %cst_604 : f32 to vector<8x64xf32>
    %1808 = arith.addf %1807, %1806 : vector<8x64xf32>
    %1809 = arith.divf %1807, %1808 : vector<8x64xf32>
    %1810 = vector.extract_strided_slice %1786 {offsets = [0, 64], sizes = [8, 32], strides = [1, 1]} : vector<8x192xf32> to vector<8x32xf32>
    %1811 = vector.extract_strided_slice %1801 {offsets = [0, 0], sizes = [8, 32], strides = [1, 1]} : vector<8x64xf32> to vector<8x32xf32>
    %1812 = vector.extract_strided_slice %1791 {offsets = [0, 64], sizes = [8, 32], strides = [1, 1]} : vector<8x96xf32> to vector<8x32xf32>
    %1813 = vector.broadcast %1060 : vector<1x32xf32> to vector<8x32xf32>
    %1814 = arith.addf %1812, %1813 : vector<8x32xf32>
    %1815 = arith.mulf %1811, %1814 : vector<8x32xf32>
    %1816 = arith.addf %1810, %1815 : vector<8x32xf32>
    %1817 = math.tanh %1816 : vector<8x32xf32>
    %1818 = vector.extract_strided_slice %1789 {offsets = [0, 160], sizes = [8, 32], strides = [1, 1]} : vector<8x192xf32> to vector<8x32xf32>
    %1819 = vector.extract_strided_slice %1809 {offsets = [0, 0], sizes = [8, 32], strides = [1, 1]} : vector<8x64xf32> to vector<8x32xf32>
    %1820 = vector.extract_strided_slice %1793 {offsets = [0, 64], sizes = [8, 32], strides = [1, 1]} : vector<8x96xf32> to vector<8x32xf32>
    %1821 = vector.broadcast %1061 : vector<1x32xf32> to vector<8x32xf32>
    %1822 = arith.addf %1820, %1821 : vector<8x32xf32>
    %1823 = arith.mulf %1819, %1822 : vector<8x32xf32>
    %1824 = arith.addf %1818, %1823 : vector<8x32xf32>
    %1825 = math.tanh %1824 : vector<8x32xf32>
    %1826 = vector.extract_strided_slice %1801 {offsets = [0, 32], sizes = [8, 32], strides = [1, 1]} : vector<8x64xf32> to vector<8x32xf32>
    %1827 = vector.extract_strided_slice %1809 {offsets = [0, 32], sizes = [8, 32], strides = [1, 1]} : vector<8x64xf32> to vector<8x32xf32>
    %cst_605 = arith.constant 1.000000e+00 : f32
    %1828 = vector.broadcast %cst_605 : f32 to vector<8x32xf32>
    %1829 = arith.subf %1828, %1826 : vector<8x32xf32>
    %1830 = arith.mulf %1829, %1817 : vector<8x32xf32>
    %1831 = arith.mulf %1826, %1772 : vector<8x32xf32>
    %1832 = arith.addf %1830, %1831 : vector<8x32xf32>
    %cst_606 = arith.constant 1.000000e+00 : f32
    %1833 = vector.broadcast %cst_606 : f32 to vector<8x32xf32>
    %1834 = arith.subf %1833, %1827 : vector<8x32xf32>
    %1835 = arith.mulf %1834, %1825 : vector<8x32xf32>
    %1836 = arith.mulf %1827, %1777 : vector<8x32xf32>
    %1837 = arith.addf %1835, %1836 : vector<8x32xf32>
    %c12_607 = arith.constant 12 : index
    %c0_608 = arith.constant 0 : index
    %c0_609 = arith.constant 0 : index
    %1838 = vector.load %arg28[%c12_607, %c0_608, %c0_609] : memref<16x8x64xf32, #tpu.memory_space<vmem>>, vector<1x8x32xf32>
    %1839 = vector.shape_cast %1838 : vector<1x8x32xf32> to vector<8x32xf32>
    %1840 = vector.shape_cast %1832 : vector<8x32xf32> to vector<1x8x32xf32>
    tpu.vector_store %arg28[%c12_607, %c0_608, %c0_609], %1840 {strides = array<i32>} : memref<16x8x64xf32, #tpu.memory_space<vmem>>, vector<1x8x32xf32>,
    %c3_610 = arith.constant 3 : index
    %c0_611 = arith.constant 0 : index
    %c32_612 = arith.constant 32 : index
    %1841 = vector.load %arg28[%c3_610, %c0_611, %c32_612] : memref<16x8x64xf32, #tpu.memory_space<vmem>>, vector<1x8x32xf32>
    %1842 = vector.shape_cast %1841 : vector<1x8x32xf32> to vector<8x32xf32>
    %1843 = vector.shape_cast %1837 : vector<8x32xf32> to vector<1x8x32xf32>
    tpu.vector_store %arg28[%c3_610, %c0_611, %c32_612], %1843 {strides = array<i32>} : memref<16x8x64xf32, #tpu.memory_space<vmem>>, vector<1x8x32xf32>,
    %c13_613 = arith.constant 13 : index
    %c0_614 = arith.constant 0 : index
    %c0_615 = arith.constant 0 : index
    %1844 = vector.load %arg27[%c13_613, %c0_614, %c0_615] : memref<16x8x192xbf16, #tpu.memory_space<vmem>>, vector<1x8x192xbf16>
    %1845 = vector.shape_cast %1844 : vector<1x8x192xbf16> to vector<8x192xbf16>
    %1846 = arith.extf %1845 : vector<8x192xbf16> to vector<8x192xf32>
    %c2_616 = arith.constant 2 : index
    %c0_617 = arith.constant 0 : index
    %c0_618 = arith.constant 0 : index
    %1847 = vector.load %arg27[%c2_616, %c0_617, %c0_618] : memref<16x8x192xbf16, #tpu.memory_space<vmem>>, vector<1x8x192xbf16>
    %1848 = vector.shape_cast %1847 : vector<1x8x192xbf16> to vector<8x192xbf16>
    %1849 = arith.extf %1848 : vector<8x192xbf16> to vector<8x192xf32>
    %1850 = arith.truncf %1832 : vector<8x32xf32> to vector<8x32xbf16>
    %cst_619 = arith.constant dense<0.000000e+00> : vector<8x96xf32>
    %1851 = tpu.matmul %1850, %1058, %cst_619 {dimension_numbers = #tpu.dot_dimension_numbers<[1], [0], [0], [1], [0, 0, 1, 1], [], []>} : vector<8x32xbf16>, vector<32x96xbf16>, vector<8x96xf32> -> vector<8x96xf32>
    %1852 = arith.truncf %1837 : vector<8x32xf32> to vector<8x32xbf16>
    %cst_620 = arith.constant dense<0.000000e+00> : vector<8x96xf32>
    %1853 = tpu.matmul %1852, %1059, %cst_620 {dimension_numbers = #tpu.dot_dimension_numbers<[1], [0], [0], [1], [0, 0, 1, 1], [], []>} : vector<8x32xbf16>, vector<32x96xbf16>, vector<8x96xf32> -> vector<8x96xf32>
    %1854 = vector.extract_strided_slice %1846 {offsets = [0, 0], sizes = [8, 64], strides = [1, 1]} : vector<8x192xf32> to vector<8x64xf32>
    %1855 = vector.extract_strided_slice %1851 {offsets = [0, 0], sizes = [8, 64], strides = [1, 1]} : vector<8x96xf32> to vector<8x64xf32>
    %1856 = arith.addf %1854, %1855 : vector<8x64xf32>
    %1857 = arith.negf %1856 : vector<8x64xf32>
    %1858 = math.exp %1857 : vector<8x64xf32>
    %cst_621 = arith.constant 1.000000e+00 : f32
    %1859 = vector.broadcast %cst_621 : f32 to vector<8x64xf32>
    %1860 = arith.addf %1859, %1858 : vector<8x64xf32>
    %1861 = arith.divf %1859, %1860 : vector<8x64xf32>
    %1862 = vector.extract_strided_slice %1849 {offsets = [0, 96], sizes = [8, 64], strides = [1, 1]} : vector<8x192xf32> to vector<8x64xf32>
    %1863 = vector.extract_strided_slice %1853 {offsets = [0, 0], sizes = [8, 64], strides = [1, 1]} : vector<8x96xf32> to vector<8x64xf32>
    %1864 = arith.addf %1862, %1863 : vector<8x64xf32>
    %1865 = arith.negf %1864 : vector<8x64xf32>
    %1866 = math.exp %1865 : vector<8x64xf32>
    %cst_622 = arith.constant 1.000000e+00 : f32
    %1867 = vector.broadcast %cst_622 : f32 to vector<8x64xf32>
    %1868 = arith.addf %1867, %1866 : vector<8x64xf32>
    %1869 = arith.divf %1867, %1868 : vector<8x64xf32>
    %1870 = vector.extract_strided_slice %1846 {offsets = [0, 64], sizes = [8, 32], strides = [1, 1]} : vector<8x192xf32> to vector<8x32xf32>
    %1871 = vector.extract_strided_slice %1861 {offsets = [0, 0], sizes = [8, 32], strides = [1, 1]} : vector<8x64xf32> to vector<8x32xf32>
    %1872 = vector.extract_strided_slice %1851 {offsets = [0, 64], sizes = [8, 32], strides = [1, 1]} : vector<8x96xf32> to vector<8x32xf32>
    %1873 = vector.broadcast %1060 : vector<1x32xf32> to vector<8x32xf32>
    %1874 = arith.addf %1872, %1873 : vector<8x32xf32>
    %1875 = arith.mulf %1871, %1874 : vector<8x32xf32>
    %1876 = arith.addf %1870, %1875 : vector<8x32xf32>
    %1877 = math.tanh %1876 : vector<8x32xf32>
    %1878 = vector.extract_strided_slice %1849 {offsets = [0, 160], sizes = [8, 32], strides = [1, 1]} : vector<8x192xf32> to vector<8x32xf32>
    %1879 = vector.extract_strided_slice %1869 {offsets = [0, 0], sizes = [8, 32], strides = [1, 1]} : vector<8x64xf32> to vector<8x32xf32>
    %1880 = vector.extract_strided_slice %1853 {offsets = [0, 64], sizes = [8, 32], strides = [1, 1]} : vector<8x96xf32> to vector<8x32xf32>
    %1881 = vector.broadcast %1061 : vector<1x32xf32> to vector<8x32xf32>
    %1882 = arith.addf %1880, %1881 : vector<8x32xf32>
    %1883 = arith.mulf %1879, %1882 : vector<8x32xf32>
    %1884 = arith.addf %1878, %1883 : vector<8x32xf32>
    %1885 = math.tanh %1884 : vector<8x32xf32>
    %1886 = vector.extract_strided_slice %1861 {offsets = [0, 32], sizes = [8, 32], strides = [1, 1]} : vector<8x64xf32> to vector<8x32xf32>
    %1887 = vector.extract_strided_slice %1869 {offsets = [0, 32], sizes = [8, 32], strides = [1, 1]} : vector<8x64xf32> to vector<8x32xf32>
    %cst_623 = arith.constant 1.000000e+00 : f32
    %1888 = vector.broadcast %cst_623 : f32 to vector<8x32xf32>
    %1889 = arith.subf %1888, %1886 : vector<8x32xf32>
    %1890 = arith.mulf %1889, %1877 : vector<8x32xf32>
    %1891 = arith.mulf %1886, %1832 : vector<8x32xf32>
    %1892 = arith.addf %1890, %1891 : vector<8x32xf32>
    %cst_624 = arith.constant 1.000000e+00 : f32
    %1893 = vector.broadcast %cst_624 : f32 to vector<8x32xf32>
    %1894 = arith.subf %1893, %1887 : vector<8x32xf32>
    %1895 = arith.mulf %1894, %1885 : vector<8x32xf32>
    %1896 = arith.mulf %1887, %1837 : vector<8x32xf32>
    %1897 = arith.addf %1895, %1896 : vector<8x32xf32>
    %c13_625 = arith.constant 13 : index
    %c0_626 = arith.constant 0 : index
    %c0_627 = arith.constant 0 : index
    %1898 = vector.load %arg28[%c13_625, %c0_626, %c0_627] : memref<16x8x64xf32, #tpu.memory_space<vmem>>, vector<1x8x32xf32>
    %1899 = vector.shape_cast %1898 : vector<1x8x32xf32> to vector<8x32xf32>
    %1900 = vector.shape_cast %1892 : vector<8x32xf32> to vector<1x8x32xf32>
    tpu.vector_store %arg28[%c13_625, %c0_626, %c0_627], %1900 {strides = array<i32>} : memref<16x8x64xf32, #tpu.memory_space<vmem>>, vector<1x8x32xf32>,
    %c2_628 = arith.constant 2 : index
    %c0_629 = arith.constant 0 : index
    %c32_630 = arith.constant 32 : index
    %1901 = vector.load %arg28[%c2_628, %c0_629, %c32_630] : memref<16x8x64xf32, #tpu.memory_space<vmem>>, vector<1x8x32xf32>
    %1902 = vector.shape_cast %1901 : vector<1x8x32xf32> to vector<8x32xf32>
    %1903 = vector.shape_cast %1897 : vector<8x32xf32> to vector<1x8x32xf32>
    tpu.vector_store %arg28[%c2_628, %c0_629, %c32_630], %1903 {strides = array<i32>} : memref<16x8x64xf32, #tpu.memory_space<vmem>>, vector<1x8x32xf32>,
    %c14_631 = arith.constant 14 : index
    %c0_632 = arith.constant 0 : index
    %c0_633 = arith.constant 0 : index
    %1904 = vector.load %arg27[%c14_631, %c0_632, %c0_633] : memref<16x8x192xbf16, #tpu.memory_space<vmem>>, vector<1x8x192xbf16>
    %1905 = vector.shape_cast %1904 : vector<1x8x192xbf16> to vector<8x192xbf16>
    %1906 = arith.extf %1905 : vector<8x192xbf16> to vector<8x192xf32>
    %c1_634 = arith.constant 1 : index
    %c0_635 = arith.constant 0 : index
    %c0_636 = arith.constant 0 : index
    %1907 = vector.load %arg27[%c1_634, %c0_635, %c0_636] : memref<16x8x192xbf16, #tpu.memory_space<vmem>>, vector<1x8x192xbf16>
    %1908 = vector.shape_cast %1907 : vector<1x8x192xbf16> to vector<8x192xbf16>
    %1909 = arith.extf %1908 : vector<8x192xbf16> to vector<8x192xf32>
    %1910 = arith.truncf %1892 : vector<8x32xf32> to vector<8x32xbf16>
    %cst_637 = arith.constant dense<0.000000e+00> : vector<8x96xf32>
    %1911 = tpu.matmul %1910, %1058, %cst_637 {dimension_numbers = #tpu.dot_dimension_numbers<[1], [0], [0], [1], [0, 0, 1, 1], [], []>} : vector<8x32xbf16>, vector<32x96xbf16>, vector<8x96xf32> -> vector<8x96xf32>
    %1912 = arith.truncf %1897 : vector<8x32xf32> to vector<8x32xbf16>
    %cst_638 = arith.constant dense<0.000000e+00> : vector<8x96xf32>
    %1913 = tpu.matmul %1912, %1059, %cst_638 {dimension_numbers = #tpu.dot_dimension_numbers<[1], [0], [0], [1], [0, 0, 1, 1], [], []>} : vector<8x32xbf16>, vector<32x96xbf16>, vector<8x96xf32> -> vector<8x96xf32>
    %1914 = vector.extract_strided_slice %1906 {offsets = [0, 0], sizes = [8, 64], strides = [1, 1]} : vector<8x192xf32> to vector<8x64xf32>
    %1915 = vector.extract_strided_slice %1911 {offsets = [0, 0], sizes = [8, 64], strides = [1, 1]} : vector<8x96xf32> to vector<8x64xf32>
    %1916 = arith.addf %1914, %1915 : vector<8x64xf32>
    %1917 = arith.negf %1916 : vector<8x64xf32>
    %1918 = math.exp %1917 : vector<8x64xf32>
    %cst_639 = arith.constant 1.000000e+00 : f32
    %1919 = vector.broadcast %cst_639 : f32 to vector<8x64xf32>
    %1920 = arith.addf %1919, %1918 : vector<8x64xf32>
    %1921 = arith.divf %1919, %1920 : vector<8x64xf32>
    %1922 = vector.extract_strided_slice %1909 {offsets = [0, 96], sizes = [8, 64], strides = [1, 1]} : vector<8x192xf32> to vector<8x64xf32>
    %1923 = vector.extract_strided_slice %1913 {offsets = [0, 0], sizes = [8, 64], strides = [1, 1]} : vector<8x96xf32> to vector<8x64xf32>
    %1924 = arith.addf %1922, %1923 : vector<8x64xf32>
    %1925 = arith.negf %1924 : vector<8x64xf32>
    %1926 = math.exp %1925 : vector<8x64xf32>
    %cst_640 = arith.constant 1.000000e+00 : f32
    %1927 = vector.broadcast %cst_640 : f32 to vector<8x64xf32>
    %1928 = arith.addf %1927, %1926 : vector<8x64xf32>
    %1929 = arith.divf %1927, %1928 : vector<8x64xf32>
    %1930 = vector.extract_strided_slice %1906 {offsets = [0, 64], sizes = [8, 32], strides = [1, 1]} : vector<8x192xf32> to vector<8x32xf32>
    %1931 = vector.extract_strided_slice %1921 {offsets = [0, 0], sizes = [8, 32], strides = [1, 1]} : vector<8x64xf32> to vector<8x32xf32>
    %1932 = vector.extract_strided_slice %1911 {offsets = [0, 64], sizes = [8, 32], strides = [1, 1]} : vector<8x96xf32> to vector<8x32xf32>
    %1933 = vector.broadcast %1060 : vector<1x32xf32> to vector<8x32xf32>
    %1934 = arith.addf %1932, %1933 : vector<8x32xf32>
    %1935 = arith.mulf %1931, %1934 : vector<8x32xf32>
    %1936 = arith.addf %1930, %1935 : vector<8x32xf32>
    %1937 = math.tanh %1936 : vector<8x32xf32>
    %1938 = vector.extract_strided_slice %1909 {offsets = [0, 160], sizes = [8, 32], strides = [1, 1]} : vector<8x192xf32> to vector<8x32xf32>
    %1939 = vector.extract_strided_slice %1929 {offsets = [0, 0], sizes = [8, 32], strides = [1, 1]} : vector<8x64xf32> to vector<8x32xf32>
    %1940 = vector.extract_strided_slice %1913 {offsets = [0, 64], sizes = [8, 32], strides = [1, 1]} : vector<8x96xf32> to vector<8x32xf32>
    %1941 = vector.broadcast %1061 : vector<1x32xf32> to vector<8x32xf32>
    %1942 = arith.addf %1940, %1941 : vector<8x32xf32>
    %1943 = arith.mulf %1939, %1942 : vector<8x32xf32>
    %1944 = arith.addf %1938, %1943 : vector<8x32xf32>
    %1945 = math.tanh %1944 : vector<8x32xf32>
    %1946 = vector.extract_strided_slice %1921 {offsets = [0, 32], sizes = [8, 32], strides = [1, 1]} : vector<8x64xf32> to vector<8x32xf32>
    %1947 = vector.extract_strided_slice %1929 {offsets = [0, 32], sizes = [8, 32], strides = [1, 1]} : vector<8x64xf32> to vector<8x32xf32>
    %cst_641 = arith.constant 1.000000e+00 : f32
    %1948 = vector.broadcast %cst_641 : f32 to vector<8x32xf32>
    %1949 = arith.subf %1948, %1946 : vector<8x32xf32>
    %1950 = arith.mulf %1949, %1937 : vector<8x32xf32>
    %1951 = arith.mulf %1946, %1892 : vector<8x32xf32>
    %1952 = arith.addf %1950, %1951 : vector<8x32xf32>
    %cst_642 = arith.constant 1.000000e+00 : f32
    %1953 = vector.broadcast %cst_642 : f32 to vector<8x32xf32>
    %1954 = arith.subf %1953, %1947 : vector<8x32xf32>
    %1955 = arith.mulf %1954, %1945 : vector<8x32xf32>
    %1956 = arith.mulf %1947, %1897 : vector<8x32xf32>
    %1957 = arith.addf %1955, %1956 : vector<8x32xf32>
    %c14_643 = arith.constant 14 : index
    %c0_644 = arith.constant 0 : index
    %c0_645 = arith.constant 0 : index
    %1958 = vector.load %arg28[%c14_643, %c0_644, %c0_645] : memref<16x8x64xf32, #tpu.memory_space<vmem>>, vector<1x8x32xf32>
    %1959 = vector.shape_cast %1958 : vector<1x8x32xf32> to vector<8x32xf32>
    %1960 = vector.shape_cast %1952 : vector<8x32xf32> to vector<1x8x32xf32>
    tpu.vector_store %arg28[%c14_643, %c0_644, %c0_645], %1960 {strides = array<i32>} : memref<16x8x64xf32, #tpu.memory_space<vmem>>, vector<1x8x32xf32>,
    %c1_646 = arith.constant 1 : index
    %c0_647 = arith.constant 0 : index
    %c32_648 = arith.constant 32 : index
    %1961 = vector.load %arg28[%c1_646, %c0_647, %c32_648] : memref<16x8x64xf32, #tpu.memory_space<vmem>>, vector<1x8x32xf32>
    %1962 = vector.shape_cast %1961 : vector<1x8x32xf32> to vector<8x32xf32>
    %1963 = vector.shape_cast %1957 : vector<8x32xf32> to vector<1x8x32xf32>
    tpu.vector_store %arg28[%c1_646, %c0_647, %c32_648], %1963 {strides = array<i32>} : memref<16x8x64xf32, #tpu.memory_space<vmem>>, vector<1x8x32xf32>,
    %c15_649 = arith.constant 15 : index
    %c0_650 = arith.constant 0 : index
    %c0_651 = arith.constant 0 : index
    %1964 = vector.load %arg27[%c15_649, %c0_650, %c0_651] : memref<16x8x192xbf16, #tpu.memory_space<vmem>>, vector<1x8x192xbf16>
    %1965 = vector.shape_cast %1964 : vector<1x8x192xbf16> to vector<8x192xbf16>
    %1966 = arith.extf %1965 : vector<8x192xbf16> to vector<8x192xf32>
    %c0_652 = arith.constant 0 : index
    %c0_653 = arith.constant 0 : index
    %c0_654 = arith.constant 0 : index
    %1967 = vector.load %arg27[%c0_652, %c0_653, %c0_654] : memref<16x8x192xbf16, #tpu.memory_space<vmem>>, vector<1x8x192xbf16>
    %1968 = vector.shape_cast %1967 : vector<1x8x192xbf16> to vector<8x192xbf16>
    %1969 = arith.extf %1968 : vector<8x192xbf16> to vector<8x192xf32>
    %1970 = arith.truncf %1952 : vector<8x32xf32> to vector<8x32xbf16>
    %cst_655 = arith.constant dense<0.000000e+00> : vector<8x96xf32>
    %1971 = tpu.matmul %1970, %1058, %cst_655 {dimension_numbers = #tpu.dot_dimension_numbers<[1], [0], [0], [1], [0, 0, 1, 1], [], []>} : vector<8x32xbf16>, vector<32x96xbf16>, vector<8x96xf32> -> vector<8x96xf32>
    %1972 = arith.truncf %1957 : vector<8x32xf32> to vector<8x32xbf16>
    %cst_656 = arith.constant dense<0.000000e+00> : vector<8x96xf32>
    %1973 = tpu.matmul %1972, %1059, %cst_656 {dimension_numbers = #tpu.dot_dimension_numbers<[1], [0], [0], [1], [0, 0, 1, 1], [], []>} : vector<8x32xbf16>, vector<32x96xbf16>, vector<8x96xf32> -> vector<8x96xf32>
    %1974 = vector.extract_strided_slice %1966 {offsets = [0, 0], sizes = [8, 64], strides = [1, 1]} : vector<8x192xf32> to vector<8x64xf32>
    %1975 = vector.extract_strided_slice %1971 {offsets = [0, 0], sizes = [8, 64], strides = [1, 1]} : vector<8x96xf32> to vector<8x64xf32>
    %1976 = arith.addf %1974, %1975 : vector<8x64xf32>
    %1977 = arith.negf %1976 : vector<8x64xf32>
    %1978 = math.exp %1977 : vector<8x64xf32>
    %cst_657 = arith.constant 1.000000e+00 : f32
    %1979 = vector.broadcast %cst_657 : f32 to vector<8x64xf32>
    %1980 = arith.addf %1979, %1978 : vector<8x64xf32>
    %1981 = arith.divf %1979, %1980 : vector<8x64xf32>
    %1982 = vector.extract_strided_slice %1969 {offsets = [0, 96], sizes = [8, 64], strides = [1, 1]} : vector<8x192xf32> to vector<8x64xf32>
    %1983 = vector.extract_strided_slice %1973 {offsets = [0, 0], sizes = [8, 64], strides = [1, 1]} : vector<8x96xf32> to vector<8x64xf32>
    %1984 = arith.addf %1982, %1983 : vector<8x64xf32>
    %1985 = arith.negf %1984 : vector<8x64xf32>
    %1986 = math.exp %1985 : vector<8x64xf32>
    %cst_658 = arith.constant 1.000000e+00 : f32
    %1987 = vector.broadcast %cst_658 : f32 to vector<8x64xf32>
    %1988 = arith.addf %1987, %1986 : vector<8x64xf32>
    %1989 = arith.divf %1987, %1988 : vector<8x64xf32>
    %1990 = vector.extract_strided_slice %1966 {offsets = [0, 64], sizes = [8, 32], strides = [1, 1]} : vector<8x192xf32> to vector<8x32xf32>
    %1991 = vector.extract_strided_slice %1981 {offsets = [0, 0], sizes = [8, 32], strides = [1, 1]} : vector<8x64xf32> to vector<8x32xf32>
    %1992 = vector.extract_strided_slice %1971 {offsets = [0, 64], sizes = [8, 32], strides = [1, 1]} : vector<8x96xf32> to vector<8x32xf32>
    %1993 = vector.broadcast %1060 : vector<1x32xf32> to vector<8x32xf32>
    %1994 = arith.addf %1992, %1993 : vector<8x32xf32>
    %1995 = arith.mulf %1991, %1994 : vector<8x32xf32>
    %1996 = arith.addf %1990, %1995 : vector<8x32xf32>
    %1997 = math.tanh %1996 : vector<8x32xf32>
    %1998 = vector.extract_strided_slice %1969 {offsets = [0, 160], sizes = [8, 32], strides = [1, 1]} : vector<8x192xf32> to vector<8x32xf32>
    %1999 = vector.extract_strided_slice %1989 {offsets = [0, 0], sizes = [8, 32], strides = [1, 1]} : vector<8x64xf32> to vector<8x32xf32>
    %2000 = vector.extract_strided_slice %1973 {offsets = [0, 64], sizes = [8, 32], strides = [1, 1]} : vector<8x96xf32> to vector<8x32xf32>
    %2001 = vector.broadcast %1061 : vector<1x32xf32> to vector<8x32xf32>
    %2002 = arith.addf %2000, %2001 : vector<8x32xf32>
    %2003 = arith.mulf %1999, %2002 : vector<8x32xf32>
    %2004 = arith.addf %1998, %2003 : vector<8x32xf32>
    %2005 = math.tanh %2004 : vector<8x32xf32>
    %2006 = vector.extract_strided_slice %1981 {offsets = [0, 32], sizes = [8, 32], strides = [1, 1]} : vector<8x64xf32> to vector<8x32xf32>
    %2007 = vector.extract_strided_slice %1989 {offsets = [0, 32], sizes = [8, 32], strides = [1, 1]} : vector<8x64xf32> to vector<8x32xf32>
    %cst_659 = arith.constant 1.000000e+00 : f32
    %2008 = vector.broadcast %cst_659 : f32 to vector<8x32xf32>
    %2009 = arith.subf %2008, %2006 : vector<8x32xf32>
    %2010 = arith.mulf %2009, %1997 : vector<8x32xf32>
    %2011 = arith.mulf %2006, %1952 : vector<8x32xf32>
    %2012 = arith.addf %2010, %2011 : vector<8x32xf32>
    %cst_660 = arith.constant 1.000000e+00 : f32
    %2013 = vector.broadcast %cst_660 : f32 to vector<8x32xf32>
    %2014 = arith.subf %2013, %2007 : vector<8x32xf32>
    %2015 = arith.mulf %2014, %2005 : vector<8x32xf32>
    %2016 = arith.mulf %2007, %1957 : vector<8x32xf32>
    %2017 = arith.addf %2015, %2016 : vector<8x32xf32>
    %c15_661 = arith.constant 15 : index
    %c0_662 = arith.constant 0 : index
    %c0_663 = arith.constant 0 : index
    %2018 = vector.load %arg28[%c15_661, %c0_662, %c0_663] : memref<16x8x64xf32, #tpu.memory_space<vmem>>, vector<1x8x32xf32>
    %2019 = vector.shape_cast %2018 : vector<1x8x32xf32> to vector<8x32xf32>
    %2020 = vector.shape_cast %2012 : vector<8x32xf32> to vector<1x8x32xf32>
    tpu.vector_store %arg28[%c15_661, %c0_662, %c0_663], %2020 {strides = array<i32>} : memref<16x8x64xf32, #tpu.memory_space<vmem>>, vector<1x8x32xf32>,
    %c0_664 = arith.constant 0 : index
    %c0_665 = arith.constant 0 : index
    %c32_666 = arith.constant 32 : index
    %2021 = vector.load %arg28[%c0_664, %c0_665, %c32_666] : memref<16x8x64xf32, #tpu.memory_space<vmem>>, vector<1x8x32xf32>
    %2022 = vector.shape_cast %2021 : vector<1x8x32xf32> to vector<8x32xf32>
    %2023 = vector.shape_cast %2017 : vector<8x32xf32> to vector<1x8x32xf32>
    tpu.vector_store %arg28[%c0_664, %c0_665, %c32_666], %2023 {strides = array<i32>} : memref<16x8x64xf32, #tpu.memory_space<vmem>>, vector<1x8x32xf32>,
    %c0_667 = arith.constant 0 : index
    %c0_668 = arith.constant 0 : index
    %c0_669 = arith.constant 0 : index
    %2024 = vector.load %arg28[%c0_667, %c0_668, %c0_669] : memref<16x8x64xf32, #tpu.memory_space<vmem>>, vector<16x8x64xf32>
    %2025 = arith.truncf %2024 : vector<16x8x64xf32> to vector<16x8x64xbf16>
    %2026 = vector.shape_cast %2025 : vector<16x8x64xbf16> to vector<128x64xbf16>
    %c0_670 = arith.constant 0 : index
    %c0_671 = arith.constant 0 : index
    %2027 = vector.load %arg20[%c0_670, %c0_671] : memref<64x4xbf16, #tpu.memory_space<vmem>>, vector<64x4xbf16>
    %cst_672 = arith.constant dense<0.000000e+00> : vector<128x4xf32>
    %2028 = tpu.matmul %2026, %2027, %cst_672 {dimension_numbers = #tpu.dot_dimension_numbers<[1], [0], [0], [1], [0, 0, 1, 1], [], []>} : vector<128x64xbf16>, vector<64x4xbf16>, vector<128x4xf32> -> vector<128x4xf32>
    %2029 = vector.shape_cast %2028 : vector<128x4xf32> to vector<16x8x4xf32>
    %c0_673 = arith.constant 0 : index
    %c0_674 = arith.constant 0 : index
    %c0_675 = arith.constant 0 : index
    %2030 = vector.load %arg21[%c0_673, %c0_674, %c0_675] : memref<1x1x4xf32, #tpu.memory_space<vmem>>, vector<1x1x4xf32>
    %2031 = vector.broadcast %2030 : vector<1x1x4xf32> to vector<16x8x4xf32>
    %2032 = arith.addf %2029, %2031 : vector<16x8x4xf32>
    %c0_676 = arith.constant 0 : index
    %c0_677 = arith.constant 0 : index
    %c0_678 = arith.constant 0 : index
    %2033 = vector.load %arg22[%c0_676, %c0_677, %c0_678] : memref<16x8x4xf32, #tpu.memory_space<vmem>>, vector<16x8x4xf32>
    tpu.vector_store %arg22[%c0_676, %c0_677, %c0_678], %2032 {strides = array<i32>} : memref<16x8x4xf32, #tpu.memory_space<vmem>>, vector<16x8x4xf32>,
    return
  }
  func.func @transform_0(%arg0: i32) -> (i32, i32, i32) {
    %c0_i32 = arith.constant 0 : i32
    %c0_i32_0 = arith.constant 0 : i32
    %c0_i32_1 = arith.constant 0 : i32
    %c0_i32_2 = arith.constant 0 : i32
    return %c0_i32, %c0_i32_0, %c0_i32_1 : i32, i32, i32
  }
  func.func @transform_1(%arg0: i32) -> (i32, i32, i32) {
    %c0_i32 = arith.constant 0 : i32
    %c0_i32_0 = arith.constant 0 : i32
    %c0_i32_1 = arith.constant 0 : i32
    %c0_i32_2 = arith.constant 0 : i32
    return %c0_i32, %c0_i32_0, %c0_i32_1 : i32, i32, i32
  }
  func.func @transform_2(%arg0: i32) -> (i32, i32, i32) {
    %c0_i32 = arith.constant 0 : i32
    %c0_i32_0 = arith.constant 0 : i32
    %c0_i32_1 = arith.constant 0 : i32
    %c0_i32_2 = arith.constant 0 : i32
    return %c0_i32, %c0_i32_0, %c0_i32_1 : i32, i32, i32
  }
  func.func @transform_3(%arg0: i32) -> (i32, i32, i32) {
    %c0_i32 = arith.constant 0 : i32
    %c0_i32_0 = arith.constant 0 : i32
    %c0_i32_1 = arith.constant 0 : i32
    %c0_i32_2 = arith.constant 0 : i32
    return %c0_i32, %c0_i32_0, %c0_i32_1 : i32, i32, i32
  }
  func.func @transform_4(%arg0: i32) -> (i32, i32, i32) {
    %c0_i32 = arith.constant 0 : i32
    %c0_i32_0 = arith.constant 0 : i32
    %c0_i32_1 = arith.constant 0 : i32
    %c0_i32_2 = arith.constant 0 : i32
    return %c0_i32, %c0_i32_0, %c0_i32_1 : i32, i32, i32
  }
  func.func @transform_5(%arg0: i32) -> (i32, i32, i32) {
    %c0_i32 = arith.constant 0 : i32
    %c0_i32_0 = arith.constant 0 : i32
    %c0_i32_1 = arith.constant 0 : i32
    %c0_i32_2 = arith.constant 0 : i32
    return %c0_i32, %c0_i32_0, %c0_i32_1 : i32, i32, i32
  }
  func.func @transform_6(%arg0: i32) -> (i32, i32, i32) {
    %c0_i32 = arith.constant 0 : i32
    %c0_i32_0 = arith.constant 0 : i32
    %c0_i32_1 = arith.constant 0 : i32
    %c0_i32_2 = arith.constant 0 : i32
    return %c0_i32, %c0_i32_0, %c0_i32_1 : i32, i32, i32
  }
  func.func @transform_7(%arg0: i32) -> (i32, i32) {
    %c0_i32 = arith.constant 0 : i32
    %c0_i32_0 = arith.constant 0 : i32
    %c0_i32_1 = arith.constant 0 : i32
    return %c0_i32, %c0_i32_0 : i32, i32
  }
  func.func @transform_8(%arg0: i32) -> (i32, i32) {
    %c0_i32 = arith.constant 0 : i32
    %c0_i32_0 = arith.constant 0 : i32
    %c0_i32_1 = arith.constant 0 : i32
    return %c0_i32, %c0_i32_0 : i32, i32
  }
  func.func @transform_9(%arg0: i32) -> (i32, i32) {
    %c0_i32 = arith.constant 0 : i32
    %c0_i32_0 = arith.constant 0 : i32
    %c0_i32_1 = arith.constant 0 : i32
    return %c0_i32, %c0_i32_0 : i32, i32
  }
  func.func @transform_10(%arg0: i32) -> (i32, i32) {
    %c0_i32 = arith.constant 0 : i32
    %c0_i32_0 = arith.constant 0 : i32
    %c0_i32_1 = arith.constant 0 : i32
    return %c0_i32, %c0_i32_0 : i32, i32
  }
  func.func @transform_11(%arg0: i32) -> (i32, i32) {
    %c0_i32 = arith.constant 0 : i32
    %c0_i32_0 = arith.constant 0 : i32
    %c0_i32_1 = arith.constant 0 : i32
    return %c0_i32, %c0_i32_0 : i32, i32
  }
  func.func @transform_12(%arg0: i32) -> (i32, i32) {
    %c0_i32 = arith.constant 0 : i32
    %c0_i32_0 = arith.constant 0 : i32
    %c0_i32_1 = arith.constant 0 : i32
    return %c0_i32, %c0_i32_0 : i32, i32
  }
  func.func @transform_13(%arg0: i32) -> (i32, i32) {
    %c0_i32 = arith.constant 0 : i32
    %c0_i32_0 = arith.constant 0 : i32
    %c0_i32_1 = arith.constant 0 : i32
    return %c0_i32, %c0_i32_0 : i32, i32
  }
  func.func @transform_14(%arg0: i32) -> (i32, i32) {
    %c0_i32 = arith.constant 0 : i32
    %c0_i32_0 = arith.constant 0 : i32
    %c0_i32_1 = arith.constant 0 : i32
    return %c0_i32, %c0_i32_0 : i32, i32
  }
  func.func @transform_15(%arg0: i32) -> (i32, i32) {
    %c0_i32 = arith.constant 0 : i32
    %c0_i32_0 = arith.constant 0 : i32
    %c0_i32_1 = arith.constant 0 : i32
    return %c0_i32, %c0_i32_0 : i32, i32
  }
  func.func @transform_16(%arg0: i32) -> (i32, i32) {
    %c0_i32 = arith.constant 0 : i32
    %c0_i32_0 = arith.constant 0 : i32
    %c0_i32_1 = arith.constant 0 : i32
    return %c0_i32, %c0_i32_0 : i32, i32
  }
  func.func @transform_17(%arg0: i32) -> (i32, i32) {
    %c0_i32 = arith.constant 0 : i32
    %c0_i32_0 = arith.constant 0 : i32
    %c0_i32_1 = arith.constant 0 : i32
    return %c0_i32, %c0_i32_0 : i32, i32
  }
  func.func @transform_18(%arg0: i32) -> (i32, i32) {
    %c0_i32 = arith.constant 0 : i32
    %c0_i32_0 = arith.constant 0 : i32
    %c0_i32_1 = arith.constant 0 : i32
    return %c0_i32, %c0_i32_0 : i32, i32
  }
  func.func @transform_19(%arg0: i32) -> (i32, i32) {
    %c0_i32 = arith.constant 0 : i32
    %c0_i32_0 = arith.constant 0 : i32
    %c0_i32_1 = arith.constant 0 : i32
    return %c0_i32, %c0_i32_0 : i32, i32
  }
  func.func @transform_20(%arg0: i32) -> (i32, i32, i32) {
    %c0_i32 = arith.constant 0 : i32
    %c0_i32_0 = arith.constant 0 : i32
    %c0_i32_1 = arith.constant 0 : i32
    %c0_i32_2 = arith.constant 0 : i32
    return %c0_i32, %c0_i32_0, %c0_i32_1 : i32, i32, i32
  }
  func.func @transform_21(%arg0: i32) -> (i32, i32, i32) {
    %c0_i32 = arith.constant 0 : i32
    %c0_i32_0 = arith.constant 0 : i32
    %c0_i32_1 = arith.constant 0 : i32
    %c0_i32_2 = arith.constant 0 : i32
    return %c0_i32, %c0_i32_0, %c0_i32_1 : i32, i32, i32
  }
}

</mosaic_0001>

<llo_original>
// kernel: classifier_forward.1
$region0: #{classifier_forward.1}
  #allocation0 [shape = 'u32[]', space=smem, size = 0x4, offset = 0x4, fixed_abs, tag = 'smem constant byte address 0x4 - core index']
  #allocation1 [shape = 'u32[144,128]{1,0:T(1,128)}', space=vmem, size = 0x12000, scoped, tag = 'internal scratch']
  #allocation2 [shape = 'f32[20,8,8]{2,1,0:T(8,128)}', space=vmem, size = 0x14000, scoped, tag = 'scratch operand']
  #allocation3 [shape = 'f32[20,8,32]{2,1,0:T(8,128)}', space=vmem, size = 0x14000, scoped, tag = 'scratch operand']
  #allocation4 [shape = 'bf16[16,8,192]{2,1,0:T(8,128)(2,1)}', space=vmem, size = 0x10000, scoped, tag = 'scratch operand']
  #allocation5 [shape = 'f32[16,8,64]{2,1,0:T(8,128)}', space=vmem, size = 0x10000, scoped, tag = 'scratch operand']
  #allocation6 [shape = 'bf16[16,8,192]{2,1,0:T(8,128)(2,1)}', space=vmem, size = 0x10000, scoped, tag = 'scratch operand']
  #allocation7 [shape = 'f32[16,8,64]{2,1,0:T(8,128)}', space=vmem, size = 0x10000, scoped, tag = 'scratch operand']
  %s0 = inlined_call_operand.vmem [shape: f32[16,8,8], index: 0, kind: input, shape index: {}]
  %s1 = inlined_call_operand.vmem [shape: f32[1,1,8], index: 1, kind: input, shape index: {}]
  %s2 = inlined_call_operand.vmem [shape: f32[1,1,8], index: 2, kind: input, shape index: {}]
  %s3 = inlined_call_operand.vmem [shape: bf16[3,8,32], index: 3, kind: input, shape index: {}]
  %s4 = inlined_call_operand.vmem [shape: f32[1,1,32], index: 4, kind: input, shape index: {}]
  %s5 = inlined_call_operand.vmem [shape: bf16[3,32,32], index: 5, kind: input, shape index: {}]
  %s6 = inlined_call_operand.vmem [shape: f32[1,1,32], index: 6, kind: input, shape index: {}]
  %s7 = inlined_call_operand.vmem [shape: bf16[32,192], index: 7, kind: input, shape index: {}]
  %s8 = inlined_call_operand.vmem [shape: f32[1,192], index: 8, kind: input, shape index: {}]
  %s9 = inlined_call_operand.vmem [shape: bf16[32,96], index: 9, kind: input, shape index: {}]
  %s10 = inlined_call_operand.vmem [shape: bf16[32,96], index: 10, kind: input, shape index: {}]
  %s11 = inlined_call_operand.vmem [shape: f32[1,32], index: 11, kind: input, shape index: {}]
  %s12 = inlined_call_operand.vmem [shape: f32[1,32], index: 12, kind: input, shape index: {}]
  %s13 = inlined_call_operand.vmem [shape: bf16[64,192], index: 13, kind: input, shape index: {}]
  %s14 = inlined_call_operand.vmem [shape: f32[1,192], index: 14, kind: input, shape index: {}]
  %s15 = inlined_call_operand.vmem [shape: bf16[32,96], index: 15, kind: input, shape index: {}]
  %s16 = inlined_call_operand.vmem [shape: bf16[32,96], index: 16, kind: input, shape index: {}]
  %s17 = inlined_call_operand.vmem [shape: f32[1,32], index: 17, kind: input, shape index: {}]
  %s18 = inlined_call_operand.vmem [shape: f32[1,32], index: 18, kind: input, shape index: {}]
  %s19 = inlined_call_operand.vmem [shape: bf16[64,4], index: 19, kind: input, shape index: {}]
  %s20 = inlined_call_operand.vmem [shape: f32[1,1,4], index: 20, kind: input, shape index: {}]
  %s21 = inlined_call_operand.vmem [shape: f32[16,8,4], index: 21, kind: output, shape index: {}]
  %s22 = sld [smem:[#allocation0]]
  $region94: #{classifier_forward.1} parent=0
    _
  %s24 = ssub.s32 1, %s22
  %s25 = scalar_select 0, %s24, %s22
  // Predicated region
  $region2: #{classifier_forward.1} parent=0 // pred_check
    _
  $region3: #{classifier_forward.1} parent=0 // pred_check_branch
    %27 = sbr.rel (0) target = $region5
  $region4: #{classifier_forward.1} parent=0 // pred_region
    _
  $region5: #{classifier_forward.1} parent=0 // pred_fallthru
    _
  // Predicated region
  $region6: #{classifier_forward.1} parent=0 // pred_check
    _
  $region7: #{classifier_forward.1} parent=0 // pred_check_branch
    %29 = sbr.rel (0) target = $region9
  $region8: #{classifier_forward.1} parent=0 // pred_region
    _
  $region9: #{classifier_forward.1} parent=0 // pred_fallthru
    _
  // Predicated region
  $region10: #{classifier_forward.1} parent=0 // pred_check
    _
  $region11: #{classifier_forward.1} parent=0 // pred_check_branch
    %31 = sbr.rel (0) target = $region13
  $region12: #{classifier_forward.1} parent=0 // pred_region
    _
  $region13: #{classifier_forward.1} parent=0 // pred_fallthru
    _
  // Predicated region
  $region14: #{classifier_forward.1} parent=0 // pred_check
    _
  $region15: #{classifier_forward.1} parent=0 // pred_check_branch
    %33 = sbr.rel (0) target = $region17
  $region16: #{classifier_forward.1} parent=0 // pred_region
    _
  $region17: #{classifier_forward.1} parent=0 // pred_fallthru
    _
  // Predicated region
  $region18: #{classifier_forward.1} parent=0 // pred_check
    _
  $region19: #{classifier_forward.1} parent=0 // pred_check_branch
    %35 = sbr.rel (0) target = $region21
  $region20: #{classifier_forward.1} parent=0 // pred_region
    _
  $region21: #{classifier_forward.1} parent=0 // pred_fallthru
    _
  // Predicated region
  $region22: #{classifier_forward.1} parent=0 // pred_check
    _
  $region23: #{classifier_forward.1} parent=0 // pred_check_branch
    %37 = sbr.rel (0) target = $region25
  $region24: #{classifier_forward.1} parent=0 // pred_region
    _
  $region25: #{classifier_forward.1} parent=0 // pred_fallthru
    _
  // Predicated region
  $region26: #{classifier_forward.1} parent=0 // pred_check
    _
  $region27: #{classifier_forward.1} parent=0 // pred_check_branch
    %39 = sbr.rel (0) target = $region29
  $region28: #{classifier_forward.1} parent=0 // pred_region
    _
  $region29: #{classifier_forward.1} parent=0 // pred_fallthru
    _
  // Predicated region
  $region30: #{classifier_forward.1} parent=0 // pred_check
    _
  $region31: #{classifier_forward.1} parent=0 // pred_check_branch
    %41 = sbr.rel (0) target = $region33
  $region32: #{classifier_forward.1} parent=0 // pred_region
    _
  $region33: #{classifier_forward.1} parent=0 // pred_fallthru
    _
  // Predicated region
  $region34: #{classifier_forward.1} parent=0 // pred_check
    _
  $region35: #{classifier_forward.1} parent=0 // pred_check_branch
    %43 = sbr.rel (0) target = $region37
  $region36: #{classifier_forward.1} parent=0 // pred_region
    _
  $region37: #{classifier_forward.1} parent=0 // pred_fallthru
    _
  // Predicated region
  $region38: #{classifier_forward.1} parent=0 // pred_check
    _
  $region39: #{classifier_forward.1} parent=0 // pred_check_branch
    %45 = sbr.rel (0) target = $region41
  $region40: #{classifier_forward.1} parent=0 // pred_region
    _
  $region41: #{classifier_forward.1} parent=0 // pred_fallthru
    _
  // Predicated region
  $region42: #{classifier_forward.1} parent=0 // pred_check
    _
  $region43: #{classifier_forward.1} parent=0 // pred_check_branch
    %47 = sbr.rel (0) target = $region45
  $region44: #{classifier_forward.1} parent=0 // pred_region
    _
  $region45: #{classifier_forward.1} parent=0 // pred_fallthru
    _
  // Predicated region
  $region46: #{classifier_forward.1} parent=0 // pred_check
    _
  $region47: #{classifier_forward.1} parent=0 // pred_check_branch
    %49 = sbr.rel (0) target = $region49
  $region48: #{classifier_forward.1} parent=0 // pred_region
    _
  $region49: #{classifier_forward.1} parent=0 // pred_fallthru
    _
  // Predicated region
  $region50: #{classifier_forward.1} parent=0 // pred_check
    _
  $region51: #{classifier_forward.1} parent=0 // pred_check_branch
    %51 = sbr.rel (0) target = $region53
  $region52: #{classifier_forward.1} parent=0 // pred_region
    _
  $region53: #{classifier_forward.1} parent=0 // pred_fallthru
    _
  // Predicated region
  $region54: #{classifier_forward.1} parent=0 // pred_check
    _
  $region55: #{classifier_forward.1} parent=0 // pred_check_branch
    %53 = sbr.rel (0) target = $region57
  $region56: #{classifier_forward.1} parent=0 // pred_region
    _
  $region57: #{classifier_forward.1} parent=0 // pred_fallthru
    _
  // Predicated region
  $region58: #{classifier_forward.1} parent=0 // pred_check
    _
  $region59: #{classifier_forward.1} parent=0 // pred_check_branch
    %55 = sbr.rel (0) target = $region61
  $region60: #{classifier_forward.1} parent=0 // pred_region
    _
  $region61: #{classifier_forward.1} parent=0 // pred_fallthru
    _
  // Predicated region
  $region62: #{classifier_forward.1} parent=0 // pred_check
    _
  $region63: #{classifier_forward.1} parent=0 // pred_check_branch
    %57 = sbr.rel (0) target = $region65
  $region64: #{classifier_forward.1} parent=0 // pred_region
    _
  $region65: #{classifier_forward.1} parent=0 // pred_fallthru
    _
  // Predicated region
  $region66: #{classifier_forward.1} parent=0 // pred_check
    _
  $region67: #{classifier_forward.1} parent=0 // pred_check_branch
    %59 = sbr.rel (0) target = $region69
  $region68: #{classifier_forward.1} parent=0 // pred_region
    _
  $region69: #{classifier_forward.1} parent=0 // pred_fallthru
    _
  // Predicated region
  $region70: #{classifier_forward.1} parent=0 // pred_check
    _
  $region71: #{classifier_forward.1} parent=0 // pred_check_branch
    %61 = sbr.rel (0) target = $region73
  $region72: #{classifier_forward.1} parent=0 // pred_region
    _
  $region73: #{classifier_forward.1} parent=0 // pred_fallthru
    _
  // Predicated region
  $region74: #{classifier_forward.1} parent=0 // pred_check
    _
  $region75: #{classifier_forward.1} parent=0 // pred_check_branch
    %63 = sbr.rel (0) target = $region77
  $region76: #{classifier_forward.1} parent=0 // pred_region
    _
  $region77: #{classifier_forward.1} parent=0 // pred_fallthru
    _
  // Predicated region
  $region78: #{classifier_forward.1} parent=0 // pred_check
    _
  $region79: #{classifier_forward.1} parent=0 // pred_check_branch
    %65 = sbr.rel (0) target = $region81
  $region80: #{classifier_forward.1} parent=0 // pred_region
    _
  $region81: #{classifier_forward.1} parent=0 // pred_fallthru
    _
  // Predicated region
  $region82: #{classifier_forward.1} parent=0 // pred_check
    _
  $region83: #{classifier_forward.1} parent=0 // pred_check_branch
    %67 = sbr.rel (0) target = $region85
  $region84: #{classifier_forward.1} parent=0 // pred_region
    _
  $region85: #{classifier_forward.1} parent=0 // pred_fallthru
    _
  %v69 = vld [vmem:[%s0] sm:$0xff]
  %v70 = vld [vmem:[%s0 + $0x8] sm:$0xff]
  %v71 = vld [vmem:[%s0 + $0x10] sm:$0xff]
  %v72 = vld [vmem:[%s0 + $0x18] sm:$0xff]
  %v73 = vld [vmem:[%s0 + $0x20] sm:$0xff]
  %v74 = vld [vmem:[%s0 + $0x28] sm:$0xff]
  %v75 = vld [vmem:[%s0 + $0x30] sm:$0xff]
  %v76 = vld [vmem:[%s0 + $0x38] sm:$0xff]
  %v77 = vld [vmem:[%s0 + $0x40] sm:$0xff]
  %v78 = vld [vmem:[%s0 + $0x48] sm:$0xff]
  %v79 = vld [vmem:[%s0 + $0x50] sm:$0xff]
  %v80 = vld [vmem:[%s0 + $0x58] sm:$0xff]
  %v81 = vld [vmem:[%s0 + $0x60] sm:$0xff]
  %v82 = vld [vmem:[%s0 + $0x68] sm:$0xff]
  %v83 = vld [vmem:[%s0 + $0x70] sm:$0xff]
  %v84 = vld [vmem:[%s0 + $0x78] sm:$0xff]
  %v85 = vld [vmem:[%s1] sm:$0x1]
  %v87 = vlaneseq
  %v88 = vshrl.u32 %v87, 7
  %v89 = vsub.s32 0, %v88
  %v90 = vrot.slane %v85, %v89
  %v92 = vmul.f32 %v69, %v90
  %v93 = vmul.f32 %v70, %v90
  %v94 = vmul.f32 %v71, %v90
  %v95 = vmul.f32 %v72, %v90
  %v96 = vmul.f32 %v73, %v90
  %v97 = vmul.f32 %v74, %v90
  %v98 = vmul.f32 %v75, %v90
  %v99 = vmul.f32 %v76, %v90
  %v100 = vmul.f32 %v77, %v90
  %v101 = vmul.f32 %v78, %v90
  %v102 = vmul.f32 %v79, %v90
  %v103 = vmul.f32 %v80, %v90
  %v104 = vmul.f32 %v81, %v90
  %v105 = vmul.f32 %v82, %v90
  %v106 = vmul.f32 %v83, %v90
  %v107 = vmul.f32 %v84, %v90
  %v108 = vld [vmem:[%s2] sm:$0x1]
  %v110 = vlaneseq
  %v111 = vshrl.u32 %v110, 7
  %v112 = vsub.s32 0, %v111
  %v113 = vrot.slane %v108, %v112
  %v115 = vadd.f32 %v92, %v113
  %v116 = vadd.f32 %v93, %v113
  %v117 = vadd.f32 %v94, %v113
  %v118 = vadd.f32 %v95, %v113
  %v119 = vadd.f32 %v96, %v113
  %v120 = vadd.f32 %v97, %v113
  %v121 = vadd.f32 %v98, %v113
  %v122 = vadd.f32 %v99, %v113
  %v123 = vadd.f32 %v100, %v113
  %v124 = vadd.f32 %v101, %v113
  %v125 = vadd.f32 %v102, %v113
  %v126 = vadd.f32 %v103, %v113
  %v127 = vadd.f32 %v104, %v113
  %v128 = vadd.f32 %v105, %v113
  %v129 = vadd.f32 %v106, %v113
  %v130 = vadd.f32 %v107, %v113
  %vm131 = vcmask 64512
  %132 = vst.msk [vmem:[#allocation2] sm:$0xff] %vm131, 0.0
  %133 = vst.msk [vmem:[#allocation2 + $0x8] sm:$0xff] %vm131, 0.0
  %s134 = scalar_lea.vmem [#allocation2], 144
  %135 = vst.msk [vmem:[%s134] sm:$0xff] %vm131, 0.0
  %136 = vst.msk [vmem:[%s134 + $0x8] sm:$0xff] %vm131, 0.0
  %s137 = scalar_lea.vmem [#allocation2], 16
  %138 = vst.msk [vmem:[%s137] sm:$0xff] %vm131, %v115
  %139 = vst.msk [vmem:[%s137 + $0x8] sm:$0xff] %vm131, %v116
  %140 = vst.msk [vmem:[%s137 + $0x10] sm:$0xff] %vm131, %v117
  %141 = vst.msk [vmem:[%s137 + $0x18] sm:$0xff] %vm131, %v118
  %142 = vst.msk [vmem:[%s137 + $0x20] sm:$0xff] %vm131, %v119
  %143 = vst.msk [vmem:[%s137 + $0x28] sm:$0xff] %vm131, %v120
  %144 = vst.msk [vmem:[%s137 + $0x30] sm:$0xff] %vm131, %v121
  %145 = vst.msk [vmem:[%s137 + $0x38] sm:$0xff] %vm131, %v122
  %146 = vst.msk [vmem:[%s137 + $0x40] sm:$0xff] %vm131, %v123
  %147 = vst.msk [vmem:[%s137 + $0x48] sm:$0xff] %vm131, %v124
  %148 = vst.msk [vmem:[%s137 + $0x50] sm:$0xff] %vm131, %v125
  %149 = vst.msk [vmem:[%s137 + $0x58] sm:$0xff] %vm131, %v126
  %150 = vst.msk [vmem:[%s137 + $0x60] sm:$0xff] %vm131, %v127
  %151 = vst.msk [vmem:[%s137 + $0x68] sm:$0xff] %vm131, %v128
  %152 = vst.msk [vmem:[%s137 + $0x70] sm:$0xff] %vm131, %v129
  %153 = vst.msk [vmem:[%s137 + $0x78] sm:$0xff] %vm131, %v130
  %v154 = vld [vmem:[#allocation2] sm:$0xff]
  %v155 = vld [vmem:[#allocation2 + $0x8] sm:$0xff]
  %v156 = vld [vmem:[#allocation2 + $0x10] sm:$0xff]
  %v157 = vld [vmem:[#allocation2 + $0x18] sm:$0xff]
  %v158 = vld [vmem:[#allocation2 + $0x20] sm:$0xff]
  %v159 = vld [vmem:[#allocation2 + $0x28] sm:$0xff]
  %v160 = vld [vmem:[#allocation2 + $0x30] sm:$0xff]
  %v161 = vld [vmem:[#allocation2 + $0x38] sm:$0xff]
  %v162 = vld [vmem:[#allocation2 + $0x40] sm:$0xff]
  %v163 = vld [vmem:[#allocation2 + $0x48] sm:$0xff]
  %v164 = vld [vmem:[#allocation2 + $0x50] sm:$0xff]
  %v165 = vld [vmem:[#allocation2 + $0x58] sm:$0xff]
  %v166 = vld [vmem:[#allocation2 + $0x60] sm:$0xff]
  %v167 = vld [vmem:[#allocation2 + $0x68] sm:$0xff]
  %v168 = vld [vmem:[#allocation2 + $0x70] sm:$0xff]
  %v169 = vld [vmem:[#allocation2 + $0x78] sm:$0xff]
  %v170 = vld [vmem:[#allocation2 + $0x80] sm:$0xff]
  %v171 = vld [vmem:[#allocation2 + $0x88] sm:$0xff]
  %v172 = vld [vmem:[#allocation2 + $0x90] sm:$0xff]
  %v173 = vld [vmem:[#allocation2 + $0x98] sm:$0xff]
  %v174 = vpack.c.bf16 %v154, %v154
  %v175 = vpack.c.bf16 %v155, %v155
  %v176 = vpack.c.bf16 %v156, %v156
  %v177 = vpack.c.bf16 %v157, %v157
  %v178 = vpack.c.bf16 %v158, %v158
  %v179 = vpack.c.bf16 %v159, %v159
  %v180 = vpack.c.bf16 %v160, %v160
  %v181 = vpack.c.bf16 %v161, %v161
  %v182 = vpack.c.bf16 %v162, %v162
  %v183 = vpack.c.bf16 %v163, %v163
  %v184 = vpack.c.bf16 %v164, %v164
  %v185 = vpack.c.bf16 %v165, %v165
  %v186 = vpack.c.bf16 %v166, %v166
  %v187 = vpack.c.bf16 %v167, %v167
  %v188 = vpack.c.bf16 %v168, %v168
  %v189 = vpack.c.bf16 %v169, %v169
  %v190 = vpack.c.bf16 %v170, %v170
  %v191 = vpack.c.bf16 %v171, %v171
  %v192 = vpack.c.bf16 %v172, %v172
  %v193 = vpack.c.bf16 %v173, %v173
  %v194 = vld [vmem:[%s3] sm:$0xf]
  %s195 = scalar_lea.vmem %s3, 4
  %v196 = vld [vmem:[%s195] sm:$0xf]
  %v213 = vunpack.c.l.b16 %v176
  %v214 = vunpack.c.l.b16 %v177
  %v215 = vunpack.c.l.b16 %v178
  %v216 = vunpack.c.l.b16 %v179
  %v217 = vunpack.c.l.b16 %v180
  %v218 = vunpack.c.l.b16 %v181
  %v219 = vunpack.c.l.b16 %v182
  %v220 = vunpack.c.l.b16 %v183
  %v221 = vunpack.c.l.b16 %v184
  %v222 = vunpack.c.l.b16 %v185
  %v223 = vunpack.c.l.b16 %v186
  %v224 = vunpack.c.l.b16 %v187
  %v225 = vunpack.c.l.b16 %v188
  %v226 = vunpack.c.l.b16 %v189
  %v227 = vunpack.c.l.b16 %v190
  %v228 = vunpack.c.l.b16 %v191
  %v229 = vpack.c.b16 %v214, %v213
  %v230 = vpack.c.b16 %v216, %v215
  %v231 = vpack.c.b16 %v218, %v217
  %v232 = vpack.c.b16 %v220, %v219
  %v233 = vpack.c.b16 %v222, %v221
  %v234 = vpack.c.b16 %v224, %v223
  %v235 = vpack.c.b16 %v226, %v225
  %v236 = vpack.c.b16 %v228, %v227
  %v238 = vsel %vm131, %v229, 0
  %v241 = vsel %vm131, %v230, 0
  %v244 = vsel %vm131, %v231, 0
  %v247 = vsel %vm131, %v232, 0
  %v250 = vsel %vm131, %v233, 0
  %v253 = vsel %vm131, %v234, 0
  %v256 = vsel %vm131, %v235, 0
  %v259 = vsel %vm131, %v236, 0
  %vm261 = vcmask 1043456
  %v263 = vsel %vm261, %v196, 0
  %265 = vmatprep.subr.bf16.mxu0 0
  %266 = vmatpush1.bf16.msra.mxu0 %v263
  %267 = vmatprep.subr.bf16.mxu0 0
  %268 = vmatpush1.bf16.msra.mxu0 0
  %269 = vmatprep.subr.bf16.mxu0 0
  %270 = vmatpush1.bf16.msra.mxu0 0
  %271 = vmatprep.subr.bf16.mxu0 0
  %272 = vmatpush1.bf16.msra.mxu0 0
  %273 = vmatprep.subr.bf16.mxu0 0
  %274 = vmatpush1.bf16.msra.mxu0 0
  %275 = vmatprep.subr.bf16.mxu0 0
  %276 = vmatpush1.bf16.msra.mxu0 0
  %277 = vmatprep.subr.bf16.mxu0 0
  %278 = vmatpush1.bf16.msra.mxu0 0
  %279 = vmatprep.subr.bf16.mxu0 0
  %280 = vmatpush1.bf16.msra.mxu0 0
  %281 = vmatprep.subr.bf16.mxu0 0
  %282 = vmatpush1.bf16.msra.mxu0 0
  %283 = vmatprep.subr.bf16.mxu0 0
  %284 = vmatpush1.bf16.msra.mxu0 0
  %285 = vmatprep.subr.bf16.mxu0 0
  %286 = vmatpush1.bf16.msra.mxu0 0
  %287 = vmatprep.subr.bf16.mxu0 0
  %288 = vmatpush1.bf16.msra.mxu0 0
  %289 = vmatprep.subr.bf16.mxu0 0
  %290 = vmatpush1.bf16.msra.mxu0 0
  %291 = vmatprep.subr.bf16.mxu0 0
  %292 = vmatpush1.bf16.msra.mxu0 0
  %293 = vmatprep.subr.bf16.mxu0 0
  %294 = vmatpush1.bf16.msra.mxu0 0
  %295 = vmatprep.subr.bf16.mxu0 0
  %296 = vmatpush1.bf16.msra.mxu0 0
  %297 = vmatprep.mubr.bf16.mxu0 0
  %298 = vmatmul.mubr.bf16.gmra.mrb[0].mxu0 %v238
  %v299 = vpop.f32.mrb[0].mxu0
  %v300 = vadd.f32 0.0, %v299
  %v301 = vpop.f32.mrb[0].mxu0
  %v302 = vpop.f32.mrb[0].mxu0
  %v303 = vadd.f32 0.0, %v302
  %v304 = vpop.f32.mrb[0].mxu0
  %305 = vmatprep.mubr.bf16.mxu0 0
  %306 = vmatmul.mubr.bf16.gmra.mrb[0].mxu0 %v241
  %v307 = vpop.f32.mrb[0].mxu0
  %v308 = vadd.f32 0.0, %v307
  %v309 = vpop.f32.mrb[0].mxu0
  %v310 = vpop.f32.mrb[0].mxu0
  %v311 = vadd.f32 0.0, %v310
  %v312 = vpop.f32.mrb[0].mxu0
  %313 = vmatprep.mubr.bf16.mxu0 0
  %314 = vmatmul.mubr.bf16.gmra.mrb[0].mxu0 %v244
  %v315 = vpop.f32.mrb[0].mxu0
  %v316 = vadd.f32 0.0, %v315
  %v317 = vpop.f32.mrb[0].mxu0
  %v318 = vpop.f32.mrb[0].mxu0
  %v319 = vadd.f32 0.0, %v318
  %v320 = vpop.f32.mrb[0].mxu0
  %321 = vmatprep.mubr.bf16.mxu0 0
  %322 = vmatmul.mubr.bf16.gmra.mrb[0].mxu0 %v247
  %v323 = vpop.f32.mrb[0].mxu0
  %v324 = vadd.f32 0.0, %v323
  %v325 = vpop.f32.mrb[0].mxu0
  %v326 = vpop.f32.mrb[0].mxu0
  %v327 = vadd.f32 0.0, %v326
  %v328 = vpop.f32.mrb[0].mxu0
  %329 = vmatprep.mubr.bf16.mxu0 0
  %330 = vmatmul.mubr.bf16.gmra.mrb[0].mxu0 %v250
  %v331 = vpop.f32.mrb[0].mxu0
  %v332 = vadd.f32 0.0, %v331
  %v333 = vpop.f32.mrb[0].mxu0
  %v334 = vpop.f32.mrb[0].mxu0
  %v335 = vadd.f32 0.0, %v334
  %v336 = vpop.f32.mrb[0].mxu0
  %337 = vmatprep.mubr.bf16.mxu0 0
  %338 = vmatmul.mubr.bf16.gmra.mrb[0].mxu0 %v253
  %v339 = vpop.f32.mrb[0].mxu0
  %v340 = vadd.f32 0.0, %v339
  %v341 = vpop.f32.mrb[0].mxu0
  %v342 = vpop.f32.mrb[0].mxu0
  %v343 = vadd.f32 0.0, %v342
  %v344 = vpop.f32.mrb[0].mxu0
  %345 = vmatprep.mubr.bf16.mxu0 0
  %346 = vmatmul.mubr.bf16.gmra.mrb[0].mxu0 %v256
  %v347 = vpop.f32.mrb[0].mxu0
  %v348 = vadd.f32 0.0, %v347
  %v349 = vpop.f32.mrb[0].mxu0
  %v350 = vpop.f32.mrb[0].mxu0
  %v351 = vadd.f32 0.0, %v350
  %v352 = vpop.f32.mrb[0].mxu0
  %353 = vmatprep.mubr.bf16.mxu0 0
  %354 = vmatmul.mubr.bf16.gmra.mrb[0].mxu0 %v259
  %v355 = vpop.f32.mrb[0].mxu0
  %v356 = vadd.f32 0.0, %v355
  %v357 = vpop.f32.mrb[0].mxu0
  %v358 = vpop.f32.mrb[0].mxu0
  %v359 = vadd.f32 0.0, %v358
  %v360 = vpop.f32.mrb[0].mxu0
  %361 = vdwg.mxu0
  %v364 = vunpack.c.l.b16 %v174
  %v365 = vunpack.c.l.b16 %v175
  %v366 = vpack.c.b16 %v365, %v364
  %v368 = vsel %vm131, %v366, 0
  %v371 = vsel %vm261, %v194, 0
  %373 = vmatprep.subr.bf16.mxu0 0
  %374 = vmatpush1.bf16.msra.mxu0 %v371
  %375 = vmatprep.subr.bf16.mxu0 0
  %376 = vmatpush1.bf16.msra.mxu0 0
  %377 = vmatprep.subr.bf16.mxu0 0
  %378 = vmatpush1.bf16.msra.mxu0 0
  %379 = vmatprep.subr.bf16.mxu0 0
  %380 = vmatpush1.bf16.msra.mxu0 0
  %381 = vmatprep.subr.bf16.mxu0 0
  %382 = vmatpush1.bf16.msra.mxu0 0
  %383 = vmatprep.subr.bf16.mxu0 0
  %384 = vmatpush1.bf16.msra.mxu0 0
  %385 = vmatprep.subr.bf16.mxu0 0
  %386 = vmatpush1.bf16.msra.mxu0 0
  %387 = vmatprep.subr.bf16.mxu0 0
  %388 = vmatpush1.bf16.msra.mxu0 0
  %389 = vmatprep.subr.bf16.mxu0 0
  %390 = vmatpush1.bf16.msra.mxu0 0
  %391 = vmatprep.subr.bf16.mxu0 0
  %392 = vmatpush1.bf16.msra.mxu0 0
  %393 = vmatprep.subr.bf16.mxu0 0
  %394 = vmatpush1.bf16.msra.mxu0 0
  %395 = vmatprep.subr.bf16.mxu0 0
  %396 = vmatpush1.bf16.msra.mxu0 0
  %397 = vmatprep.subr.bf16.mxu0 0
  %398 = vmatpush1.bf16.msra.mxu0 0
  %399 = vmatprep.subr.bf16.mxu0 0
  %400 = vmatpush1.bf16.msra.mxu0 0
  %401 = vmatprep.subr.bf16.mxu0 0
  %402 = vmatpush1.bf16.msra.mxu0 0
  %403 = vmatprep.subr.bf16.mxu0 0
  %404 = vmatpush1.bf16.msra.mxu0 0
  %405 = vmatprep.mubr.bf16.mxu0 0
  %406 = vmatmul.mubr.bf16.gmra.mrb[0].mxu0 %v368
  %v407 = vpop.f32.mrb[0].mxu0
  %v408 = vadd.f32 %v300, %v407
  %v409 = vpop.f32.mrb[0].mxu0
  %v410 = vpop.f32.mrb[0].mxu0
  %v411 = vadd.f32 %v303, %v410
  %v412 = vpop.f32.mrb[0].mxu0
  %413 = vmatprep.mubr.bf16.mxu0 0
  %414 = vmatmul.mubr.bf16.gmra.mrb[0].mxu0 %v238
  %v415 = vpop.f32.mrb[0].mxu0
  %v416 = vadd.f32 %v308, %v415
  %v417 = vpop.f32.mrb[0].mxu0
  %v418 = vpop.f32.mrb[0].mxu0
  %v419 = vadd.f32 %v311, %v418
  %v420 = vpop.f32.mrb[0].mxu0
  %421 = vmatprep.mubr.bf16.mxu0 0
  %422 = vmatmul.mubr.bf16.gmra.mrb[0].mxu0 %v241
  %v423 = vpop.f32.mrb[0].mxu0
  %v424 = vadd.f32 %v316, %v423
  %v425 = vpop.f32.mrb[0].mxu0
  %v426 = vpop.f32.mrb[0].mxu0
  %v427 = vadd.f32 %v319, %v426
  %v428 = vpop.f32.mrb[0].mxu0
  %429 = vmatprep.mubr.bf16.mxu0 0
  %430 = vmatmul.mubr.bf16.gmra.mrb[0].mxu0 %v244
  %v431 = vpop.f32.mrb[0].mxu0
  %v432 = vadd.f32 %v324, %v431
  %v433 = vpop.f32.mrb[0].mxu0
  %v434 = vpop.f32.mrb[0].mxu0
  %v435 = vadd.f32 %v327, %v434
  %v436 = vpop.f32.mrb[0].mxu0
  %437 = vmatprep.mubr.bf16.mxu0 0
  %438 = vmatmul.mubr.bf16.gmra.mrb[0].mxu0 %v247
  %v439 = vpop.f32.mrb[0].mxu0
  %v440 = vadd.f32 %v332, %v439
  %v441 = vpop.f32.mrb[0].mxu0
  %v442 = vpop.f32.mrb[0].mxu0
  %v443 = vadd.f32 %v335, %v442
  %v444 = vpop.f32.mrb[0].mxu0
  %445 = vmatprep.mubr.bf16.mxu0 0
  %446 = vmatmul.mubr.bf16.gmra.mrb[0].mxu0 %v250
  %v447 = vpop.f32.mrb[0].mxu0
  %v448 = vadd.f32 %v340, %v447
  %v449 = vpop.f32.mrb[0].mxu0
  %v450 = vpop.f32.mrb[0].mxu0
  %v451 = vadd.f32 %v343, %v450
  %v452 = vpop.f32.mrb[0].mxu0
  %453 = vmatprep.mubr.bf16.mxu0 0
  %454 = vmatmul.mubr.bf16.gmra.mrb[0].mxu0 %v253
  %v455 = vpop.f32.mrb[0].mxu0
  %v456 = vadd.f32 %v348, %v455
  %v457 = vpop.f32.mrb[0].mxu0
  %v458 = vpop.f32.mrb[0].mxu0
  %v459 = vadd.f32 %v351, %v458
  %v460 = vpop.f32.mrb[0].mxu0
  %461 = vmatprep.mubr.bf16.mxu0 0
  %462 = vmatmul.mubr.bf16.gmra.mrb[0].mxu0 %v256
  %v463 = vpop.f32.mrb[0].mxu0
  %v464 = vadd.f32 %v356, %v463
  %v465 = vpop.f32.mrb[0].mxu0
  %v466 = vpop.f32.mrb[0].mxu0
  %v467 = vadd.f32 %v359, %v466
  %v468 = vpop.f32.mrb[0].mxu0
  %469 = vdwg.mxu0
  %s470 = scalar_lea.vmem %s3, 8
  %v471 = vld [vmem:[%s470] sm:$0xf]
  %v474 = vunpack.c.l.b16 %v192
  %v475 = vunpack.c.l.b16 %v193
  %v476 = vpack.c.b16 %v475, %v474
  %v478 = vsel %vm131, %v476, 0
  %v481 = vsel %vm261, %v471, 0
  %483 = vmatprep.subr.bf16.mxu0 0
  %484 = vmatpush1.bf16.msra.mxu0 %v481
  %485 = vmatprep.subr.bf16.mxu0 0
  %486 = vmatpush1.bf16.msra.mxu0 0
  %487 = vmatprep.subr.bf16.mxu0 0
  %488 = vmatpush1.bf16.msra.mxu0 0
  %489 = vmatprep.subr.bf16.mxu0 0
  %490 = vmatpush1.bf16.msra.mxu0 0
  %491 = vmatprep.subr.bf16.mxu0 0
  %492 = vmatpush1.bf16.msra.mxu0 0
  %493 = vmatprep.subr.bf16.mxu0 0
  %494 = vmatpush1.bf16.msra.mxu0 0
  %495 = vmatprep.subr.bf16.mxu0 0
  %496 = vmatpush1.bf16.msra.mxu0 0
  %497 = vmatprep.subr.bf16.mxu0 0
  %498 = vmatpush1.bf16.msra.mxu0 0
  %499 = vmatprep.subr.bf16.mxu0 0
  %500 = vmatpush1.bf16.msra.mxu0 0
  %501 = vmatprep.subr.bf16.mxu0 0
  %502 = vmatpush1.bf16.msra.mxu0 0
  %503 = vmatprep.subr.bf16.mxu0 0
  %504 = vmatpush1.bf16.msra.mxu0 0
  %505 = vmatprep.subr.bf16.mxu0 0
  %506 = vmatpush1.bf16.msra.mxu0 0
  %507 = vmatprep.subr.bf16.mxu0 0
  %508 = vmatpush1.bf16.msra.mxu0 0
  %509 = vmatprep.subr.bf16.mxu0 0
  %510 = vmatpush1.bf16.msra.mxu0 0
  %511 = vmatprep.subr.bf16.mxu0 0
  %512 = vmatpush1.bf16.msra.mxu0 0
  %513 = vmatprep.subr.bf16.mxu0 0
  %514 = vmatpush1.bf16.msra.mxu0 0
  %515 = vmatprep.mubr.bf16.mxu0 0
  %516 = vmatmul.mubr.bf16.gmra.mrb[0].mxu0 %v241
  %v517 = vpop.f32.mrb[0].mxu0
  %v518 = vadd.f32 0.0, %v517
  %v519 = vpop.f32.mrb[0].mxu0
  %v520 = vpop.f32.mrb[0].mxu0
  %v521 = vadd.f32 0.0, %v520
  %v522 = vpop.f32.mrb[0].mxu0
  %523 = vmatprep.mubr.bf16.mxu0 0
  %524 = vmatmul.mubr.bf16.gmra.mrb[0].mxu0 %v244
  %v525 = vpop.f32.mrb[0].mxu0
  %v526 = vadd.f32 0.0, %v525
  %v527 = vpop.f32.mrb[0].mxu0
  %v528 = vpop.f32.mrb[0].mxu0
  %v529 = vadd.f32 0.0, %v528
  %v530 = vpop.f32.mrb[0].mxu0
  %531 = vmatprep.mubr.bf16.mxu0 0
  %532 = vmatmul.mubr.bf16.gmra.mrb[0].mxu0 %v247
  %v533 = vpop.f32.mrb[0].mxu0
  %v534 = vadd.f32 0.0, %v533
  %v535 = vpop.f32.mrb[0].mxu0
  %v536 = vpop.f32.mrb[0].mxu0
  %v537 = vadd.f32 0.0, %v536
  %v538 = vpop.f32.mrb[0].mxu0
  %539 = vmatprep.mubr.bf16.mxu0 0
  %540 = vmatmul.mubr.bf16.gmra.mrb[0].mxu0 %v250
  %v541 = vpop.f32.mrb[0].mxu0
  %v542 = vadd.f32 0.0, %v541
  %v543 = vpop.f32.mrb[0].mxu0
  %v544 = vpop.f32.mrb[0].mxu0
  %v545 = vadd.f32 0.0, %v544
  %v546 = vpop.f32.mrb[0].mxu0
  %547 = vmatprep.mubr.bf16.mxu0 0
  %548 = vmatmul.mubr.bf16.gmra.mrb[0].mxu0 %v253
  %v549 = vpop.f32.mrb[0].mxu0
  %v550 = vadd.f32 0.0, %v549
  %v551 = vpop.f32.mrb[0].mxu0
  %v552 = vpop.f32.mrb[0].mxu0
  %v553 = vadd.f32 0.0, %v552
  %v554 = vpop.f32.mrb[0].mxu0
  %555 = vmatprep.mubr.bf16.mxu0 0
  %556 = vmatmul.mubr.bf16.gmra.mrb[0].mxu0 %v256
  %v557 = vpop.f32.mrb[0].mxu0
  %v558 = vadd.f32 0.0, %v557
  %v559 = vpop.f32.mrb[0].mxu0
  %v560 = vpop.f32.mrb[0].mxu0
  %v561 = vadd.f32 0.0, %v560
  %v562 = vpop.f32.mrb[0].mxu0
  %563 = vmatprep.mubr.bf16.mxu0 0
  %564 = vmatmul.mubr.bf16.gmra.mrb[0].mxu0 %v259
  %v565 = vpop.f32.mrb[0].mxu0
  %v566 = vadd.f32 0.0, %v565
  %v567 = vpop.f32.mrb[0].mxu0
  %v568 = vpop.f32.mrb[0].mxu0
  %v569 = vadd.f32 0.0, %v568
  %v570 = vpop.f32.mrb[0].mxu0
  %571 = vmatprep.mubr.bf16.mxu0 0
  %572 = vmatmul.mubr.bf16.gmra.mrb[0].mxu0 %v478
  %v573 = vpop.f32.mrb[0].mxu0
  %v574 = vadd.f32 0.0, %v573
  %v575 = vpop.f32.mrb[0].mxu0
  %v576 = vpop.f32.mrb[0].mxu0
  %v577 = vadd.f32 0.0, %v576
  %v578 = vpop.f32.mrb[0].mxu0
  %579 = vdwg.mxu0
  %v580 = vadd.f32 %v408, %v518
  %v581 = vadd.f32 %v411, %v521
  %v582 = vadd.f32 %v416, %v526
  %v583 = vadd.f32 %v419, %v529
  %v584 = vadd.f32 %v424, %v534
  %v585 = vadd.f32 %v427, %v537
  %v586 = vadd.f32 %v432, %v542
  %v587 = vadd.f32 %v435, %v545
  %v588 = vadd.f32 %v440, %v550
  %v589 = vadd.f32 %v443, %v553
  %v590 = vadd.f32 %v448, %v558
  %v591 = vadd.f32 %v451, %v561
  %v592 = vadd.f32 %v456, %v566
  %v593 = vadd.f32 %v459, %v569
  %v594 = vadd.f32 %v464, %v574
  %v595 = vadd.f32 %v467, %v577
  %v596 = vld [vmem:[%s4] sm:$0x1]
  %v598 = vlaneseq
  %v599 = vshrl.u32 %v598, 7
  %v600 = vsub.s32 0, %v599
  %v601 = vrot.slane %v596, %v600
  %v603 = vadd.f32 %v580, %v601
  %v604 = vadd.f32 %v581, %v601
  %v605 = vadd.f32 %v582, %v601
  %v606 = vadd.f32 %v583, %v601
  %v607 = vadd.f32 %v584, %v601
  %v608 = vadd.f32 %v585, %v601
  %v609 = vadd.f32 %v586, %v601
  %v610 = vadd.f32 %v587, %v601
  %v611 = vadd.f32 %v588, %v601
  %v612 = vadd.f32 %v589, %v601
  %v613 = vadd.f32 %v590, %v601
  %v614 = vadd.f32 %v591, %v601
  %v615 = vadd.f32 %v592, %v601
  %v616 = vadd.f32 %v593, %v601
  %v617 = vadd.f32 %v594, %v601
  %v618 = vadd.f32 %v595, %v601
  %v619 = vmax.f32 %v603, 0.0
  %v620 = vmax.f32 %v604, 0.0
  %v621 = vmax.f32 %v605, 0.0
  %v622 = vmax.f32 %v606, 0.0
  %v623 = vmax.f32 %v607, 0.0
  %v624 = vmax.f32 %v608, 0.0
  %v625 = vmax.f32 %v609, 0.0
  %v626 = vmax.f32 %v610, 0.0
  %v627 = vmax.f32 %v611, 0.0
  %v628 = vmax.f32 %v612, 0.0
  %v629 = vmax.f32 %v613, 0.0
  %v630 = vmax.f32 %v614, 0.0
  %v631 = vmax.f32 %v615, 0.0
  %v632 = vmax.f32 %v616, 0.0
  %v633 = vmax.f32 %v617, 0.0
  %v634 = vmax.f32 %v618, 0.0
  %vm635 = vcmask 261120
  %636 = vst.msk [vmem:[#allocation3] sm:$0xff] %vm635, 0.0
  %637 = vst.msk [vmem:[#allocation3 + $0x8] sm:$0xff] %vm635, 0.0
  %s638 = scalar_lea.vmem [#allocation3], 144
  %639 = vst.msk [vmem:[%s638] sm:$0xff] %vm635, 0.0
  %640 = vst.msk [vmem:[%s638 + $0x8] sm:$0xff] %vm635, 0.0
  %s641 = scalar_lea.vmem [#allocation3], 16
  %642 = vst.msk [vmem:[%s641] sm:$0xff] %vm635, %v619
  %643 = vst.msk [vmem:[%s641 + $0x8] sm:$0xff] %vm635, %v620
  %644 = vst.msk [vmem:[%s641 + $0x10] sm:$0xff] %vm635, %v621
  %645 = vst.msk [vmem:[%s641 + $0x18] sm:$0xff] %vm635, %v622
  %646 = vst.msk [vmem:[%s641 + $0x20] sm:$0xff] %vm635, %v623
  %647 = vst.msk [vmem:[%s641 + $0x28] sm:$0xff] %vm635, %v624
  %648 = vst.msk [vmem:[%s641 + $0x30] sm:$0xff] %vm635, %v625
  %649 = vst.msk [vmem:[%s641 + $0x38] sm:$0xff] %vm635, %v626
  %650 = vst.msk [vmem:[%s641 + $0x40] sm:$0xff] %vm635, %v627
  %651 = vst.msk [vmem:[%s641 + $0x48] sm:$0xff] %vm635, %v628
  %652 = vst.msk [vmem:[%s641 + $0x50] sm:$0xff] %vm635, %v629
  %653 = vst.msk [vmem:[%s641 + $0x58] sm:$0xff] %vm635, %v630
  %654 = vst.msk [vmem:[%s641 + $0x60] sm:$0xff] %vm635, %v631
  %655 = vst.msk [vmem:[%s641 + $0x68] sm:$0xff] %vm635, %v632
  %656 = vst.msk [vmem:[%s641 + $0x70] sm:$0xff] %vm635, %v633
  %657 = vst.msk [vmem:[%s641 + $0x78] sm:$0xff] %vm635, %v634
  %v658 = vld [vmem:[#allocation3] sm:$0xff]
  %v659 = vld [vmem:[#allocation3 + $0x8] sm:$0xff]
  %v660 = vld [vmem:[#allocation3 + $0x10] sm:$0xff]
  %v661 = vld [vmem:[#allocation3 + $0x18] sm:$0xff]
  %v662 = vld [vmem:[#allocation3 + $0x20] sm:$0xff]
  %v663 = vld [vmem:[#allocation3 + $0x28] sm:$0xff]
  %v664 = vld [vmem:[#allocation3 + $0x30] sm:$0xff]
  %v665 = vld [vmem:[#allocation3 + $0x38] sm:$0xff]
  %v666 = vld [vmem:[#allocation3 + $0x40] sm:$0xff]
  %v667 = vld [vmem:[#allocation3 + $0x48] sm:$0xff]
  %v668 = vld [vmem:[#allocation3 + $0x50] sm:$0xff]
  %v669 = vld [vmem:[#allocation3 + $0x58] sm:$0xff]
  %v670 = vld [vmem:[#allocation3 + $0x60] sm:$0xff]
  %v671 = vld [vmem:[#allocation3 + $0x68] sm:$0xff]
  %v672 = vld [vmem:[#allocation3 + $0x70] sm:$0xff]
  %v673 = vld [vmem:[#allocation3 + $0x78] sm:$0xff]
  %v674 = vld [vmem:[#allocation3 + $0x80] sm:$0xff]
  %v675 = vld [vmem:[#allocation3 + $0x88] sm:$0xff]
  %v676 = vld [vmem:[#allocation3 + $0x90] sm:$0xff]
  %v677 = vld [vmem:[#allocation3 + $0x98] sm:$0xff]
  %v678 = vpack.c.bf16 %v658, %v658
  %v679 = vpack.c.bf16 %v659, %v659
  %v680 = vpack.c.bf16 %v660, %v660
  %v681 = vpack.c.bf16 %v661, %v661
  %v682 = vpack.c.bf16 %v662, %v662
  %v683 = vpack.c.bf16 %v663, %v663
  %v684 = vpack.c.bf16 %v664, %v664
  %v685 = vpack.c.bf16 %v665, %v665
  %v686 = vpack.c.bf16 %v666, %v666
  %v687 = vpack.c.bf16 %v667, %v667
  %v688 = vpack.c.bf16 %v668, %v668
  %v689 = vpack.c.bf16 %v669, %v669
  %v690 = vpack.c.bf16 %v670, %v670
  %v691 = vpack.c.bf16 %v671, %v671
  %v692 = vpack.c.bf16 %v672, %v672
  %v693 = vpack.c.bf16 %v673, %v673
  %v694 = vpack.c.bf16 %v674, %v674
  %v695 = vpack.c.bf16 %v675, %v675
  %v696 = vpack.c.bf16 %v676, %v676
  %v697 = vpack.c.bf16 %v677, %v677
  %v698 = vld [vmem:[%s5] sm:$0xf]
  %v699 = vld [vmem:[%s5 + $0x4] sm:$0xf]
  %v700 = vld [vmem:[%s5 + $0x8] sm:$0xf]
  %v701 = vld [vmem:[%s5 + $0xc] sm:$0xf]
  %s702 = scalar_lea.vmem %s5, 16
  %v703 = vld [vmem:[%s702] sm:$0xf]
  %v704 = vld [vmem:[%s702 + $0x4] sm:$0xf]
  %v705 = vld [vmem:[%s702 + $0x8] sm:$0xf]
  %v706 = vld [vmem:[%s702 + $0xc] sm:$0xf]
  %v723 = vunpack.c.l.b16 %v680
  %v724 = vunpack.c.l.b16 %v681
  %v725 = vunpack.c.l.b16 %v682
  %v726 = vunpack.c.l.b16 %v683
  %v727 = vunpack.c.l.b16 %v684
  %v728 = vunpack.c.l.b16 %v685
  %v729 = vunpack.c.l.b16 %v686
  %v730 = vunpack.c.l.b16 %v687
  %v731 = vunpack.c.l.b16 %v688
  %v732 = vunpack.c.l.b16 %v689
  %v733 = vunpack.c.l.b16 %v690
  %v734 = vunpack.c.l.b16 %v691
  %v735 = vunpack.c.l.b16 %v692
  %v736 = vunpack.c.l.b16 %v693
  %v737 = vunpack.c.l.b16 %v694
  %v738 = vunpack.c.l.b16 %v695
  %v739 = vpack.c.b16 %v724, %v723
  %v740 = vpack.c.b16 %v726, %v725
  %v741 = vpack.c.b16 %v728, %v727
  %v742 = vpack.c.b16 %v730, %v729
  %v743 = vpack.c.b16 %v732, %v731
  %v744 = vpack.c.b16 %v734, %v733
  %v745 = vpack.c.b16 %v736, %v735
  %v746 = vpack.c.b16 %v738, %v737
  %v751 = vunpack.c.l.b16 %v703
  %v752 = vunpack.c.l.b16 %v704
  %v753 = vunpack.c.l.b16 %v705
  %v754 = vunpack.c.l.b16 %v706
  %v755 = vpack.c.b16 %v752, %v751
  %v756 = vpack.c.b16 %v754, %v753
  %v760 = vsel %vm635, %v739, 0
  %v763 = vsel %vm635, %v740, 0
  %v766 = vsel %vm635, %v741, 0
  %v769 = vsel %vm635, %v742, 0
  %v772 = vsel %vm635, %v743, 0
  %v775 = vsel %vm635, %v744, 0
  %v778 = vsel %vm635, %v745, 0
  %v781 = vsel %vm635, %v746, 0
  %783 = vmatprep.subr.bf16.mxu0 0
  %784 = vmatpush1.bf16.msra.mxu0 %v755
  %785 = vmatprep.subr.bf16.mxu0 0
  %786 = vmatpush1.bf16.msra.mxu0 %v756
  %787 = vmatprep.subr.bf16.mxu0 0
  %788 = vmatpush1.bf16.msra.mxu0 0
  %789 = vmatprep.subr.bf16.mxu0 0
  %790 = vmatpush1.bf16.msra.mxu0 0
  %791 = vmatprep.subr.bf16.mxu0 0
  %792 = vmatpush1.bf16.msra.mxu0 0
  %793 = vmatprep.subr.bf16.mxu0 0
  %794 = vmatpush1.bf16.msra.mxu0 0
  %795 = vmatprep.subr.bf16.mxu0 0
  %796 = vmatpush1.bf16.msra.mxu0 0
  %797 = vmatprep.subr.bf16.mxu0 0
  %798 = vmatpush1.bf16.msra.mxu0 0
  %799 = vmatprep.subr.bf16.mxu0 0
  %800 = vmatpush1.bf16.msra.mxu0 0
  %801 = vmatprep.subr.bf16.mxu0 0
  %802 = vmatpush1.bf16.msra.mxu0 0
  %803 = vmatprep.subr.bf16.mxu0 0
  %804 = vmatpush1.bf16.msra.mxu0 0
  %805 = vmatprep.subr.bf16.mxu0 0
  %806 = vmatpush1.bf16.msra.mxu0 0
  %807 = vmatprep.subr.bf16.mxu0 0
  %808 = vmatpush1.bf16.msra.mxu0 0
  %809 = vmatprep.subr.bf16.mxu0 0
  %810 = vmatpush1.bf16.msra.mxu0 0
  %811 = vmatprep.subr.bf16.mxu0 0
  %812 = vmatpush1.bf16.msra.mxu0 0
  %813 = vmatprep.subr.bf16.mxu0 0
  %814 = vmatpush1.bf16.msra.mxu0 0
  %815 = vmatprep.mubr.bf16.mxu0 0
  %816 = vmatmul.mubr.bf16.gmra.mrb[0].mxu0 %v760
  %v817 = vpop.f32.mrb[0].mxu0
  %v818 = vadd.f32 0.0, %v817
  %v819 = vpop.f32.mrb[0].mxu0
  %v820 = vpop.f32.mrb[0].mxu0
  %v821 = vadd.f32 0.0, %v820
  %v822 = vpop.f32.mrb[0].mxu0
  %823 = vmatprep.mubr.bf16.mxu0 0
  %824 = vmatmul.mubr.bf16.gmra.mrb[0].mxu0 %v763
  %v825 = vpop.f32.mrb[0].mxu0
  %v826 = vadd.f32 0.0, %v825
  %v827 = vpop.f32.mrb[0].mxu0
  %v828 = vpop.f32.mrb[0].mxu0
  %v829 = vadd.f32 0.0, %v828
  %v830 = vpop.f32.mrb[0].mxu0
  %831 = vmatprep.mubr.bf16.mxu0 0
  %832 = vmatmul.mubr.bf16.gmra.mrb[0].mxu0 %v766
  %v833 = vpop.f32.mrb[0].mxu0
  %v834 = vadd.f32 0.0, %v833
  %v835 = vpop.f32.mrb[0].mxu0
  %v836 = vpop.f32.mrb[0].mxu0
  %v837 = vadd.f32 0.0, %v836
  %v838 = vpop.f32.mrb[0].mxu0
  %839 = vmatprep.mubr.bf16.mxu0 0
  %840 = vmatmul.mubr.bf16.gmra.mrb[0].mxu0 %v769
  %v841 = vpop.f32.mrb[0].mxu0
  %v842 = vadd.f32 0.0, %v841
  %v843 = vpop.f32.mrb[0].mxu0
  %v844 = vpop.f32.mrb[0].mxu0
  %v845 = vadd.f32 0.0, %v844
  %v846 = vpop.f32.mrb[0].mxu0
  %847 = vmatprep.mubr.bf16.mxu0 0
  %848 = vmatmul.mubr.bf16.gmra.mrb[0].mxu0 %v772
  %v849 = vpop.f32.mrb[0].mxu0
  %v850 = vadd.f32 0.0, %v849
  %v851 = vpop.f32.mrb[0].mxu0
  %v852 = vpop.f32.mrb[0].mxu0
  %v853 = vadd.f32 0.0, %v852
  %v854 = vpop.f32.mrb[0].mxu0
  %855 = vmatprep.mubr.bf16.mxu0 0
  %856 = vmatmul.mubr.bf16.gmra.mrb[0].mxu0 %v775
  %v857 = vpop.f32.mrb[0].mxu0
  %v858 = vadd.f32 0.0, %v857
  %v859 = vpop.f32.mrb[0].mxu0
  %v860 = vpop.f32.mrb[0].mxu0
  %v861 = vadd.f32 0.0, %v860
  %v862 = vpop.f32.mrb[0].mxu0
  %863 = vmatprep.mubr.bf16.mxu0 0
  %864 = vmatmul.mubr.bf16.gmra.mrb[0].mxu0 %v778
  %v865 = vpop.f32.mrb[0].mxu0
  %v866 = vadd.f32 0.0, %v865
  %v867 = vpop.f32.mrb[0].mxu0
  %v868 = vpop.f32.mrb[0].mxu0
  %v869 = vadd.f32 0.0, %v868
  %v870 = vpop.f32.mrb[0].mxu0
  %871 = vmatprep.mubr.bf16.mxu0 0
  %872 = vmatmul.mubr.bf16.gmra.mrb[0].mxu0 %v781
  %v873 = vpop.f32.mrb[0].mxu0
  %v874 = vadd.f32 0.0, %v873
  %v875 = vpop.f32.mrb[0].mxu0
  %v876 = vpop.f32.mrb[0].mxu0
  %v877 = vadd.f32 0.0, %v876
  %v878 = vpop.f32.mrb[0].mxu0
  %879 = vdwg.mxu0
  %v882 = vunpack.c.l.b16 %v678
  %v883 = vunpack.c.l.b16 %v679
  %v884 = vpack.c.b16 %v883, %v882
  %v889 = vunpack.c.l.b16 %v698
  %v890 = vunpack.c.l.b16 %v699
  %v891 = vunpack.c.l.b16 %v700
  %v892 = vunpack.c.l.b16 %v701
  %v893 = vpack.c.b16 %v890, %v889
  %v894 = vpack.c.b16 %v892, %v891
  %v898 = vsel %vm635, %v884, 0
  %900 = vmatprep.subr.bf16.mxu0 0
  %901 = vmatpush1.bf16.msra.mxu0 %v893
  %902 = vmatprep.subr.bf16.mxu0 0
  %903 = vmatpush1.bf16.msra.mxu0 %v894
  %904 = vmatprep.subr.bf16.mxu0 0
  %905 = vmatpush1.bf16.msra.mxu0 0
  %906 = vmatprep.subr.bf16.mxu0 0
  %907 = vmatpush1.bf16.msra.mxu0 0
  %908 = vmatprep.subr.bf16.mxu0 0
  %909 = vmatpush1.bf16.msra.mxu0 0
  %910 = vmatprep.subr.bf16.mxu0 0
  %911 = vmatpush1.bf16.msra.mxu0 0
  %912 = vmatprep.subr.bf16.mxu0 0
  %913 = vmatpush1.bf16.msra.mxu0 0
  %914 = vmatprep.subr.bf16.mxu0 0
  %915 = vmatpush1.bf16.msra.mxu0 0
  %916 = vmatprep.subr.bf16.mxu0 0
  %917 = vmatpush1.bf16.msra.mxu0 0
  %918 = vmatprep.subr.bf16.mxu0 0
  %919 = vmatpush1.bf16.msra.mxu0 0
  %920 = vmatprep.subr.bf16.mxu0 0
  %921 = vmatpush1.bf16.msra.mxu0 0
  %922 = vmatprep.subr.bf16.mxu0 0
  %923 = vmatpush1.bf16.msra.mxu0 0
  %924 = vmatprep.subr.bf16.mxu0 0
  %925 = vmatpush1.bf16.msra.mxu0 0
  %926 = vmatprep.subr.bf16.mxu0 0
  %927 = vmatpush1.bf16.msra.mxu0 0
  %928 = vmatprep.subr.bf16.mxu0 0
  %929 = vmatpush1.bf16.msra.mxu0 0
  %930 = vmatprep.subr.bf16.mxu0 0
  %931 = vmatpush1.bf16.msra.mxu0 0
  %932 = vmatprep.mubr.bf16.mxu0 0
  %933 = vmatmul.mubr.bf16.gmra.mrb[0].mxu0 %v898
  %v934 = vpop.f32.mrb[0].mxu0
  %v935 = vadd.f32 %v818, %v934
  %v936 = vpop.f32.mrb[0].mxu0
  %v937 = vpop.f32.mrb[0].mxu0
  %v938 = vadd.f32 %v821, %v937
  %v939 = vpop.f32.mrb[0].mxu0
  %940 = vmatprep.mubr.bf16.mxu0 0
  %941 = vmatmul.mubr.bf16.gmra.mrb[0].mxu0 %v760
  %v942 = vpop.f32.mrb[0].mxu0
  %v943 = vadd.f32 %v826, %v942
  %v944 = vpop.f32.mrb[0].mxu0
  %v945 = vpop.f32.mrb[0].mxu0
  %v946 = vadd.f32 %v829, %v945
  %v947 = vpop.f32.mrb[0].mxu0
  %948 = vmatprep.mubr.bf16.mxu0 0
  %949 = vmatmul.mubr.bf16.gmra.mrb[0].mxu0 %v763
  %v950 = vpop.f32.mrb[0].mxu0
  %v951 = vadd.f32 %v834, %v950
  %v952 = vpop.f32.mrb[0].mxu0
  %v953 = vpop.f32.mrb[0].mxu0
  %v954 = vadd.f32 %v837, %v953
  %v955 = vpop.f32.mrb[0].mxu0
  %956 = vmatprep.mubr.bf16.mxu0 0
  %957 = vmatmul.mubr.bf16.gmra.mrb[0].mxu0 %v766
  %v958 = vpop.f32.mrb[0].mxu0
  %v959 = vadd.f32 %v842, %v958
  %v960 = vpop.f32.mrb[0].mxu0
  %v961 = vpop.f32.mrb[0].mxu0
  %v962 = vadd.f32 %v845, %v961
  %v963 = vpop.f32.mrb[0].mxu0
  %964 = vmatprep.mubr.bf16.mxu0 0
  %965 = vmatmul.mubr.bf16.gmra.mrb[0].mxu0 %v769
  %v966 = vpop.f32.mrb[0].mxu0
  %v967 = vadd.f32 %v850, %v966
  %v968 = vpop.f32.mrb[0].mxu0
  %v969 = vpop.f32.mrb[0].mxu0
  %v970 = vadd.f32 %v853, %v969
  %v971 = vpop.f32.mrb[0].mxu0
  %972 = vmatprep.mubr.bf16.mxu0 0
  %973 = vmatmul.mubr.bf16.gmra.mrb[0].mxu0 %v772
  %v974 = vpop.f32.mrb[0].mxu0
  %v975 = vadd.f32 %v858, %v974
  %v976 = vpop.f32.mrb[0].mxu0
  %v977 = vpop.f32.mrb[0].mxu0
  %v978 = vadd.f32 %v861, %v977
  %v979 = vpop.f32.mrb[0].mxu0
  %980 = vmatprep.mubr.bf16.mxu0 0
  %981 = vmatmul.mubr.bf16.gmra.mrb[0].mxu0 %v775
  %v982 = vpop.f32.mrb[0].mxu0
  %v983 = vadd.f32 %v866, %v982
  %v984 = vpop.f32.mrb[0].mxu0
  %v985 = vpop.f32.mrb[0].mxu0
  %v986 = vadd.f32 %v869, %v985
  %v987 = vpop.f32.mrb[0].mxu0
  %988 = vmatprep.mubr.bf16.mxu0 0
  %989 = vmatmul.mubr.bf16.gmra.mrb[0].mxu0 %v778
  %v990 = vpop.f32.mrb[0].mxu0
  %v991 = vadd.f32 %v874, %v990
  %v992 = vpop.f32.mrb[0].mxu0
  %v993 = vpop.f32.mrb[0].mxu0
  %v994 = vadd.f32 %v877, %v993
  %v995 = vpop.f32.mrb[0].mxu0
  %996 = vdwg.mxu0
  %s997 = scalar_lea.vmem %s5, 32
  %v998 = vld [vmem:[%s997] sm:$0xf]
  %v999 = vld [vmem:[%s997 + $0x4] sm:$0xf]
  %v1000 = vld [vmem:[%s997 + $0x8] sm:$0xf]
  %v1001 = vld [vmem:[%s997 + $0xc] sm:$0xf]
  %v1004 = vunpack.c.l.b16 %v696
  %v1005 = vunpack.c.l.b16 %v697
  %v1006 = vpack.c.b16 %v1005, %v1004
  %v1011 = vunpack.c.l.b16 %v998
  %v1012 = vunpack.c.l.b16 %v999
  %v1013 = vunpack.c.l.b16 %v1000
  %v1014 = vunpack.c.l.b16 %v1001
  %v1015 = vpack.c.b16 %v1012, %v1011
  %v1016 = vpack.c.b16 %v1014, %v1013
  %v1020 = vsel %vm635, %v1006, 0
  %1022 = vmatprep.subr.bf16.mxu0 0
  %1023 = vmatpush1.bf16.msra.mxu0 %v1015
  %1024 = vmatprep.subr.bf16.mxu0 0
  %1025 = vmatpush1.bf16.msra.mxu0 %v1016
  %1026 = vmatprep.subr.bf16.mxu0 0
  %1027 = vmatpush1.bf16.msra.mxu0 0
  %1028 = vmatprep.subr.bf16.mxu0 0
  %1029 = vmatpush1.bf16.msra.mxu0 0
  %1030 = vmatprep.subr.bf16.mxu0 0
  %1031 = vmatpush1.bf16.msra.mxu0 0
  %1032 = vmatprep.subr.bf16.mxu0 0
  %1033 = vmatpush1.bf16.msra.mxu0 0
  %1034 = vmatprep.subr.bf16.mxu0 0
  %1035 = vmatpush1.bf16.msra.mxu0 0
  %1036 = vmatprep.subr.bf16.mxu0 0
  %1037 = vmatpush1.bf16.msra.mxu0 0
  %1038 = vmatprep.subr.bf16.mxu0 0
  %1039 = vmatpush1.bf16.msra.mxu0 0
  %1040 = vmatprep.subr.bf16.mxu0 0
  %1041 = vmatpush1.bf16.msra.mxu0 0
  %1042 = vmatprep.subr.bf16.mxu0 0
  %1043 = vmatpush1.bf16.msra.mxu0 0
  %1044 = vmatprep.subr.bf16.mxu0 0
  %1045 = vmatpush1.bf16.msra.mxu0 0
  %1046 = vmatprep.subr.bf16.mxu0 0
  %1047 = vmatpush1.bf16.msra.mxu0 0
  %1048 = vmatprep.subr.bf16.mxu0 0
  %1049 = vmatpush1.bf16.msra.mxu0 0
  %1050 = vmatprep.subr.bf16.mxu0 0
  %1051 = vmatpush1.bf16.msra.mxu0 0
  %1052 = vmatprep.subr.bf16.mxu0 0
  %1053 = vmatpush1.bf16.msra.mxu0 0
  %1054 = vmatprep.mubr.bf16.mxu0 0
  %1055 = vmatmul.mubr.bf16.gmra.mrb[0].mxu0 %v763
  %v1056 = vpop.f32.mrb[0].mxu0
  %v1057 = vadd.f32 0.0, %v1056
  %v1058 = vpop.f32.mrb[0].mxu0
  %v1059 = vpop.f32.mrb[0].mxu0
  %v1060 = vadd.f32 0.0, %v1059
  %v1061 = vpop.f32.mrb[0].mxu0
  %1062 = vmatprep.mubr.bf16.mxu0 0
  %1063 = vmatmul.mubr.bf16.gmra.mrb[0].mxu0 %v766
  %v1064 = vpop.f32.mrb[0].mxu0
  %v1065 = vadd.f32 0.0, %v1064
  %v1066 = vpop.f32.mrb[0].mxu0
  %v1067 = vpop.f32.mrb[0].mxu0
  %v1068 = vadd.f32 0.0, %v1067
  %v1069 = vpop.f32.mrb[0].mxu0
  %1070 = vmatprep.mubr.bf16.mxu0 0
  %1071 = vmatmul.mubr.bf16.gmra.mrb[0].mxu0 %v769
  %v1072 = vpop.f32.mrb[0].mxu0
  %v1073 = vadd.f32 0.0, %v1072
  %v1074 = vpop.f32.mrb[0].mxu0
  %v1075 = vpop.f32.mrb[0].mxu0
  %v1076 = vadd.f32 0.0, %v1075
  %v1077 = vpop.f32.mrb[0].mxu0
  %1078 = vmatprep.mubr.bf16.mxu0 0
  %1079 = vmatmul.mubr.bf16.gmra.mrb[0].mxu0 %v772
  %v1080 = vpop.f32.mrb[0].mxu0
  %v1081 = vadd.f32 0.0, %v1080
  %v1082 = vpop.f32.mrb[0].mxu0
  %v1083 = vpop.f32.mrb[0].mxu0
  %v1084 = vadd.f32 0.0, %v1083
  %v1085 = vpop.f32.mrb[0].mxu0
  %1086 = vmatprep.mubr.bf16.mxu0 0
  %1087 = vmatmul.mubr.bf16.gmra.mrb[0].mxu0 %v775
  %v1088 = vpop.f32.mrb[0].mxu0
  %v1089 = vadd.f32 0.0, %v1088
  %v1090 = vpop.f32.mrb[0].mxu0
  %v1091 = vpop.f32.mrb[0].mxu0
  %v1092 = vadd.f32 0.0, %v1091
  %v1093 = vpop.f32.mrb[0].mxu0
  %1094 = vmatprep.mubr.bf16.mxu0 0
  %1095 = vmatmul.mubr.bf16.gmra.mrb[0].mxu0 %v778
  %v1096 = vpop.f32.mrb[0].mxu0
  %v1097 = vadd.f32 0.0, %v1096
  %v1098 = vpop.f32.mrb[0].mxu0
  %v1099 = vpop.f32.mrb[0].mxu0
  %v1100 = vadd.f32 0.0, %v1099
  %v1101 = vpop.f32.mrb[0].mxu0
  %1102 = vmatprep.mubr.bf16.mxu0 0
  %1103 = vmatmul.mubr.bf16.gmra.mrb[0].mxu0 %v781
  %v1104 = vpop.f32.mrb[0].mxu0
  %v1105 = vadd.f32 0.0, %v1104
  %v1106 = vpop.f32.mrb[0].mxu0
  %v1107 = vpop.f32.mrb[0].mxu0
  %v1108 = vadd.f32 0.0, %v1107
  %v1109 = vpop.f32.mrb[0].mxu0
  %1110 = vmatprep.mubr.bf16.mxu0 0
  %1111 = vmatmul.mubr.bf16.gmra.mrb[0].mxu0 %v1020
  %v1112 = vpop.f32.mrb[0].mxu0
  %v1113 = vadd.f32 0.0, %v1112
  %v1114 = vpop.f32.mrb[0].mxu0
  %v1115 = vpop.f32.mrb[0].mxu0
  %v1116 = vadd.f32 0.0, %v1115
  %v1117 = vpop.f32.mrb[0].mxu0
  %1118 = vdwg.mxu0
  %v1119 = vadd.f32 %v935, %v1057
  %v1120 = vadd.f32 %v938, %v1060
  %v1121 = vadd.f32 %v943, %v1065
  %v1122 = vadd.f32 %v946, %v1068
  %v1123 = vadd.f32 %v951, %v1073
  %v1124 = vadd.f32 %v954, %v1076
  %v1125 = vadd.f32 %v959, %v1081
  %v1126 = vadd.f32 %v962, %v1084
  %v1127 = vadd.f32 %v967, %v1089
  %v1128 = vadd.f32 %v970, %v1092
  %v1129 = vadd.f32 %v975, %v1097
  %v1130 = vadd.f32 %v978, %v1100
  %v1131 = vadd.f32 %v983, %v1105
  %v1132 = vadd.f32 %v986, %v1108
  %v1133 = vadd.f32 %v991, %v1113
  %v1134 = vadd.f32 %v994, %v1116
  %v1135 = vld [vmem:[%s6] sm:$0x1]
  %v1137 = vlaneseq
  %v1138 = vshrl.u32 %v1137, 7
  %v1139 = vsub.s32 0, %v1138
  %v1140 = vrot.slane %v1135, %v1139
  %v1142 = vadd.f32 %v1119, %v1140
  %v1143 = vadd.f32 %v1120, %v1140
  %v1144 = vadd.f32 %v1121, %v1140
  %v1145 = vadd.f32 %v1122, %v1140
  %v1146 = vadd.f32 %v1123, %v1140
  %v1147 = vadd.f32 %v1124, %v1140
  %v1148 = vadd.f32 %v1125, %v1140
  %v1149 = vadd.f32 %v1126, %v1140
  %v1150 = vadd.f32 %v1127, %v1140
  %v1151 = vadd.f32 %v1128, %v1140
  %v1152 = vadd.f32 %v1129, %v1140
  %v1153 = vadd.f32 %v1130, %v1140
  %v1154 = vadd.f32 %v1131, %v1140
  %v1155 = vadd.f32 %v1132, %v1140
  %v1156 = vadd.f32 %v1133, %v1140
  %v1157 = vadd.f32 %v1134, %v1140
  %v1158 = vmax.f32 %v1142, 0.0
  %v1159 = vmax.f32 %v1143, 0.0
  %v1160 = vmax.f32 %v1144, 0.0
  %v1161 = vmax.f32 %v1145, 0.0
  %v1162 = vmax.f32 %v1146, 0.0
  %v1163 = vmax.f32 %v1147, 0.0
  %v1164 = vmax.f32 %v1148, 0.0
  %v1165 = vmax.f32 %v1149, 0.0
  %v1166 = vmax.f32 %v1150, 0.0
  %v1167 = vmax.f32 %v1151, 0.0
  %v1168 = vmax.f32 %v1152, 0.0
  %v1169 = vmax.f32 %v1153, 0.0
  %v1170 = vmax.f32 %v1154, 0.0
  %v1171 = vmax.f32 %v1155, 0.0
  %v1172 = vmax.f32 %v1156, 0.0
  %v1173 = vmax.f32 %v1157, 0.0
  %v1174 = vpack.c.bf16 %v1158, %v1158
  %v1175 = vpack.c.bf16 %v1159, %v1159
  %v1176 = vpack.c.bf16 %v1160, %v1160
  %v1177 = vpack.c.bf16 %v1161, %v1161
  %v1178 = vpack.c.bf16 %v1162, %v1162
  %v1179 = vpack.c.bf16 %v1163, %v1163
  %v1180 = vpack.c.bf16 %v1164, %v1164
  %v1181 = vpack.c.bf16 %v1165, %v1165
  %v1182 = vpack.c.bf16 %v1166, %v1166
  %v1183 = vpack.c.bf16 %v1167, %v1167
  %v1184 = vpack.c.bf16 %v1168, %v1168
  %v1185 = vpack.c.bf16 %v1169, %v1169
  %v1186 = vpack.c.bf16 %v1170, %v1170
  %v1187 = vpack.c.bf16 %v1171, %v1171
  %v1188 = vpack.c.bf16 %v1172, %v1172
  %v1189 = vpack.c.bf16 %v1173, %v1173
  %v1190 = vld [vmem:[%s7] sm:$0xff]
  %v1191 = vld [vmem:[%s7 + $0x8] sm:$0xff]
  %v1192 = vld [vmem:[%s7 + $0x10] sm:$0xff]
  %v1193 = vld [vmem:[%s7 + $0x18] sm:$0xff]
  %v1194 = vld [vmem:[%s8] sm:$0x3]
  %v1196 = vlaneseq
  %v1197 = vshrl.u32 %v1196, 7
  %v1198 = vsub.s32 0, %v1197
  %v1199 = vrot.slane %v1194, %v1198
  %v1200 = vlaneseq
  %v1201 = vshrl.u32 %v1200, 7
  %v1202 = vsub.s32 1, %v1201
  %v1203 = vrot.slane %v1194, %v1202
  %v1222 = vunpack.c.l.b16 %v1174
  %v1223 = vunpack.c.l.b16 %v1175
  %v1224 = vunpack.c.l.b16 %v1176
  %v1225 = vunpack.c.l.b16 %v1177
  %v1226 = vunpack.c.l.b16 %v1178
  %v1227 = vunpack.c.l.b16 %v1179
  %v1228 = vunpack.c.l.b16 %v1180
  %v1229 = vunpack.c.l.b16 %v1181
  %v1230 = vunpack.c.l.b16 %v1182
  %v1231 = vunpack.c.l.b16 %v1183
  %v1232 = vunpack.c.l.b16 %v1184
  %v1233 = vunpack.c.l.b16 %v1185
  %v1234 = vunpack.c.l.b16 %v1186
  %v1235 = vunpack.c.l.b16 %v1187
  %v1236 = vunpack.c.l.b16 %v1188
  %v1237 = vunpack.c.l.b16 %v1189
  %v1238 = vpack.c.b16 %v1223, %v1222
  %v1239 = vpack.c.b16 %v1225, %v1224
  %v1240 = vpack.c.b16 %v1227, %v1226
  %v1241 = vpack.c.b16 %v1229, %v1228
  %v1242 = vpack.c.b16 %v1231, %v1230
  %v1243 = vpack.c.b16 %v1233, %v1232
  %v1244 = vpack.c.b16 %v1235, %v1234
  %v1245 = vpack.c.b16 %v1237, %v1236
  %v1250 = vunpack.c.l.b16 %v1190
  %v1251 = vunpack.c.h.b16 %v1190
  %v1252 = vunpack.c.l.b16 %v1191
  %v1253 = vunpack.c.h.b16 %v1191
  %v1254 = vunpack.c.l.b16 %v1192
  %v1255 = vunpack.c.h.b16 %v1192
  %v1256 = vunpack.c.l.b16 %v1193
  %v1257 = vunpack.c.h.b16 %v1193
  %v1258 = vpack.c.b16 %v1252, %v1250
  %v1259 = vpack.c.b16 %v1253, %v1251
  %v1260 = vpack.c.b16 %v1256, %v1254
  %v1261 = vpack.c.b16 %v1257, %v1255
  %v1267 = vsel %vm635, %v1238, 0
  %v1270 = vsel %vm635, %v1239, 0
  %v1273 = vsel %vm635, %v1240, 0
  %v1276 = vsel %vm635, %v1241, 0
  %v1279 = vsel %vm635, %v1242, 0
  %v1282 = vsel %vm635, %v1243, 0
  %v1285 = vsel %vm635, %v1244, 0
  %v1288 = vsel %vm635, %v1245, 0
  %1290 = vmatprep.subr.bf16.mxu0 %v1259
  %1291 = vmatpush1.bf16.msra.mxu0 %v1258
  %1292 = vmatprep.subr.bf16.mxu0 %v1261
  %1293 = vmatpush1.bf16.msra.mxu0 %v1260
  %1294 = vmatprep.subr.bf16.mxu0 0
  %1295 = vmatpush1.bf16.msra.mxu0 0
  %1296 = vmatprep.subr.bf16.mxu0 0
  %1297 = vmatpush1.bf16.msra.mxu0 0
  %1298 = vmatprep.subr.bf16.mxu0 0
  %1299 = vmatpush1.bf16.msra.mxu0 0
  %1300 = vmatprep.subr.bf16.mxu0 0
  %1301 = vmatpush1.bf16.msra.mxu0 0
  %1302 = vmatprep.subr.bf16.mxu0 0
  %1303 = vmatpush1.bf16.msra.mxu0 0
  %1304 = vmatprep.subr.bf16.mxu0 0
  %1305 = vmatpush1.bf16.msra.mxu0 0
  %1306 = vmatprep.subr.bf16.mxu0 0
  %1307 = vmatpush1.bf16.msra.mxu0 0
  %1308 = vmatprep.subr.bf16.mxu0 0
  %1309 = vmatpush1.bf16.msra.mxu0 0
  %1310 = vmatprep.subr.bf16.mxu0 0
  %1311 = vmatpush1.bf16.msra.mxu0 0
  %1312 = vmatprep.subr.bf16.mxu0 0
  %1313 = vmatpush1.bf16.msra.mxu0 0
  %1314 = vmatprep.subr.bf16.mxu0 0
  %1315 = vmatpush1.bf16.msra.mxu0 0
  %1316 = vmatprep.subr.bf16.mxu0 0
  %1317 = vmatpush1.bf16.msra.mxu0 0
  %1318 = vmatprep.subr.bf16.mxu0 0
  %1319 = vmatpush1.bf16.msra.mxu0 0
  %1320 = vmatprep.subr.bf16.mxu0 0
  %1321 = vmatpush1.bf16.msra.mxu0 0
  %1322 = vmatprep.mubr.bf16.mxu0 0
  %1323 = vmatmul.mubr.bf16.gmra.mrb[0].mxu0 %v1267
  %v1324 = vpop.f32.mrb[0].mxu0
  %v1325 = vadd.f32 %v1199, %v1324
  %v1326 = vpop.f32.mrb[0].mxu0
  %v1327 = vadd.f32 %v1203, %v1326
  %v1328 = vpop.f32.mrb[0].mxu0
  %v1329 = vadd.f32 %v1199, %v1328
  %v1330 = vpop.f32.mrb[0].mxu0
  %v1331 = vadd.f32 %v1203, %v1330
  %1332 = vmatprep.mubr.bf16.mxu0 0
  %1333 = vmatmul.mubr.bf16.gmra.mrb[0].mxu0 %v1270
  %v1334 = vpop.f32.mrb[0].mxu0
  %v1335 = vadd.f32 %v1199, %v1334
  %v1336 = vpop.f32.mrb[0].mxu0
  %v1337 = vadd.f32 %v1203, %v1336
  %v1338 = vpop.f32.mrb[0].mxu0
  %v1339 = vadd.f32 %v1199, %v1338
  %v1340 = vpop.f32.mrb[0].mxu0
  %v1341 = vadd.f32 %v1203, %v1340
  %1342 = vmatprep.mubr.bf16.mxu0 0
  %1343 = vmatmul.mubr.bf16.gmra.mrb[0].mxu0 %v1273
  %v1344 = vpop.f32.mrb[0].mxu0
  %v1345 = vadd.f32 %v1199, %v1344
  %v1346 = vpop.f32.mrb[0].mxu0
  %v1347 = vadd.f32 %v1203, %v1346
  %v1348 = vpop.f32.mrb[0].mxu0
  %v1349 = vadd.f32 %v1199, %v1348
  %v1350 = vpop.f32.mrb[0].mxu0
  %v1351 = vadd.f32 %v1203, %v1350
  %1352 = vmatprep.mubr.bf16.mxu0 0
  %1353 = vmatmul.mubr.bf16.gmra.mrb[0].mxu0 %v1276
  %v1354 = vpop.f32.mrb[0].mxu0
  %v1355 = vadd.f32 %v1199, %v1354
  %v1356 = vpop.f32.mrb[0].mxu0
  %v1357 = vadd.f32 %v1203, %v1356
  %v1358 = vpop.f32.mrb[0].mxu0
  %v1359 = vadd.f32 %v1199, %v1358
  %v1360 = vpop.f32.mrb[0].mxu0
  %v1361 = vadd.f32 %v1203, %v1360
  %1362 = vmatprep.mubr.bf16.mxu0 0
  %1363 = vmatmul.mubr.bf16.gmra.mrb[0].mxu0 %v1279
  %v1364 = vpop.f32.mrb[0].mxu0
  %v1365 = vadd.f32 %v1199, %v1364
  %v1366 = vpop.f32.mrb[0].mxu0
  %v1367 = vadd.f32 %v1203, %v1366
  %v1368 = vpop.f32.mrb[0].mxu0
  %v1369 = vadd.f32 %v1199, %v1368
  %v1370 = vpop.f32.mrb[0].mxu0
  %v1371 = vadd.f32 %v1203, %v1370
  %1372 = vmatprep.mubr.bf16.mxu0 0
  %1373 = vmatmul.mubr.bf16.gmra.mrb[0].mxu0 %v1282
  %v1374 = vpop.f32.mrb[0].mxu0
  %v1375 = vadd.f32 %v1199, %v1374
  %v1376 = vpop.f32.mrb[0].mxu0
  %v1377 = vadd.f32 %v1203, %v1376
  %v1378 = vpop.f32.mrb[0].mxu0
  %v1379 = vadd.f32 %v1199, %v1378
  %v1380 = vpop.f32.mrb[0].mxu0
  %v1381 = vadd.f32 %v1203, %v1380
  %1382 = vmatprep.mubr.bf16.mxu0 0
  %1383 = vmatmul.mubr.bf16.gmra.mrb[0].mxu0 %v1285
  %v1384 = vpop.f32.mrb[0].mxu0
  %v1385 = vadd.f32 %v1199, %v1384
  %v1386 = vpop.f32.mrb[0].mxu0
  %v1387 = vadd.f32 %v1203, %v1386
  %v1388 = vpop.f32.mrb[0].mxu0
  %v1389 = vadd.f32 %v1199, %v1388
  %v1390 = vpop.f32.mrb[0].mxu0
  %v1391 = vadd.f32 %v1203, %v1390
  %1392 = vmatprep.mubr.bf16.mxu0 0
  %1393 = vmatmul.mubr.bf16.gmra.mrb[0].mxu0 %v1288
  %v1394 = vpop.f32.mrb[0].mxu0
  %v1395 = vadd.f32 %v1199, %v1394
  %v1396 = vpop.f32.mrb[0].mxu0
  %v1397 = vadd.f32 %v1203, %v1396
  %v1398 = vpop.f32.mrb[0].mxu0
  %v1399 = vadd.f32 %v1199, %v1398
  %v1400 = vpop.f32.mrb[0].mxu0
  %v1401 = vadd.f32 %v1203, %v1400
  %1402 = vdwg.mxu0
  %v1403 = vpack.c.bf16 %v1325, %v1325
  %v1404 = vpack.c.bf16 %v1327, %v1327
  %v1405 = vpack.c.bf16 %v1329, %v1329
  %v1406 = vpack.c.bf16 %v1331, %v1331
  %v1407 = vpack.c.bf16 %v1335, %v1335
  %v1408 = vpack.c.bf16 %v1337, %v1337
  %v1409 = vpack.c.bf16 %v1339, %v1339
  %v1410 = vpack.c.bf16 %v1341, %v1341
  %v1411 = vpack.c.bf16 %v1345, %v1345
  %v1412 = vpack.c.bf16 %v1347, %v1347
  %v1413 = vpack.c.bf16 %v1349, %v1349
  %v1414 = vpack.c.bf16 %v1351, %v1351
  %v1415 = vpack.c.bf16 %v1355, %v1355
  %v1416 = vpack.c.bf16 %v1357, %v1357
  %v1417 = vpack.c.bf16 %v1359, %v1359
  %v1418 = vpack.c.bf16 %v1361, %v1361
  %v1419 = vpack.c.bf16 %v1365, %v1365
  %v1420 = vpack.c.bf16 %v1367, %v1367
  %v1421 = vpack.c.bf16 %v1369, %v1369
  %v1422 = vpack.c.bf16 %v1371, %v1371
  %v1423 = vpack.c.bf16 %v1375, %v1375
  %v1424 = vpack.c.bf16 %v1377, %v1377
  %v1425 = vpack.c.bf16 %v1379, %v1379
  %v1426 = vpack.c.bf16 %v1381, %v1381
  %v1427 = vpack.c.bf16 %v1385, %v1385
  %v1428 = vpack.c.bf16 %v1387, %v1387
  %v1429 = vpack.c.bf16 %v1389, %v1389
  %v1430 = vpack.c.bf16 %v1391, %v1391
  %v1431 = vpack.c.bf16 %v1395, %v1395
  %v1432 = vpack.c.bf16 %v1397, %v1397
  %v1433 = vpack.c.bf16 %v1399, %v1399
  %v1434 = vpack.c.bf16 %v1401, %v1401
  %v1467 = vunpack.c.l.b16 %v1403
  %v1468 = vunpack.c.l.b16 %v1404
  %v1469 = vunpack.c.l.b16 %v1405
  %v1470 = vunpack.c.l.b16 %v1406
  %v1471 = vunpack.c.l.b16 %v1407
  %v1472 = vunpack.c.l.b16 %v1408
  %v1473 = vunpack.c.l.b16 %v1409
  %v1474 = vunpack.c.l.b16 %v1410
  %v1475 = vunpack.c.l.b16 %v1411
  %v1476 = vunpack.c.l.b16 %v1412
  %v1477 = vunpack.c.l.b16 %v1413
  %v1478 = vunpack.c.l.b16 %v1414
  %v1479 = vunpack.c.l.b16 %v1415
  %v1480 = vunpack.c.l.b16 %v1416
  %v1481 = vunpack.c.l.b16 %v1417
  %v1482 = vunpack.c.l.b16 %v1418
  %v1483 = vunpack.c.l.b16 %v1419
  %v1484 = vunpack.c.l.b16 %v1420
  %v1485 = vunpack.c.l.b16 %v1421
  %v1486 = vunpack.c.l.b16 %v1422
  %v1487 = vunpack.c.l.b16 %v1423
  %v1488 = vunpack.c.l.b16 %v1424
  %v1489 = vunpack.c.l.b16 %v1425
  %v1490 = vunpack.c.l.b16 %v1426
  %v1491 = vunpack.c.l.b16 %v1427
  %v1492 = vunpack.c.l.b16 %v1428
  %v1493 = vunpack.c.l.b16 %v1429
  %v1494 = vunpack.c.l.b16 %v1430
  %v1495 = vunpack.c.l.b16 %v1431
  %v1496 = vunpack.c.l.b16 %v1432
  %v1497 = vunpack.c.l.b16 %v1433
  %v1498 = vunpack.c.l.b16 %v1434
  %v1499 = vpack.c.b16 %v1468, %v1467
  %v1500 = vpack.c.b16 %v1470, %v1469
  %v1501 = vpack.c.b16 %v1472, %v1471
  %v1502 = vpack.c.b16 %v1474, %v1473
  %v1503 = vpack.c.b16 %v1476, %v1475
  %v1504 = vpack.c.b16 %v1478, %v1477
  %v1505 = vpack.c.b16 %v1480, %v1479
  %v1506 = vpack.c.b16 %v1482, %v1481
  %v1507 = vpack.c.b16 %v1484, %v1483
  %v1508 = vpack.c.b16 %v1486, %v1485
  %v1509 = vpack.c.b16 %v1488, %v1487
  %v1510 = vpack.c.b16 %v1490, %v1489
  %v1511 = vpack.c.b16 %v1492, %v1491
  %v1512 = vpack.c.b16 %v1494, %v1493
  %v1513 = vpack.c.b16 %v1496, %v1495
  %v1514 = vpack.c.b16 %v1498, %v1497
  %vm1531 = vcmask 523268
  %vm1532 = vmor %vm1531, %vm261
  %1533 = vst.msk [vmem:[#allocation4] sm:$0xff] %vm1532, %v1499
  %1534 = vst.msk [vmem:[#allocation4 + $0x8] sm:$0xff] %vm1532, %v1500
  %1535 = vst.msk [vmem:[#allocation4 + $0x10] sm:$0xff] %vm1532, %v1501
  %1536 = vst.msk [vmem:[#allocation4 + $0x18] sm:$0xff] %vm1532, %v1502
  %1537 = vst.msk [vmem:[#allocation4 + $0x20] sm:$0xff] %vm1532, %v1503
  %1538 = vst.msk [vmem:[#allocation4 + $0x28] sm:$0xff] %vm1532, %v1504
  %1539 = vst.msk [vmem:[#allocation4 + $0x30] sm:$0xff] %vm1532, %v1505
  %1540 = vst.msk [vmem:[#allocation4 + $0x38] sm:$0xff] %vm1532, %v1506
  %1541 = vst.msk [vmem:[#allocation4 + $0x40] sm:$0xff] %vm1532, %v1507
  %1542 = vst.msk [vmem:[#allocation4 + $0x48] sm:$0xff] %vm1532, %v1508
  %1543 = vst.msk [vmem:[#allocation4 + $0x50] sm:$0xff] %vm1532, %v1509
  %1544 = vst.msk [vmem:[#allocation4 + $0x58] sm:$0xff] %vm1532, %v1510
  %1545 = vst.msk [vmem:[#allocation4 + $0x60] sm:$0xff] %vm1532, %v1511
  %1546 = vst.msk [vmem:[#allocation4 + $0x68] sm:$0xff] %vm1532, %v1512
  %1547 = vst.msk [vmem:[#allocation4 + $0x70] sm:$0xff] %vm1532, %v1513
  %1548 = vst.msk [vmem:[#allocation4 + $0x78] sm:$0xff] %vm1532, %v1514
  %v1549 = vld [vmem:[%s9] sm:$0xf]
  %v1550 = vld [vmem:[%s9 + $0x4] sm:$0xf]
  %v1551 = vld [vmem:[%s9 + $0x8] sm:$0xf]
  %v1552 = vld [vmem:[%s9 + $0xc] sm:$0xf]
  %v1553 = vld [vmem:[%s10] sm:$0xf]
  %v1554 = vld [vmem:[%s10 + $0x4] sm:$0xf]
  %v1555 = vld [vmem:[%s10 + $0x8] sm:$0xf]
  %v1556 = vld [vmem:[%s10 + $0xc] sm:$0xf]
  %v1557 = vld [vmem:[%s11] sm:$0x1]
  %v1558 = vld [vmem:[%s12] sm:$0x1]
  %v1559 = vld [vmem:[#allocation4] sm:$0xff]
  %v1560 = vunpack.c.l.bf16 %v1559
  %s1561 = scalar_lea.vmem [#allocation4], 120
  %v1562 = vld [vmem:[%s1561] sm:$0xff]
  %v1563 = vunpack.c.l.bf16 %v1562
  %v1564 = vunpack.c.h.bf16 %v1562
  %v1569 = vunpack.c.l.b16 %v1549
  %v1570 = vunpack.c.l.b16 %v1550
  %v1571 = vunpack.c.l.b16 %v1551
  %v1572 = vunpack.c.l.b16 %v1552
  %v1573 = vpack.c.b16 %v1570, %v1569
  %v1574 = vpack.c.b16 %v1572, %v1571
  %v1578 = vsel %vm635, 0, 0
  %1580 = vmatprep.subr.bf16.mxu0 0
  %1581 = vmatpush1.bf16.msra.mxu0 %v1573
  %1582 = vmatprep.subr.bf16.mxu0 0
  %1583 = vmatpush1.bf16.msra.mxu0 %v1574
  %1584 = vmatprep.subr.bf16.mxu0 0
  %1585 = vmatpush1.bf16.msra.mxu0 0
  %1586 = vmatprep.subr.bf16.mxu0 0
  %1587 = vmatpush1.bf16.msra.mxu0 0
  %1588 = vmatprep.subr.bf16.mxu0 0
  %1589 = vmatpush1.bf16.msra.mxu0 0
  %1590 = vmatprep.subr.bf16.mxu0 0
  %1591 = vmatpush1.bf16.msra.mxu0 0
  %1592 = vmatprep.subr.bf16.mxu0 0
  %1593 = vmatpush1.bf16.msra.mxu0 0
  %1594 = vmatprep.subr.bf16.mxu0 0
  %1595 = vmatpush1.bf16.msra.mxu0 0
  %1596 = vmatprep.subr.bf16.mxu0 0
  %1597 = vmatpush1.bf16.msra.mxu0 0
  %1598 = vmatprep.subr.bf16.mxu0 0
  %1599 = vmatpush1.bf16.msra.mxu0 0
  %1600 = vmatprep.subr.bf16.mxu0 0
  %1601 = vmatpush1.bf16.msra.mxu0 0
  %1602 = vmatprep.subr.bf16.mxu0 0
  %1603 = vmatpush1.bf16.msra.mxu0 0
  %1604 = vmatprep.subr.bf16.mxu0 0
  %1605 = vmatpush1.bf16.msra.mxu0 0
  %1606 = vmatprep.subr.bf16.mxu0 0
  %1607 = vmatpush1.bf16.msra.mxu0 0
  %1608 = vmatprep.subr.bf16.mxu0 0
  %1609 = vmatpush1.bf16.msra.mxu0 0
  %1610 = vmatprep.subr.bf16.mxu0 0
  %1611 = vmatpush1.bf16.msra.mxu0 0
  %1612 = vmatprep.mubr.bf16.mxu0 0
  %1613 = vmatmul.mubr.bf16.gmra.mrb[0].mxu0 %v1578
  %v1614 = vpop.f32.mrb[0].mxu0
  %v1615 = vadd.f32 0.0, %v1614
  %v1616 = vpop.f32.mrb[0].mxu0
  %v1617 = vpop.f32.mrb[0].mxu0
  %v1618 = vpop.f32.mrb[0].mxu0
  %1619 = vdwg.mxu0
  %v1624 = vunpack.c.l.b16 %v1553
  %v1625 = vunpack.c.l.b16 %v1554
  %v1626 = vunpack.c.l.b16 %v1555
  %v1627 = vunpack.c.l.b16 %v1556
  %v1628 = vpack.c.b16 %v1625, %v1624
  %v1629 = vpack.c.b16 %v1627, %v1626
  %1632 = vmatprep.subr.bf16.mxu0 0
  %1633 = vmatpush1.bf16.msra.mxu0 %v1628
  %1634 = vmatprep.subr.bf16.mxu0 0
  %1635 = vmatpush1.bf16.msra.mxu0 %v1629
  %1636 = vmatprep.subr.bf16.mxu0 0
  %1637 = vmatpush1.bf16.msra.mxu0 0
  %1638 = vmatprep.subr.bf16.mxu0 0
  %1639 = vmatpush1.bf16.msra.mxu0 0
  %1640 = vmatprep.subr.bf16.mxu0 0
  %1641 = vmatpush1.bf16.msra.mxu0 0
  %1642 = vmatprep.subr.bf16.mxu0 0
  %1643 = vmatpush1.bf16.msra.mxu0 0
  %1644 = vmatprep.subr.bf16.mxu0 0
  %1645 = vmatpush1.bf16.msra.mxu0 0
  %1646 = vmatprep.subr.bf16.mxu0 0
  %1647 = vmatpush1.bf16.msra.mxu0 0
  %1648 = vmatprep.subr.bf16.mxu0 0
  %1649 = vmatpush1.bf16.msra.mxu0 0
  %1650 = vmatprep.subr.bf16.mxu0 0
  %1651 = vmatpush1.bf16.msra.mxu0 0
  %1652 = vmatprep.subr.bf16.mxu0 0
  %1653 = vmatpush1.bf16.msra.mxu0 0
  %1654 = vmatprep.subr.bf16.mxu0 0
  %1655 = vmatpush1.bf16.msra.mxu0 0
  %1656 = vmatprep.subr.bf16.mxu0 0
  %1657 = vmatpush1.bf16.msra.mxu0 0
  %1658 = vmatprep.subr.bf16.mxu0 0
  %1659 = vmatpush1.bf16.msra.mxu0 0
  %1660 = vmatprep.subr.bf16.mxu0 0
  %1661 = vmatpush1.bf16.msra.mxu0 0
  %1662 = vmatprep.subr.bf16.mxu0 0
  %1663 = vmatpush1.bf16.msra.mxu0 0
  %1664 = vmatprep.mubr.bf16.mxu0 0
  %1665 = vmatmul.mubr.bf16.gmra.mrb[0].mxu0 %v1578
  %v1666 = vpop.f32.mrb[0].mxu0
  %v1667 = vadd.f32 0.0, %v1666
  %v1668 = vpop.f32.mrb[0].mxu0
  %v1669 = vpop.f32.mrb[0].mxu0
  %v1670 = vpop.f32.mrb[0].mxu0
  %1671 = vdwg.mxu0
  %v1672 = vadd.f32 %v1560, %v1615
  %v1673 = vxor.u32 %v1672, 2147483648
  %v1674 = vmul.f32 %v1673, 1.442695
  %v1675 = vpow.pop %v1674
  %v1676 = vadd.f32 %v1675, 1.0
  %v1677 = vrcp.pop %v1676
  %v1678 = vmul.f32 1.0, %v1677
  %1680 = vrot.lane.b32.xlu0 %v1667, 96
  %v1681 = vpop.permute.xlu0 %1680
  %v1683 = vadd.f32 %v1563, %v1681
  %v1684 = vadd.f32 %v1564, %v1681
  %v1685 = vxor.u32 %v1683, 2147483648
  %v1686 = vxor.u32 %v1684, 2147483648
  %v1687 = vmul.f32 %v1685, 1.442695
  %v1688 = vpow.pop %v1687
  %v1689 = vmul.f32 %v1686, 1.442695
  %v1690 = vpow.pop %v1689
  %v1691 = vadd.f32 %v1688, 1.0
  %v1692 = vadd.f32 %v1690, 1.0
  %v1693 = vrcp.pop %v1691
  %v1694 = vmul.f32 1.0, %v1693
  %v1695 = vrcp.pop %v1692
  %v1696 = vmul.f32 1.0, %v1695
  %v1698 = vlaneseq
  %v1699 = vshrl.u32 %v1698, 7
  %v1700 = vsub.s32 0, %v1699
  %v1701 = vrot.slane %v1557, %v1700
  %1702 = vrot.lane.b32.xlu0 %v1701, 64
  %v1703 = vpop.permute.xlu0 %1702
  %v1705 = vadd.f32 %v1615, %v1703
  %1707 = vrot.lane.b32.xlu0 %v1705, 64
  %v1708 = vpop.permute.xlu0 %1707
  %v1710 = vmul.f32 %v1678, %v1708
  %1712 = vrot.lane.b32.xlu0 %v1710, 64
  %v1713 = vpop.permute.xlu0 %1712
  %v1715 = vadd.f32 %v1560, %v1713
  %v1716 = vtanh.pop %v1715
  %v1718 = vlaneseq
  %v1719 = vshrl.u32 %v1718, 7
  %v1720 = vsub.s32 0, %v1719
  %v1721 = vrot.slane %v1558, %v1720
  %1722 = vrot.lane.b32.xlu0 %v1721, 64
  %v1723 = vpop.permute.xlu0 %1722
  %v1725 = vadd.f32 %v1667, %v1723
  %1727 = vrot.lane.b32.xlu0 %v1725, 32
  %v1728 = vpop.permute.xlu0 %1727
  %v1730 = vmul.f32 %v1694, %v1728
  %1732 = vrot.lane.b32.xlu0 %v1730, 64
  %v1733 = vpop.permute.xlu0 %1732
  %v1735 = vadd.f32 %v1564, %v1733
  %v1736 = vtanh.pop %v1735
  %v1737 = vsub.f32 1.0, %v1678
  %1739 = vrot.lane.b32.xlu0 %v1716, 96
  %v1740 = vpop.permute.xlu0 %1739
  %v1742 = vmul.f32 %v1737, %v1740
  %v1743 = vmul.f32 %v1678, 0.0
  %v1744 = vadd.f32 %v1742, %v1743
  %v1745 = vsub.f32 1.0, %v1696
  %1747 = vrot.lane.b32.xlu0 %v1736, 96
  %v1748 = vpop.permute.xlu0 %1747
  %v1750 = vmul.f32 %v1745, %v1748
  %v1751 = vmul.f32 %v1696, 0.0
  %v1752 = vadd.f32 %v1750, %v1751
  %1754 = vrot.lane.b32.xlu0 %v1744, 96
  %v1755 = vpop.permute.xlu0 %1754
  %1757 = vst.msk [vmem:[#allocation5] sm:$0xff] %vm635, %v1755
  %1759 = vrot.lane.b32.xlu0 %v1752, 32
  %v1760 = vpop.permute.xlu0 %1759
  %s1762 = scalar_lea.vmem [#allocation5], 120
  %vm1763 = vcmask 523520
  %1764 = vst.msk [vmem:[%s1762] sm:$0xff] %vm1763, %v1760
  %s1765 = scalar_lea.vmem [#allocation4], 8
  %v1766 = vld [vmem:[%s1765] sm:$0xff]
  %v1767 = vunpack.c.l.bf16 %v1766
  %s1768 = scalar_lea.vmem [#allocation4], 112
  %v1769 = vld [vmem:[%s1768] sm:$0xff]
  %v1770 = vunpack.c.l.bf16 %v1769
  %v1771 = vunpack.c.h.bf16 %v1769
  %v1772 = vpack.c.bf16 %v1744, %v1744
  %1774 = vrot.lane.b32.xlu0 %v1772, 96
  %v1775 = vpop.permute.xlu0 %1774
  %v1777 = vsel %vm635, %v1775, 0
  %1779 = vmatprep.subr.bf16.mxu0 0
  %1780 = vmatpush1.bf16.msra.mxu0 %v1573
  %1781 = vmatprep.subr.bf16.mxu0 0
  %1782 = vmatpush1.bf16.msra.mxu0 %v1574
  %1783 = vmatprep.subr.bf16.mxu0 0
  %1784 = vmatpush1.bf16.msra.mxu0 0
  %1785 = vmatprep.subr.bf16.mxu0 0
  %1786 = vmatpush1.bf16.msra.mxu0 0
  %1787 = vmatprep.subr.bf16.mxu0 0
  %1788 = vmatpush1.bf16.msra.mxu0 0
  %1789 = vmatprep.subr.bf16.mxu0 0
  %1790 = vmatpush1.bf16.msra.mxu0 0
  %1791 = vmatprep.subr.bf16.mxu0 0
  %1792 = vmatpush1.bf16.msra.mxu0 0
  %1793 = vmatprep.subr.bf16.mxu0 0
  %1794 = vmatpush1.bf16.msra.mxu0 0
  %1795 = vmatprep.subr.bf16.mxu0 0
  %1796 = vmatpush1.bf16.msra.mxu0 0
  %1797 = vmatprep.subr.bf16.mxu0 0
  %1798 = vmatpush1.bf16.msra.mxu0 0
  %1799 = vmatprep.subr.bf16.mxu0 0
  %1800 = vmatpush1.bf16.msra.mxu0 0
  %1801 = vmatprep.subr.bf16.mxu0 0
  %1802 = vmatpush1.bf16.msra.mxu0 0
  %1803 = vmatprep.subr.bf16.mxu0 0
  %1804 = vmatpush1.bf16.msra.mxu0 0
  %1805 = vmatprep.subr.bf16.mxu0 0
  %1806 = vmatpush1.bf16.msra.mxu0 0
  %1807 = vmatprep.subr.bf16.mxu0 0
  %1808 = vmatpush1.bf16.msra.mxu0 0
  %1809 = vmatprep.subr.bf16.mxu0 0
  %1810 = vmatpush1.bf16.msra.mxu0 0
  %1811 = vmatprep.mubr.bf16.mxu0 0
  %1812 = vmatmul.mubr.bf16.gmra.mrb[0].mxu0 %v1777
  %v1813 = vpop.f32.mrb[0].mxu0
  %v1814 = vadd.f32 0.0, %v1813
  %v1815 = vpop.f32.mrb[0].mxu0
  %v1816 = vpop.f32.mrb[0].mxu0
  %v1817 = vpop.f32.mrb[0].mxu0
  %1818 = vdwg.mxu0
  %v1819 = vpack.c.bf16 %v1752, %v1752
  %v1821 = vsel %vm635, %v1819, 0
  %1823 = vmatprep.subr.bf16.mxu0 0
  %1824 = vmatpush1.bf16.msra.mxu0 %v1628
  %1825 = vmatprep.subr.bf16.mxu0 0
  %1826 = vmatpush1.bf16.msra.mxu0 %v1629
  %1827 = vmatprep.subr.bf16.mxu0 0
  %1828 = vmatpush1.bf16.msra.mxu0 0
  %1829 = vmatprep.subr.bf16.mxu0 0
  %1830 = vmatpush1.bf16.msra.mxu0 0
  %1831 = vmatprep.subr.bf16.mxu0 0
  %1832 = vmatpush1.bf16.msra.mxu0 0
  %1833 = vmatprep.subr.bf16.mxu0 0
  %1834 = vmatpush1.bf16.msra.mxu0 0
  %1835 = vmatprep.subr.bf16.mxu0 0
  %1836 = vmatpush1.bf16.msra.mxu0 0
  %1837 = vmatprep.subr.bf16.mxu0 0
  %1838 = vmatpush1.bf16.msra.mxu0 0
  %1839 = vmatprep.subr.bf16.mxu0 0
  %1840 = vmatpush1.bf16.msra.mxu0 0
  %1841 = vmatprep.subr.bf16.mxu0 0
  %1842 = vmatpush1.bf16.msra.mxu0 0
  %1843 = vmatprep.subr.bf16.mxu0 0
  %1844 = vmatpush1.bf16.msra.mxu0 0
  %1845 = vmatprep.subr.bf16.mxu0 0
  %1846 = vmatpush1.bf16.msra.mxu0 0
  %1847 = vmatprep.subr.bf16.mxu0 0
  %1848 = vmatpush1.bf16.msra.mxu0 0
  %1849 = vmatprep.subr.bf16.mxu0 0
  %1850 = vmatpush1.bf16.msra.mxu0 0
  %1851 = vmatprep.subr.bf16.mxu0 0
  %1852 = vmatpush1.bf16.msra.mxu0 0
  %1853 = vmatprep.subr.bf16.mxu0 0
  %1854 = vmatpush1.bf16.msra.mxu0 0
  %1855 = vmatprep.mubr.bf16.mxu0 0
  %1856 = vmatmul.mubr.bf16.gmra.mrb[0].mxu0 %v1821
  %v1857 = vpop.f32.mrb[0].mxu0
  %v1858 = vadd.f32 0.0, %v1857
  %v1859 = vpop.f32.mrb[0].mxu0
  %v1860 = vpop.f32.mrb[0].mxu0
  %v1861 = vpop.f32.mrb[0].mxu0
  %1862 = vdwg.mxu0
  %v1863 = vadd.f32 %v1767, %v1814
  %v1864 = vxor.u32 %v1863, 2147483648
  %v1865 = vmul.f32 %v1864, 1.442695
  %v1866 = vpow.pop %v1865
  %v1867 = vadd.f32 %v1866, 1.0
  %v1868 = vrcp.pop %v1867
  %v1869 = vmul.f32 1.0, %v1868
  %1871 = vrot.lane.b32.xlu0 %v1858, 96
  %v1872 = vpop.permute.xlu0 %1871
  %v1874 = vadd.f32 %v1770, %v1872
  %v1875 = vadd.f32 %v1771, %v1872
  %v1876 = vxor.u32 %v1874, 2147483648
  %v1877 = vxor.u32 %v1875, 2147483648
  %v1878 = vmul.f32 %v1876, 1.442695
  %v1879 = vpow.pop %v1878
  %v1880 = vmul.f32 %v1877, 1.442695
  %v1881 = vpow.pop %v1880
  %v1882 = vadd.f32 %v1879, 1.0
  %v1883 = vadd.f32 %v1881, 1.0
  %v1884 = vrcp.pop %v1882
  %v1885 = vmul.f32 1.0, %v1884
  %v1886 = vrcp.pop %v1883
  %v1887 = vmul.f32 1.0, %v1886
  %v1888 = vadd.f32 %v1814, %v1703
  %1890 = vrot.lane.b32.xlu0 %v1888, 64
  %v1891 = vpop.permute.xlu0 %1890
  %v1893 = vmul.f32 %v1869, %v1891
  %1895 = vrot.lane.b32.xlu0 %v1893, 64
  %v1896 = vpop.permute.xlu0 %1895
  %v1898 = vadd.f32 %v1767, %v1896
  %v1899 = vtanh.pop %v1898
  %v1900 = vadd.f32 %v1858, %v1723
  %1902 = vrot.lane.b32.xlu0 %v1900, 32
  %v1903 = vpop.permute.xlu0 %1902
  %v1905 = vmul.f32 %v1885, %v1903
  %1907 = vrot.lane.b32.xlu0 %v1905, 64
  %v1908 = vpop.permute.xlu0 %1907
  %v1910 = vadd.f32 %v1771, %v1908
  %v1911 = vtanh.pop %v1910
  %v1912 = vsub.f32 1.0, %v1869
  %1914 = vrot.lane.b32.xlu0 %v1899, 96
  %v1915 = vpop.permute.xlu0 %1914
  %v1917 = vmul.f32 %v1912, %v1915
  %v1918 = vmul.f32 %v1869, %v1744
  %v1919 = vadd.f32 %v1917, %v1918
  %v1920 = vsub.f32 1.0, %v1887
  %1922 = vrot.lane.b32.xlu0 %v1911, 96
  %v1923 = vpop.permute.xlu0 %1922
  %v1925 = vmul.f32 %v1920, %v1923
  %v1926 = vmul.f32 %v1887, %v1752
  %v1927 = vadd.f32 %v1925, %v1926
  %1929 = vrot.lane.b32.xlu0 %v1919, 96
  %v1930 = vpop.permute.xlu0 %1929
  %s1932 = scalar_lea.vmem [#allocation5], 8
  %1933 = vst.msk [vmem:[%s1932] sm:$0xff] %vm635, %v1930
  %1935 = vrot.lane.b32.xlu0 %v1927, 32
  %v1936 = vpop.permute.xlu0 %1935
  %s1938 = scalar_lea.vmem [#allocation5], 112
  %1939 = vst.msk [vmem:[%s1938] sm:$0xff] %vm1763, %v1936
  %s1940 = scalar_lea.vmem [#allocation4], 16
  %v1941 = vld [vmem:[%s1940] sm:$0xff]
  %v1942 = vunpack.c.l.bf16 %v1941
  %s1943 = scalar_lea.vmem [#allocation4], 104
  %v1944 = vld [vmem:[%s1943] sm:$0xff]
  %v1945 = vunpack.c.l.bf16 %v1944
  %v1946 = vunpack.c.h.bf16 %v1944
  %v1947 = vpack.c.bf16 %v1919, %v1919
  %1949 = vrot.lane.b32.xlu0 %v1947, 96
  %v1950 = vpop.permute.xlu0 %1949
  %v1952 = vsel %vm635, %v1950, 0
  %1954 = vmatprep.subr.bf16.mxu0 0
  %1955 = vmatpush1.bf16.msra.mxu0 %v1573
  %1956 = vmatprep.subr.bf16.mxu0 0
  %1957 = vmatpush1.bf16.msra.mxu0 %v1574
  %1958 = vmatprep.subr.bf16.mxu0 0
  %1959 = vmatpush1.bf16.msra.mxu0 0
  %1960 = vmatprep.subr.bf16.mxu0 0
  %1961 = vmatpush1.bf16.msra.mxu0 0
  %1962 = vmatprep.subr.bf16.mxu0 0
  %1963 = vmatpush1.bf16.msra.mxu0 0
  %1964 = vmatprep.subr.bf16.mxu0 0
  %1965 = vmatpush1.bf16.msra.mxu0 0
  %1966 = vmatprep.subr.bf16.mxu0 0
  %1967 = vmatpush1.bf16.msra.mxu0 0
  %1968 = vmatprep.subr.bf16.mxu0 0
  %1969 = vmatpush1.bf16.msra.mxu0 0
  %1970 = vmatprep.subr.bf16.mxu0 0
  %1971 = vmatpush1.bf16.msra.mxu0 0
  %1972 = vmatprep.subr.bf16.mxu0 0
  %1973 = vmatpush1.bf16.msra.mxu0 0
  %1974 = vmatprep.subr.bf16.mxu0 0
  %1975 = vmatpush1.bf16.msra.mxu0 0
  %1976 = vmatprep.subr.bf16.mxu0 0
  %1977 = vmatpush1.bf16.msra.mxu0 0
  %1978 = vmatprep.subr.bf16.mxu0 0
  %1979 = vmatpush1.bf16.msra.mxu0 0
  %1980 = vmatprep.subr.bf16.mxu0 0
  %1981 = vmatpush1.bf16.msra.mxu0 0
  %1982 = vmatprep.subr.bf16.mxu0 0
  %1983 = vmatpush1.bf16.msra.mxu0 0
  %1984 = vmatprep.subr.bf16.mxu0 0
  %1985 = vmatpush1.bf16.msra.mxu0 0
  %1986 = vmatprep.mubr.bf16.mxu0 0
  %1987 = vmatmul.mubr.bf16.gmra.mrb[0].mxu0 %v1952
  %v1988 = vpop.f32.mrb[0].mxu0
  %v1989 = vadd.f32 0.0, %v1988
  %v1990 = vpop.f32.mrb[0].mxu0
  %v1991 = vpop.f32.mrb[0].mxu0
  %v1992 = vpop.f32.mrb[0].mxu0
  %1993 = vdwg.mxu0
  %v1994 = vpack.c.bf16 %v1927, %v1927
  %v1996 = vsel %vm635, %v1994, 0
  %1998 = vmatprep.subr.bf16.mxu0 0
  %1999 = vmatpush1.bf16.msra.mxu0 %v1628
  %2000 = vmatprep.subr.bf16.mxu0 0
  %2001 = vmatpush1.bf16.msra.mxu0 %v1629
  %2002 = vmatprep.subr.bf16.mxu0 0
  %2003 = vmatpush1.bf16.msra.mxu0 0
  %2004 = vmatprep.subr.bf16.mxu0 0
  %2005 = vmatpush1.bf16.msra.mxu0 0
  %2006 = vmatprep.subr.bf16.mxu0 0
  %2007 = vmatpush1.bf16.msra.mxu0 0
  %2008 = vmatprep.subr.bf16.mxu0 0
  %2009 = vmatpush1.bf16.msra.mxu0 0
  %2010 = vmatprep.subr.bf16.mxu0 0
  %2011 = vmatpush1.bf16.msra.mxu0 0
  %2012 = vmatprep.subr.bf16.mxu0 0
  %2013 = vmatpush1.bf16.msra.mxu0 0
  %2014 = vmatprep.subr.bf16.mxu0 0
  %2015 = vmatpush1.bf16.msra.mxu0 0
  %2016 = vmatprep.subr.bf16.mxu0 0
  %2017 = vmatpush1.bf16.msra.mxu0 0
  %2018 = vmatprep.subr.bf16.mxu0 0
  %2019 = vmatpush1.bf16.msra.mxu0 0
  %2020 = vmatprep.subr.bf16.mxu0 0
  %2021 = vmatpush1.bf16.msra.mxu0 0
  %2022 = vmatprep.subr.bf16.mxu0 0
  %2023 = vmatpush1.bf16.msra.mxu0 0
  %2024 = vmatprep.subr.bf16.mxu0 0
  %2025 = vmatpush1.bf16.msra.mxu0 0
  %2026 = vmatprep.subr.bf16.mxu0 0
  %2027 = vmatpush1.bf16.msra.mxu0 0
  %2028 = vmatprep.subr.bf16.mxu0 0
  %2029 = vmatpush1.bf16.msra.mxu0 0
  %2030 = vmatprep.mubr.bf16.mxu0 0
  %2031 = vmatmul.mubr.bf16.gmra.mrb[0].mxu0 %v1996
  %v2032 = vpop.f32.mrb[0].mxu0
  %v2033 = vadd.f32 0.0, %v2032
  %v2034 = vpop.f32.mrb[0].mxu0
  %v2035 = vpop.f32.mrb[0].mxu0
  %v2036 = vpop.f32.mrb[0].mxu0
  %2037 = vdwg.mxu0
  %v2038 = vadd.f32 %v1942, %v1989
  %v2039 = vxor.u32 %v2038, 2147483648
  %v2040 = vmul.f32 %v2039, 1.442695
  %v2041 = vpow.pop %v2040
  %v2042 = vadd.f32 %v2041, 1.0
  %v2043 = vrcp.pop %v2042
  %v2044 = vmul.f32 1.0, %v2043
  %2046 = vrot.lane.b32.xlu0 %v2033, 96
  %v2047 = vpop.permute.xlu0 %2046
  %v2049 = vadd.f32 %v1945, %v2047
  %v2050 = vadd.f32 %v1946, %v2047
  %v2051 = vxor.u32 %v2049, 2147483648
  %v2052 = vxor.u32 %v2050, 2147483648
  %v2053 = vmul.f32 %v2051, 1.442695
  %v2054 = vpow.pop %v2053
  %v2055 = vmul.f32 %v2052, 1.442695
  %v2056 = vpow.pop %v2055
  %v2057 = vadd.f32 %v2054, 1.0
  %v2058 = vadd.f32 %v2056, 1.0
  %v2059 = vrcp.pop %v2057
  %v2060 = vmul.f32 1.0, %v2059
  %v2061 = vrcp.pop %v2058
  %v2062 = vmul.f32 1.0, %v2061
  %v2063 = vadd.f32 %v1989, %v1703
  %2065 = vrot.lane.b32.xlu0 %v2063, 64
  %v2066 = vpop.permute.xlu0 %2065
  %v2068 = vmul.f32 %v2044, %v2066
  %2070 = vrot.lane.b32.xlu0 %v2068, 64
  %v2071 = vpop.permute.xlu0 %2070
  %v2073 = vadd.f32 %v1942, %v2071
  %v2074 = vtanh.pop %v2073
  %v2075 = vadd.f32 %v2033, %v1723
  %2077 = vrot.lane.b32.xlu0 %v2075, 32
  %v2078 = vpop.permute.xlu0 %2077
  %v2080 = vmul.f32 %v2060, %v2078
  %2082 = vrot.lane.b32.xlu0 %v2080, 64
  %v2083 = vpop.permute.xlu0 %2082
  %v2085 = vadd.f32 %v1946, %v2083
  %v2086 = vtanh.pop %v2085
  %v2087 = vsub.f32 1.0, %v2044
  %2089 = vrot.lane.b32.xlu0 %v2074, 96
  %v2090 = vpop.permute.xlu0 %2089
  %v2092 = vmul.f32 %v2087, %v2090
  %v2093 = vmul.f32 %v2044, %v1919
  %v2094 = vadd.f32 %v2092, %v2093
  %v2095 = vsub.f32 1.0, %v2062
  %2097 = vrot.lane.b32.xlu0 %v2086, 96
  %v2098 = vpop.permute.xlu0 %2097
  %v2100 = vmul.f32 %v2095, %v2098
  %v2101 = vmul.f32 %v2062, %v1927
  %v2102 = vadd.f32 %v2100, %v2101
  %2104 = vrot.lane.b32.xlu0 %v2094, 96
  %v2105 = vpop.permute.xlu0 %2104
  %s2107 = scalar_lea.vmem [#allocation5], 16
  %2108 = vst.msk [vmem:[%s2107] sm:$0xff] %vm635, %v2105
  %2110 = vrot.lane.b32.xlu0 %v2102, 32
  %v2111 = vpop.permute.xlu0 %2110
  %s2113 = scalar_lea.vmem [#allocation5], 104
  %2114 = vst.msk [vmem:[%s2113] sm:$0xff] %vm1763, %v2111
  %s2115 = scalar_lea.vmem [#allocation4], 24
  %v2116 = vld [vmem:[%s2115] sm:$0xff]
  %v2117 = vunpack.c.l.bf16 %v2116
  %s2118 = scalar_lea.vmem [#allocation4], 96
  %v2119 = vld [vmem:[%s2118] sm:$0xff]
  %v2120 = vunpack.c.l.bf16 %v2119
  %v2121 = vunpack.c.h.bf16 %v2119
  %v2122 = vpack.c.bf16 %v2094, %v2094
  %2124 = vrot.lane.b32.xlu0 %v2122, 96
  %v2125 = vpop.permute.xlu0 %2124
  %v2127 = vsel %vm635, %v2125, 0
  %2129 = vmatprep.subr.bf16.mxu0 0
  %2130 = vmatpush1.bf16.msra.mxu0 %v1573
  %2131 = vmatprep.subr.bf16.mxu0 0
  %2132 = vmatpush1.bf16.msra.mxu0 %v1574
  %2133 = vmatprep.subr.bf16.mxu0 0
  %2134 = vmatpush1.bf16.msra.mxu0 0
  %2135 = vmatprep.subr.bf16.mxu0 0
  %2136 = vmatpush1.bf16.msra.mxu0 0
  %2137 = vmatprep.subr.bf16.mxu0 0
  %2138 = vmatpush1.bf16.msra.mxu0 0
  %2139 = vmatprep.subr.bf16.mxu0 0
  %2140 = vmatpush1.bf16.msra.mxu0 0
  %2141 = vmatprep.subr.bf16.mxu0 0
  %2142 = vmatpush1.bf16.msra.mxu0 0
  %2143 = vmatprep.subr.bf16.mxu0 0
  %2144 = vmatpush1.bf16.msra.mxu0 0
  %2145 = vmatprep.subr.bf16.mxu0 0
  %2146 = vmatpush1.bf16.msra.mxu0 0
  %2147 = vmatprep.subr.bf16.mxu0 0
  %2148 = vmatpush1.bf16.msra.mxu0 0
  %2149 = vmatprep.subr.bf16.mxu0 0
  %2150 = vmatpush1.bf16.msra.mxu0 0
  %2151 = vmatprep.subr.bf16.mxu0 0
  %2152 = vmatpush1.bf16.msra.mxu0 0
  %2153 = vmatprep.subr.bf16.mxu0 0
  %2154 = vmatpush1.bf16.msra.mxu0 0
  %2155 = vmatprep.subr.bf16.mxu0 0
  %2156 = vmatpush1.bf16.msra.mxu0 0
  %2157 = vmatprep.subr.bf16.mxu0 0
  %2158 = vmatpush1.bf16.msra.mxu0 0
  %2159 = vmatprep.subr.bf16.mxu0 0
  %2160 = vmatpush1.bf16.msra.mxu0 0
  %2161 = vmatprep.mubr.bf16.mxu0 0
  %2162 = vmatmul.mubr.bf16.gmra.mrb[0].mxu0 %v2127
  %v2163 = vpop.f32.mrb[0].mxu0
  %v2164 = vadd.f32 0.0, %v2163
  %v2165 = vpop.f32.mrb[0].mxu0
  %v2166 = vpop.f32.mrb[0].mxu0
  %v2167 = vpop.f32.mrb[0].mxu0
  %2168 = vdwg.mxu0
  %v2169 = vpack.c.bf16 %v2102, %v2102
  %v2171 = vsel %vm635, %v2169, 0
  %2173 = vmatprep.subr.bf16.mxu0 0
  %2174 = vmatpush1.bf16.msra.mxu0 %v1628
  %2175 = vmatprep.subr.bf16.mxu0 0
  %2176 = vmatpush1.bf16.msra.mxu0 %v1629
  %2177 = vmatprep.subr.bf16.mxu0 0
  %2178 = vmatpush1.bf16.msra.mxu0 0
  %2179 = vmatprep.subr.bf16.mxu0 0
  %2180 = vmatpush1.bf16.msra.mxu0 0
  %2181 = vmatprep.subr.bf16.mxu0 0
  %2182 = vmatpush1.bf16.msra.mxu0 0
  %2183 = vmatprep.subr.bf16.mxu0 0
  %2184 = vmatpush1.bf16.msra.mxu0 0
  %2185 = vmatprep.subr.bf16.mxu0 0
  %2186 = vmatpush1.bf16.msra.mxu0 0
  %2187 = vmatprep.subr.bf16.mxu0 0
  %2188 = vmatpush1.bf16.msra.mxu0 0
  %2189 = vmatprep.subr.bf16.mxu0 0
  %2190 = vmatpush1.bf16.msra.mxu0 0
  %2191 = vmatprep.subr.bf16.mxu0 0
  %2192 = vmatpush1.bf16.msra.mxu0 0
  %2193 = vmatprep.subr.bf16.mxu0 0
  %2194 = vmatpush1.bf16.msra.mxu0 0
  %2195 = vmatprep.subr.bf16.mxu0 0
  %2196 = vmatpush1.bf16.msra.mxu0 0
  %2197 = vmatprep.subr.bf16.mxu0 0
  %2198 = vmatpush1.bf16.msra.mxu0 0
  %2199 = vmatprep.subr.bf16.mxu0 0
  %2200 = vmatpush1.bf16.msra.mxu0 0
  %2201 = vmatprep.subr.bf16.mxu0 0
  %2202 = vmatpush1.bf16.msra.mxu0 0
  %2203 = vmatprep.subr.bf16.mxu0 0
  %2204 = vmatpush1.bf16.msra.mxu0 0
  %2205 = vmatprep.mubr.bf16.mxu0 0
  %2206 = vmatmul.mubr.bf16.gmra.mrb[0].mxu0 %v2171
  %v2207 = vpop.f32.mrb[0].mxu0
  %v2208 = vadd.f32 0.0, %v2207
  %v2209 = vpop.f32.mrb[0].mxu0
  %v2210 = vpop.f32.mrb[0].mxu0
  %v2211 = vpop.f32.mrb[0].mxu0
  %2212 = vdwg.mxu0
  %v2213 = vadd.f32 %v2117, %v2164
  %v2214 = vxor.u32 %v2213, 2147483648
  %v2215 = vmul.f32 %v2214, 1.442695
  %v2216 = vpow.pop %v2215
  %v2217 = vadd.f32 %v2216, 1.0
  %v2218 = vrcp.pop %v2217
  %v2219 = vmul.f32 1.0, %v2218
  %2221 = vrot.lane.b32.xlu0 %v2208, 96
  %v2222 = vpop.permute.xlu0 %2221
  %v2224 = vadd.f32 %v2120, %v2222
  %v2225 = vadd.f32 %v2121, %v2222
  %v2226 = vxor.u32 %v2224, 2147483648
  %v2227 = vxor.u32 %v2225, 2147483648
  %v2228 = vmul.f32 %v2226, 1.442695
  %v2229 = vpow.pop %v2228
  %v2230 = vmul.f32 %v2227, 1.442695
  %v2231 = vpow.pop %v2230
  %v2232 = vadd.f32 %v2229, 1.0
  %v2233 = vadd.f32 %v2231, 1.0
  %v2234 = vrcp.pop %v2232
  %v2235 = vmul.f32 1.0, %v2234
  %v2236 = vrcp.pop %v2233
  %v2237 = vmul.f32 1.0, %v2236
  %v2238 = vadd.f32 %v2164, %v1703
  %2240 = vrot.lane.b32.xlu0 %v2238, 64
  %v2241 = vpop.permute.xlu0 %2240
  %v2243 = vmul.f32 %v2219, %v2241
  %2245 = vrot.lane.b32.xlu0 %v2243, 64
  %v2246 = vpop.permute.xlu0 %2245
  %v2248 = vadd.f32 %v2117, %v2246
  %v2249 = vtanh.pop %v2248
  %v2250 = vadd.f32 %v2208, %v1723
  %2252 = vrot.lane.b32.xlu0 %v2250, 32
  %v2253 = vpop.permute.xlu0 %2252
  %v2255 = vmul.f32 %v2235, %v2253
  %2257 = vrot.lane.b32.xlu0 %v2255, 64
  %v2258 = vpop.permute.xlu0 %2257
  %v2260 = vadd.f32 %v2121, %v2258
  %v2261 = vtanh.pop %v2260
  %v2262 = vsub.f32 1.0, %v2219
  %2264 = vrot.lane.b32.xlu0 %v2249, 96
  %v2265 = vpop.permute.xlu0 %2264
  %v2267 = vmul.f32 %v2262, %v2265
  %v2268 = vmul.f32 %v2219, %v2094
  %v2269 = vadd.f32 %v2267, %v2268
  %v2270 = vsub.f32 1.0, %v2237
  %2272 = vrot.lane.b32.xlu0 %v2261, 96
  %v2273 = vpop.permute.xlu0 %2272
  %v2275 = vmul.f32 %v2270, %v2273
  %v2276 = vmul.f32 %v2237, %v2102
  %v2277 = vadd.f32 %v2275, %v2276
  %2279 = vrot.lane.b32.xlu0 %v2269, 96
  %v2280 = vpop.permute.xlu0 %2279
  %s2282 = scalar_lea.vmem [#allocation5], 24
  %2283 = vst.msk [vmem:[%s2282] sm:$0xff] %vm635, %v2280
  %2285 = vrot.lane.b32.xlu0 %v2277, 32
  %v2286 = vpop.permute.xlu0 %2285
  %s2288 = scalar_lea.vmem [#allocation5], 96
  %2289 = vst.msk [vmem:[%s2288] sm:$0xff] %vm1763, %v2286
  %s2290 = scalar_lea.vmem [#allocation4], 32
  %v2291 = vld [vmem:[%s2290] sm:$0xff]
  %v2292 = vunpack.c.l.bf16 %v2291
  %s2293 = scalar_lea.vmem [#allocation4], 88
  %v2294 = vld [vmem:[%s2293] sm:$0xff]
  %v2295 = vunpack.c.l.bf16 %v2294
  %v2296 = vunpack.c.h.bf16 %v2294
  %v2297 = vpack.c.bf16 %v2269, %v2269
  %2299 = vrot.lane.b32.xlu0 %v2297, 96
  %v2300 = vpop.permute.xlu0 %2299
  %v2302 = vsel %vm635, %v2300, 0
  %2304 = vmatprep.subr.bf16.mxu0 0
  %2305 = vmatpush1.bf16.msra.mxu0 %v1573
  %2306 = vmatprep.subr.bf16.mxu0 0
  %2307 = vmatpush1.bf16.msra.mxu0 %v1574
  %2308 = vmatprep.subr.bf16.mxu0 0
  %2309 = vmatpush1.bf16.msra.mxu0 0
  %2310 = vmatprep.subr.bf16.mxu0 0
  %2311 = vmatpush1.bf16.msra.mxu0 0
  %2312 = vmatprep.subr.bf16.mxu0 0
  %2313 = vmatpush1.bf16.msra.mxu0 0
  %2314 = vmatprep.subr.bf16.mxu0 0
  %2315 = vmatpush1.bf16.msra.mxu0 0
  %2316 = vmatprep.subr.bf16.mxu0 0
  %2317 = vmatpush1.bf16.msra.mxu0 0
  %2318 = vmatprep.subr.bf16.mxu0 0
  %2319 = vmatpush1.bf16.msra.mxu0 0
  %2320 = vmatprep.subr.bf16.mxu0 0
  %2321 = vmatpush1.bf16.msra.mxu0 0
  %2322 = vmatprep.subr.bf16.mxu0 0
  %2323 = vmatpush1.bf16.msra.mxu0 0
  %2324 = vmatprep.subr.bf16.mxu0 0
  %2325 = vmatpush1.bf16.msra.mxu0 0
  %2326 = vmatprep.subr.bf16.mxu0 0
  %2327 = vmatpush1.bf16.msra.mxu0 0
  %2328 = vmatprep.subr.bf16.mxu0 0
  %2329 = vmatpush1.bf16.msra.mxu0 0
  %2330 = vmatprep.subr.bf16.mxu0 0
  %2331 = vmatpush1.bf16.msra.mxu0 0
  %2332 = vmatprep.subr.bf16.mxu0 0
  %2333 = vmatpush1.bf16.msra.mxu0 0
  %2334 = vmatprep.subr.bf16.mxu0 0
  %2335 = vmatpush1.bf16.msra.mxu0 0
  %2336 = vmatprep.mubr.bf16.mxu0 0
  %2337 = vmatmul.mubr.bf16.gmra.mrb[0].mxu0 %v2302
  %v2338 = vpop.f32.mrb[0].mxu0
  %v2339 = vadd.f32 0.0, %v2338
  %v2340 = vpop.f32.mrb[0].mxu0
  %v2341 = vpop.f32.mrb[0].mxu0
  %v2342 = vpop.f32.mrb[0].mxu0
  %2343 = vdwg.mxu0
  %v2344 = vpack.c.bf16 %v2277, %v2277
  %v2346 = vsel %vm635, %v2344, 0
  %2348 = vmatprep.subr.bf16.mxu0 0
  %2349 = vmatpush1.bf16.msra.mxu0 %v1628
  %2350 = vmatprep.subr.bf16.mxu0 0
  %2351 = vmatpush1.bf16.msra.mxu0 %v1629
  %2352 = vmatprep.subr.bf16.mxu0 0
  %2353 = vmatpush1.bf16.msra.mxu0 0
  %2354 = vmatprep.subr.bf16.mxu0 0
  %2355 = vmatpush1.bf16.msra.mxu0 0
  %2356 = vmatprep.subr.bf16.mxu0 0
  %2357 = vmatpush1.bf16.msra.mxu0 0
  %2358 = vmatprep.subr.bf16.mxu0 0
  %2359 = vmatpush1.bf16.msra.mxu0 0
  %2360 = vmatprep.subr.bf16.mxu0 0
  %2361 = vmatpush1.bf16.msra.mxu0 0
  %2362 = vmatprep.subr.bf16.mxu0 0
  %2363 = vmatpush1.bf16.msra.mxu0 0
  %2364 = vmatprep.subr.bf16.mxu0 0
  %2365 = vmatpush1.bf16.msra.mxu0 0
  %2366 = vmatprep.subr.bf16.mxu0 0
  %2367 = vmatpush1.bf16.msra.mxu0 0
  %2368 = vmatprep.subr.bf16.mxu0 0
  %2369 = vmatpush1.bf16.msra.mxu0 0
  %2370 = vmatprep.subr.bf16.mxu0 0
  %2371 = vmatpush1.bf16.msra.mxu0 0
  %2372 = vmatprep.subr.bf16.mxu0 0
  %2373 = vmatpush1.bf16.msra.mxu0 0
  %2374 = vmatprep.subr.bf16.mxu0 0
  %2375 = vmatpush1.bf16.msra.mxu0 0
  %2376 = vmatprep.subr.bf16.mxu0 0
  %2377 = vmatpush1.bf16.msra.mxu0 0
  %2378 = vmatprep.subr.bf16.mxu0 0
  %2379 = vmatpush1.bf16.msra.mxu0 0
  %2380 = vmatprep.mubr.bf16.mxu0 0
  %2381 = vmatmul.mubr.bf16.gmra.mrb[0].mxu0 %v2346
  %v2382 = vpop.f32.mrb[0].mxu0
  %v2383 = vadd.f32 0.0, %v2382
  %v2384 = vpop.f32.mrb[0].mxu0
  %v2385 = vpop.f32.mrb[0].mxu0
  %v2386 = vpop.f32.mrb[0].mxu0
  %2387 = vdwg.mxu0
  %v2388 = vadd.f32 %v2292, %v2339
  %v2389 = vxor.u32 %v2388, 2147483648
  %v2390 = vmul.f32 %v2389, 1.442695
  %v2391 = vpow.pop %v2390
  %v2392 = vadd.f32 %v2391, 1.0
  %v2393 = vrcp.pop %v2392
  %v2394 = vmul.f32 1.0, %v2393
  %2396 = vrot.lane.b32.xlu0 %v2383, 96
  %v2397 = vpop.permute.xlu0 %2396
  %v2399 = vadd.f32 %v2295, %v2397
  %v2400 = vadd.f32 %v2296, %v2397
  %v2401 = vxor.u32 %v2399, 2147483648
  %v2402 = vxor.u32 %v2400, 2147483648
  %v2403 = vmul.f32 %v2401, 1.442695
  %v2404 = vpow.pop %v2403
  %v2405 = vmul.f32 %v2402, 1.442695
  %v2406 = vpow.pop %v2405
  %v2407 = vadd.f32 %v2404, 1.0
  %v2408 = vadd.f32 %v2406, 1.0
  %v2409 = vrcp.pop %v2407
  %v2410 = vmul.f32 1.0, %v2409
  %v2411 = vrcp.pop %v2408
  %v2412 = vmul.f32 1.0, %v2411
  %v2413 = vadd.f32 %v2339, %v1703
  %2415 = vrot.lane.b32.xlu0 %v2413, 64
  %v2416 = vpop.permute.xlu0 %2415
  %v2418 = vmul.f32 %v2394, %v2416
  %2420 = vrot.lane.b32.xlu0 %v2418, 64
  %v2421 = vpop.permute.xlu0 %2420
  %v2423 = vadd.f32 %v2292, %v2421
  %v2424 = vtanh.pop %v2423
  %v2425 = vadd.f32 %v2383, %v1723
  %2427 = vrot.lane.b32.xlu0 %v2425, 32
  %v2428 = vpop.permute.xlu0 %2427
  %v2430 = vmul.f32 %v2410, %v2428
  %2432 = vrot.lane.b32.xlu0 %v2430, 64
  %v2433 = vpop.permute.xlu0 %2432
  %v2435 = vadd.f32 %v2296, %v2433
  %v2436 = vtanh.pop %v2435
  %v2437 = vsub.f32 1.0, %v2394
  %2439 = vrot.lane.b32.xlu0 %v2424, 96
  %v2440 = vpop.permute.xlu0 %2439
  %v2442 = vmul.f32 %v2437, %v2440
  %v2443 = vmul.f32 %v2394, %v2269
  %v2444 = vadd.f32 %v2442, %v2443
  %v2445 = vsub.f32 1.0, %v2412
  %2447 = vrot.lane.b32.xlu0 %v2436, 96
  %v2448 = vpop.permute.xlu0 %2447
  %v2450 = vmul.f32 %v2445, %v2448
  %v2451 = vmul.f32 %v2412, %v2277
  %v2452 = vadd.f32 %v2450, %v2451
  %2454 = vrot.lane.b32.xlu0 %v2444, 96
  %v2455 = vpop.permute.xlu0 %2454
  %s2457 = scalar_lea.vmem [#allocation5], 32
  %2458 = vst.msk [vmem:[%s2457] sm:$0xff] %vm635, %v2455
  %2460 = vrot.lane.b32.xlu0 %v2452, 32
  %v2461 = vpop.permute.xlu0 %2460
  %s2463 = scalar_lea.vmem [#allocation5], 88
  %2464 = vst.msk [vmem:[%s2463] sm:$0xff] %vm1763, %v2461
  %s2465 = scalar_lea.vmem [#allocation4], 40
  %v2466 = vld [vmem:[%s2465] sm:$0xff]
  %v2467 = vunpack.c.l.bf16 %v2466
  %s2468 = scalar_lea.vmem [#allocation4], 80
  %v2469 = vld [vmem:[%s2468] sm:$0xff]
  %v2470 = vunpack.c.l.bf16 %v2469
  %v2471 = vunpack.c.h.bf16 %v2469
  %v2472 = vpack.c.bf16 %v2444, %v2444
  %2474 = vrot.lane.b32.xlu0 %v2472, 96
  %v2475 = vpop.permute.xlu0 %2474
  %v2477 = vsel %vm635, %v2475, 0
  %2479 = vmatprep.subr.bf16.mxu0 0
  %2480 = vmatpush1.bf16.msra.mxu0 %v1573
  %2481 = vmatprep.subr.bf16.mxu0 0
  %2482 = vmatpush1.bf16.msra.mxu0 %v1574
  %2483 = vmatprep.subr.bf16.mxu0 0
  %2484 = vmatpush1.bf16.msra.mxu0 0
  %2485 = vmatprep.subr.bf16.mxu0 0
  %2486 = vmatpush1.bf16.msra.mxu0 0
  %2487 = vmatprep.subr.bf16.mxu0 0
  %2488 = vmatpush1.bf16.msra.mxu0 0
  %2489 = vmatprep.subr.bf16.mxu0 0
  %2490 = vmatpush1.bf16.msra.mxu0 0
  %2491 = vmatprep.subr.bf16.mxu0 0
  %2492 = vmatpush1.bf16.msra.mxu0 0
  %2493 = vmatprep.subr.bf16.mxu0 0
  %2494 = vmatpush1.bf16.msra.mxu0 0
  %2495 = vmatprep.subr.bf16.mxu0 0
  %2496 = vmatpush1.bf16.msra.mxu0 0
  %2497 = vmatprep.subr.bf16.mxu0 0
  %2498 = vmatpush1.bf16.msra.mxu0 0
  %2499 = vmatprep.subr.bf16.mxu0 0
  %2500 = vmatpush1.bf16.msra.mxu0 0
  %2501 = vmatprep.subr.bf16.mxu0 0
  %2502 = vmatpush1.bf16.msra.mxu0 0
  %2503 = vmatprep.subr.bf16.mxu0 0
  %2504 = vmatpush1.bf16.msra.mxu0 0
  %2505 = vmatprep.subr.bf16.mxu0 0
  %2506 = vmatpush1.bf16.msra.mxu0 0
  %2507 = vmatprep.subr.bf16.mxu0 0
  %2508 = vmatpush1.bf16.msra.mxu0 0
  %2509 = vmatprep.subr.bf16.mxu0 0
  %2510 = vmatpush1.bf16.msra.mxu0 0
  %2511 = vmatprep.mubr.bf16.mxu0 0
  %2512 = vmatmul.mubr.bf16.gmra.mrb[0].mxu0 %v2477
  %v2513 = vpop.f32.mrb[0].mxu0
  %v2514 = vadd.f32 0.0, %v2513
  %v2515 = vpop.f32.mrb[0].mxu0
  %v2516 = vpop.f32.mrb[0].mxu0
  %v2517 = vpop.f32.mrb[0].mxu0
  %2518 = vdwg.mxu0
  %v2519 = vpack.c.bf16 %v2452, %v2452
  %v2521 = vsel %vm635, %v2519, 0
  %2523 = vmatprep.subr.bf16.mxu0 0
  %2524 = vmatpush1.bf16.msra.mxu0 %v1628
  %2525 = vmatprep.subr.bf16.mxu0 0
  %2526 = vmatpush1.bf16.msra.mxu0 %v1629
  %2527 = vmatprep.subr.bf16.mxu0 0
  %2528 = vmatpush1.bf16.msra.mxu0 0
  %2529 = vmatprep.subr.bf16.mxu0 0
  %2530 = vmatpush1.bf16.msra.mxu0 0
  %2531 = vmatprep.subr.bf16.mxu0 0
  %2532 = vmatpush1.bf16.msra.mxu0 0
  %2533 = vmatprep.subr.bf16.mxu0 0
  %2534 = vmatpush1.bf16.msra.mxu0 0
  %2535 = vmatprep.subr.bf16.mxu0 0
  %2536 = vmatpush1.bf16.msra.mxu0 0
  %2537 = vmatprep.subr.bf16.mxu0 0
  %2538 = vmatpush1.bf16.msra.mxu0 0
  %2539 = vmatprep.subr.bf16.mxu0 0
  %2540 = vmatpush1.bf16.msra.mxu0 0
  %2541 = vmatprep.subr.bf16.mxu0 0
  %2542 = vmatpush1.bf16.msra.mxu0 0
  %2543 = vmatprep.subr.bf16.mxu0 0
  %2544 = vmatpush1.bf16.msra.mxu0 0
  %2545 = vmatprep.subr.bf16.mxu0 0
  %2546 = vmatpush1.bf16.msra.mxu0 0
  %2547 = vmatprep.subr.bf16.mxu0 0
  %2548 = vmatpush1.bf16.msra.mxu0 0
  %2549 = vmatprep.subr.bf16.mxu0 0
  %2550 = vmatpush1.bf16.msra.mxu0 0
  %2551 = vmatprep.subr.bf16.mxu0 0
  %2552 = vmatpush1.bf16.msra.mxu0 0
  %2553 = vmatprep.subr.bf16.mxu0 0
  %2554 = vmatpush1.bf16.msra.mxu0 0
  %2555 = vmatprep.mubr.bf16.mxu0 0
  %2556 = vmatmul.mubr.bf16.gmra.mrb[0].mxu0 %v2521
  %v2557 = vpop.f32.mrb[0].mxu0
  %v2558 = vadd.f32 0.0, %v2557
  %v2559 = vpop.f32.mrb[0].mxu0
  %v2560 = vpop.f32.mrb[0].mxu0
  %v2561 = vpop.f32.mrb[0].mxu0
  %2562 = vdwg.mxu0
  %v2563 = vadd.f32 %v2467, %v2514
  %v2564 = vxor.u32 %v2563, 2147483648
  %v2565 = vmul.f32 %v2564, 1.442695
  %v2566 = vpow.pop %v2565
  %v2567 = vadd.f32 %v2566, 1.0
  %v2568 = vrcp.pop %v2567
  %v2569 = vmul.f32 1.0, %v2568
  %2571 = vrot.lane.b32.xlu0 %v2558, 96
  %v2572 = vpop.permute.xlu0 %2571
  %v2574 = vadd.f32 %v2470, %v2572
  %v2575 = vadd.f32 %v2471, %v2572
  %v2576 = vxor.u32 %v2574, 2147483648
  %v2577 = vxor.u32 %v2575, 2147483648
  %v2578 = vmul.f32 %v2576, 1.442695
  %v2579 = vpow.pop %v2578
  %v2580 = vmul.f32 %v2577, 1.442695
  %v2581 = vpow.pop %v2580
  %v2582 = vadd.f32 %v2579, 1.0
  %v2583 = vadd.f32 %v2581, 1.0
  %v2584 = vrcp.pop %v2582
  %v2585 = vmul.f32 1.0, %v2584
  %v2586 = vrcp.pop %v2583
  %v2587 = vmul.f32 1.0, %v2586
  %v2588 = vadd.f32 %v2514, %v1703
  %2590 = vrot.lane.b32.xlu0 %v2588, 64
  %v2591 = vpop.permute.xlu0 %2590
  %v2593 = vmul.f32 %v2569, %v2591
  %2595 = vrot.lane.b32.xlu0 %v2593, 64
  %v2596 = vpop.permute.xlu0 %2595
  %v2598 = vadd.f32 %v2467, %v2596
  %v2599 = vtanh.pop %v2598
  %v2600 = vadd.f32 %v2558, %v1723
  %2602 = vrot.lane.b32.xlu0 %v2600, 32
  %v2603 = vpop.permute.xlu0 %2602
  %v2605 = vmul.f32 %v2585, %v2603
  %2607 = vrot.lane.b32.xlu0 %v2605, 64
  %v2608 = vpop.permute.xlu0 %2607
  %v2610 = vadd.f32 %v2471, %v2608
  %v2611 = vtanh.pop %v2610
  %v2612 = vsub.f32 1.0, %v2569
  %2614 = vrot.lane.b32.xlu0 %v2599, 96
  %v2615 = vpop.permute.xlu0 %2614
  %v2617 = vmul.f32 %v2612, %v2615
  %v2618 = vmul.f32 %v2569, %v2444
  %v2619 = vadd.f32 %v2617, %v2618
  %v2620 = vsub.f32 1.0, %v2587
  %2622 = vrot.lane.b32.xlu0 %v2611, 96
  %v2623 = vpop.permute.xlu0 %2622
  %v2625 = vmul.f32 %v2620, %v2623
  %v2626 = vmul.f32 %v2587, %v2452
  %v2627 = vadd.f32 %v2625, %v2626
  %2629 = vrot.lane.b32.xlu0 %v2619, 96
  %v2630 = vpop.permute.xlu0 %2629
  %s2632 = scalar_lea.vmem [#allocation5], 40
  %2633 = vst.msk [vmem:[%s2632] sm:$0xff] %vm635, %v2630
  %2635 = vrot.lane.b32.xlu0 %v2627, 32
  %v2636 = vpop.permute.xlu0 %2635
  %s2638 = scalar_lea.vmem [#allocation5], 80
  %2639 = vst.msk [vmem:[%s2638] sm:$0xff] %vm1763, %v2636
  %s2640 = scalar_lea.vmem [#allocation4], 48
  %v2641 = vld [vmem:[%s2640] sm:$0xff]
  %v2642 = vunpack.c.l.bf16 %v2641
  %s2643 = scalar_lea.vmem [#allocation4], 72
  %v2644 = vld [vmem:[%s2643] sm:$0xff]
  %v2645 = vunpack.c.l.bf16 %v2644
  %v2646 = vunpack.c.h.bf16 %v2644
  %v2647 = vpack.c.bf16 %v2619, %v2619
  %2649 = vrot.lane.b32.xlu0 %v2647, 96
  %v2650 = vpop.permute.xlu0 %2649
  %v2652 = vsel %vm635, %v2650, 0
  %2654 = vmatprep.subr.bf16.mxu0 0
  %2655 = vmatpush1.bf16.msra.mxu0 %v1573
  %2656 = vmatprep.subr.bf16.mxu0 0
  %2657 = vmatpush1.bf16.msra.mxu0 %v1574
  %2658 = vmatprep.subr.bf16.mxu0 0
  %2659 = vmatpush1.bf16.msra.mxu0 0
  %2660 = vmatprep.subr.bf16.mxu0 0
  %2661 = vmatpush1.bf16.msra.mxu0 0
  %2662 = vmatprep.subr.bf16.mxu0 0
  %2663 = vmatpush1.bf16.msra.mxu0 0
  %2664 = vmatprep.subr.bf16.mxu0 0
  %2665 = vmatpush1.bf16.msra.mxu0 0
  %2666 = vmatprep.subr.bf16.mxu0 0
  %2667 = vmatpush1.bf16.msra.mxu0 0
  %2668 = vmatprep.subr.bf16.mxu0 0
  %2669 = vmatpush1.bf16.msra.mxu0 0
  %2670 = vmatprep.subr.bf16.mxu0 0
  %2671 = vmatpush1.bf16.msra.mxu0 0
  %2672 = vmatprep.subr.bf16.mxu0 0
  %2673 = vmatpush1.bf16.msra.mxu0 0
  %2674 = vmatprep.subr.bf16.mxu0 0
  %2675 = vmatpush1.bf16.msra.mxu0 0
  %2676 = vmatprep.subr.bf16.mxu0 0
  %2677 = vmatpush1.bf16.msra.mxu0 0
  %2678 = vmatprep.subr.bf16.mxu0 0
  %2679 = vmatpush1.bf16.msra.mxu0 0
  %2680 = vmatprep.subr.bf16.mxu0 0
  %2681 = vmatpush1.bf16.msra.mxu0 0
  %2682 = vmatprep.subr.bf16.mxu0 0
  %2683 = vmatpush1.bf16.msra.mxu0 0
  %2684 = vmatprep.subr.bf16.mxu0 0
  %2685 = vmatpush1.bf16.msra.mxu0 0
  %2686 = vmatprep.mubr.bf16.mxu0 0
  %2687 = vmatmul.mubr.bf16.gmra.mrb[0].mxu0 %v2652
  %v2688 = vpop.f32.mrb[0].mxu0
  %v2689 = vadd.f32 0.0, %v2688
  %v2690 = vpop.f32.mrb[0].mxu0
  %v2691 = vpop.f32.mrb[0].mxu0
  %v2692 = vpop.f32.mrb[0].mxu0
  %2693 = vdwg.mxu0
  %v2694 = vpack.c.bf16 %v2627, %v2627
  %v2696 = vsel %vm635, %v2694, 0
  %2698 = vmatprep.subr.bf16.mxu0 0
  %2699 = vmatpush1.bf16.msra.mxu0 %v1628
  %2700 = vmatprep.subr.bf16.mxu0 0
  %2701 = vmatpush1.bf16.msra.mxu0 %v1629
  %2702 = vmatprep.subr.bf16.mxu0 0
  %2703 = vmatpush1.bf16.msra.mxu0 0
  %2704 = vmatprep.subr.bf16.mxu0 0
  %2705 = vmatpush1.bf16.msra.mxu0 0
  %2706 = vmatprep.subr.bf16.mxu0 0
  %2707 = vmatpush1.bf16.msra.mxu0 0
  %2708 = vmatprep.subr.bf16.mxu0 0
  %2709 = vmatpush1.bf16.msra.mxu0 0
  %2710 = vmatprep.subr.bf16.mxu0 0
  %2711 = vmatpush1.bf16.msra.mxu0 0
  %2712 = vmatprep.subr.bf16.mxu0 0
  %2713 = vmatpush1.bf16.msra.mxu0 0
  %2714 = vmatprep.subr.bf16.mxu0 0
  %2715 = vmatpush1.bf16.msra.mxu0 0
  %2716 = vmatprep.subr.bf16.mxu0 0
  %2717 = vmatpush1.bf16.msra.mxu0 0
  %2718 = vmatprep.subr.bf16.mxu0 0
  %2719 = vmatpush1.bf16.msra.mxu0 0
  %2720 = vmatprep.subr.bf16.mxu0 0
  %2721 = vmatpush1.bf16.msra.mxu0 0
  %2722 = vmatprep.subr.bf16.mxu0 0
  %2723 = vmatpush1.bf16.msra.mxu0 0
  %2724 = vmatprep.subr.bf16.mxu0 0
  %2725 = vmatpush1.bf16.msra.mxu0 0
  %2726 = vmatprep.subr.bf16.mxu0 0
  %2727 = vmatpush1.bf16.msra.mxu0 0
  %2728 = vmatprep.subr.bf16.mxu0 0
  %2729 = vmatpush1.bf16.msra.mxu0 0
  %2730 = vmatprep.mubr.bf16.mxu0 0
  %2731 = vmatmul.mubr.bf16.gmra.mrb[0].mxu0 %v2696
  %v2732 = vpop.f32.mrb[0].mxu0
  %v2733 = vadd.f32 0.0, %v2732
  %v2734 = vpop.f32.mrb[0].mxu0
  %v2735 = vpop.f32.mrb[0].mxu0
  %v2736 = vpop.f32.mrb[0].mxu0
  %2737 = vdwg.mxu0
  %v2738 = vadd.f32 %v2642, %v2689
  %v2739 = vxor.u32 %v2738, 2147483648
  %v2740 = vmul.f32 %v2739, 1.442695
  %v2741 = vpow.pop %v2740
  %v2742 = vadd.f32 %v2741, 1.0
  %v2743 = vrcp.pop %v2742
  %v2744 = vmul.f32 1.0, %v2743
  %2746 = vrot.lane.b32.xlu0 %v2733, 96
  %v2747 = vpop.permute.xlu0 %2746
  %v2749 = vadd.f32 %v2645, %v2747
  %v2750 = vadd.f32 %v2646, %v2747
  %v2751 = vxor.u32 %v2749, 2147483648
  %v2752 = vxor.u32 %v2750, 2147483648
  %v2753 = vmul.f32 %v2751, 1.442695
  %v2754 = vpow.pop %v2753
  %v2755 = vmul.f32 %v2752, 1.442695
  %v2756 = vpow.pop %v2755
  %v2757 = vadd.f32 %v2754, 1.0
  %v2758 = vadd.f32 %v2756, 1.0
  %v2759 = vrcp.pop %v2757
  %v2760 = vmul.f32 1.0, %v2759
  %v2761 = vrcp.pop %v2758
  %v2762 = vmul.f32 1.0, %v2761
  %v2763 = vadd.f32 %v2689, %v1703
  %2765 = vrot.lane.b32.xlu0 %v2763, 64
  %v2766 = vpop.permute.xlu0 %2765
  %v2768 = vmul.f32 %v2744, %v2766
  %2770 = vrot.lane.b32.xlu0 %v2768, 64
  %v2771 = vpop.permute.xlu0 %2770
  %v2773 = vadd.f32 %v2642, %v2771
  %v2774 = vtanh.pop %v2773
  %v2775 = vadd.f32 %v2733, %v1723
  %2777 = vrot.lane.b32.xlu0 %v2775, 32
  %v2778 = vpop.permute.xlu0 %2777
  %v2780 = vmul.f32 %v2760, %v2778
  %2782 = vrot.lane.b32.xlu0 %v2780, 64
  %v2783 = vpop.permute.xlu0 %2782
  %v2785 = vadd.f32 %v2646, %v2783
  %v2786 = vtanh.pop %v2785
  %v2787 = vsub.f32 1.0, %v2744
  %2789 = vrot.lane.b32.xlu0 %v2774, 96
  %v2790 = vpop.permute.xlu0 %2789
  %v2792 = vmul.f32 %v2787, %v2790
  %v2793 = vmul.f32 %v2744, %v2619
  %v2794 = vadd.f32 %v2792, %v2793
  %v2795 = vsub.f32 1.0, %v2762
  %2797 = vrot.lane.b32.xlu0 %v2786, 96
  %v2798 = vpop.permute.xlu0 %2797
  %v2800 = vmul.f32 %v2795, %v2798
  %v2801 = vmul.f32 %v2762, %v2627
  %v2802 = vadd.f32 %v2800, %v2801
  %2804 = vrot.lane.b32.xlu0 %v2794, 96
  %v2805 = vpop.permute.xlu0 %2804
  %s2807 = scalar_lea.vmem [#allocation5], 48
  %2808 = vst.msk [vmem:[%s2807] sm:$0xff] %vm635, %v2805
  %2810 = vrot.lane.b32.xlu0 %v2802, 32
  %v2811 = vpop.permute.xlu0 %2810
  %s2813 = scalar_lea.vmem [#allocation5], 72
  %2814 = vst.msk [vmem:[%s2813] sm:$0xff] %vm1763, %v2811
  %s2815 = scalar_lea.vmem [#allocation4], 56
  %v2816 = vld [vmem:[%s2815] sm:$0xff]
  %v2817 = vunpack.c.l.bf16 %v2816
  %s2818 = scalar_lea.vmem [#allocation4], 64
  %v2819 = vld [vmem:[%s2818] sm:$0xff]
  %v2820 = vunpack.c.l.bf16 %v2819
  %v2821 = vunpack.c.h.bf16 %v2819
  %v2822 = vpack.c.bf16 %v2794, %v2794
  %2824 = vrot.lane.b32.xlu0 %v2822, 96
  %v2825 = vpop.permute.xlu0 %2824
  %v2827 = vsel %vm635, %v2825, 0
  %2829 = vmatprep.subr.bf16.mxu0 0
  %2830 = vmatpush1.bf16.msra.mxu0 %v1573
  %2831 = vmatprep.subr.bf16.mxu0 0
  %2832 = vmatpush1.bf16.msra.mxu0 %v1574
  %2833 = vmatprep.subr.bf16.mxu0 0
  %2834 = vmatpush1.bf16.msra.mxu0 0
  %2835 = vmatprep.subr.bf16.mxu0 0
  %2836 = vmatpush1.bf16.msra.mxu0 0
  %2837 = vmatprep.subr.bf16.mxu0 0
  %2838 = vmatpush1.bf16.msra.mxu0 0
  %2839 = vmatprep.subr.bf16.mxu0 0
  %2840 = vmatpush1.bf16.msra.mxu0 0
  %2841 = vmatprep.subr.bf16.mxu0 0
  %2842 = vmatpush1.bf16.msra.mxu0 0
  %2843 = vmatprep.subr.bf16.mxu0 0
  %2844 = vmatpush1.bf16.msra.mxu0 0
  %2845 = vmatprep.subr.bf16.mxu0 0
  %2846 = vmatpush1.bf16.msra.mxu0 0
  %2847 = vmatprep.subr.bf16.mxu0 0
  %2848 = vmatpush1.bf16.msra.mxu0 0
  %2849 = vmatprep.subr.bf16.mxu0 0
  %2850 = vmatpush1.bf16.msra.mxu0 0
  %2851 = vmatprep.subr.bf16.mxu0 0
  %2852 = vmatpush1.bf16.msra.mxu0 0
  %2853 = vmatprep.subr.bf16.mxu0 0
  %2854 = vmatpush1.bf16.msra.mxu0 0
  %2855 = vmatprep.subr.bf16.mxu0 0
  %2856 = vmatpush1.bf16.msra.mxu0 0
  %2857 = vmatprep.subr.bf16.mxu0 0
  %2858 = vmatpush1.bf16.msra.mxu0 0
  %2859 = vmatprep.subr.bf16.mxu0 0
  %2860 = vmatpush1.bf16.msra.mxu0 0
  %2861 = vmatprep.mubr.bf16.mxu0 0
  %2862 = vmatmul.mubr.bf16.gmra.mrb[0].mxu0 %v2827
  %v2863 = vpop.f32.mrb[0].mxu0
  %v2864 = vadd.f32 0.0, %v2863
  %v2865 = vpop.f32.mrb[0].mxu0
  %v2866 = vpop.f32.mrb[0].mxu0
  %v2867 = vpop.f32.mrb[0].mxu0
  %2868 = vdwg.mxu0
  %v2869 = vpack.c.bf16 %v2802, %v2802
  %v2871 = vsel %vm635, %v2869, 0
  %2873 = vmatprep.subr.bf16.mxu0 0
  %2874 = vmatpush1.bf16.msra.mxu0 %v1628
  %2875 = vmatprep.subr.bf16.mxu0 0
  %2876 = vmatpush1.bf16.msra.mxu0 %v1629
  %2877 = vmatprep.subr.bf16.mxu0 0
  %2878 = vmatpush1.bf16.msra.mxu0 0
  %2879 = vmatprep.subr.bf16.mxu0 0
  %2880 = vmatpush1.bf16.msra.mxu0 0
  %2881 = vmatprep.subr.bf16.mxu0 0
  %2882 = vmatpush1.bf16.msra.mxu0 0
  %2883 = vmatprep.subr.bf16.mxu0 0
  %2884 = vmatpush1.bf16.msra.mxu0 0
  %2885 = vmatprep.subr.bf16.mxu0 0
  %2886 = vmatpush1.bf16.msra.mxu0 0
  %2887 = vmatprep.subr.bf16.mxu0 0
  %2888 = vmatpush1.bf16.msra.mxu0 0
  %2889 = vmatprep.subr.bf16.mxu0 0
  %2890 = vmatpush1.bf16.msra.mxu0 0
  %2891 = vmatprep.subr.bf16.mxu0 0
  %2892 = vmatpush1.bf16.msra.mxu0 0
  %2893 = vmatprep.subr.bf16.mxu0 0
  %2894 = vmatpush1.bf16.msra.mxu0 0
  %2895 = vmatprep.subr.bf16.mxu0 0
  %2896 = vmatpush1.bf16.msra.mxu0 0
  %2897 = vmatprep.subr.bf16.mxu0 0
  %2898 = vmatpush1.bf16.msra.mxu0 0
  %2899 = vmatprep.subr.bf16.mxu0 0
  %2900 = vmatpush1.bf16.msra.mxu0 0
  %2901 = vmatprep.subr.bf16.mxu0 0
  %2902 = vmatpush1.bf16.msra.mxu0 0
  %2903 = vmatprep.subr.bf16.mxu0 0
  %2904 = vmatpush1.bf16.msra.mxu0 0
  %2905 = vmatprep.mubr.bf16.mxu0 0
  %2906 = vmatmul.mubr.bf16.gmra.mrb[0].mxu0 %v2871
  %v2907 = vpop.f32.mrb[0].mxu0
  %v2908 = vadd.f32 0.0, %v2907
  %v2909 = vpop.f32.mrb[0].mxu0
  %v2910 = vpop.f32.mrb[0].mxu0
  %v2911 = vpop.f32.mrb[0].mxu0
  %2912 = vdwg.mxu0
  %v2913 = vadd.f32 %v2817, %v2864
  %v2914 = vxor.u32 %v2913, 2147483648
  %v2915 = vmul.f32 %v2914, 1.442695
  %v2916 = vpow.pop %v2915
  %v2917 = vadd.f32 %v2916, 1.0
  %v2918 = vrcp.pop %v2917
  %v2919 = vmul.f32 1.0, %v2918
  %2921 = vrot.lane.b32.xlu0 %v2908, 96
  %v2922 = vpop.permute.xlu0 %2921
  %v2924 = vadd.f32 %v2820, %v2922
  %v2925 = vadd.f32 %v2821, %v2922
  %v2926 = vxor.u32 %v2924, 2147483648
  %v2927 = vxor.u32 %v2925, 2147483648
  %v2928 = vmul.f32 %v2926, 1.442695
  %v2929 = vpow.pop %v2928
  %v2930 = vmul.f32 %v2927, 1.442695
  %v2931 = vpow.pop %v2930
  %v2932 = vadd.f32 %v2929, 1.0
  %v2933 = vadd.f32 %v2931, 1.0
  %v2934 = vrcp.pop %v2932
  %v2935 = vmul.f32 1.0, %v2934
  %v2936 = vrcp.pop %v2933
  %v2937 = vmul.f32 1.0, %v2936
  %v2938 = vadd.f32 %v2864, %v1703
  %2940 = vrot.lane.b32.xlu0 %v2938, 64
  %v2941 = vpop.permute.xlu0 %2940
  %v2943 = vmul.f32 %v2919, %v2941
  %2945 = vrot.lane.b32.xlu0 %v2943, 64
  %v2946 = vpop.permute.xlu0 %2945
  %v2948 = vadd.f32 %v2817, %v2946
  %v2949 = vtanh.pop %v2948
  %v2950 = vadd.f32 %v2908, %v1723
  %2952 = vrot.lane.b32.xlu0 %v2950, 32
  %v2953 = vpop.permute.xlu0 %2952
  %v2955 = vmul.f32 %v2935, %v2953
  %2957 = vrot.lane.b32.xlu0 %v2955, 64
  %v2958 = vpop.permute.xlu0 %2957
  %v2960 = vadd.f32 %v2821, %v2958
  %v2961 = vtanh.pop %v2960
  %v2962 = vsub.f32 1.0, %v2919
  %2964 = vrot.lane.b32.xlu0 %v2949, 96
  %v2965 = vpop.permute.xlu0 %2964
  %v2967 = vmul.f32 %v2962, %v2965
  %v2968 = vmul.f32 %v2919, %v2794
  %v2969 = vadd.f32 %v2967, %v2968
  %v2970 = vsub.f32 1.0, %v2937
  %2972 = vrot.lane.b32.xlu0 %v2961, 96
  %v2973 = vpop.permute.xlu0 %2972
  %v2975 = vmul.f32 %v2970, %v2973
  %v2976 = vmul.f32 %v2937, %v2802
  %v2977 = vadd.f32 %v2975, %v2976
  %2979 = vrot.lane.b32.xlu0 %v2969, 96
  %v2980 = vpop.permute.xlu0 %2979
  %s2982 = scalar_lea.vmem [#allocation5], 56
  %2983 = vst.msk [vmem:[%s2982] sm:$0xff] %vm635, %v2980
  %2985 = vrot.lane.b32.xlu0 %v2977, 32
  %v2986 = vpop.permute.xlu0 %2985
  %s2988 = scalar_lea.vmem [#allocation5], 64
  %2989 = vst.msk [vmem:[%s2988] sm:$0xff] %vm1763, %v2986
  %v2990 = vld [vmem:[%s2818] sm:$0xff]
  %v2991 = vunpack.c.l.bf16 %v2990
  %v2992 = vld [vmem:[%s2815] sm:$0xff]
  %v2993 = vunpack.c.l.bf16 %v2992
  %v2994 = vunpack.c.h.bf16 %v2992
  %v2995 = vpack.c.bf16 %v2969, %v2969
  %2997 = vrot.lane.b32.xlu0 %v2995, 96
  %v2998 = vpop.permute.xlu0 %2997
  %v3000 = vsel %vm635, %v2998, 0
  %3002 = vmatprep.subr.bf16.mxu0 0
  %3003 = vmatpush1.bf16.msra.mxu0 %v1573
  %3004 = vmatprep.subr.bf16.mxu0 0
  %3005 = vmatpush1.bf16.msra.mxu0 %v1574
  %3006 = vmatprep.subr.bf16.mxu0 0
  %3007 = vmatpush1.bf16.msra.mxu0 0
  %3008 = vmatprep.subr.bf16.mxu0 0
  %3009 = vmatpush1.bf16.msra.mxu0 0
  %3010 = vmatprep.subr.bf16.mxu0 0
  %3011 = vmatpush1.bf16.msra.mxu0 0
  %3012 = vmatprep.subr.bf16.mxu0 0
  %3013 = vmatpush1.bf16.msra.mxu0 0
  %3014 = vmatprep.subr.bf16.mxu0 0
  %3015 = vmatpush1.bf16.msra.mxu0 0
  %3016 = vmatprep.subr.bf16.mxu0 0
  %3017 = vmatpush1.bf16.msra.mxu0 0
  %3018 = vmatprep.subr.bf16.mxu0 0
  %3019 = vmatpush1.bf16.msra.mxu0 0
  %3020 = vmatprep.subr.bf16.mxu0 0
  %3021 = vmatpush1.bf16.msra.mxu0 0
  %3022 = vmatprep.subr.bf16.mxu0 0
  %3023 = vmatpush1.bf16.msra.mxu0 0
  %3024 = vmatprep.subr.bf16.mxu0 0
  %3025 = vmatpush1.bf16.msra.mxu0 0
  %3026 = vmatprep.subr.bf16.mxu0 0
  %3027 = vmatpush1.bf16.msra.mxu0 0
  %3028 = vmatprep.subr.bf16.mxu0 0
  %3029 = vmatpush1.bf16.msra.mxu0 0
  %3030 = vmatprep.subr.bf16.mxu0 0
  %3031 = vmatpush1.bf16.msra.mxu0 0
  %3032 = vmatprep.subr.bf16.mxu0 0
  %3033 = vmatpush1.bf16.msra.mxu0 0
  %3034 = vmatprep.mubr.bf16.mxu0 0
  %3035 = vmatmul.mubr.bf16.gmra.mrb[0].mxu0 %v3000
  %v3036 = vpop.f32.mrb[0].mxu0
  %v3037 = vadd.f32 0.0, %v3036
  %v3038 = vpop.f32.mrb[0].mxu0
  %v3039 = vpop.f32.mrb[0].mxu0
  %v3040 = vpop.f32.mrb[0].mxu0
  %3041 = vdwg.mxu0
  %v3042 = vpack.c.bf16 %v2977, %v2977
  %v3044 = vsel %vm635, %v3042, 0
  %3046 = vmatprep.subr.bf16.mxu0 0
  %3047 = vmatpush1.bf16.msra.mxu0 %v1628
  %3048 = vmatprep.subr.bf16.mxu0 0
  %3049 = vmatpush1.bf16.msra.mxu0 %v1629
  %3050 = vmatprep.subr.bf16.mxu0 0
  %3051 = vmatpush1.bf16.msra.mxu0 0
  %3052 = vmatprep.subr.bf16.mxu0 0
  %3053 = vmatpush1.bf16.msra.mxu0 0
  %3054 = vmatprep.subr.bf16.mxu0 0
  %3055 = vmatpush1.bf16.msra.mxu0 0
  %3056 = vmatprep.subr.bf16.mxu0 0
  %3057 = vmatpush1.bf16.msra.mxu0 0
  %3058 = vmatprep.subr.bf16.mxu0 0
  %3059 = vmatpush1.bf16.msra.mxu0 0
  %3060 = vmatprep.subr.bf16.mxu0 0
  %3061 = vmatpush1.bf16.msra.mxu0 0
  %3062 = vmatprep.subr.bf16.mxu0 0
  %3063 = vmatpush1.bf16.msra.mxu0 0
  %3064 = vmatprep.subr.bf16.mxu0 0
  %3065 = vmatpush1.bf16.msra.mxu0 0
  %3066 = vmatprep.subr.bf16.mxu0 0
  %3067 = vmatpush1.bf16.msra.mxu0 0
  %3068 = vmatprep.subr.bf16.mxu0 0
  %3069 = vmatpush1.bf16.msra.mxu0 0
  %3070 = vmatprep.subr.bf16.mxu0 0
  %3071 = vmatpush1.bf16.msra.mxu0 0
  %3072 = vmatprep.subr.bf16.mxu0 0
  %3073 = vmatpush1.bf16.msra.mxu0 0
  %3074 = vmatprep.subr.bf16.mxu0 0
  %3075 = vmatpush1.bf16.msra.mxu0 0
  %3076 = vmatprep.subr.bf16.mxu0 0
  %3077 = vmatpush1.bf16.msra.mxu0 0
  %3078 = vmatprep.mubr.bf16.mxu0 0
  %3079 = vmatmul.mubr.bf16.gmra.mrb[0].mxu0 %v3044
  %v3080 = vpop.f32.mrb[0].mxu0
  %v3081 = vadd.f32 0.0, %v3080
  %v3082 = vpop.f32.mrb[0].mxu0
  %v3083 = vpop.f32.mrb[0].mxu0
  %v3084 = vpop.f32.mrb[0].mxu0
  %3085 = vdwg.mxu0
  %v3086 = vadd.f32 %v2991, %v3037
  %v3087 = vxor.u32 %v3086, 2147483648
  %v3088 = vmul.f32 %v3087, 1.442695
  %v3089 = vpow.pop %v3088
  %v3090 = vadd.f32 %v3089, 1.0
  %v3091 = vrcp.pop %v3090
  %v3092 = vmul.f32 1.0, %v3091
  %3094 = vrot.lane.b32.xlu0 %v3081, 96
  %v3095 = vpop.permute.xlu0 %3094
  %v3097 = vadd.f32 %v2993, %v3095
  %v3098 = vadd.f32 %v2994, %v3095
  %v3099 = vxor.u32 %v3097, 2147483648
  %v3100 = vxor.u32 %v3098, 2147483648
  %v3101 = vmul.f32 %v3099, 1.442695
  %v3102 = vpow.pop %v3101
  %v3103 = vmul.f32 %v3100, 1.442695
  %v3104 = vpow.pop %v3103
  %v3105 = vadd.f32 %v3102, 1.0
  %v3106 = vadd.f32 %v3104, 1.0
  %v3107 = vrcp.pop %v3105
  %v3108 = vmul.f32 1.0, %v3107
  %v3109 = vrcp.pop %v3106
  %v3110 = vmul.f32 1.0, %v3109
  %v3111 = vadd.f32 %v3037, %v1703
  %3113 = vrot.lane.b32.xlu0 %v3111, 64
  %v3114 = vpop.permute.xlu0 %3113
  %v3116 = vmul.f32 %v3092, %v3114
  %3118 = vrot.lane.b32.xlu0 %v3116, 64
  %v3119 = vpop.permute.xlu0 %3118
  %v3121 = vadd.f32 %v2991, %v3119
  %v3122 = vtanh.pop %v3121
  %v3123 = vadd.f32 %v3081, %v1723
  %3125 = vrot.lane.b32.xlu0 %v3123, 32
  %v3126 = vpop.permute.xlu0 %3125
  %v3128 = vmul.f32 %v3108, %v3126
  %3130 = vrot.lane.b32.xlu0 %v3128, 64
  %v3131 = vpop.permute.xlu0 %3130
  %v3133 = vadd.f32 %v2994, %v3131
  %v3134 = vtanh.pop %v3133
  %v3135 = vsub.f32 1.0, %v3092
  %3137 = vrot.lane.b32.xlu0 %v3122, 96
  %v3138 = vpop.permute.xlu0 %3137
  %v3140 = vmul.f32 %v3135, %v3138
  %v3141 = vmul.f32 %v3092, %v2969
  %v3142 = vadd.f32 %v3140, %v3141
  %v3143 = vsub.f32 1.0, %v3110
  %3145 = vrot.lane.b32.xlu0 %v3134, 96
  %v3146 = vpop.permute.xlu0 %3145
  %v3148 = vmul.f32 %v3143, %v3146
  %v3149 = vmul.f32 %v3110, %v2977
  %v3150 = vadd.f32 %v3148, %v3149
  %3152 = vrot.lane.b32.xlu0 %v3142, 96
  %v3153 = vpop.permute.xlu0 %3152
  %3155 = vst.msk [vmem:[%s2988] sm:$0xff] %vm635, %v3153
  %3157 = vrot.lane.b32.xlu0 %v3150, 32
  %v3158 = vpop.permute.xlu0 %3157
  %3160 = vst.msk [vmem:[%s2982] sm:$0xff] %vm1763, %v3158
  %v3161 = vld [vmem:[%s2643] sm:$0xff]
  %v3162 = vunpack.c.l.bf16 %v3161
  %v3163 = vld [vmem:[%s2640] sm:$0xff]
  %v3164 = vunpack.c.l.bf16 %v3163
  %v3165 = vunpack.c.h.bf16 %v3163
  %v3166 = vpack.c.bf16 %v3142, %v3142
  %3168 = vrot.lane.b32.xlu0 %v3166, 96
  %v3169 = vpop.permute.xlu0 %3168
  %v3171 = vsel %vm635, %v3169, 0
  %3173 = vmatprep.subr.bf16.mxu0 0
  %3174 = vmatpush1.bf16.msra.mxu0 %v1573
  %3175 = vmatprep.subr.bf16.mxu0 0
  %3176 = vmatpush1.bf16.msra.mxu0 %v1574
  %3177 = vmatprep.subr.bf16.mxu0 0
  %3178 = vmatpush1.bf16.msra.mxu0 0
  %3179 = vmatprep.subr.bf16.mxu0 0
  %3180 = vmatpush1.bf16.msra.mxu0 0
  %3181 = vmatprep.subr.bf16.mxu0 0
  %3182 = vmatpush1.bf16.msra.mxu0 0
  %3183 = vmatprep.subr.bf16.mxu0 0
  %3184 = vmatpush1.bf16.msra.mxu0 0
  %3185 = vmatprep.subr.bf16.mxu0 0
  %3186 = vmatpush1.bf16.msra.mxu0 0
  %3187 = vmatprep.subr.bf16.mxu0 0
  %3188 = vmatpush1.bf16.msra.mxu0 0
  %3189 = vmatprep.subr.bf16.mxu0 0
  %3190 = vmatpush1.bf16.msra.mxu0 0
  %3191 = vmatprep.subr.bf16.mxu0 0
  %3192 = vmatpush1.bf16.msra.mxu0 0
  %3193 = vmatprep.subr.bf16.mxu0 0
  %3194 = vmatpush1.bf16.msra.mxu0 0
  %3195 = vmatprep.subr.bf16.mxu0 0
  %3196 = vmatpush1.bf16.msra.mxu0 0
  %3197 = vmatprep.subr.bf16.mxu0 0
  %3198 = vmatpush1.bf16.msra.mxu0 0
  %3199 = vmatprep.subr.bf16.mxu0 0
  %3200 = vmatpush1.bf16.msra.mxu0 0
  %3201 = vmatprep.subr.bf16.mxu0 0
  %3202 = vmatpush1.bf16.msra.mxu0 0
  %3203 = vmatprep.subr.bf16.mxu0 0
  %3204 = vmatpush1.bf16.msra.mxu0 0
  %3205 = vmatprep.mubr.bf16.mxu0 0
  %3206 = vmatmul.mubr.bf16.gmra.mrb[0].mxu0 %v3171
  %v3207 = vpop.f32.mrb[0].mxu0
  %v3208 = vadd.f32 0.0, %v3207
  %v3209 = vpop.f32.mrb[0].mxu0
  %v3210 = vpop.f32.mrb[0].mxu0
  %v3211 = vpop.f32.mrb[0].mxu0
  %3212 = vdwg.mxu0
  %v3213 = vpack.c.bf16 %v3150, %v3150
  %v3215 = vsel %vm635, %v3213, 0
  %3217 = vmatprep.subr.bf16.mxu0 0
  %3218 = vmatpush1.bf16.msra.mxu0 %v1628
  %3219 = vmatprep.subr.bf16.mxu0 0
  %3220 = vmatpush1.bf16.msra.mxu0 %v1629
  %3221 = vmatprep.subr.bf16.mxu0 0
  %3222 = vmatpush1.bf16.msra.mxu0 0
  %3223 = vmatprep.subr.bf16.mxu0 0
  %3224 = vmatpush1.bf16.msra.mxu0 0
  %3225 = vmatprep.subr.bf16.mxu0 0
  %3226 = vmatpush1.bf16.msra.mxu0 0
  %3227 = vmatprep.subr.bf16.mxu0 0
  %3228 = vmatpush1.bf16.msra.mxu0 0
  %3229 = vmatprep.subr.bf16.mxu0 0
  %3230 = vmatpush1.bf16.msra.mxu0 0
  %3231 = vmatprep.subr.bf16.mxu0 0
  %3232 = vmatpush1.bf16.msra.mxu0 0
  %3233 = vmatprep.subr.bf16.mxu0 0
  %3234 = vmatpush1.bf16.msra.mxu0 0
  %3235 = vmatprep.subr.bf16.mxu0 0
  %3236 = vmatpush1.bf16.msra.mxu0 0
  %3237 = vmatprep.subr.bf16.mxu0 0
  %3238 = vmatpush1.bf16.msra.mxu0 0
  %3239 = vmatprep.subr.bf16.mxu0 0
  %3240 = vmatpush1.bf16.msra.mxu0 0
  %3241 = vmatprep.subr.bf16.mxu0 0
  %3242 = vmatpush1.bf16.msra.mxu0 0
  %3243 = vmatprep.subr.bf16.mxu0 0
  %3244 = vmatpush1.bf16.msra.mxu0 0
  %3245 = vmatprep.subr.bf16.mxu0 0
  %3246 = vmatpush1.bf16.msra.mxu0 0
  %3247 = vmatprep.subr.bf16.mxu0 0
  %3248 = vmatpush1.bf16.msra.mxu0 0
  %3249 = vmatprep.mubr.bf16.mxu0 0
  %3250 = vmatmul.mubr.bf16.gmra.mrb[0].mxu0 %v3215
  %v3251 = vpop.f32.mrb[0].mxu0
  %v3252 = vadd.f32 0.0, %v3251
  %v3253 = vpop.f32.mrb[0].mxu0
  %v3254 = vpop.f32.mrb[0].mxu0
  %v3255 = vpop.f32.mrb[0].mxu0
  %3256 = vdwg.mxu0
  %v3257 = vadd.f32 %v3162, %v3208
  %v3258 = vxor.u32 %v3257, 2147483648
  %v3259 = vmul.f32 %v3258, 1.442695
  %v3260 = vpow.pop %v3259
  %v3261 = vadd.f32 %v3260, 1.0
  %v3262 = vrcp.pop %v3261
  %v3263 = vmul.f32 1.0, %v3262
  %3265 = vrot.lane.b32.xlu0 %v3252, 96
  %v3266 = vpop.permute.xlu0 %3265
  %v3268 = vadd.f32 %v3164, %v3266
  %v3269 = vadd.f32 %v3165, %v3266
  %v3270 = vxor.u32 %v3268, 2147483648
  %v3271 = vxor.u32 %v3269, 2147483648
  %v3272 = vmul.f32 %v3270, 1.442695
  %v3273 = vpow.pop %v3272
  %v3274 = vmul.f32 %v3271, 1.442695
  %v3275 = vpow.pop %v3274
  %v3276 = vadd.f32 %v3273, 1.0
  %v3277 = vadd.f32 %v3275, 1.0
  %v3278 = vrcp.pop %v3276
  %v3279 = vmul.f32 1.0, %v3278
  %v3280 = vrcp.pop %v3277
  %v3281 = vmul.f32 1.0, %v3280
  %v3282 = vadd.f32 %v3208, %v1703
  %3284 = vrot.lane.b32.xlu0 %v3282, 64
  %v3285 = vpop.permute.xlu0 %3284
  %v3287 = vmul.f32 %v3263, %v3285
  %3289 = vrot.lane.b32.xlu0 %v3287, 64
  %v3290 = vpop.permute.xlu0 %3289
  %v3292 = vadd.f32 %v3162, %v3290
  %v3293 = vtanh.pop %v3292
  %v3294 = vadd.f32 %v3252, %v1723
  %3296 = vrot.lane.b32.xlu0 %v3294, 32
  %v3297 = vpop.permute.xlu0 %3296
  %v3299 = vmul.f32 %v3279, %v3297
  %3301 = vrot.lane.b32.xlu0 %v3299, 64
  %v3302 = vpop.permute.xlu0 %3301
  %v3304 = vadd.f32 %v3165, %v3302
  %v3305 = vtanh.pop %v3304
  %v3306 = vsub.f32 1.0, %v3263
  %3308 = vrot.lane.b32.xlu0 %v3293, 96
  %v3309 = vpop.permute.xlu0 %3308
  %v3311 = vmul.f32 %v3306, %v3309
  %v3312 = vmul.f32 %v3263, %v3142
  %v3313 = vadd.f32 %v3311, %v3312
  %v3314 = vsub.f32 1.0, %v3281
  %3316 = vrot.lane.b32.xlu0 %v3305, 96
  %v3317 = vpop.permute.xlu0 %3316
  %v3319 = vmul.f32 %v3314, %v3317
  %v3320 = vmul.f32 %v3281, %v3150
  %v3321 = vadd.f32 %v3319, %v3320
  %3323 = vrot.lane.b32.xlu0 %v3313, 96
  %v3324 = vpop.permute.xlu0 %3323
  %3326 = vst.msk [vmem:[%s2813] sm:$0xff] %vm635, %v3324
  %3328 = vrot.lane.b32.xlu0 %v3321, 32
  %v3329 = vpop.permute.xlu0 %3328
  %3331 = vst.msk [vmem:[%s2807] sm:$0xff] %vm1763, %v3329
  %v3332 = vld [vmem:[%s2468] sm:$0xff]
  %v3333 = vunpack.c.l.bf16 %v3332
  %v3334 = vld [vmem:[%s2465] sm:$0xff]
  %v3335 = vunpack.c.l.bf16 %v3334
  %v3336 = vunpack.c.h.bf16 %v3334
  %v3337 = vpack.c.bf16 %v3313, %v3313
  %3339 = vrot.lane.b32.xlu0 %v3337, 96
  %v3340 = vpop.permute.xlu0 %3339
  %v3342 = vsel %vm635, %v3340, 0
  %3344 = vmatprep.subr.bf16.mxu0 0
  %3345 = vmatpush1.bf16.msra.mxu0 %v1573
  %3346 = vmatprep.subr.bf16.mxu0 0
  %3347 = vmatpush1.bf16.msra.mxu0 %v1574
  %3348 = vmatprep.subr.bf16.mxu0 0
  %3349 = vmatpush1.bf16.msra.mxu0 0
  %3350 = vmatprep.subr.bf16.mxu0 0
  %3351 = vmatpush1.bf16.msra.mxu0 0
  %3352 = vmatprep.subr.bf16.mxu0 0
  %3353 = vmatpush1.bf16.msra.mxu0 0
  %3354 = vmatprep.subr.bf16.mxu0 0
  %3355 = vmatpush1.bf16.msra.mxu0 0
  %3356 = vmatprep.subr.bf16.mxu0 0
  %3357 = vmatpush1.bf16.msra.mxu0 0
  %3358 = vmatprep.subr.bf16.mxu0 0
  %3359 = vmatpush1.bf16.msra.mxu0 0
  %3360 = vmatprep.subr.bf16.mxu0 0
  %3361 = vmatpush1.bf16.msra.mxu0 0
  %3362 = vmatprep.subr.bf16.mxu0 0
  %3363 = vmatpush1.bf16.msra.mxu0 0
  %3364 = vmatprep.subr.bf16.mxu0 0
  %3365 = vmatpush1.bf16.msra.mxu0 0
  %3366 = vmatprep.subr.bf16.mxu0 0
  %3367 = vmatpush1.bf16.msra.mxu0 0
  %3368 = vmatprep.subr.bf16.mxu0 0
  %3369 = vmatpush1.bf16.msra.mxu0 0
  %3370 = vmatprep.subr.bf16.mxu0 0
  %3371 = vmatpush1.bf16.msra.mxu0 0
  %3372 = vmatprep.subr.bf16.mxu0 0
  %3373 = vmatpush1.bf16.msra.mxu0 0
  %3374 = vmatprep.subr.bf16.mxu0 0
  %3375 = vmatpush1.bf16.msra.mxu0 0
  %3376 = vmatprep.mubr.bf16.mxu0 0
  %3377 = vmatmul.mubr.bf16.gmra.mrb[0].mxu0 %v3342
  %v3378 = vpop.f32.mrb[0].mxu0
  %v3379 = vadd.f32 0.0, %v3378
  %v3380 = vpop.f32.mrb[0].mxu0
  %v3381 = vpop.f32.mrb[0].mxu0
  %v3382 = vpop.f32.mrb[0].mxu0
  %3383 = vdwg.mxu0
  %v3384 = vpack.c.bf16 %v3321, %v3321
  %v3386 = vsel %vm635, %v3384, 0
  %3388 = vmatprep.subr.bf16.mxu0 0
  %3389 = vmatpush1.bf16.msra.mxu0 %v1628
  %3390 = vmatprep.subr.bf16.mxu0 0
  %3391 = vmatpush1.bf16.msra.mxu0 %v1629
  %3392 = vmatprep.subr.bf16.mxu0 0
  %3393 = vmatpush1.bf16.msra.mxu0 0
  %3394 = vmatprep.subr.bf16.mxu0 0
  %3395 = vmatpush1.bf16.msra.mxu0 0
  %3396 = vmatprep.subr.bf16.mxu0 0
  %3397 = vmatpush1.bf16.msra.mxu0 0
  %3398 = vmatprep.subr.bf16.mxu0 0
  %3399 = vmatpush1.bf16.msra.mxu0 0
  %3400 = vmatprep.subr.bf16.mxu0 0
  %3401 = vmatpush1.bf16.msra.mxu0 0
  %3402 = vmatprep.subr.bf16.mxu0 0
  %3403 = vmatpush1.bf16.msra.mxu0 0
  %3404 = vmatprep.subr.bf16.mxu0 0
  %3405 = vmatpush1.bf16.msra.mxu0 0
  %3406 = vmatprep.subr.bf16.mxu0 0
  %3407 = vmatpush1.bf16.msra.mxu0 0
  %3408 = vmatprep.subr.bf16.mxu0 0
  %3409 = vmatpush1.bf16.msra.mxu0 0
  %3410 = vmatprep.subr.bf16.mxu0 0
  %3411 = vmatpush1.bf16.msra.mxu0 0
  %3412 = vmatprep.subr.bf16.mxu0 0
  %3413 = vmatpush1.bf16.msra.mxu0 0
  %3414 = vmatprep.subr.bf16.mxu0 0
  %3415 = vmatpush1.bf16.msra.mxu0 0
  %3416 = vmatprep.subr.bf16.mxu0 0
  %3417 = vmatpush1.bf16.msra.mxu0 0
  %3418 = vmatprep.subr.bf16.mxu0 0
  %3419 = vmatpush1.bf16.msra.mxu0 0
  %3420 = vmatprep.mubr.bf16.mxu0 0
  %3421 = vmatmul.mubr.bf16.gmra.mrb[0].mxu0 %v3386
  %v3422 = vpop.f32.mrb[0].mxu0
  %v3423 = vadd.f32 0.0, %v3422
  %v3424 = vpop.f32.mrb[0].mxu0
  %v3425 = vpop.f32.mrb[0].mxu0
  %v3426 = vpop.f32.mrb[0].mxu0
  %3427 = vdwg.mxu0
  %v3428 = vadd.f32 %v3333, %v3379
  %v3429 = vxor.u32 %v3428, 2147483648
  %v3430 = vmul.f32 %v3429, 1.442695
  %v3431 = vpow.pop %v3430
  %v3432 = vadd.f32 %v3431, 1.0
  %v3433 = vrcp.pop %v3432
  %v3434 = vmul.f32 1.0, %v3433
  %3436 = vrot.lane.b32.xlu0 %v3423, 96
  %v3437 = vpop.permute.xlu0 %3436
  %v3439 = vadd.f32 %v3335, %v3437
  %v3440 = vadd.f32 %v3336, %v3437
  %v3441 = vxor.u32 %v3439, 2147483648
  %v3442 = vxor.u32 %v3440, 2147483648
  %v3443 = vmul.f32 %v3441, 1.442695
  %v3444 = vpow.pop %v3443
  %v3445 = vmul.f32 %v3442, 1.442695
  %v3446 = vpow.pop %v3445
  %v3447 = vadd.f32 %v3444, 1.0
  %v3448 = vadd.f32 %v3446, 1.0
  %v3449 = vrcp.pop %v3447
  %v3450 = vmul.f32 1.0, %v3449
  %v3451 = vrcp.pop %v3448
  %v3452 = vmul.f32 1.0, %v3451
  %v3453 = vadd.f32 %v3379, %v1703
  %3455 = vrot.lane.b32.xlu0 %v3453, 64
  %v3456 = vpop.permute.xlu0 %3455
  %v3458 = vmul.f32 %v3434, %v3456
  %3460 = vrot.lane.b32.xlu0 %v3458, 64
  %v3461 = vpop.permute.xlu0 %3460
  %v3463 = vadd.f32 %v3333, %v3461
  %v3464 = vtanh.pop %v3463
  %v3465 = vadd.f32 %v3423, %v1723
  %3467 = vrot.lane.b32.xlu0 %v3465, 32
  %v3468 = vpop.permute.xlu0 %3467
  %v3470 = vmul.f32 %v3450, %v3468
  %3472 = vrot.lane.b32.xlu0 %v3470, 64
  %v3473 = vpop.permute.xlu0 %3472
  %v3475 = vadd.f32 %v3336, %v3473
  %v3476 = vtanh.pop %v3475
  %v3477 = vsub.f32 1.0, %v3434
  %3479 = vrot.lane.b32.xlu0 %v3464, 96
  %v3480 = vpop.permute.xlu0 %3479
  %v3482 = vmul.f32 %v3477, %v3480
  %v3483 = vmul.f32 %v3434, %v3313
  %v3484 = vadd.f32 %v3482, %v3483
  %v3485 = vsub.f32 1.0, %v3452
  %3487 = vrot.lane.b32.xlu0 %v3476, 96
  %v3488 = vpop.permute.xlu0 %3487
  %v3490 = vmul.f32 %v3485, %v3488
  %v3491 = vmul.f32 %v3452, %v3321
  %v3492 = vadd.f32 %v3490, %v3491
  %3494 = vrot.lane.b32.xlu0 %v3484, 96
  %v3495 = vpop.permute.xlu0 %3494
  %3497 = vst.msk [vmem:[%s2638] sm:$0xff] %vm635, %v3495
  %3499 = vrot.lane.b32.xlu0 %v3492, 32
  %v3500 = vpop.permute.xlu0 %3499
  %3502 = vst.msk [vmem:[%s2632] sm:$0xff] %vm1763, %v3500
  %v3503 = vld [vmem:[%s2293] sm:$0xff]
  %v3504 = vunpack.c.l.bf16 %v3503
  %v3505 = vld [vmem:[%s2290] sm:$0xff]
  %v3506 = vunpack.c.l.bf16 %v3505
  %v3507 = vunpack.c.h.bf16 %v3505
  %v3508 = vpack.c.bf16 %v3484, %v3484
  %3510 = vrot.lane.b32.xlu0 %v3508, 96
  %v3511 = vpop.permute.xlu0 %3510
  %v3513 = vsel %vm635, %v3511, 0
  %3515 = vmatprep.subr.bf16.mxu0 0
  %3516 = vmatpush1.bf16.msra.mxu0 %v1573
  %3517 = vmatprep.subr.bf16.mxu0 0
  %3518 = vmatpush1.bf16.msra.mxu0 %v1574
  %3519 = vmatprep.subr.bf16.mxu0 0
  %3520 = vmatpush1.bf16.msra.mxu0 0
  %3521 = vmatprep.subr.bf16.mxu0 0
  %3522 = vmatpush1.bf16.msra.mxu0 0
  %3523 = vmatprep.subr.bf16.mxu0 0
  %3524 = vmatpush1.bf16.msra.mxu0 0
  %3525 = vmatprep.subr.bf16.mxu0 0
  %3526 = vmatpush1.bf16.msra.mxu0 0
  %3527 = vmatprep.subr.bf16.mxu0 0
  %3528 = vmatpush1.bf16.msra.mxu0 0
  %3529 = vmatprep.subr.bf16.mxu0 0
  %3530 = vmatpush1.bf16.msra.mxu0 0
  %3531 = vmatprep.subr.bf16.mxu0 0
  %3532 = vmatpush1.bf16.msra.mxu0 0
  %3533 = vmatprep.subr.bf16.mxu0 0
  %3534 = vmatpush1.bf16.msra.mxu0 0
  %3535 = vmatprep.subr.bf16.mxu0 0
  %3536 = vmatpush1.bf16.msra.mxu0 0
  %3537 = vmatprep.subr.bf16.mxu0 0
  %3538 = vmatpush1.bf16.msra.mxu0 0
  %3539 = vmatprep.subr.bf16.mxu0 0
  %3540 = vmatpush1.bf16.msra.mxu0 0
  %3541 = vmatprep.subr.bf16.mxu0 0
  %3542 = vmatpush1.bf16.msra.mxu0 0
  %3543 = vmatprep.subr.bf16.mxu0 0
  %3544 = vmatpush1.bf16.msra.mxu0 0
  %3545 = vmatprep.subr.bf16.mxu0 0
  %3546 = vmatpush1.bf16.msra.mxu0 0
  %3547 = vmatprep.mubr.bf16.mxu0 0
  %3548 = vmatmul.mubr.bf16.gmra.mrb[0].mxu0 %v3513
  %v3549 = vpop.f32.mrb[0].mxu0
  %v3550 = vadd.f32 0.0, %v3549
  %v3551 = vpop.f32.mrb[0].mxu0
  %v3552 = vpop.f32.mrb[0].mxu0
  %v3553 = vpop.f32.mrb[0].mxu0
  %3554 = vdwg.mxu0
  %v3555 = vpack.c.bf16 %v3492, %v3492
  %v3557 = vsel %vm635, %v3555, 0
  %3559 = vmatprep.subr.bf16.mxu0 0
  %3560 = vmatpush1.bf16.msra.mxu0 %v1628
  %3561 = vmatprep.subr.bf16.mxu0 0
  %3562 = vmatpush1.bf16.msra.mxu0 %v1629
  %3563 = vmatprep.subr.bf16.mxu0 0
  %3564 = vmatpush1.bf16.msra.mxu0 0
  %3565 = vmatprep.subr.bf16.mxu0 0
  %3566 = vmatpush1.bf16.msra.mxu0 0
  %3567 = vmatprep.subr.bf16.mxu0 0
  %3568 = vmatpush1.bf16.msra.mxu0 0
  %3569 = vmatprep.subr.bf16.mxu0 0
  %3570 = vmatpush1.bf16.msra.mxu0 0
  %3571 = vmatprep.subr.bf16.mxu0 0
  %3572 = vmatpush1.bf16.msra.mxu0 0
  %3573 = vmatprep.subr.bf16.mxu0 0
  %3574 = vmatpush1.bf16.msra.mxu0 0
  %3575 = vmatprep.subr.bf16.mxu0 0
  %3576 = vmatpush1.bf16.msra.mxu0 0
  %3577 = vmatprep.subr.bf16.mxu0 0
  %3578 = vmatpush1.bf16.msra.mxu0 0
  %3579 = vmatprep.subr.bf16.mxu0 0
  %3580 = vmatpush1.bf16.msra.mxu0 0
  %3581 = vmatprep.subr.bf16.mxu0 0
  %3582 = vmatpush1.bf16.msra.mxu0 0
  %3583 = vmatprep.subr.bf16.mxu0 0
  %3584 = vmatpush1.bf16.msra.mxu0 0
  %3585 = vmatprep.subr.bf16.mxu0 0
  %3586 = vmatpush1.bf16.msra.mxu0 0
  %3587 = vmatprep.subr.bf16.mxu0 0
  %3588 = vmatpush1.bf16.msra.mxu0 0
  %3589 = vmatprep.subr.bf16.mxu0 0
  %3590 = vmatpush1.bf16.msra.mxu0 0
  %3591 = vmatprep.mubr.bf16.mxu0 0
  %3592 = vmatmul.mubr.bf16.gmra.mrb[0].mxu0 %v3557
  %v3593 = vpop.f32.mrb[0].mxu0
  %v3594 = vadd.f32 0.0, %v3593
  %v3595 = vpop.f32.mrb[0].mxu0
  %v3596 = vpop.f32.mrb[0].mxu0
  %v3597 = vpop.f32.mrb[0].mxu0
  %3598 = vdwg.mxu0
  %v3599 = vadd.f32 %v3504, %v3550
  %v3600 = vxor.u32 %v3599, 2147483648
  %v3601 = vmul.f32 %v3600, 1.442695
  %v3602 = vpow.pop %v3601
  %v3603 = vadd.f32 %v3602, 1.0
  %v3604 = vrcp.pop %v3603
  %v3605 = vmul.f32 1.0, %v3604
  %3607 = vrot.lane.b32.xlu0 %v3594, 96
  %v3608 = vpop.permute.xlu0 %3607
  %v3610 = vadd.f32 %v3506, %v3608
  %v3611 = vadd.f32 %v3507, %v3608
  %v3612 = vxor.u32 %v3610, 2147483648
  %v3613 = vxor.u32 %v3611, 2147483648
  %v3614 = vmul.f32 %v3612, 1.442695
  %v3615 = vpow.pop %v3614
  %v3616 = vmul.f32 %v3613, 1.442695
  %v3617 = vpow.pop %v3616
  %v3618 = vadd.f32 %v3615, 1.0
  %v3619 = vadd.f32 %v3617, 1.0
  %v3620 = vrcp.pop %v3618
  %v3621 = vmul.f32 1.0, %v3620
  %v3622 = vrcp.pop %v3619
  %v3623 = vmul.f32 1.0, %v3622
  %v3624 = vadd.f32 %v3550, %v1703
  %3626 = vrot.lane.b32.xlu0 %v3624, 64
  %v3627 = vpop.permute.xlu0 %3626
  %v3629 = vmul.f32 %v3605, %v3627
  %3631 = vrot.lane.b32.xlu0 %v3629, 64
  %v3632 = vpop.permute.xlu0 %3631
  %v3634 = vadd.f32 %v3504, %v3632
  %v3635 = vtanh.pop %v3634
  %v3636 = vadd.f32 %v3594, %v1723
  %3638 = vrot.lane.b32.xlu0 %v3636, 32
  %v3639 = vpop.permute.xlu0 %3638
  %v3641 = vmul.f32 %v3621, %v3639
  %3643 = vrot.lane.b32.xlu0 %v3641, 64
  %v3644 = vpop.permute.xlu0 %3643
  %v3646 = vadd.f32 %v3507, %v3644
  %v3647 = vtanh.pop %v3646
  %v3648 = vsub.f32 1.0, %v3605
  %3650 = vrot.lane.b32.xlu0 %v3635, 96
  %v3651 = vpop.permute.xlu0 %3650
  %v3653 = vmul.f32 %v3648, %v3651
  %v3654 = vmul.f32 %v3605, %v3484
  %v3655 = vadd.f32 %v3653, %v3654
  %v3656 = vsub.f32 1.0, %v3623
  %3658 = vrot.lane.b32.xlu0 %v3647, 96
  %v3659 = vpop.permute.xlu0 %3658
  %v3661 = vmul.f32 %v3656, %v3659
  %v3662 = vmul.f32 %v3623, %v3492
  %v3663 = vadd.f32 %v3661, %v3662
  %3665 = vrot.lane.b32.xlu0 %v3655, 96
  %v3666 = vpop.permute.xlu0 %3665
  %3668 = vst.msk [vmem:[%s2463] sm:$0xff] %vm635, %v3666
  %3670 = vrot.lane.b32.xlu0 %v3663, 32
  %v3671 = vpop.permute.xlu0 %3670
  %3673 = vst.msk [vmem:[%s2457] sm:$0xff] %vm1763, %v3671
  %v3674 = vld [vmem:[%s2118] sm:$0xff]
  %v3675 = vunpack.c.l.bf16 %v3674
  %v3676 = vld [vmem:[%s2115] sm:$0xff]
  %v3677 = vunpack.c.l.bf16 %v3676
  %v3678 = vunpack.c.h.bf16 %v3676
  %v3679 = vpack.c.bf16 %v3655, %v3655
  %3681 = vrot.lane.b32.xlu0 %v3679, 96
  %v3682 = vpop.permute.xlu0 %3681
  %v3684 = vsel %vm635, %v3682, 0
  %3686 = vmatprep.subr.bf16.mxu0 0
  %3687 = vmatpush1.bf16.msra.mxu0 %v1573
  %3688 = vmatprep.subr.bf16.mxu0 0
  %3689 = vmatpush1.bf16.msra.mxu0 %v1574
  %3690 = vmatprep.subr.bf16.mxu0 0
  %3691 = vmatpush1.bf16.msra.mxu0 0
  %3692 = vmatprep.subr.bf16.mxu0 0
  %3693 = vmatpush1.bf16.msra.mxu0 0
  %3694 = vmatprep.subr.bf16.mxu0 0
  %3695 = vmatpush1.bf16.msra.mxu0 0
  %3696 = vmatprep.subr.bf16.mxu0 0
  %3697 = vmatpush1.bf16.msra.mxu0 0
  %3698 = vmatprep.subr.bf16.mxu0 0
  %3699 = vmatpush1.bf16.msra.mxu0 0
  %3700 = vmatprep.subr.bf16.mxu0 0
  %3701 = vmatpush1.bf16.msra.mxu0 0
  %3702 = vmatprep.subr.bf16.mxu0 0
  %3703 = vmatpush1.bf16.msra.mxu0 0
  %3704 = vmatprep.subr.bf16.mxu0 0
  %3705 = vmatpush1.bf16.msra.mxu0 0
  %3706 = vmatprep.subr.bf16.mxu0 0
  %3707 = vmatpush1.bf16.msra.mxu0 0
  %3708 = vmatprep.subr.bf16.mxu0 0
  %3709 = vmatpush1.bf16.msra.mxu0 0
  %3710 = vmatprep.subr.bf16.mxu0 0
  %3711 = vmatpush1.bf16.msra.mxu0 0
  %3712 = vmatprep.subr.bf16.mxu0 0
  %3713 = vmatpush1.bf16.msra.mxu0 0
  %3714 = vmatprep.subr.bf16.mxu0 0
  %3715 = vmatpush1.bf16.msra.mxu0 0
  %3716 = vmatprep.subr.bf16.mxu0 0
  %3717 = vmatpush1.bf16.msra.mxu0 0
  %3718 = vmatprep.mubr.bf16.mxu0 0
  %3719 = vmatmul.mubr.bf16.gmra.mrb[0].mxu0 %v3684
  %v3720 = vpop.f32.mrb[0].mxu0
  %v3721 = vadd.f32 0.0, %v3720
  %v3722 = vpop.f32.mrb[0].mxu0
  %v3723 = vpop.f32.mrb[0].mxu0
  %v3724 = vpop.f32.mrb[0].mxu0
  %3725 = vdwg.mxu0
  %v3726 = vpack.c.bf16 %v3663, %v3663
  %v3728 = vsel %vm635, %v3726, 0
  %3730 = vmatprep.subr.bf16.mxu0 0
  %3731 = vmatpush1.bf16.msra.mxu0 %v1628
  %3732 = vmatprep.subr.bf16.mxu0 0
  %3733 = vmatpush1.bf16.msra.mxu0 %v1629
  %3734 = vmatprep.subr.bf16.mxu0 0
  %3735 = vmatpush1.bf16.msra.mxu0 0
  %3736 = vmatprep.subr.bf16.mxu0 0
  %3737 = vmatpush1.bf16.msra.mxu0 0
  %3738 = vmatprep.subr.bf16.mxu0 0
  %3739 = vmatpush1.bf16.msra.mxu0 0
  %3740 = vmatprep.subr.bf16.mxu0 0
  %3741 = vmatpush1.bf16.msra.mxu0 0
  %3742 = vmatprep.subr.bf16.mxu0 0
  %3743 = vmatpush1.bf16.msra.mxu0 0
  %3744 = vmatprep.subr.bf16.mxu0 0
  %3745 = vmatpush1.bf16.msra.mxu0 0
  %3746 = vmatprep.subr.bf16.mxu0 0
  %3747 = vmatpush1.bf16.msra.mxu0 0
  %3748 = vmatprep.subr.bf16.mxu0 0
  %3749 = vmatpush1.bf16.msra.mxu0 0
  %3750 = vmatprep.subr.bf16.mxu0 0
  %3751 = vmatpush1.bf16.msra.mxu0 0
  %3752 = vmatprep.subr.bf16.mxu0 0
  %3753 = vmatpush1.bf16.msra.mxu0 0
  %3754 = vmatprep.subr.bf16.mxu0 0
  %3755 = vmatpush1.bf16.msra.mxu0 0
  %3756 = vmatprep.subr.bf16.mxu0 0
  %3757 = vmatpush1.bf16.msra.mxu0 0
  %3758 = vmatprep.subr.bf16.mxu0 0
  %3759 = vmatpush1.bf16.msra.mxu0 0
  %3760 = vmatprep.subr.bf16.mxu0 0
  %3761 = vmatpush1.bf16.msra.mxu0 0
  %3762 = vmatprep.mubr.bf16.mxu0 0
  %3763 = vmatmul.mubr.bf16.gmra.mrb[0].mxu0 %v3728
  %v3764 = vpop.f32.mrb[0].mxu0
  %v3765 = vadd.f32 0.0, %v3764
  %v3766 = vpop.f32.mrb[0].mxu0
  %v3767 = vpop.f32.mrb[0].mxu0
  %v3768 = vpop.f32.mrb[0].mxu0
  %3769 = vdwg.mxu0
  %v3770 = vadd.f32 %v3675, %v3721
  %v3771 = vxor.u32 %v3770, 2147483648
  %v3772 = vmul.f32 %v3771, 1.442695
  %v3773 = vpow.pop %v3772
  %v3774 = vadd.f32 %v3773, 1.0
  %v3775 = vrcp.pop %v3774
  %v3776 = vmul.f32 1.0, %v3775
  %3778 = vrot.lane.b32.xlu0 %v3765, 96
  %v3779 = vpop.permute.xlu0 %3778
  %v3781 = vadd.f32 %v3677, %v3779
  %v3782 = vadd.f32 %v3678, %v3779
  %v3783 = vxor.u32 %v3781, 2147483648
  %v3784 = vxor.u32 %v3782, 2147483648
  %v3785 = vmul.f32 %v3783, 1.442695
  %v3786 = vpow.pop %v3785
  %v3787 = vmul.f32 %v3784, 1.442695
  %v3788 = vpow.pop %v3787
  %v3789 = vadd.f32 %v3786, 1.0
  %v3790 = vadd.f32 %v3788, 1.0
  %v3791 = vrcp.pop %v3789
  %v3792 = vmul.f32 1.0, %v3791
  %v3793 = vrcp.pop %v3790
  %v3794 = vmul.f32 1.0, %v3793
  %v3795 = vadd.f32 %v3721, %v1703
  %3797 = vrot.lane.b32.xlu0 %v3795, 64
  %v3798 = vpop.permute.xlu0 %3797
  %v3800 = vmul.f32 %v3776, %v3798
  %3802 = vrot.lane.b32.xlu0 %v3800, 64
  %v3803 = vpop.permute.xlu0 %3802
  %v3805 = vadd.f32 %v3675, %v3803
  %v3806 = vtanh.pop %v3805
  %v3807 = vadd.f32 %v3765, %v1723
  %3809 = vrot.lane.b32.xlu0 %v3807, 32
  %v3810 = vpop.permute.xlu0 %3809
  %v3812 = vmul.f32 %v3792, %v3810
  %3814 = vrot.lane.b32.xlu0 %v3812, 64
  %v3815 = vpop.permute.xlu0 %3814
  %v3817 = vadd.f32 %v3678, %v3815
  %v3818 = vtanh.pop %v3817
  %v3819 = vsub.f32 1.0, %v3776
  %3821 = vrot.lane.b32.xlu0 %v3806, 96
  %v3822 = vpop.permute.xlu0 %3821
  %v3824 = vmul.f32 %v3819, %v3822
  %v3825 = vmul.f32 %v3776, %v3655
  %v3826 = vadd.f32 %v3824, %v3825
  %v3827 = vsub.f32 1.0, %v3794
  %3829 = vrot.lane.b32.xlu0 %v3818, 96
  %v3830 = vpop.permute.xlu0 %3829
  %v3832 = vmul.f32 %v3827, %v3830
  %v3833 = vmul.f32 %v3794, %v3663
  %v3834 = vadd.f32 %v3832, %v3833
  %3836 = vrot.lane.b32.xlu0 %v3826, 96
  %v3837 = vpop.permute.xlu0 %3836
  %3839 = vst.msk [vmem:[%s2288] sm:$0xff] %vm635, %v3837
  %3841 = vrot.lane.b32.xlu0 %v3834, 32
  %v3842 = vpop.permute.xlu0 %3841
  %3844 = vst.msk [vmem:[%s2282] sm:$0xff] %vm1763, %v3842
  %v3845 = vld [vmem:[%s1943] sm:$0xff]
  %v3846 = vunpack.c.l.bf16 %v3845
  %v3847 = vld [vmem:[%s1940] sm:$0xff]
  %v3848 = vunpack.c.l.bf16 %v3847
  %v3849 = vunpack.c.h.bf16 %v3847
  %v3850 = vpack.c.bf16 %v3826, %v3826
  %3852 = vrot.lane.b32.xlu0 %v3850, 96
  %v3853 = vpop.permute.xlu0 %3852
  %v3855 = vsel %vm635, %v3853, 0
  %3857 = vmatprep.subr.bf16.mxu0 0
  %3858 = vmatpush1.bf16.msra.mxu0 %v1573
  %3859 = vmatprep.subr.bf16.mxu0 0
  %3860 = vmatpush1.bf16.msra.mxu0 %v1574
  %3861 = vmatprep.subr.bf16.mxu0 0
  %3862 = vmatpush1.bf16.msra.mxu0 0
  %3863 = vmatprep.subr.bf16.mxu0 0
  %3864 = vmatpush1.bf16.msra.mxu0 0
  %3865 = vmatprep.subr.bf16.mxu0 0
  %3866 = vmatpush1.bf16.msra.mxu0 0
  %3867 = vmatprep.subr.bf16.mxu0 0
  %3868 = vmatpush1.bf16.msra.mxu0 0
  %3869 = vmatprep.subr.bf16.mxu0 0
  %3870 = vmatpush1.bf16.msra.mxu0 0
  %3871 = vmatprep.subr.bf16.mxu0 0
  %3872 = vmatpush1.bf16.msra.mxu0 0
  %3873 = vmatprep.subr.bf16.mxu0 0
  %3874 = vmatpush1.bf16.msra.mxu0 0
  %3875 = vmatprep.subr.bf16.mxu0 0
  %3876 = vmatpush1.bf16.msra.mxu0 0
  %3877 = vmatprep.subr.bf16.mxu0 0
  %3878 = vmatpush1.bf16.msra.mxu0 0
  %3879 = vmatprep.subr.bf16.mxu0 0
  %3880 = vmatpush1.bf16.msra.mxu0 0
  %3881 = vmatprep.subr.bf16.mxu0 0
  %3882 = vmatpush1.bf16.msra.mxu0 0
  %3883 = vmatprep.subr.bf16.mxu0 0
  %3884 = vmatpush1.bf16.msra.mxu0 0
  %3885 = vmatprep.subr.bf16.mxu0 0
  %3886 = vmatpush1.bf16.msra.mxu0 0
  %3887 = vmatprep.subr.bf16.mxu0 0
  %3888 = vmatpush1.bf16.msra.mxu0 0
  %3889 = vmatprep.mubr.bf16.mxu0 0
  %3890 = vmatmul.mubr.bf16.gmra.mrb[0].mxu0 %v3855
  %v3891 = vpop.f32.mrb[0].mxu0
  %v3892 = vadd.f32 0.0, %v3891
  %v3893 = vpop.f32.mrb[0].mxu0
  %v3894 = vpop.f32.mrb[0].mxu0
  %v3895 = vpop.f32.mrb[0].mxu0
  %3896 = vdwg.mxu0
  %v3897 = vpack.c.bf16 %v3834, %v3834
  %v3899 = vsel %vm635, %v3897, 0
  %3901 = vmatprep.subr.bf16.mxu0 0
  %3902 = vmatpush1.bf16.msra.mxu0 %v1628
  %3903 = vmatprep.subr.bf16.mxu0 0
  %3904 = vmatpush1.bf16.msra.mxu0 %v1629
  %3905 = vmatprep.subr.bf16.mxu0 0
  %3906 = vmatpush1.bf16.msra.mxu0 0
  %3907 = vmatprep.subr.bf16.mxu0 0
  %3908 = vmatpush1.bf16.msra.mxu0 0
  %3909 = vmatprep.subr.bf16.mxu0 0
  %3910 = vmatpush1.bf16.msra.mxu0 0
  %3911 = vmatprep.subr.bf16.mxu0 0
  %3912 = vmatpush1.bf16.msra.mxu0 0
  %3913 = vmatprep.subr.bf16.mxu0 0
  %3914 = vmatpush1.bf16.msra.mxu0 0
  %3915 = vmatprep.subr.bf16.mxu0 0
  %3916 = vmatpush1.bf16.msra.mxu0 0
  %3917 = vmatprep.subr.bf16.mxu0 0
  %3918 = vmatpush1.bf16.msra.mxu0 0
  %3919 = vmatprep.subr.bf16.mxu0 0
  %3920 = vmatpush1.bf16.msra.mxu0 0
  %3921 = vmatprep.subr.bf16.mxu0 0
  %3922 = vmatpush1.bf16.msra.mxu0 0
  %3923 = vmatprep.subr.bf16.mxu0 0
  %3924 = vmatpush1.bf16.msra.mxu0 0
  %3925 = vmatprep.subr.bf16.mxu0 0
  %3926 = vmatpush1.bf16.msra.mxu0 0
  %3927 = vmatprep.subr.bf16.mxu0 0
  %3928 = vmatpush1.bf16.msra.mxu0 0
  %3929 = vmatprep.subr.bf16.mxu0 0
  %3930 = vmatpush1.bf16.msra.mxu0 0
  %3931 = vmatprep.subr.bf16.mxu0 0
  %3932 = vmatpush1.bf16.msra.mxu0 0
  %3933 = vmatprep.mubr.bf16.mxu0 0
  %3934 = vmatmul.mubr.bf16.gmra.mrb[0].mxu0 %v3899
  %v3935 = vpop.f32.mrb[0].mxu0
  %v3936 = vadd.f32 0.0, %v3935
  %v3937 = vpop.f32.mrb[0].mxu0
  %v3938 = vpop.f32.mrb[0].mxu0
  %v3939 = vpop.f32.mrb[0].mxu0
  %3940 = vdwg.mxu0
  %v3941 = vadd.f32 %v3846, %v3892
  %v3942 = vxor.u32 %v3941, 2147483648
  %v3943 = vmul.f32 %v3942, 1.442695
  %v3944 = vpow.pop %v3943
  %v3945 = vadd.f32 %v3944, 1.0
  %v3946 = vrcp.pop %v3945
  %v3947 = vmul.f32 1.0, %v3946
  %3949 = vrot.lane.b32.xlu0 %v3936, 96
  %v3950 = vpop.permute.xlu0 %3949
  %v3952 = vadd.f32 %v3848, %v3950
  %v3953 = vadd.f32 %v3849, %v3950
  %v3954 = vxor.u32 %v3952, 2147483648
  %v3955 = vxor.u32 %v3953, 2147483648
  %v3956 = vmul.f32 %v3954, 1.442695
  %v3957 = vpow.pop %v3956
  %v3958 = vmul.f32 %v3955, 1.442695
  %v3959 = vpow.pop %v3958
  %v3960 = vadd.f32 %v3957, 1.0
  %v3961 = vadd.f32 %v3959, 1.0
  %v3962 = vrcp.pop %v3960
  %v3963 = vmul.f32 1.0, %v3962
  %v3964 = vrcp.pop %v3961
  %v3965 = vmul.f32 1.0, %v3964
  %v3966 = vadd.f32 %v3892, %v1703
  %3968 = vrot.lane.b32.xlu0 %v3966, 64
  %v3969 = vpop.permute.xlu0 %3968
  %v3971 = vmul.f32 %v3947, %v3969
  %3973 = vrot.lane.b32.xlu0 %v3971, 64
  %v3974 = vpop.permute.xlu0 %3973
  %v3976 = vadd.f32 %v3846, %v3974
  %v3977 = vtanh.pop %v3976
  %v3978 = vadd.f32 %v3936, %v1723
  %3980 = vrot.lane.b32.xlu0 %v3978, 32
  %v3981 = vpop.permute.xlu0 %3980
  %v3983 = vmul.f32 %v3963, %v3981
  %3985 = vrot.lane.b32.xlu0 %v3983, 64
  %v3986 = vpop.permute.xlu0 %3985
  %v3988 = vadd.f32 %v3849, %v3986
  %v3989 = vtanh.pop %v3988
  %v3990 = vsub.f32 1.0, %v3947
  %3992 = vrot.lane.b32.xlu0 %v3977, 96
  %v3993 = vpop.permute.xlu0 %3992
  %v3995 = vmul.f32 %v3990, %v3993
  %v3996 = vmul.f32 %v3947, %v3826
  %v3997 = vadd.f32 %v3995, %v3996
  %v3998 = vsub.f32 1.0, %v3965
  %4000 = vrot.lane.b32.xlu0 %v3989, 96
  %v4001 = vpop.permute.xlu0 %4000
  %v4003 = vmul.f32 %v3998, %v4001
  %v4004 = vmul.f32 %v3965, %v3834
  %v4005 = vadd.f32 %v4003, %v4004
  %4007 = vrot.lane.b32.xlu0 %v3997, 96
  %v4008 = vpop.permute.xlu0 %4007
  %4010 = vst.msk [vmem:[%s2113] sm:$0xff] %vm635, %v4008
  %4012 = vrot.lane.b32.xlu0 %v4005, 32
  %v4013 = vpop.permute.xlu0 %4012
  %4015 = vst.msk [vmem:[%s2107] sm:$0xff] %vm1763, %v4013
  %v4016 = vld [vmem:[%s1768] sm:$0xff]
  %v4017 = vunpack.c.l.bf16 %v4016
  %v4018 = vld [vmem:[%s1765] sm:$0xff]
  %v4019 = vunpack.c.l.bf16 %v4018
  %v4020 = vunpack.c.h.bf16 %v4018
  %v4021 = vpack.c.bf16 %v3997, %v3997
  %4023 = vrot.lane.b32.xlu0 %v4021, 96
  %v4024 = vpop.permute.xlu0 %4023
  %v4026 = vsel %vm635, %v4024, 0
  %4028 = vmatprep.subr.bf16.mxu0 0
  %4029 = vmatpush1.bf16.msra.mxu0 %v1573
  %4030 = vmatprep.subr.bf16.mxu0 0
  %4031 = vmatpush1.bf16.msra.mxu0 %v1574
  %4032 = vmatprep.subr.bf16.mxu0 0
  %4033 = vmatpush1.bf16.msra.mxu0 0
  %4034 = vmatprep.subr.bf16.mxu0 0
  %4035 = vmatpush1.bf16.msra.mxu0 0
  %4036 = vmatprep.subr.bf16.mxu0 0
  %4037 = vmatpush1.bf16.msra.mxu0 0
  %4038 = vmatprep.subr.bf16.mxu0 0
  %4039 = vmatpush1.bf16.msra.mxu0 0
  %4040 = vmatprep.subr.bf16.mxu0 0
  %4041 = vmatpush1.bf16.msra.mxu0 0
  %4042 = vmatprep.subr.bf16.mxu0 0
  %4043 = vmatpush1.bf16.msra.mxu0 0
  %4044 = vmatprep.subr.bf16.mxu0 0
  %4045 = vmatpush1.bf16.msra.mxu0 0
  %4046 = vmatprep.subr.bf16.mxu0 0
  %4047 = vmatpush1.bf16.msra.mxu0 0
  %4048 = vmatprep.subr.bf16.mxu0 0
  %4049 = vmatpush1.bf16.msra.mxu0 0
  %4050 = vmatprep.subr.bf16.mxu0 0
  %4051 = vmatpush1.bf16.msra.mxu0 0
  %4052 = vmatprep.subr.bf16.mxu0 0
  %4053 = vmatpush1.bf16.msra.mxu0 0
  %4054 = vmatprep.subr.bf16.mxu0 0
  %4055 = vmatpush1.bf16.msra.mxu0 0
  %4056 = vmatprep.subr.bf16.mxu0 0
  %4057 = vmatpush1.bf16.msra.mxu0 0
  %4058 = vmatprep.subr.bf16.mxu0 0
  %4059 = vmatpush1.bf16.msra.mxu0 0
  %4060 = vmatprep.mubr.bf16.mxu0 0
  %4061 = vmatmul.mubr.bf16.gmra.mrb[0].mxu0 %v4026
  %v4062 = vpop.f32.mrb[0].mxu0
  %v4063 = vadd.f32 0.0, %v4062
  %v4064 = vpop.f32.mrb[0].mxu0
  %v4065 = vpop.f32.mrb[0].mxu0
  %v4066 = vpop.f32.mrb[0].mxu0
  %4067 = vdwg.mxu0
  %v4068 = vpack.c.bf16 %v4005, %v4005
  %v4070 = vsel %vm635, %v4068, 0
  %4072 = vmatprep.subr.bf16.mxu0 0
  %4073 = vmatpush1.bf16.msra.mxu0 %v1628
  %4074 = vmatprep.subr.bf16.mxu0 0
  %4075 = vmatpush1.bf16.msra.mxu0 %v1629
  %4076 = vmatprep.subr.bf16.mxu0 0
  %4077 = vmatpush1.bf16.msra.mxu0 0
  %4078 = vmatprep.subr.bf16.mxu0 0
  %4079 = vmatpush1.bf16.msra.mxu0 0
  %4080 = vmatprep.subr.bf16.mxu0 0
  %4081 = vmatpush1.bf16.msra.mxu0 0
  %4082 = vmatprep.subr.bf16.mxu0 0
  %4083 = vmatpush1.bf16.msra.mxu0 0
  %4084 = vmatprep.subr.bf16.mxu0 0
  %4085 = vmatpush1.bf16.msra.mxu0 0
  %4086 = vmatprep.subr.bf16.mxu0 0
  %4087 = vmatpush1.bf16.msra.mxu0 0
  %4088 = vmatprep.subr.bf16.mxu0 0
  %4089 = vmatpush1.bf16.msra.mxu0 0
  %4090 = vmatprep.subr.bf16.mxu0 0
  %4091 = vmatpush1.bf16.msra.mxu0 0
  %4092 = vmatprep.subr.bf16.mxu0 0
  %4093 = vmatpush1.bf16.msra.mxu0 0
  %4094 = vmatprep.subr.bf16.mxu0 0
  %4095 = vmatpush1.bf16.msra.mxu0 0
  %4096 = vmatprep.subr.bf16.mxu0 0
  %4097 = vmatpush1.bf16.msra.mxu0 0
  %4098 = vmatprep.subr.bf16.mxu0 0
  %4099 = vmatpush1.bf16.msra.mxu0 0
  %4100 = vmatprep.subr.bf16.mxu0 0
  %4101 = vmatpush1.bf16.msra.mxu0 0
  %4102 = vmatprep.subr.bf16.mxu0 0
  %4103 = vmatpush1.bf16.msra.mxu0 0
  %4104 = vmatprep.mubr.bf16.mxu0 0
  %4105 = vmatmul.mubr.bf16.gmra.mrb[0].mxu0 %v4070
  %v4106 = vpop.f32.mrb[0].mxu0
  %v4107 = vadd.f32 0.0, %v4106
  %v4108 = vpop.f32.mrb[0].mxu0
  %v4109 = vpop.f32.mrb[0].mxu0
  %v4110 = vpop.f32.mrb[0].mxu0
  %4111 = vdwg.mxu0
  %v4112 = vadd.f32 %v4017, %v4063
  %v4113 = vxor.u32 %v4112, 2147483648
  %v4114 = vmul.f32 %v4113, 1.442695
  %v4115 = vpow.pop %v4114
  %v4116 = vadd.f32 %v4115, 1.0
  %v4117 = vrcp.pop %v4116
  %v4118 = vmul.f32 1.0, %v4117
  %4120 = vrot.lane.b32.xlu0 %v4107, 96
  %v4121 = vpop.permute.xlu0 %4120
  %v4123 = vadd.f32 %v4019, %v4121
  %v4124 = vadd.f32 %v4020, %v4121
  %v4125 = vxor.u32 %v4123, 2147483648
  %v4126 = vxor.u32 %v4124, 2147483648
  %v4127 = vmul.f32 %v4125, 1.442695
  %v4128 = vpow.pop %v4127
  %v4129 = vmul.f32 %v4126, 1.442695
  %v4130 = vpow.pop %v4129
  %v4131 = vadd.f32 %v4128, 1.0
  %v4132 = vadd.f32 %v4130, 1.0
  %v4133 = vrcp.pop %v4131
  %v4134 = vmul.f32 1.0, %v4133
  %v4135 = vrcp.pop %v4132
  %v4136 = vmul.f32 1.0, %v4135
  %v4137 = vadd.f32 %v4063, %v1703
  %4139 = vrot.lane.b32.xlu0 %v4137, 64
  %v4140 = vpop.permute.xlu0 %4139
  %v4142 = vmul.f32 %v4118, %v4140
  %4144 = vrot.lane.b32.xlu0 %v4142, 64
  %v4145 = vpop.permute.xlu0 %4144
  %v4147 = vadd.f32 %v4017, %v4145
  %v4148 = vtanh.pop %v4147
  %v4149 = vadd.f32 %v4107, %v1723
  %4151 = vrot.lane.b32.xlu0 %v4149, 32
  %v4152 = vpop.permute.xlu0 %4151
  %v4154 = vmul.f32 %v4134, %v4152
  %4156 = vrot.lane.b32.xlu0 %v4154, 64
  %v4157 = vpop.permute.xlu0 %4156
  %v4159 = vadd.f32 %v4020, %v4157
  %v4160 = vtanh.pop %v4159
  %v4161 = vsub.f32 1.0, %v4118
  %4163 = vrot.lane.b32.xlu0 %v4148, 96
  %v4164 = vpop.permute.xlu0 %4163
  %v4166 = vmul.f32 %v4161, %v4164
  %v4167 = vmul.f32 %v4118, %v3997
  %v4168 = vadd.f32 %v4166, %v4167
  %v4169 = vsub.f32 1.0, %v4136
  %4171 = vrot.lane.b32.xlu0 %v4160, 96
  %v4172 = vpop.permute.xlu0 %4171
  %v4174 = vmul.f32 %v4169, %v4172
  %v4175 = vmul.f32 %v4136, %v4005
  %v4176 = vadd.f32 %v4174, %v4175
  %4178 = vrot.lane.b32.xlu0 %v4168, 96
  %v4179 = vpop.permute.xlu0 %4178
  %4181 = vst.msk [vmem:[%s1938] sm:$0xff] %vm635, %v4179
  %4183 = vrot.lane.b32.xlu0 %v4176, 32
  %v4184 = vpop.permute.xlu0 %4183
  %4186 = vst.msk [vmem:[%s1932] sm:$0xff] %vm1763, %v4184
  %v4187 = vld [vmem:[%s1561] sm:$0xff]
  %v4188 = vunpack.c.l.bf16 %v4187
  %v4189 = vld [vmem:[#allocation4] sm:$0xff]
  %v4190 = vunpack.c.l.bf16 %v4189
  %v4191 = vunpack.c.h.bf16 %v4189
  %v4192 = vpack.c.bf16 %v4168, %v4168
  %4194 = vrot.lane.b32.xlu0 %v4192, 96
  %v4195 = vpop.permute.xlu0 %4194
  %v4197 = vsel %vm635, %v4195, 0
  %4199 = vmatprep.subr.bf16.mxu0 0
  %4200 = vmatpush1.bf16.msra.mxu0 %v1573
  %4201 = vmatprep.subr.bf16.mxu0 0
  %4202 = vmatpush1.bf16.msra.mxu0 %v1574
  %4203 = vmatprep.subr.bf16.mxu0 0
  %4204 = vmatpush1.bf16.msra.mxu0 0
  %4205 = vmatprep.subr.bf16.mxu0 0
  %4206 = vmatpush1.bf16.msra.mxu0 0
  %4207 = vmatprep.subr.bf16.mxu0 0
  %4208 = vmatpush1.bf16.msra.mxu0 0
  %4209 = vmatprep.subr.bf16.mxu0 0
  %4210 = vmatpush1.bf16.msra.mxu0 0
  %4211 = vmatprep.subr.bf16.mxu0 0
  %4212 = vmatpush1.bf16.msra.mxu0 0
  %4213 = vmatprep.subr.bf16.mxu0 0
  %4214 = vmatpush1.bf16.msra.mxu0 0
  %4215 = vmatprep.subr.bf16.mxu0 0
  %4216 = vmatpush1.bf16.msra.mxu0 0
  %4217 = vmatprep.subr.bf16.mxu0 0
  %4218 = vmatpush1.bf16.msra.mxu0 0
  %4219 = vmatprep.subr.bf16.mxu0 0
  %4220 = vmatpush1.bf16.msra.mxu0 0
  %4221 = vmatprep.subr.bf16.mxu0 0
  %4222 = vmatpush1.bf16.msra.mxu0 0
  %4223 = vmatprep.subr.bf16.mxu0 0
  %4224 = vmatpush1.bf16.msra.mxu0 0
  %4225 = vmatprep.subr.bf16.mxu0 0
  %4226 = vmatpush1.bf16.msra.mxu0 0
  %4227 = vmatprep.subr.bf16.mxu0 0
  %4228 = vmatpush1.bf16.msra.mxu0 0
  %4229 = vmatprep.subr.bf16.mxu0 0
  %4230 = vmatpush1.bf16.msra.mxu0 0
  %4231 = vmatprep.mubr.bf16.mxu0 0
  %4232 = vmatmul.mubr.bf16.gmra.mrb[0].mxu0 %v4197
  %v4233 = vpop.f32.mrb[0].mxu0
  %v4234 = vadd.f32 0.0, %v4233
  %v4235 = vpop.f32.mrb[0].mxu0
  %v4236 = vpop.f32.mrb[0].mxu0
  %v4237 = vpop.f32.mrb[0].mxu0
  %4238 = vdwg.mxu0
  %v4239 = vpack.c.bf16 %v4176, %v4176
  %v4241 = vsel %vm635, %v4239, 0
  %4243 = vmatprep.subr.bf16.mxu0 0
  %4244 = vmatpush1.bf16.msra.mxu0 %v1628
  %4245 = vmatprep.subr.bf16.mxu0 0
  %4246 = vmatpush1.bf16.msra.mxu0 %v1629
  %4247 = vmatprep.subr.bf16.mxu0 0
  %4248 = vmatpush1.bf16.msra.mxu0 0
  %4249 = vmatprep.subr.bf16.mxu0 0
  %4250 = vmatpush1.bf16.msra.mxu0 0
  %4251 = vmatprep.subr.bf16.mxu0 0
  %4252 = vmatpush1.bf16.msra.mxu0 0
  %4253 = vmatprep.subr.bf16.mxu0 0
  %4254 = vmatpush1.bf16.msra.mxu0 0
  %4255 = vmatprep.subr.bf16.mxu0 0
  %4256 = vmatpush1.bf16.msra.mxu0 0
  %4257 = vmatprep.subr.bf16.mxu0 0
  %4258 = vmatpush1.bf16.msra.mxu0 0
  %4259 = vmatprep.subr.bf16.mxu0 0
  %4260 = vmatpush1.bf16.msra.mxu0 0
  %4261 = vmatprep.subr.bf16.mxu0 0
  %4262 = vmatpush1.bf16.msra.mxu0 0
  %4263 = vmatprep.subr.bf16.mxu0 0
  %4264 = vmatpush1.bf16.msra.mxu0 0
  %4265 = vmatprep.subr.bf16.mxu0 0
  %4266 = vmatpush1.bf16.msra.mxu0 0
  %4267 = vmatprep.subr.bf16.mxu0 0
  %4268 = vmatpush1.bf16.msra.mxu0 0
  %4269 = vmatprep.subr.bf16.mxu0 0
  %4270 = vmatpush1.bf16.msra.mxu0 0
  %4271 = vmatprep.subr.bf16.mxu0 0
  %4272 = vmatpush1.bf16.msra.mxu0 0
  %4273 = vmatprep.subr.bf16.mxu0 0
  %4274 = vmatpush1.bf16.msra.mxu0 0
  %4275 = vmatprep.mubr.bf16.mxu0 0
  %4276 = vmatmul.mubr.bf16.gmra.mrb[0].mxu0 %v4241
  %v4277 = vpop.f32.mrb[0].mxu0
  %v4278 = vadd.f32 0.0, %v4277
  %v4279 = vpop.f32.mrb[0].mxu0
  %v4280 = vpop.f32.mrb[0].mxu0
  %v4281 = vpop.f32.mrb[0].mxu0
  %4282 = vdwg.mxu0
  %v4283 = vadd.f32 %v4188, %v4234
  %v4284 = vxor.u32 %v4283, 2147483648
  %v4285 = vmul.f32 %v4284, 1.442695
  %v4286 = vpow.pop %v4285
  %v4287 = vadd.f32 %v4286, 1.0
  %v4288 = vrcp.pop %v4287
  %v4289 = vmul.f32 1.0, %v4288
  %4291 = vrot.lane.b32.xlu0 %v4278, 96
  %v4292 = vpop.permute.xlu0 %4291
  %v4294 = vadd.f32 %v4190, %v4292
  %v4295 = vadd.f32 %v4191, %v4292
  %v4296 = vxor.u32 %v4294, 2147483648
  %v4297 = vxor.u32 %v4295, 2147483648
  %v4298 = vmul.f32 %v4296, 1.442695
  %v4299 = vpow.pop %v4298
  %v4300 = vmul.f32 %v4297, 1.442695
  %v4301 = vpow.pop %v4300
  %v4302 = vadd.f32 %v4299, 1.0
  %v4303 = vadd.f32 %v4301, 1.0
  %v4304 = vrcp.pop %v4302
  %v4305 = vmul.f32 1.0, %v4304
  %v4306 = vrcp.pop %v4303
  %v4307 = vmul.f32 1.0, %v4306
  %v4308 = vadd.f32 %v4234, %v1703
  %4310 = vrot.lane.b32.xlu0 %v4308, 64
  %v4311 = vpop.permute.xlu0 %4310
  %v4313 = vmul.f32 %v4289, %v4311
  %4315 = vrot.lane.b32.xlu0 %v4313, 64
  %v4316 = vpop.permute.xlu0 %4315
  %v4318 = vadd.f32 %v4188, %v4316
  %v4319 = vtanh.pop %v4318
  %v4320 = vadd.f32 %v4278, %v1723
  %4322 = vrot.lane.b32.xlu0 %v4320, 32
  %v4323 = vpop.permute.xlu0 %4322
  %v4325 = vmul.f32 %v4305, %v4323
  %4327 = vrot.lane.b32.xlu0 %v4325, 64
  %v4328 = vpop.permute.xlu0 %4327
  %v4330 = vadd.f32 %v4191, %v4328
  %v4331 = vtanh.pop %v4330
  %v4332 = vsub.f32 1.0, %v4289
  %4334 = vrot.lane.b32.xlu0 %v4319, 96
  %v4335 = vpop.permute.xlu0 %4334
  %v4337 = vmul.f32 %v4332, %v4335
  %v4338 = vmul.f32 %v4289, %v4168
  %v4339 = vadd.f32 %v4337, %v4338
  %v4340 = vsub.f32 1.0, %v4307
  %4342 = vrot.lane.b32.xlu0 %v4331, 96
  %v4343 = vpop.permute.xlu0 %4342
  %v4345 = vmul.f32 %v4340, %v4343
  %v4346 = vmul.f32 %v4307, %v4176
  %v4347 = vadd.f32 %v4345, %v4346
  %4349 = vrot.lane.b32.xlu0 %v4339, 96
  %v4350 = vpop.permute.xlu0 %4349
  %4352 = vst.msk [vmem:[%s1762] sm:$0xff] %vm635, %v4350
  %4354 = vrot.lane.b32.xlu0 %v4347, 32
  %v4355 = vpop.permute.xlu0 %4354
  %4357 = vst.msk [vmem:[#allocation5] sm:$0xff] %vm1763, %v4355
  %v4358 = vld [vmem:[#allocation5] sm:$0xff]
  %v4359 = vld [vmem:[#allocation5 + $0x8] sm:$0xff]
  %v4360 = vld [vmem:[#allocation5 + $0x10] sm:$0xff]
  %v4361 = vld [vmem:[#allocation5 + $0x18] sm:$0xff]
  %v4362 = vld [vmem:[#allocation5 + $0x20] sm:$0xff]
  %v4363 = vld [vmem:[#allocation5 + $0x28] sm:$0xff]
  %v4364 = vld [vmem:[#allocation5 + $0x30] sm:$0xff]
  %v4365 = vld [vmem:[#allocation5 + $0x38] sm:$0xff]
  %v4366 = vld [vmem:[#allocation5 + $0x40] sm:$0xff]
  %v4367 = vld [vmem:[#allocation5 + $0x48] sm:$0xff]
  %v4368 = vld [vmem:[#allocation5 + $0x50] sm:$0xff]
  %v4369 = vld [vmem:[#allocation5 + $0x58] sm:$0xff]
  %v4370 = vld [vmem:[#allocation5 + $0x60] sm:$0xff]
  %v4371 = vld [vmem:[#allocation5 + $0x68] sm:$0xff]
  %v4372 = vld [vmem:[#allocation5 + $0x70] sm:$0xff]
  %v4373 = vld [vmem:[#allocation5 + $0x78] sm:$0xff]
  %v4374 = vpack.c.bf16 %v4358, %v4358
  %v4375 = vpack.c.bf16 %v4359, %v4359
  %v4376 = vpack.c.bf16 %v4360, %v4360
  %v4377 = vpack.c.bf16 %v4361, %v4361
  %v4378 = vpack.c.bf16 %v4362, %v4362
  %v4379 = vpack.c.bf16 %v4363, %v4363
  %v4380 = vpack.c.bf16 %v4364, %v4364
  %v4381 = vpack.c.bf16 %v4365, %v4365
  %v4382 = vpack.c.bf16 %v4366, %v4366
  %v4383 = vpack.c.bf16 %v4367, %v4367
  %v4384 = vpack.c.bf16 %v4368, %v4368
  %v4385 = vpack.c.bf16 %v4369, %v4369
  %v4386 = vpack.c.bf16 %v4370, %v4370
  %v4387 = vpack.c.bf16 %v4371, %v4371
  %v4388 = vpack.c.bf16 %v4372, %v4372
  %v4389 = vpack.c.bf16 %v4373, %v4373
  %v4390 = vld [vmem:[%s13] sm:$0xff]
  %v4391 = vld [vmem:[%s13 + $0x8] sm:$0xff]
  %v4392 = vld [vmem:[%s13 + $0x10] sm:$0xff]
  %v4393 = vld [vmem:[%s13 + $0x18] sm:$0xff]
  %v4394 = vld [vmem:[%s13 + $0x20] sm:$0xff]
  %v4395 = vld [vmem:[%s13 + $0x28] sm:$0xff]
  %v4396 = vld [vmem:[%s13 + $0x30] sm:$0xff]
  %v4397 = vld [vmem:[%s13 + $0x38] sm:$0xff]
  %v4398 = vld [vmem:[%s14] sm:$0x3]
  %v4400 = vlaneseq
  %v4401 = vshrl.u32 %v4400, 7
  %v4402 = vsub.s32 0, %v4401
  %v4403 = vrot.slane %v4398, %v4402
  %v4404 = vlaneseq
  %v4405 = vshrl.u32 %v4404, 7
  %v4406 = vsub.s32 1, %v4405
  %v4407 = vrot.slane %v4398, %v4406
  %v4426 = vunpack.c.l.b16 %v4374
  %v4427 = vunpack.c.l.b16 %v4375
  %v4428 = vunpack.c.l.b16 %v4376
  %v4429 = vunpack.c.l.b16 %v4377
  %v4430 = vunpack.c.l.b16 %v4378
  %v4431 = vunpack.c.l.b16 %v4379
  %v4432 = vunpack.c.l.b16 %v4380
  %v4433 = vunpack.c.l.b16 %v4381
  %v4434 = vunpack.c.l.b16 %v4382
  %v4435 = vunpack.c.l.b16 %v4383
  %v4436 = vunpack.c.l.b16 %v4384
  %v4437 = vunpack.c.l.b16 %v4385
  %v4438 = vunpack.c.l.b16 %v4386
  %v4439 = vunpack.c.l.b16 %v4387
  %v4440 = vunpack.c.l.b16 %v4388
  %v4441 = vunpack.c.l.b16 %v4389
  %v4442 = vpack.c.b16 %v4427, %v4426
  %v4443 = vpack.c.b16 %v4429, %v4428
  %v4444 = vpack.c.b16 %v4431, %v4430
  %v4445 = vpack.c.b16 %v4433, %v4432
  %v4446 = vpack.c.b16 %v4435, %v4434
  %v4447 = vpack.c.b16 %v4437, %v4436
  %v4448 = vpack.c.b16 %v4439, %v4438
  %v4449 = vpack.c.b16 %v4441, %v4440
  %v4458 = vunpack.c.l.b16 %v4390
  %v4459 = vunpack.c.h.b16 %v4390
  %v4460 = vunpack.c.l.b16 %v4391
  %v4461 = vunpack.c.h.b16 %v4391
  %v4462 = vunpack.c.l.b16 %v4392
  %v4463 = vunpack.c.h.b16 %v4392
  %v4464 = vunpack.c.l.b16 %v4393
  %v4465 = vunpack.c.h.b16 %v4393
  %v4466 = vunpack.c.l.b16 %v4394
  %v4467 = vunpack.c.h.b16 %v4394
  %v4468 = vunpack.c.l.b16 %v4395
  %v4469 = vunpack.c.h.b16 %v4395
  %v4470 = vunpack.c.l.b16 %v4396
  %v4471 = vunpack.c.h.b16 %v4396
  %v4472 = vunpack.c.l.b16 %v4397
  %v4473 = vunpack.c.h.b16 %v4397
  %v4474 = vpack.c.b16 %v4460, %v4458
  %v4475 = vpack.c.b16 %v4461, %v4459
  %v4476 = vpack.c.b16 %v4464, %v4462
  %v4477 = vpack.c.b16 %v4465, %v4463
  %v4478 = vpack.c.b16 %v4468, %v4466
  %v4479 = vpack.c.b16 %v4469, %v4467
  %v4480 = vpack.c.b16 %v4472, %v4470
  %v4481 = vpack.c.b16 %v4473, %v4471
  %vm4490 = vcmask 523264
  %v4492 = vsel %vm4490, %v4442, 0
  %v4495 = vsel %vm4490, %v4443, 0
  %v4498 = vsel %vm4490, %v4444, 0
  %v4501 = vsel %vm4490, %v4445, 0
  %v4504 = vsel %vm4490, %v4446, 0
  %v4507 = vsel %vm4490, %v4447, 0
  %v4510 = vsel %vm4490, %v4448, 0
  %v4513 = vsel %vm4490, %v4449, 0
  %4515 = vmatprep.subr.bf16.mxu0 %v4475
  %4516 = vmatpush1.bf16.msra.mxu0 %v4474
  %4517 = vmatprep.subr.bf16.mxu0 %v4477
  %4518 = vmatpush1.bf16.msra.mxu0 %v4476
  %4519 = vmatprep.subr.bf16.mxu0 %v4479
  %4520 = vmatpush1.bf16.msra.mxu0 %v4478
  %4521 = vmatprep.subr.bf16.mxu0 %v4481
  %4522 = vmatpush1.bf16.msra.mxu0 %v4480
  %4523 = vmatprep.subr.bf16.mxu0 0
  %4524 = vmatpush1.bf16.msra.mxu0 0
  %4525 = vmatprep.subr.bf16.mxu0 0
  %4526 = vmatpush1.bf16.msra.mxu0 0
  %4527 = vmatprep.subr.bf16.mxu0 0
  %4528 = vmatpush1.bf16.msra.mxu0 0
  %4529 = vmatprep.subr.bf16.mxu0 0
  %4530 = vmatpush1.bf16.msra.mxu0 0
  %4531 = vmatprep.subr.bf16.mxu0 0
  %4532 = vmatpush1.bf16.msra.mxu0 0
  %4533 = vmatprep.subr.bf16.mxu0 0
  %4534 = vmatpush1.bf16.msra.mxu0 0
  %4535 = vmatprep.subr.bf16.mxu0 0
  %4536 = vmatpush1.bf16.msra.mxu0 0
  %4537 = vmatprep.subr.bf16.mxu0 0
  %4538 = vmatpush1.bf16.msra.mxu0 0
  %4539 = vmatprep.subr.bf16.mxu0 0
  %4540 = vmatpush1.bf16.msra.mxu0 0
  %4541 = vmatprep.subr.bf16.mxu0 0
  %4542 = vmatpush1.bf16.msra.mxu0 0
  %4543 = vmatprep.subr.bf16.mxu0 0
  %4544 = vmatpush1.bf16.msra.mxu0 0
  %4545 = vmatprep.subr.bf16.mxu0 0
  %4546 = vmatpush1.bf16.msra.mxu0 0
  %4547 = vmatprep.mubr.bf16.mxu0 0
  %4548 = vmatmul.mubr.bf16.gmra.mrb[0].mxu0 %v4492
  %v4549 = vpop.f32.mrb[0].mxu0
  %v4550 = vadd.f32 %v4403, %v4549
  %v4551 = vpop.f32.mrb[0].mxu0
  %v4552 = vadd.f32 %v4407, %v4551
  %v4553 = vpop.f32.mrb[0].mxu0
  %v4554 = vadd.f32 %v4403, %v4553
  %v4555 = vpop.f32.mrb[0].mxu0
  %v4556 = vadd.f32 %v4407, %v4555
  %4557 = vmatprep.mubr.bf16.mxu0 0
  %4558 = vmatmul.mubr.bf16.gmra.mrb[0].mxu0 %v4495
  %v4559 = vpop.f32.mrb[0].mxu0
  %v4560 = vadd.f32 %v4403, %v4559
  %v4561 = vpop.f32.mrb[0].mxu0
  %v4562 = vadd.f32 %v4407, %v4561
  %v4563 = vpop.f32.mrb[0].mxu0
  %v4564 = vadd.f32 %v4403, %v4563
  %v4565 = vpop.f32.mrb[0].mxu0
  %v4566 = vadd.f32 %v4407, %v4565
  %4567 = vmatprep.mubr.bf16.mxu0 0
  %4568 = vmatmul.mubr.bf16.gmra.mrb[0].mxu0 %v4498
  %v4569 = vpop.f32.mrb[0].mxu0
  %v4570 = vadd.f32 %v4403, %v4569
  %v4571 = vpop.f32.mrb[0].mxu0
  %v4572 = vadd.f32 %v4407, %v4571
  %v4573 = vpop.f32.mrb[0].mxu0
  %v4574 = vadd.f32 %v4403, %v4573
  %v4575 = vpop.f32.mrb[0].mxu0
  %v4576 = vadd.f32 %v4407, %v4575
  %4577 = vmatprep.mubr.bf16.mxu0 0
  %4578 = vmatmul.mubr.bf16.gmra.mrb[0].mxu0 %v4501
  %v4579 = vpop.f32.mrb[0].mxu0
  %v4580 = vadd.f32 %v4403, %v4579
  %v4581 = vpop.f32.mrb[0].mxu0
  %v4582 = vadd.f32 %v4407, %v4581
  %v4583 = vpop.f32.mrb[0].mxu0
  %v4584 = vadd.f32 %v4403, %v4583
  %v4585 = vpop.f32.mrb[0].mxu0
  %v4586 = vadd.f32 %v4407, %v4585
  %4587 = vmatprep.mubr.bf16.mxu0 0
  %4588 = vmatmul.mubr.bf16.gmra.mrb[0].mxu0 %v4504
  %v4589 = vpop.f32.mrb[0].mxu0
  %v4590 = vadd.f32 %v4403, %v4589
  %v4591 = vpop.f32.mrb[0].mxu0
  %v4592 = vadd.f32 %v4407, %v4591
  %v4593 = vpop.f32.mrb[0].mxu0
  %v4594 = vadd.f32 %v4403, %v4593
  %v4595 = vpop.f32.mrb[0].mxu0
  %v4596 = vadd.f32 %v4407, %v4595
  %4597 = vmatprep.mubr.bf16.mxu0 0
  %4598 = vmatmul.mubr.bf16.gmra.mrb[0].mxu0 %v4507
  %v4599 = vpop.f32.mrb[0].mxu0
  %v4600 = vadd.f32 %v4403, %v4599
  %v4601 = vpop.f32.mrb[0].mxu0
  %v4602 = vadd.f32 %v4407, %v4601
  %v4603 = vpop.f32.mrb[0].mxu0
  %v4604 = vadd.f32 %v4403, %v4603
  %v4605 = vpop.f32.mrb[0].mxu0
  %v4606 = vadd.f32 %v4407, %v4605
  %4607 = vmatprep.mubr.bf16.mxu0 0
  %4608 = vmatmul.mubr.bf16.gmra.mrb[0].mxu0 %v4510
  %v4609 = vpop.f32.mrb[0].mxu0
  %v4610 = vadd.f32 %v4403, %v4609
  %v4611 = vpop.f32.mrb[0].mxu0
  %v4612 = vadd.f32 %v4407, %v4611
  %v4613 = vpop.f32.mrb[0].mxu0
  %v4614 = vadd.f32 %v4403, %v4613
  %v4615 = vpop.f32.mrb[0].mxu0
  %v4616 = vadd.f32 %v4407, %v4615
  %4617 = vmatprep.mubr.bf16.mxu0 0
  %4618 = vmatmul.mubr.bf16.gmra.mrb[0].mxu0 %v4513
  %v4619 = vpop.f32.mrb[0].mxu0
  %v4620 = vadd.f32 %v4403, %v4619
  %v4621 = vpop.f32.mrb[0].mxu0
  %v4622 = vadd.f32 %v4407, %v4621
  %v4623 = vpop.f32.mrb[0].mxu0
  %v4624 = vadd.f32 %v4403, %v4623
  %v4625 = vpop.f32.mrb[0].mxu0
  %v4626 = vadd.f32 %v4407, %v4625
  %4627 = vdwg.mxu0
  %v4628 = vpack.c.bf16 %v4550, %v4550
  %v4629 = vpack.c.bf16 %v4552, %v4552
  %v4630 = vpack.c.bf16 %v4554, %v4554
  %v4631 = vpack.c.bf16 %v4556, %v4556
  %v4632 = vpack.c.bf16 %v4560, %v4560
  %v4633 = vpack.c.bf16 %v4562, %v4562
  %v4634 = vpack.c.bf16 %v4564, %v4564
  %v4635 = vpack.c.bf16 %v4566, %v4566
  %v4636 = vpack.c.bf16 %v4570, %v4570
  %v4637 = vpack.c.bf16 %v4572, %v4572
  %v4638 = vpack.c.bf16 %v4574, %v4574
  %v4639 = vpack.c.bf16 %v4576, %v4576
  %v4640 = vpack.c.bf16 %v4580, %v4580
  %v4641 = vpack.c.bf16 %v4582, %v4582
  %v4642 = vpack.c.bf16 %v4584, %v4584
  %v4643 = vpack.c.bf16 %v4586, %v4586
  %v4644 = vpack.c.bf16 %v4590, %v4590
  %v4645 = vpack.c.bf16 %v4592, %v4592
  %v4646 = vpack.c.bf16 %v4594, %v4594
  %v4647 = vpack.c.bf16 %v4596, %v4596
  %v4648 = vpack.c.bf16 %v4600, %v4600
  %v4649 = vpack.c.bf16 %v4602, %v4602
  %v4650 = vpack.c.bf16 %v4604, %v4604
  %v4651 = vpack.c.bf16 %v4606, %v4606
  %v4652 = vpack.c.bf16 %v4610, %v4610
  %v4653 = vpack.c.bf16 %v4612, %v4612
  %v4654 = vpack.c.bf16 %v4614, %v4614
  %v4655 = vpack.c.bf16 %v4616, %v4616
  %v4656 = vpack.c.bf16 %v4620, %v4620
  %v4657 = vpack.c.bf16 %v4622, %v4622
  %v4658 = vpack.c.bf16 %v4624, %v4624
  %v4659 = vpack.c.bf16 %v4626, %v4626
  %v4692 = vunpack.c.l.b16 %v4628
  %v4693 = vunpack.c.l.b16 %v4629
  %v4694 = vunpack.c.l.b16 %v4630
  %v4695 = vunpack.c.l.b16 %v4631
  %v4696 = vunpack.c.l.b16 %v4632
  %v4697 = vunpack.c.l.b16 %v4633
  %v4698 = vunpack.c.l.b16 %v4634
  %v4699 = vunpack.c.l.b16 %v4635
  %v4700 = vunpack.c.l.b16 %v4636
  %v4701 = vunpack.c.l.b16 %v4637
  %v4702 = vunpack.c.l.b16 %v4638
  %v4703 = vunpack.c.l.b16 %v4639
  %v4704 = vunpack.c.l.b16 %v4640
  %v4705 = vunpack.c.l.b16 %v4641
  %v4706 = vunpack.c.l.b16 %v4642
  %v4707 = vunpack.c.l.b16 %v4643
  %v4708 = vunpack.c.l.b16 %v4644
  %v4709 = vunpack.c.l.b16 %v4645
  %v4710 = vunpack.c.l.b16 %v4646
  %v4711 = vunpack.c.l.b16 %v4647
  %v4712 = vunpack.c.l.b16 %v4648
  %v4713 = vunpack.c.l.b16 %v4649
  %v4714 = vunpack.c.l.b16 %v4650
  %v4715 = vunpack.c.l.b16 %v4651
  %v4716 = vunpack.c.l.b16 %v4652
  %v4717 = vunpack.c.l.b16 %v4653
  %v4718 = vunpack.c.l.b16 %v4654
  %v4719 = vunpack.c.l.b16 %v4655
  %v4720 = vunpack.c.l.b16 %v4656
  %v4721 = vunpack.c.l.b16 %v4657
  %v4722 = vunpack.c.l.b16 %v4658
  %v4723 = vunpack.c.l.b16 %v4659
  %v4724 = vpack.c.b16 %v4693, %v4692
  %v4725 = vpack.c.b16 %v4695, %v4694
  %v4726 = vpack.c.b16 %v4697, %v4696
  %v4727 = vpack.c.b16 %v4699, %v4698
  %v4728 = vpack.c.b16 %v4701, %v4700
  %v4729 = vpack.c.b16 %v4703, %v4702
  %v4730 = vpack.c.b16 %v4705, %v4704
  %v4731 = vpack.c.b16 %v4707, %v4706
  %v4732 = vpack.c.b16 %v4709, %v4708
  %v4733 = vpack.c.b16 %v4711, %v4710
  %v4734 = vpack.c.b16 %v4713, %v4712
  %v4735 = vpack.c.b16 %v4715, %v4714
  %v4736 = vpack.c.b16 %v4717, %v4716
  %v4737 = vpack.c.b16 %v4719, %v4718
  %v4738 = vpack.c.b16 %v4721, %v4720
  %v4739 = vpack.c.b16 %v4723, %v4722
  %4756 = vst.msk [vmem:[#allocation6] sm:$0xff] %vm1532, %v4724
  %4757 = vst.msk [vmem:[#allocation6 + $0x8] sm:$0xff] %vm1532, %v4725
  %4758 = vst.msk [vmem:[#allocation6 + $0x10] sm:$0xff] %vm1532, %v4726
  %4759 = vst.msk [vmem:[#allocation6 + $0x18] sm:$0xff] %vm1532, %v4727
  %4760 = vst.msk [vmem:[#allocation6 + $0x20] sm:$0xff] %vm1532, %v4728
  %4761 = vst.msk [vmem:[#allocation6 + $0x28] sm:$0xff] %vm1532, %v4729
  %4762 = vst.msk [vmem:[#allocation6 + $0x30] sm:$0xff] %vm1532, %v4730
  %4763 = vst.msk [vmem:[#allocation6 + $0x38] sm:$0xff] %vm1532, %v4731
  %4764 = vst.msk [vmem:[#allocation6 + $0x40] sm:$0xff] %vm1532, %v4732
  %4765 = vst.msk [vmem:[#allocation6 + $0x48] sm:$0xff] %vm1532, %v4733
  %4766 = vst.msk [vmem:[#allocation6 + $0x50] sm:$0xff] %vm1532, %v4734
  %4767 = vst.msk [vmem:[#allocation6 + $0x58] sm:$0xff] %vm1532, %v4735
  %4768 = vst.msk [vmem:[#allocation6 + $0x60] sm:$0xff] %vm1532, %v4736
  %4769 = vst.msk [vmem:[#allocation6 + $0x68] sm:$0xff] %vm1532, %v4737
  %4770 = vst.msk [vmem:[#allocation6 + $0x70] sm:$0xff] %vm1532, %v4738
  %4771 = vst.msk [vmem:[#allocation6 + $0x78] sm:$0xff] %vm1532, %v4739
  %v4772 = vld [vmem:[%s15] sm:$0xf]
  %v4773 = vld [vmem:[%s15 + $0x4] sm:$0xf]
  %v4774 = vld [vmem:[%s15 + $0x8] sm:$0xf]
  %v4775 = vld [vmem:[%s15 + $0xc] sm:$0xf]
  %v4776 = vld [vmem:[%s16] sm:$0xf]
  %v4777 = vld [vmem:[%s16 + $0x4] sm:$0xf]
  %v4778 = vld [vmem:[%s16 + $0x8] sm:$0xf]
  %v4779 = vld [vmem:[%s16 + $0xc] sm:$0xf]
  %v4780 = vld [vmem:[%s17] sm:$0x1]
  %v4781 = vld [vmem:[%s18] sm:$0x1]
  %v4782 = vld [vmem:[#allocation6] sm:$0xff]
  %v4783 = vunpack.c.l.bf16 %v4782
  %s4784 = scalar_lea.vmem [#allocation6], 120
  %v4785 = vld [vmem:[%s4784] sm:$0xff]
  %v4786 = vunpack.c.l.bf16 %v4785
  %v4787 = vunpack.c.h.bf16 %v4785
  %v4792 = vunpack.c.l.b16 %v4772
  %v4793 = vunpack.c.l.b16 %v4773
  %v4794 = vunpack.c.l.b16 %v4774
  %v4795 = vunpack.c.l.b16 %v4775
  %v4796 = vpack.c.b16 %v4793, %v4792
  %v4797 = vpack.c.b16 %v4795, %v4794
  %4800 = vmatprep.subr.bf16.mxu0 0
  %4801 = vmatpush1.bf16.msra.mxu0 %v4796
  %4802 = vmatprep.subr.bf16.mxu0 0
  %4803 = vmatpush1.bf16.msra.mxu0 %v4797
  %4804 = vmatprep.subr.bf16.mxu0 0
  %4805 = vmatpush1.bf16.msra.mxu0 0
  %4806 = vmatprep.subr.bf16.mxu0 0
  %4807 = vmatpush1.bf16.msra.mxu0 0
  %4808 = vmatprep.subr.bf16.mxu0 0
  %4809 = vmatpush1.bf16.msra.mxu0 0
  %4810 = vmatprep.subr.bf16.mxu0 0
  %4811 = vmatpush1.bf16.msra.mxu0 0
  %4812 = vmatprep.subr.bf16.mxu0 0
  %4813 = vmatpush1.bf16.msra.mxu0 0
  %4814 = vmatprep.subr.bf16.mxu0 0
  %4815 = vmatpush1.bf16.msra.mxu0 0
  %4816 = vmatprep.subr.bf16.mxu0 0
  %4817 = vmatpush1.bf16.msra.mxu0 0
  %4818 = vmatprep.subr.bf16.mxu0 0
  %4819 = vmatpush1.bf16.msra.mxu0 0
  %4820 = vmatprep.subr.bf16.mxu0 0
  %4821 = vmatpush1.bf16.msra.mxu0 0
  %4822 = vmatprep.subr.bf16.mxu0 0
  %4823 = vmatpush1.bf16.msra.mxu0 0
  %4824 = vmatprep.subr.bf16.mxu0 0
  %4825 = vmatpush1.bf16.msra.mxu0 0
  %4826 = vmatprep.subr.bf16.mxu0 0
  %4827 = vmatpush1.bf16.msra.mxu0 0
  %4828 = vmatprep.subr.bf16.mxu0 0
  %4829 = vmatpush1.bf16.msra.mxu0 0
  %4830 = vmatprep.subr.bf16.mxu0 0
  %4831 = vmatpush1.bf16.msra.mxu0 0
  %4832 = vmatprep.mubr.bf16.mxu0 0
  %4833 = vmatmul.mubr.bf16.gmra.mrb[0].mxu0 %v1578
  %v4834 = vpop.f32.mrb[0].mxu0
  %v4835 = vadd.f32 0.0, %v4834
  %v4836 = vpop.f32.mrb[0].mxu0
  %v4837 = vpop.f32.mrb[0].mxu0
  %v4838 = vpop.f32.mrb[0].mxu0
  %4839 = vdwg.mxu0
  %v4844 = vunpack.c.l.b16 %v4776
  %v4845 = vunpack.c.l.b16 %v4777
  %v4846 = vunpack.c.l.b16 %v4778
  %v4847 = vunpack.c.l.b16 %v4779
  %v4848 = vpack.c.b16 %v4845, %v4844
  %v4849 = vpack.c.b16 %v4847, %v4846
  %4852 = vmatprep.subr.bf16.mxu0 0
  %4853 = vmatpush1.bf16.msra.mxu0 %v4848
  %4854 = vmatprep.subr.bf16.mxu0 0
  %4855 = vmatpush1.bf16.msra.mxu0 %v4849
  %4856 = vmatprep.subr.bf16.mxu0 0
  %4857 = vmatpush1.bf16.msra.mxu0 0
  %4858 = vmatprep.subr.bf16.mxu0 0
  %4859 = vmatpush1.bf16.msra.mxu0 0
  %4860 = vmatprep.subr.bf16.mxu0 0
  %4861 = vmatpush1.bf16.msra.mxu0 0
  %4862 = vmatprep.subr.bf16.mxu0 0
  %4863 = vmatpush1.bf16.msra.mxu0 0
  %4864 = vmatprep.subr.bf16.mxu0 0
  %4865 = vmatpush1.bf16.msra.mxu0 0
  %4866 = vmatprep.subr.bf16.mxu0 0
  %4867 = vmatpush1.bf16.msra.mxu0 0
  %4868 = vmatprep.subr.bf16.mxu0 0
  %4869 = vmatpush1.bf16.msra.mxu0 0
  %4870 = vmatprep.subr.bf16.mxu0 0
  %4871 = vmatpush1.bf16.msra.mxu0 0
  %4872 = vmatprep.subr.bf16.mxu0 0
  %4873 = vmatpush1.bf16.msra.mxu0 0
  %4874 = vmatprep.subr.bf16.mxu0 0
  %4875 = vmatpush1.bf16.msra.mxu0 0
  %4876 = vmatprep.subr.bf16.mxu0 0
  %4877 = vmatpush1.bf16.msra.mxu0 0
  %4878 = vmatprep.subr.bf16.mxu0 0
  %4879 = vmatpush1.bf16.msra.mxu0 0
  %4880 = vmatprep.subr.bf16.mxu0 0
  %4881 = vmatpush1.bf16.msra.mxu0 0
  %4882 = vmatprep.subr.bf16.mxu0 0
  %4883 = vmatpush1.bf16.msra.mxu0 0
  %4884 = vmatprep.mubr.bf16.mxu0 0
  %4885 = vmatmul.mubr.bf16.gmra.mrb[0].mxu0 %v1578
  %v4886 = vpop.f32.mrb[0].mxu0
  %v4887 = vadd.f32 0.0, %v4886
  %v4888 = vpop.f32.mrb[0].mxu0
  %v4889 = vpop.f32.mrb[0].mxu0
  %v4890 = vpop.f32.mrb[0].mxu0
  %4891 = vdwg.mxu0
  %v4892 = vadd.f32 %v4783, %v4835
  %v4893 = vxor.u32 %v4892, 2147483648
  %v4894 = vmul.f32 %v4893, 1.442695
  %v4895 = vpow.pop %v4894
  %v4896 = vadd.f32 %v4895, 1.0
  %v4897 = vrcp.pop %v4896
  %v4898 = vmul.f32 1.0, %v4897
  %4900 = vrot.lane.b32.xlu0 %v4887, 96
  %v4901 = vpop.permute.xlu0 %4900
  %v4903 = vadd.f32 %v4786, %v4901
  %v4904 = vadd.f32 %v4787, %v4901
  %v4905 = vxor.u32 %v4903, 2147483648
  %v4906 = vxor.u32 %v4904, 2147483648
  %v4907 = vmul.f32 %v4905, 1.442695
  %v4908 = vpow.pop %v4907
  %v4909 = vmul.f32 %v4906, 1.442695
  %v4910 = vpow.pop %v4909
  %v4911 = vadd.f32 %v4908, 1.0
  %v4912 = vadd.f32 %v4910, 1.0
  %v4913 = vrcp.pop %v4911
  %v4914 = vmul.f32 1.0, %v4913
  %v4915 = vrcp.pop %v4912
  %v4916 = vmul.f32 1.0, %v4915
  %v4918 = vlaneseq
  %v4919 = vshrl.u32 %v4918, 7
  %v4920 = vsub.s32 0, %v4919
  %v4921 = vrot.slane %v4780, %v4920
  %4922 = vrot.lane.b32.xlu0 %v4921, 64
  %v4923 = vpop.permute.xlu0 %4922
  %v4925 = vadd.f32 %v4835, %v4923
  %4927 = vrot.lane.b32.xlu0 %v4925, 64
  %v4928 = vpop.permute.xlu0 %4927
  %v4930 = vmul.f32 %v4898, %v4928
  %4932 = vrot.lane.b32.xlu0 %v4930, 64
  %v4933 = vpop.permute.xlu0 %4932
  %v4935 = vadd.f32 %v4783, %v4933
  %v4936 = vtanh.pop %v4935
  %v4938 = vlaneseq
  %v4939 = vshrl.u32 %v4938, 7
  %v4940 = vsub.s32 0, %v4939
  %v4941 = vrot.slane %v4781, %v4940
  %4942 = vrot.lane.b32.xlu0 %v4941, 64
  %v4943 = vpop.permute.xlu0 %4942
  %v4945 = vadd.f32 %v4887, %v4943
  %4947 = vrot.lane.b32.xlu0 %v4945, 32
  %v4948 = vpop.permute.xlu0 %4947
  %v4950 = vmul.f32 %v4914, %v4948
  %4952 = vrot.lane.b32.xlu0 %v4950, 64
  %v4953 = vpop.permute.xlu0 %4952
  %v4955 = vadd.f32 %v4787, %v4953
  %v4956 = vtanh.pop %v4955
  %v4957 = vsub.f32 1.0, %v4898
  %4959 = vrot.lane.b32.xlu0 %v4936, 96
  %v4960 = vpop.permute.xlu0 %4959
  %v4962 = vmul.f32 %v4957, %v4960
  %v4963 = vmul.f32 %v4898, 0.0
  %v4964 = vadd.f32 %v4962, %v4963
  %v4965 = vsub.f32 1.0, %v4916
  %4967 = vrot.lane.b32.xlu0 %v4956, 96
  %v4968 = vpop.permute.xlu0 %4967
  %v4970 = vmul.f32 %v4965, %v4968
  %v4971 = vmul.f32 %v4916, 0.0
  %v4972 = vadd.f32 %v4970, %v4971
  %4974 = vrot.lane.b32.xlu0 %v4964, 96
  %v4975 = vpop.permute.xlu0 %4974
  %4977 = vst.msk [vmem:[#allocation7] sm:$0xff] %vm635, %v4975
  %4979 = vrot.lane.b32.xlu0 %v4972, 32
  %v4980 = vpop.permute.xlu0 %4979
  %s4982 = scalar_lea.vmem [#allocation7], 120
  %4983 = vst.msk [vmem:[%s4982] sm:$0xff] %vm1763, %v4980
  %s4984 = scalar_lea.vmem [#allocation6], 8
  %v4985 = vld [vmem:[%s4984] sm:$0xff]
  %v4986 = vunpack.c.l.bf16 %v4985
  %s4987 = scalar_lea.vmem [#allocation6], 112
  %v4988 = vld [vmem:[%s4987] sm:$0xff]
  %v4989 = vunpack.c.l.bf16 %v4988
  %v4990 = vunpack.c.h.bf16 %v4988
  %v4991 = vpack.c.bf16 %v4964, %v4964
  %4993 = vrot.lane.b32.xlu0 %v4991, 96
  %v4994 = vpop.permute.xlu0 %4993
  %v4996 = vsel %vm635, %v4994, 0
  %4998 = vmatprep.subr.bf16.mxu0 0
  %4999 = vmatpush1.bf16.msra.mxu0 %v4796
  %5000 = vmatprep.subr.bf16.mxu0 0
  %5001 = vmatpush1.bf16.msra.mxu0 %v4797
  %5002 = vmatprep.subr.bf16.mxu0 0
  %5003 = vmatpush1.bf16.msra.mxu0 0
  %5004 = vmatprep.subr.bf16.mxu0 0
  %5005 = vmatpush1.bf16.msra.mxu0 0
  %5006 = vmatprep.subr.bf16.mxu0 0
  %5007 = vmatpush1.bf16.msra.mxu0 0
  %5008 = vmatprep.subr.bf16.mxu0 0
  %5009 = vmatpush1.bf16.msra.mxu0 0
  %5010 = vmatprep.subr.bf16.mxu0 0
  %5011 = vmatpush1.bf16.msra.mxu0 0
  %5012 = vmatprep.subr.bf16.mxu0 0
  %5013 = vmatpush1.bf16.msra.mxu0 0
  %5014 = vmatprep.subr.bf16.mxu0 0
  %5015 = vmatpush1.bf16.msra.mxu0 0
  %5016 = vmatprep.subr.bf16.mxu0 0
  %5017 = vmatpush1.bf16.msra.mxu0 0
  %5018 = vmatprep.subr.bf16.mxu0 0
  %5019 = vmatpush1.bf16.msra.mxu0 0
  %5020 = vmatprep.subr.bf16.mxu0 0
  %5021 = vmatpush1.bf16.msra.mxu0 0
  %5022 = vmatprep.subr.bf16.mxu0 0
  %5023 = vmatpush1.bf16.msra.mxu0 0
  %5024 = vmatprep.subr.bf16.mxu0 0
  %5025 = vmatpush1.bf16.msra.mxu0 0
  %5026 = vmatprep.subr.bf16.mxu0 0
  %5027 = vmatpush1.bf16.msra.mxu0 0
  %5028 = vmatprep.subr.bf16.mxu0 0
  %5029 = vmatpush1.bf16.msra.mxu0 0
  %5030 = vmatprep.mubr.bf16.mxu0 0
  %5031 = vmatmul.mubr.bf16.gmra.mrb[0].mxu0 %v4996
  %v5032 = vpop.f32.mrb[0].mxu0
  %v5033 = vadd.f32 0.0, %v5032
  %v5034 = vpop.f32.mrb[0].mxu0
  %v5035 = vpop.f32.mrb[0].mxu0
  %v5036 = vpop.f32.mrb[0].mxu0
  %5037 = vdwg.mxu0
  %v5038 = vpack.c.bf16 %v4972, %v4972
  %v5040 = vsel %vm635, %v5038, 0
  %5042 = vmatprep.subr.bf16.mxu0 0
  %5043 = vmatpush1.bf16.msra.mxu0 %v4848
  %5044 = vmatprep.subr.bf16.mxu0 0
  %5045 = vmatpush1.bf16.msra.mxu0 %v4849
  %5046 = vmatprep.subr.bf16.mxu0 0
  %5047 = vmatpush1.bf16.msra.mxu0 0
  %5048 = vmatprep.subr.bf16.mxu0 0
  %5049 = vmatpush1.bf16.msra.mxu0 0
  %5050 = vmatprep.subr.bf16.mxu0 0
  %5051 = vmatpush1.bf16.msra.mxu0 0
  %5052 = vmatprep.subr.bf16.mxu0 0
  %5053 = vmatpush1.bf16.msra.mxu0 0
  %5054 = vmatprep.subr.bf16.mxu0 0
  %5055 = vmatpush1.bf16.msra.mxu0 0
  %5056 = vmatprep.subr.bf16.mxu0 0
  %5057 = vmatpush1.bf16.msra.mxu0 0
  %5058 = vmatprep.subr.bf16.mxu0 0
  %5059 = vmatpush1.bf16.msra.mxu0 0
  %5060 = vmatprep.subr.bf16.mxu0 0
  %5061 = vmatpush1.bf16.msra.mxu0 0
  %5062 = vmatprep.subr.bf16.mxu0 0
  %5063 = vmatpush1.bf16.msra.mxu0 0
  %5064 = vmatprep.subr.bf16.mxu0 0
  %5065 = vmatpush1.bf16.msra.mxu0 0
  %5066 = vmatprep.subr.bf16.mxu0 0
  %5067 = vmatpush1.bf16.msra.mxu0 0
  %5068 = vmatprep.subr.bf16.mxu0 0
  %5069 = vmatpush1.bf16.msra.mxu0 0
  %5070 = vmatprep.subr.bf16.mxu0 0
  %5071 = vmatpush1.bf16.msra.mxu0 0
  %5072 = vmatprep.subr.bf16.mxu0 0
  %5073 = vmatpush1.bf16.msra.mxu0 0
  %5074 = vmatprep.mubr.bf16.mxu0 0
  %5075 = vmatmul.mubr.bf16.gmra.mrb[0].mxu0 %v5040
  %v5076 = vpop.f32.mrb[0].mxu0
  %v5077 = vadd.f32 0.0, %v5076
  %v5078 = vpop.f32.mrb[0].mxu0
  %v5079 = vpop.f32.mrb[0].mxu0
  %v5080 = vpop.f32.mrb[0].mxu0
  %5081 = vdwg.mxu0
  %v5082 = vadd.f32 %v4986, %v5033
  %v5083 = vxor.u32 %v5082, 2147483648
  %v5084 = vmul.f32 %v5083, 1.442695
  %v5085 = vpow.pop %v5084
  %v5086 = vadd.f32 %v5085, 1.0
  %v5087 = vrcp.pop %v5086
  %v5088 = vmul.f32 1.0, %v5087
  %5090 = vrot.lane.b32.xlu0 %v5077, 96
  %v5091 = vpop.permute.xlu0 %5090
  %v5093 = vadd.f32 %v4989, %v5091
  %v5094 = vadd.f32 %v4990, %v5091
  %v5095 = vxor.u32 %v5093, 2147483648
  %v5096 = vxor.u32 %v5094, 2147483648
  %v5097 = vmul.f32 %v5095, 1.442695
  %v5098 = vpow.pop %v5097
  %v5099 = vmul.f32 %v5096, 1.442695
  %v5100 = vpow.pop %v5099
  %v5101 = vadd.f32 %v5098, 1.0
  %v5102 = vadd.f32 %v5100, 1.0
  %v5103 = vrcp.pop %v5101
  %v5104 = vmul.f32 1.0, %v5103
  %v5105 = vrcp.pop %v5102
  %v5106 = vmul.f32 1.0, %v5105
  %v5107 = vadd.f32 %v5033, %v4923
  %5109 = vrot.lane.b32.xlu0 %v5107, 64
  %v5110 = vpop.permute.xlu0 %5109
  %v5112 = vmul.f32 %v5088, %v5110
  %5114 = vrot.lane.b32.xlu0 %v5112, 64
  %v5115 = vpop.permute.xlu0 %5114
  %v5117 = vadd.f32 %v4986, %v5115
  %v5118 = vtanh.pop %v5117
  %v5119 = vadd.f32 %v5077, %v4943
  %5121 = vrot.lane.b32.xlu0 %v5119, 32
  %v5122 = vpop.permute.xlu0 %5121
  %v5124 = vmul.f32 %v5104, %v5122
  %5126 = vrot.lane.b32.xlu0 %v5124, 64
  %v5127 = vpop.permute.xlu0 %5126
  %v5129 = vadd.f32 %v4990, %v5127
  %v5130 = vtanh.pop %v5129
  %v5131 = vsub.f32 1.0, %v5088
  %5133 = vrot.lane.b32.xlu0 %v5118, 96
  %v5134 = vpop.permute.xlu0 %5133
  %v5136 = vmul.f32 %v5131, %v5134
  %v5137 = vmul.f32 %v5088, %v4964
  %v5138 = vadd.f32 %v5136, %v5137
  %v5139 = vsub.f32 1.0, %v5106
  %5141 = vrot.lane.b32.xlu0 %v5130, 96
  %v5142 = vpop.permute.xlu0 %5141
  %v5144 = vmul.f32 %v5139, %v5142
  %v5145 = vmul.f32 %v5106, %v4972
  %v5146 = vadd.f32 %v5144, %v5145
  %5148 = vrot.lane.b32.xlu0 %v5138, 96
  %v5149 = vpop.permute.xlu0 %5148
  %s5151 = scalar_lea.vmem [#allocation7], 8
  %5152 = vst.msk [vmem:[%s5151] sm:$0xff] %vm635, %v5149
  %5154 = vrot.lane.b32.xlu0 %v5146, 32
  %v5155 = vpop.permute.xlu0 %5154
  %s5157 = scalar_lea.vmem [#allocation7], 112
  %5158 = vst.msk [vmem:[%s5157] sm:$0xff] %vm1763, %v5155
  %s5159 = scalar_lea.vmem [#allocation6], 16
  %v5160 = vld [vmem:[%s5159] sm:$0xff]
  %v5161 = vunpack.c.l.bf16 %v5160
  %s5162 = scalar_lea.vmem [#allocation6], 104
  %v5163 = vld [vmem:[%s5162] sm:$0xff]
  %v5164 = vunpack.c.l.bf16 %v5163
  %v5165 = vunpack.c.h.bf16 %v5163
  %v5166 = vpack.c.bf16 %v5138, %v5138
  %5168 = vrot.lane.b32.xlu0 %v5166, 96
  %v5169 = vpop.permute.xlu0 %5168
  %v5171 = vsel %vm635, %v5169, 0
  %5173 = vmatprep.subr.bf16.mxu0 0
  %5174 = vmatpush1.bf16.msra.mxu0 %v4796
  %5175 = vmatprep.subr.bf16.mxu0 0
  %5176 = vmatpush1.bf16.msra.mxu0 %v4797
  %5177 = vmatprep.subr.bf16.mxu0 0
  %5178 = vmatpush1.bf16.msra.mxu0 0
  %5179 = vmatprep.subr.bf16.mxu0 0
  %5180 = vmatpush1.bf16.msra.mxu0 0
  %5181 = vmatprep.subr.bf16.mxu0 0
  %5182 = vmatpush1.bf16.msra.mxu0 0
  %5183 = vmatprep.subr.bf16.mxu0 0
  %5184 = vmatpush1.bf16.msra.mxu0 0
  %5185 = vmatprep.subr.bf16.mxu0 0
  %5186 = vmatpush1.bf16.msra.mxu0 0
  %5187 = vmatprep.subr.bf16.mxu0 0
  %5188 = vmatpush1.bf16.msra.mxu0 0
  %5189 = vmatprep.subr.bf16.mxu0 0
  %5190 = vmatpush1.bf16.msra.mxu0 0
  %5191 = vmatprep.subr.bf16.mxu0 0
  %5192 = vmatpush1.bf16.msra.mxu0 0
  %5193 = vmatprep.subr.bf16.mxu0 0
  %5194 = vmatpush1.bf16.msra.mxu0 0
  %5195 = vmatprep.subr.bf16.mxu0 0
  %5196 = vmatpush1.bf16.msra.mxu0 0
  %5197 = vmatprep.subr.bf16.mxu0 0
  %5198 = vmatpush1.bf16.msra.mxu0 0
  %5199 = vmatprep.subr.bf16.mxu0 0
  %5200 = vmatpush1.bf16.msra.mxu0 0
  %5201 = vmatprep.subr.bf16.mxu0 0
  %5202 = vmatpush1.bf16.msra.mxu0 0
  %5203 = vmatprep.subr.bf16.mxu0 0
  %5204 = vmatpush1.bf16.msra.mxu0 0
  %5205 = vmatprep.mubr.bf16.mxu0 0
  %5206 = vmatmul.mubr.bf16.gmra.mrb[0].mxu0 %v5171
  %v5207 = vpop.f32.mrb[0].mxu0
  %v5208 = vadd.f32 0.0, %v5207
  %v5209 = vpop.f32.mrb[0].mxu0
  %v5210 = vpop.f32.mrb[0].mxu0
  %v5211 = vpop.f32.mrb[0].mxu0
  %5212 = vdwg.mxu0
  %v5213 = vpack.c.bf16 %v5146, %v5146
  %v5215 = vsel %vm635, %v5213, 0
  %5217 = vmatprep.subr.bf16.mxu0 0
  %5218 = vmatpush1.bf16.msra.mxu0 %v4848
  %5219 = vmatprep.subr.bf16.mxu0 0
  %5220 = vmatpush1.bf16.msra.mxu0 %v4849
  %5221 = vmatprep.subr.bf16.mxu0 0
  %5222 = vmatpush1.bf16.msra.mxu0 0
  %5223 = vmatprep.subr.bf16.mxu0 0
  %5224 = vmatpush1.bf16.msra.mxu0 0
  %5225 = vmatprep.subr.bf16.mxu0 0
  %5226 = vmatpush1.bf16.msra.mxu0 0
  %5227 = vmatprep.subr.bf16.mxu0 0
  %5228 = vmatpush1.bf16.msra.mxu0 0
  %5229 = vmatprep.subr.bf16.mxu0 0
  %5230 = vmatpush1.bf16.msra.mxu0 0
  %5231 = vmatprep.subr.bf16.mxu0 0
  %5232 = vmatpush1.bf16.msra.mxu0 0
  %5233 = vmatprep.subr.bf16.mxu0 0
  %5234 = vmatpush1.bf16.msra.mxu0 0
  %5235 = vmatprep.subr.bf16.mxu0 0
  %5236 = vmatpush1.bf16.msra.mxu0 0
  %5237 = vmatprep.subr.bf16.mxu0 0
  %5238 = vmatpush1.bf16.msra.mxu0 0
  %5239 = vmatprep.subr.bf16.mxu0 0
  %5240 = vmatpush1.bf16.msra.mxu0 0
  %5241 = vmatprep.subr.bf16.mxu0 0
  %5242 = vmatpush1.bf16.msra.mxu0 0
  %5243 = vmatprep.subr.bf16.mxu0 0
  %5244 = vmatpush1.bf16.msra.mxu0 0
  %5245 = vmatprep.subr.bf16.mxu0 0
  %5246 = vmatpush1.bf16.msra.mxu0 0
  %5247 = vmatprep.subr.bf16.mxu0 0
  %5248 = vmatpush1.bf16.msra.mxu0 0
  %5249 = vmatprep.mubr.bf16.mxu0 0
  %5250 = vmatmul.mubr.bf16.gmra.mrb[0].mxu0 %v5215
  %v5251 = vpop.f32.mrb[0].mxu0
  %v5252 = vadd.f32 0.0, %v5251
  %v5253 = vpop.f32.mrb[0].mxu0
  %v5254 = vpop.f32.mrb[0].mxu0
  %v5255 = vpop.f32.mrb[0].mxu0
  %5256 = vdwg.mxu0
  %v5257 = vadd.f32 %v5161, %v5208
  %v5258 = vxor.u32 %v5257, 2147483648
  %v5259 = vmul.f32 %v5258, 1.442695
  %v5260 = vpow.pop %v5259
  %v5261 = vadd.f32 %v5260, 1.0
  %v5262 = vrcp.pop %v5261
  %v5263 = vmul.f32 1.0, %v5262
  %5265 = vrot.lane.b32.xlu0 %v5252, 96
  %v5266 = vpop.permute.xlu0 %5265
  %v5268 = vadd.f32 %v5164, %v5266
  %v5269 = vadd.f32 %v5165, %v5266
  %v5270 = vxor.u32 %v5268, 2147483648
  %v5271 = vxor.u32 %v5269, 2147483648
  %v5272 = vmul.f32 %v5270, 1.442695
  %v5273 = vpow.pop %v5272
  %v5274 = vmul.f32 %v5271, 1.442695
  %v5275 = vpow.pop %v5274
  %v5276 = vadd.f32 %v5273, 1.0
  %v5277 = vadd.f32 %v5275, 1.0
  %v5278 = vrcp.pop %v5276
  %v5279 = vmul.f32 1.0, %v5278
  %v5280 = vrcp.pop %v5277
  %v5281 = vmul.f32 1.0, %v5280
  %v5282 = vadd.f32 %v5208, %v4923
  %5284 = vrot.lane.b32.xlu0 %v5282, 64
  %v5285 = vpop.permute.xlu0 %5284
  %v5287 = vmul.f32 %v5263, %v5285
  %5289 = vrot.lane.b32.xlu0 %v5287, 64
  %v5290 = vpop.permute.xlu0 %5289
  %v5292 = vadd.f32 %v5161, %v5290
  %v5293 = vtanh.pop %v5292
  %v5294 = vadd.f32 %v5252, %v4943
  %5296 = vrot.lane.b32.xlu0 %v5294, 32
  %v5297 = vpop.permute.xlu0 %5296
  %v5299 = vmul.f32 %v5279, %v5297
  %5301 = vrot.lane.b32.xlu0 %v5299, 64
  %v5302 = vpop.permute.xlu0 %5301
  %v5304 = vadd.f32 %v5165, %v5302
  %v5305 = vtanh.pop %v5304
  %v5306 = vsub.f32 1.0, %v5263
  %5308 = vrot.lane.b32.xlu0 %v5293, 96
  %v5309 = vpop.permute.xlu0 %5308
  %v5311 = vmul.f32 %v5306, %v5309
  %v5312 = vmul.f32 %v5263, %v5138
  %v5313 = vadd.f32 %v5311, %v5312
  %v5314 = vsub.f32 1.0, %v5281
  %5316 = vrot.lane.b32.xlu0 %v5305, 96
  %v5317 = vpop.permute.xlu0 %5316
  %v5319 = vmul.f32 %v5314, %v5317
  %v5320 = vmul.f32 %v5281, %v5146
  %v5321 = vadd.f32 %v5319, %v5320
  %5323 = vrot.lane.b32.xlu0 %v5313, 96
  %v5324 = vpop.permute.xlu0 %5323
  %s5326 = scalar_lea.vmem [#allocation7], 16
  %5327 = vst.msk [vmem:[%s5326] sm:$0xff] %vm635, %v5324
  %5329 = vrot.lane.b32.xlu0 %v5321, 32
  %v5330 = vpop.permute.xlu0 %5329
  %s5332 = scalar_lea.vmem [#allocation7], 104
  %5333 = vst.msk [vmem:[%s5332] sm:$0xff] %vm1763, %v5330
  %s5334 = scalar_lea.vmem [#allocation6], 24
  %v5335 = vld [vmem:[%s5334] sm:$0xff]
  %v5336 = vunpack.c.l.bf16 %v5335
  %s5337 = scalar_lea.vmem [#allocation6], 96
  %v5338 = vld [vmem:[%s5337] sm:$0xff]
  %v5339 = vunpack.c.l.bf16 %v5338
  %v5340 = vunpack.c.h.bf16 %v5338
  %v5341 = vpack.c.bf16 %v5313, %v5313
  %5343 = vrot.lane.b32.xlu0 %v5341, 96
  %v5344 = vpop.permute.xlu0 %5343
  %v5346 = vsel %vm635, %v5344, 0
  %5348 = vmatprep.subr.bf16.mxu0 0
  %5349 = vmatpush1.bf16.msra.mxu0 %v4796
  %5350 = vmatprep.subr.bf16.mxu0 0
  %5351 = vmatpush1.bf16.msra.mxu0 %v4797
  %5352 = vmatprep.subr.bf16.mxu0 0
  %5353 = vmatpush1.bf16.msra.mxu0 0
  %5354 = vmatprep.subr.bf16.mxu0 0
  %5355 = vmatpush1.bf16.msra.mxu0 0
  %5356 = vmatprep.subr.bf16.mxu0 0
  %5357 = vmatpush1.bf16.msra.mxu0 0
  %5358 = vmatprep.subr.bf16.mxu0 0
  %5359 = vmatpush1.bf16.msra.mxu0 0
  %5360 = vmatprep.subr.bf16.mxu0 0
  %5361 = vmatpush1.bf16.msra.mxu0 0
  %5362 = vmatprep.subr.bf16.mxu0 0
  %5363 = vmatpush1.bf16.msra.mxu0 0
  %5364 = vmatprep.subr.bf16.mxu0 0
  %5365 = vmatpush1.bf16.msra.mxu0 0
  %5366 = vmatprep.subr.bf16.mxu0 0
  %5367 = vmatpush1.bf16.msra.mxu0 0
  %5368 = vmatprep.subr.bf16.mxu0 0
  %5369 = vmatpush1.bf16.msra.mxu0 0
  %5370 = vmatprep.subr.bf16.mxu0 0
  %5371 = vmatpush1.bf16.msra.mxu0 0
  %5372 = vmatprep.subr.bf16.mxu0 0
  %5373 = vmatpush1.bf16.msra.mxu0 0
  %5374 = vmatprep.subr.bf16.mxu0 0
  %5375 = vmatpush1.bf16.msra.mxu0 0
  %5376 = vmatprep.subr.bf16.mxu0 0
  %5377 = vmatpush1.bf16.msra.mxu0 0
  %5378 = vmatprep.subr.bf16.mxu0 0
  %5379 = vmatpush1.bf16.msra.mxu0 0
  %5380 = vmatprep.mubr.bf16.mxu0 0
  %5381 = vmatmul.mubr.bf16.gmra.mrb[0].mxu0 %v5346
  %v5382 = vpop.f32.mrb[0].mxu0
  %v5383 = vadd.f32 0.0, %v5382
  %v5384 = vpop.f32.mrb[0].mxu0
  %v5385 = vpop.f32.mrb[0].mxu0
  %v5386 = vpop.f32.mrb[0].mxu0
  %5387 = vdwg.mxu0
  %v5388 = vpack.c.bf16 %v5321, %v5321
  %v5390 = vsel %vm635, %v5388, 0
  %5392 = vmatprep.subr.bf16.mxu0 0
  %5393 = vmatpush1.bf16.msra.mxu0 %v4848
  %5394 = vmatprep.subr.bf16.mxu0 0
  %5395 = vmatpush1.bf16.msra.mxu0 %v4849
  %5396 = vmatprep.subr.bf16.mxu0 0
  %5397 = vmatpush1.bf16.msra.mxu0 0
  %5398 = vmatprep.subr.bf16.mxu0 0
  %5399 = vmatpush1.bf16.msra.mxu0 0
  %5400 = vmatprep.subr.bf16.mxu0 0
  %5401 = vmatpush1.bf16.msra.mxu0 0
  %5402 = vmatprep.subr.bf16.mxu0 0
  %5403 = vmatpush1.bf16.msra.mxu0 0
  %5404 = vmatprep.subr.bf16.mxu0 0
  %5405 = vmatpush1.bf16.msra.mxu0 0
  %5406 = vmatprep.subr.bf16.mxu0 0
  %5407 = vmatpush1.bf16.msra.mxu0 0
  %5408 = vmatprep.subr.bf16.mxu0 0
  %5409 = vmatpush1.bf16.msra.mxu0 0
  %5410 = vmatprep.subr.bf16.mxu0 0
  %5411 = vmatpush1.bf16.msra.mxu0 0
  %5412 = vmatprep.subr.bf16.mxu0 0
  %5413 = vmatpush1.bf16.msra.mxu0 0
  %5414 = vmatprep.subr.bf16.mxu0 0
  %5415 = vmatpush1.bf16.msra.mxu0 0
  %5416 = vmatprep.subr.bf16.mxu0 0
  %5417 = vmatpush1.bf16.msra.mxu0 0
  %5418 = vmatprep.subr.bf16.mxu0 0
  %5419 = vmatpush1.bf16.msra.mxu0 0
  %5420 = vmatprep.subr.bf16.mxu0 0
  %5421 = vmatpush1.bf16.msra.mxu0 0
  %5422 = vmatprep.subr.bf16.mxu0 0
  %5423 = vmatpush1.bf16.msra.mxu0 0
  %5424 = vmatprep.mubr.bf16.mxu0 0
  %5425 = vmatmul.mubr.bf16.gmra.mrb[0].mxu0 %v5390
  %v5426 = vpop.f32.mrb[0].mxu0
  %v5427 = vadd.f32 0.0, %v5426
  %v5428 = vpop.f32.mrb[0].mxu0
  %v5429 = vpop.f32.mrb[0].mxu0
  %v5430 = vpop.f32.mrb[0].mxu0
  %5431 = vdwg.mxu0
  %v5432 = vadd.f32 %v5336, %v5383
  %v5433 = vxor.u32 %v5432, 2147483648
  %v5434 = vmul.f32 %v5433, 1.442695
  %v5435 = vpow.pop %v5434
  %v5436 = vadd.f32 %v5435, 1.0
  %v5437 = vrcp.pop %v5436
  %v5438 = vmul.f32 1.0, %v5437
  %5440 = vrot.lane.b32.xlu0 %v5427, 96
  %v5441 = vpop.permute.xlu0 %5440
  %v5443 = vadd.f32 %v5339, %v5441
  %v5444 = vadd.f32 %v5340, %v5441
  %v5445 = vxor.u32 %v5443, 2147483648
  %v5446 = vxor.u32 %v5444, 2147483648
  %v5447 = vmul.f32 %v5445, 1.442695
  %v5448 = vpow.pop %v5447
  %v5449 = vmul.f32 %v5446, 1.442695
  %v5450 = vpow.pop %v5449
  %v5451 = vadd.f32 %v5448, 1.0
  %v5452 = vadd.f32 %v5450, 1.0
  %v5453 = vrcp.pop %v5451
  %v5454 = vmul.f32 1.0, %v5453
  %v5455 = vrcp.pop %v5452
  %v5456 = vmul.f32 1.0, %v5455
  %v5457 = vadd.f32 %v5383, %v4923
  %5459 = vrot.lane.b32.xlu0 %v5457, 64
  %v5460 = vpop.permute.xlu0 %5459
  %v5462 = vmul.f32 %v5438, %v5460
  %5464 = vrot.lane.b32.xlu0 %v5462, 64
  %v5465 = vpop.permute.xlu0 %5464
  %v5467 = vadd.f32 %v5336, %v5465
  %v5468 = vtanh.pop %v5467
  %v5469 = vadd.f32 %v5427, %v4943
  %5471 = vrot.lane.b32.xlu0 %v5469, 32
  %v5472 = vpop.permute.xlu0 %5471
  %v5474 = vmul.f32 %v5454, %v5472
  %5476 = vrot.lane.b32.xlu0 %v5474, 64
  %v5477 = vpop.permute.xlu0 %5476
  %v5479 = vadd.f32 %v5340, %v5477
  %v5480 = vtanh.pop %v5479
  %v5481 = vsub.f32 1.0, %v5438
  %5483 = vrot.lane.b32.xlu0 %v5468, 96
  %v5484 = vpop.permute.xlu0 %5483
  %v5486 = vmul.f32 %v5481, %v5484
  %v5487 = vmul.f32 %v5438, %v5313
  %v5488 = vadd.f32 %v5486, %v5487
  %v5489 = vsub.f32 1.0, %v5456
  %5491 = vrot.lane.b32.xlu0 %v5480, 96
  %v5492 = vpop.permute.xlu0 %5491
  %v5494 = vmul.f32 %v5489, %v5492
  %v5495 = vmul.f32 %v5456, %v5321
  %v5496 = vadd.f32 %v5494, %v5495
  %5498 = vrot.lane.b32.xlu0 %v5488, 96
  %v5499 = vpop.permute.xlu0 %5498
  %s5501 = scalar_lea.vmem [#allocation7], 24
  %5502 = vst.msk [vmem:[%s5501] sm:$0xff] %vm635, %v5499
  %5504 = vrot.lane.b32.xlu0 %v5496, 32
  %v5505 = vpop.permute.xlu0 %5504
  %s5507 = scalar_lea.vmem [#allocation7], 96
  %5508 = vst.msk [vmem:[%s5507] sm:$0xff] %vm1763, %v5505
  %s5509 = scalar_lea.vmem [#allocation6], 32
  %v5510 = vld [vmem:[%s5509] sm:$0xff]
  %v5511 = vunpack.c.l.bf16 %v5510
  %s5512 = scalar_lea.vmem [#allocation6], 88
  %v5513 = vld [vmem:[%s5512] sm:$0xff]
  %v5514 = vunpack.c.l.bf16 %v5513
  %v5515 = vunpack.c.h.bf16 %v5513
  %v5516 = vpack.c.bf16 %v5488, %v5488
  %5518 = vrot.lane.b32.xlu0 %v5516, 96
  %v5519 = vpop.permute.xlu0 %5518
  %v5521 = vsel %vm635, %v5519, 0
  %5523 = vmatprep.subr.bf16.mxu0 0
  %5524 = vmatpush1.bf16.msra.mxu0 %v4796
  %5525 = vmatprep.subr.bf16.mxu0 0
  %5526 = vmatpush1.bf16.msra.mxu0 %v4797
  %5527 = vmatprep.subr.bf16.mxu0 0
  %5528 = vmatpush1.bf16.msra.mxu0 0
  %5529 = vmatprep.subr.bf16.mxu0 0
  %5530 = vmatpush1.bf16.msra.mxu0 0
  %5531 = vmatprep.subr.bf16.mxu0 0
  %5532 = vmatpush1.bf16.msra.mxu0 0
  %5533 = vmatprep.subr.bf16.mxu0 0
  %5534 = vmatpush1.bf16.msra.mxu0 0
  %5535 = vmatprep.subr.bf16.mxu0 0
  %5536 = vmatpush1.bf16.msra.mxu0 0
  %5537 = vmatprep.subr.bf16.mxu0 0
  %5538 = vmatpush1.bf16.msra.mxu0 0
  %5539 = vmatprep.subr.bf16.mxu0 0
  %5540 = vmatpush1.bf16.msra.mxu0 0
  %5541 = vmatprep.subr.bf16.mxu0 0
  %5542 = vmatpush1.bf16.msra.mxu0 0
  %5543 = vmatprep.subr.bf16.mxu0 0
  %5544 = vmatpush1.bf16.msra.mxu0 0
  %5545 = vmatprep.subr.bf16.mxu0 0
  %5546 = vmatpush1.bf16.msra.mxu0 0
  %5547 = vmatprep.subr.bf16.mxu0 0
  %5548 = vmatpush1.bf16.msra.mxu0 0
  %5549 = vmatprep.subr.bf16.mxu0 0
  %5550 = vmatpush1.bf16.msra.mxu0 0
  %5551 = vmatprep.subr.bf16.mxu0 0
  %5552 = vmatpush1.bf16.msra.mxu0 0
  %5553 = vmatprep.subr.bf16.mxu0 0
  %5554 = vmatpush1.bf16.msra.mxu0 0
  %5555 = vmatprep.mubr.bf16.mxu0 0
  %5556 = vmatmul.mubr.bf16.gmra.mrb[0].mxu0 %v5521
  %v5557 = vpop.f32.mrb[0].mxu0
  %v5558 = vadd.f32 0.0, %v5557
  %v5559 = vpop.f32.mrb[0].mxu0
  %v5560 = vpop.f32.mrb[0].mxu0
  %v5561 = vpop.f32.mrb[0].mxu0
  %5562 = vdwg.mxu0
  %v5563 = vpack.c.bf16 %v5496, %v5496
  %v5565 = vsel %vm635, %v5563, 0
  %5567 = vmatprep.subr.bf16.mxu0 0
  %5568 = vmatpush1.bf16.msra.mxu0 %v4848
  %5569 = vmatprep.subr.bf16.mxu0 0
  %5570 = vmatpush1.bf16.msra.mxu0 %v4849
  %5571 = vmatprep.subr.bf16.mxu0 0
  %5572 = vmatpush1.bf16.msra.mxu0 0
  %5573 = vmatprep.subr.bf16.mxu0 0
  %5574 = vmatpush1.bf16.msra.mxu0 0
  %5575 = vmatprep.subr.bf16.mxu0 0
  %5576 = vmatpush1.bf16.msra.mxu0 0
  %5577 = vmatprep.subr.bf16.mxu0 0
  %5578 = vmatpush1.bf16.msra.mxu0 0
  %5579 = vmatprep.subr.bf16.mxu0 0
  %5580 = vmatpush1.bf16.msra.mxu0 0
  %5581 = vmatprep.subr.bf16.mxu0 0
  %5582 = vmatpush1.bf16.msra.mxu0 0
  %5583 = vmatprep.subr.bf16.mxu0 0
  %5584 = vmatpush1.bf16.msra.mxu0 0
  %5585 = vmatprep.subr.bf16.mxu0 0
  %5586 = vmatpush1.bf16.msra.mxu0 0
  %5587 = vmatprep.subr.bf16.mxu0 0
  %5588 = vmatpush1.bf16.msra.mxu0 0
  %5589 = vmatprep.subr.bf16.mxu0 0
  %5590 = vmatpush1.bf16.msra.mxu0 0
  %5591 = vmatprep.subr.bf16.mxu0 0
  %5592 = vmatpush1.bf16.msra.mxu0 0
  %5593 = vmatprep.subr.bf16.mxu0 0
  %5594 = vmatpush1.bf16.msra.mxu0 0
  %5595 = vmatprep.subr.bf16.mxu0 0
  %5596 = vmatpush1.bf16.msra.mxu0 0
  %5597 = vmatprep.subr.bf16.mxu0 0
  %5598 = vmatpush1.bf16.msra.mxu0 0
  %5599 = vmatprep.mubr.bf16.mxu0 0
  %5600 = vmatmul.mubr.bf16.gmra.mrb[0].mxu0 %v5565
  %v5601 = vpop.f32.mrb[0].mxu0
  %v5602 = vadd.f32 0.0, %v5601
  %v5603 = vpop.f32.mrb[0].mxu0
  %v5604 = vpop.f32.mrb[0].mxu0
  %v5605 = vpop.f32.mrb[0].mxu0
  %5606 = vdwg.mxu0
  %v5607 = vadd.f32 %v5511, %v5558
  %v5608 = vxor.u32 %v5607, 2147483648
  %v5609 = vmul.f32 %v5608, 1.442695
  %v5610 = vpow.pop %v5609
  %v5611 = vadd.f32 %v5610, 1.0
  %v5612 = vrcp.pop %v5611
  %v5613 = vmul.f32 1.0, %v5612
  %5615 = vrot.lane.b32.xlu0 %v5602, 96
  %v5616 = vpop.permute.xlu0 %5615
  %v5618 = vadd.f32 %v5514, %v5616
  %v5619 = vadd.f32 %v5515, %v5616
  %v5620 = vxor.u32 %v5618, 2147483648
  %v5621 = vxor.u32 %v5619, 2147483648
  %v5622 = vmul.f32 %v5620, 1.442695
  %v5623 = vpow.pop %v5622
  %v5624 = vmul.f32 %v5621, 1.442695
  %v5625 = vpow.pop %v5624
  %v5626 = vadd.f32 %v5623, 1.0
  %v5627 = vadd.f32 %v5625, 1.0
  %v5628 = vrcp.pop %v5626
  %v5629 = vmul.f32 1.0, %v5628
  %v5630 = vrcp.pop %v5627
  %v5631 = vmul.f32 1.0, %v5630
  %v5632 = vadd.f32 %v5558, %v4923
  %5634 = vrot.lane.b32.xlu0 %v5632, 64
  %v5635 = vpop.permute.xlu0 %5634
  %v5637 = vmul.f32 %v5613, %v5635
  %5639 = vrot.lane.b32.xlu0 %v5637, 64
  %v5640 = vpop.permute.xlu0 %5639
  %v5642 = vadd.f32 %v5511, %v5640
  %v5643 = vtanh.pop %v5642
  %v5644 = vadd.f32 %v5602, %v4943
  %5646 = vrot.lane.b32.xlu0 %v5644, 32
  %v5647 = vpop.permute.xlu0 %5646
  %v5649 = vmul.f32 %v5629, %v5647
  %5651 = vrot.lane.b32.xlu0 %v5649, 64
  %v5652 = vpop.permute.xlu0 %5651
  %v5654 = vadd.f32 %v5515, %v5652
  %v5655 = vtanh.pop %v5654
  %v5656 = vsub.f32 1.0, %v5613
  %5658 = vrot.lane.b32.xlu0 %v5643, 96
  %v5659 = vpop.permute.xlu0 %5658
  %v5661 = vmul.f32 %v5656, %v5659
  %v5662 = vmul.f32 %v5613, %v5488
  %v5663 = vadd.f32 %v5661, %v5662
  %v5664 = vsub.f32 1.0, %v5631
  %5666 = vrot.lane.b32.xlu0 %v5655, 96
  %v5667 = vpop.permute.xlu0 %5666
  %v5669 = vmul.f32 %v5664, %v5667
  %v5670 = vmul.f32 %v5631, %v5496
  %v5671 = vadd.f32 %v5669, %v5670
  %5673 = vrot.lane.b32.xlu0 %v5663, 96
  %v5674 = vpop.permute.xlu0 %5673
  %s5676 = scalar_lea.vmem [#allocation7], 32
  %5677 = vst.msk [vmem:[%s5676] sm:$0xff] %vm635, %v5674
  %5679 = vrot.lane.b32.xlu0 %v5671, 32
  %v5680 = vpop.permute.xlu0 %5679
  %s5682 = scalar_lea.vmem [#allocation7], 88
  %5683 = vst.msk [vmem:[%s5682] sm:$0xff] %vm1763, %v5680
  %s5684 = scalar_lea.vmem [#allocation6], 40
  %v5685 = vld [vmem:[%s5684] sm:$0xff]
  %v5686 = vunpack.c.l.bf16 %v5685
  %s5687 = scalar_lea.vmem [#allocation6], 80
  %v5688 = vld [vmem:[%s5687] sm:$0xff]
  %v5689 = vunpack.c.l.bf16 %v5688
  %v5690 = vunpack.c.h.bf16 %v5688
  %v5691 = vpack.c.bf16 %v5663, %v5663
  %5693 = vrot.lane.b32.xlu0 %v5691, 96
  %v5694 = vpop.permute.xlu0 %5693
  %v5696 = vsel %vm635, %v5694, 0
  %5698 = vmatprep.subr.bf16.mxu0 0
  %5699 = vmatpush1.bf16.msra.mxu0 %v4796
  %5700 = vmatprep.subr.bf16.mxu0 0
  %5701 = vmatpush1.bf16.msra.mxu0 %v4797
  %5702 = vmatprep.subr.bf16.mxu0 0
  %5703 = vmatpush1.bf16.msra.mxu0 0
  %5704 = vmatprep.subr.bf16.mxu0 0
  %5705 = vmatpush1.bf16.msra.mxu0 0
  %5706 = vmatprep.subr.bf16.mxu0 0
  %5707 = vmatpush1.bf16.msra.mxu0 0
  %5708 = vmatprep.subr.bf16.mxu0 0
  %5709 = vmatpush1.bf16.msra.mxu0 0
  %5710 = vmatprep.subr.bf16.mxu0 0
  %5711 = vmatpush1.bf16.msra.mxu0 0
  %5712 = vmatprep.subr.bf16.mxu0 0
  %5713 = vmatpush1.bf16.msra.mxu0 0
  %5714 = vmatprep.subr.bf16.mxu0 0
  %5715 = vmatpush1.bf16.msra.mxu0 0
  %5716 = vmatprep.subr.bf16.mxu0 0
  %5717 = vmatpush1.bf16.msra.mxu0 0
  %5718 = vmatprep.subr.bf16.mxu0 0
  %5719 = vmatpush1.bf16.msra.mxu0 0
  %5720 = vmatprep.subr.bf16.mxu0 0
  %5721 = vmatpush1.bf16.msra.mxu0 0
  %5722 = vmatprep.subr.bf16.mxu0 0
  %5723 = vmatpush1.bf16.msra.mxu0 0
  %5724 = vmatprep.subr.bf16.mxu0 0
  %5725 = vmatpush1.bf16.msra.mxu0 0
  %5726 = vmatprep.subr.bf16.mxu0 0
  %5727 = vmatpush1.bf16.msra.mxu0 0
  %5728 = vmatprep.subr.bf16.mxu0 0
  %5729 = vmatpush1.bf16.msra.mxu0 0
  %5730 = vmatprep.mubr.bf16.mxu0 0
  %5731 = vmatmul.mubr.bf16.gmra.mrb[0].mxu0 %v5696
  %v5732 = vpop.f32.mrb[0].mxu0
  %v5733 = vadd.f32 0.0, %v5732
  %v5734 = vpop.f32.mrb[0].mxu0
  %v5735 = vpop.f32.mrb[0].mxu0
  %v5736 = vpop.f32.mrb[0].mxu0
  %5737 = vdwg.mxu0
  %v5738 = vpack.c.bf16 %v5671, %v5671
  %v5740 = vsel %vm635, %v5738, 0
  %5742 = vmatprep.subr.bf16.mxu0 0
  %5743 = vmatpush1.bf16.msra.mxu0 %v4848
  %5744 = vmatprep.subr.bf16.mxu0 0
  %5745 = vmatpush1.bf16.msra.mxu0 %v4849
  %5746 = vmatprep.subr.bf16.mxu0 0
  %5747 = vmatpush1.bf16.msra.mxu0 0
  %5748 = vmatprep.subr.bf16.mxu0 0
  %5749 = vmatpush1.bf16.msra.mxu0 0
  %5750 = vmatprep.subr.bf16.mxu0 0
  %5751 = vmatpush1.bf16.msra.mxu0 0
  %5752 = vmatprep.subr.bf16.mxu0 0
  %5753 = vmatpush1.bf16.msra.mxu0 0
  %5754 = vmatprep.subr.bf16.mxu0 0
  %5755 = vmatpush1.bf16.msra.mxu0 0
  %5756 = vmatprep.subr.bf16.mxu0 0
  %5757 = vmatpush1.bf16.msra.mxu0 0
  %5758 = vmatprep.subr.bf16.mxu0 0
  %5759 = vmatpush1.bf16.msra.mxu0 0
  %5760 = vmatprep.subr.bf16.mxu0 0
  %5761 = vmatpush1.bf16.msra.mxu0 0
  %5762 = vmatprep.subr.bf16.mxu0 0
  %5763 = vmatpush1.bf16.msra.mxu0 0
  %5764 = vmatprep.subr.bf16.mxu0 0
  %5765 = vmatpush1.bf16.msra.mxu0 0
  %5766 = vmatprep.subr.bf16.mxu0 0
  %5767 = vmatpush1.bf16.msra.mxu0 0
  %5768 = vmatprep.subr.bf16.mxu0 0
  %5769 = vmatpush1.bf16.msra.mxu0 0
  %5770 = vmatprep.subr.bf16.mxu0 0
  %5771 = vmatpush1.bf16.msra.mxu0 0
  %5772 = vmatprep.subr.bf16.mxu0 0
  %5773 = vmatpush1.bf16.msra.mxu0 0
  %5774 = vmatprep.mubr.bf16.mxu0 0
  %5775 = vmatmul.mubr.bf16.gmra.mrb[0].mxu0 %v5740
  %v5776 = vpop.f32.mrb[0].mxu0
  %v5777 = vadd.f32 0.0, %v5776
  %v5778 = vpop.f32.mrb[0].mxu0
  %v5779 = vpop.f32.mrb[0].mxu0
  %v5780 = vpop.f32.mrb[0].mxu0
  %5781 = vdwg.mxu0
  %v5782 = vadd.f32 %v5686, %v5733
  %v5783 = vxor.u32 %v5782, 2147483648
  %v5784 = vmul.f32 %v5783, 1.442695
  %v5785 = vpow.pop %v5784
  %v5786 = vadd.f32 %v5785, 1.0
  %v5787 = vrcp.pop %v5786
  %v5788 = vmul.f32 1.0, %v5787
  %5790 = vrot.lane.b32.xlu0 %v5777, 96
  %v5791 = vpop.permute.xlu0 %5790
  %v5793 = vadd.f32 %v5689, %v5791
  %v5794 = vadd.f32 %v5690, %v5791
  %v5795 = vxor.u32 %v5793, 2147483648
  %v5796 = vxor.u32 %v5794, 2147483648
  %v5797 = vmul.f32 %v5795, 1.442695
  %v5798 = vpow.pop %v5797
  %v5799 = vmul.f32 %v5796, 1.442695
  %v5800 = vpow.pop %v5799
  %v5801 = vadd.f32 %v5798, 1.0
  %v5802 = vadd.f32 %v5800, 1.0
  %v5803 = vrcp.pop %v5801
  %v5804 = vmul.f32 1.0, %v5803
  %v5805 = vrcp.pop %v5802
  %v5806 = vmul.f32 1.0, %v5805
  %v5807 = vadd.f32 %v5733, %v4923
  %5809 = vrot.lane.b32.xlu0 %v5807, 64
  %v5810 = vpop.permute.xlu0 %5809
  %v5812 = vmul.f32 %v5788, %v5810
  %5814 = vrot.lane.b32.xlu0 %v5812, 64
  %v5815 = vpop.permute.xlu0 %5814
  %v5817 = vadd.f32 %v5686, %v5815
  %v5818 = vtanh.pop %v5817
  %v5819 = vadd.f32 %v5777, %v4943
  %5821 = vrot.lane.b32.xlu0 %v5819, 32
  %v5822 = vpop.permute.xlu0 %5821
  %v5824 = vmul.f32 %v5804, %v5822
  %5826 = vrot.lane.b32.xlu0 %v5824, 64
  %v5827 = vpop.permute.xlu0 %5826
  %v5829 = vadd.f32 %v5690, %v5827
  %v5830 = vtanh.pop %v5829
  %v5831 = vsub.f32 1.0, %v5788
  %5833 = vrot.lane.b32.xlu0 %v5818, 96
  %v5834 = vpop.permute.xlu0 %5833
  %v5836 = vmul.f32 %v5831, %v5834
  %v5837 = vmul.f32 %v5788, %v5663
  %v5838 = vadd.f32 %v5836, %v5837
  %v5839 = vsub.f32 1.0, %v5806
  %5841 = vrot.lane.b32.xlu0 %v5830, 96
  %v5842 = vpop.permute.xlu0 %5841
  %v5844 = vmul.f32 %v5839, %v5842
  %v5845 = vmul.f32 %v5806, %v5671
  %v5846 = vadd.f32 %v5844, %v5845
  %5848 = vrot.lane.b32.xlu0 %v5838, 96
  %v5849 = vpop.permute.xlu0 %5848
  %s5851 = scalar_lea.vmem [#allocation7], 40
  %5852 = vst.msk [vmem:[%s5851] sm:$0xff] %vm635, %v5849
  %5854 = vrot.lane.b32.xlu0 %v5846, 32
  %v5855 = vpop.permute.xlu0 %5854
  %s5857 = scalar_lea.vmem [#allocation7], 80
  %5858 = vst.msk [vmem:[%s5857] sm:$0xff] %vm1763, %v5855
  %s5859 = scalar_lea.vmem [#allocation6], 48
  %v5860 = vld [vmem:[%s5859] sm:$0xff]
  %v5861 = vunpack.c.l.bf16 %v5860
  %s5862 = scalar_lea.vmem [#allocation6], 72
  %v5863 = vld [vmem:[%s5862] sm:$0xff]
  %v5864 = vunpack.c.l.bf16 %v5863
  %v5865 = vunpack.c.h.bf16 %v5863
  %v5866 = vpack.c.bf16 %v5838, %v5838
  %5868 = vrot.lane.b32.xlu0 %v5866, 96
  %v5869 = vpop.permute.xlu0 %5868
  %v5871 = vsel %vm635, %v5869, 0
  %5873 = vmatprep.subr.bf16.mxu0 0
  %5874 = vmatpush1.bf16.msra.mxu0 %v4796
  %5875 = vmatprep.subr.bf16.mxu0 0
  %5876 = vmatpush1.bf16.msra.mxu0 %v4797
  %5877 = vmatprep.subr.bf16.mxu0 0
  %5878 = vmatpush1.bf16.msra.mxu0 0
  %5879 = vmatprep.subr.bf16.mxu0 0
  %5880 = vmatpush1.bf16.msra.mxu0 0
  %5881 = vmatprep.subr.bf16.mxu0 0
  %5882 = vmatpush1.bf16.msra.mxu0 0
  %5883 = vmatprep.subr.bf16.mxu0 0
  %5884 = vmatpush1.bf16.msra.mxu0 0
  %5885 = vmatprep.subr.bf16.mxu0 0
  %5886 = vmatpush1.bf16.msra.mxu0 0
  %5887 = vmatprep.subr.bf16.mxu0 0
  %5888 = vmatpush1.bf16.msra.mxu0 0
  %5889 = vmatprep.subr.bf16.mxu0 0
  %5890 = vmatpush1.bf16.msra.mxu0 0
  %5891 = vmatprep.subr.bf16.mxu0 0
  %5892 = vmatpush1.bf16.msra.mxu0 0
  %5893 = vmatprep.subr.bf16.mxu0 0
  %5894 = vmatpush1.bf16.msra.mxu0 0
  %5895 = vmatprep.subr.bf16.mxu0 0
  %5896 = vmatpush1.bf16.msra.mxu0 0
  %5897 = vmatprep.subr.bf16.mxu0 0
  %5898 = vmatpush1.bf16.msra.mxu0 0
  %5899 = vmatprep.subr.bf16.mxu0 0
  %5900 = vmatpush1.bf16.msra.mxu0 0
  %5901 = vmatprep.subr.bf16.mxu0 0
  %5902 = vmatpush1.bf16.msra.mxu0 0
  %5903 = vmatprep.subr.bf16.mxu0 0
  %5904 = vmatpush1.bf16.msra.mxu0 0
  %5905 = vmatprep.mubr.bf16.mxu0 0
  %5906 = vmatmul.mubr.bf16.gmra.mrb[0].mxu0 %v5871
  %v5907 = vpop.f32.mrb[0].mxu0
  %v5908 = vadd.f32 0.0, %v5907
  %v5909 = vpop.f32.mrb[0].mxu0
  %v5910 = vpop.f32.mrb[0].mxu0
  %v5911 = vpop.f32.mrb[0].mxu0
  %5912 = vdwg.mxu0
  %v5913 = vpack.c.bf16 %v5846, %v5846
  %v5915 = vsel %vm635, %v5913, 0
  %5917 = vmatprep.subr.bf16.mxu0 0
  %5918 = vmatpush1.bf16.msra.mxu0 %v4848
  %5919 = vmatprep.subr.bf16.mxu0 0
  %5920 = vmatpush1.bf16.msra.mxu0 %v4849
  %5921 = vmatprep.subr.bf16.mxu0 0
  %5922 = vmatpush1.bf16.msra.mxu0 0
  %5923 = vmatprep.subr.bf16.mxu0 0
  %5924 = vmatpush1.bf16.msra.mxu0 0
  %5925 = vmatprep.subr.bf16.mxu0 0
  %5926 = vmatpush1.bf16.msra.mxu0 0
  %5927 = vmatprep.subr.bf16.mxu0 0
  %5928 = vmatpush1.bf16.msra.mxu0 0
  %5929 = vmatprep.subr.bf16.mxu0 0
  %5930 = vmatpush1.bf16.msra.mxu0 0
  %5931 = vmatprep.subr.bf16.mxu0 0
  %5932 = vmatpush1.bf16.msra.mxu0 0
  %5933 = vmatprep.subr.bf16.mxu0 0
  %5934 = vmatpush1.bf16.msra.mxu0 0
  %5935 = vmatprep.subr.bf16.mxu0 0
  %5936 = vmatpush1.bf16.msra.mxu0 0
  %5937 = vmatprep.subr.bf16.mxu0 0
  %5938 = vmatpush1.bf16.msra.mxu0 0
  %5939 = vmatprep.subr.bf16.mxu0 0
  %5940 = vmatpush1.bf16.msra.mxu0 0
  %5941 = vmatprep.subr.bf16.mxu0 0
  %5942 = vmatpush1.bf16.msra.mxu0 0
  %5943 = vmatprep.subr.bf16.mxu0 0
  %5944 = vmatpush1.bf16.msra.mxu0 0
  %5945 = vmatprep.subr.bf16.mxu0 0
  %5946 = vmatpush1.bf16.msra.mxu0 0
  %5947 = vmatprep.subr.bf16.mxu0 0
  %5948 = vmatpush1.bf16.msra.mxu0 0
  %5949 = vmatprep.mubr.bf16.mxu0 0
  %5950 = vmatmul.mubr.bf16.gmra.mrb[0].mxu0 %v5915
  %v5951 = vpop.f32.mrb[0].mxu0
  %v5952 = vadd.f32 0.0, %v5951
  %v5953 = vpop.f32.mrb[0].mxu0
  %v5954 = vpop.f32.mrb[0].mxu0
  %v5955 = vpop.f32.mrb[0].mxu0
  %5956 = vdwg.mxu0
  %v5957 = vadd.f32 %v5861, %v5908
  %v5958 = vxor.u32 %v5957, 2147483648
  %v5959 = vmul.f32 %v5958, 1.442695
  %v5960 = vpow.pop %v5959
  %v5961 = vadd.f32 %v5960, 1.0
  %v5962 = vrcp.pop %v5961
  %v5963 = vmul.f32 1.0, %v5962
  %5965 = vrot.lane.b32.xlu0 %v5952, 96
  %v5966 = vpop.permute.xlu0 %5965
  %v5968 = vadd.f32 %v5864, %v5966
  %v5969 = vadd.f32 %v5865, %v5966
  %v5970 = vxor.u32 %v5968, 2147483648
  %v5971 = vxor.u32 %v5969, 2147483648
  %v5972 = vmul.f32 %v5970, 1.442695
  %v5973 = vpow.pop %v5972
  %v5974 = vmul.f32 %v5971, 1.442695
  %v5975 = vpow.pop %v5974
  %v5976 = vadd.f32 %v5973, 1.0
  %v5977 = vadd.f32 %v5975, 1.0
  %v5978 = vrcp.pop %v5976
  %v5979 = vmul.f32 1.0, %v5978
  %v5980 = vrcp.pop %v5977
  %v5981 = vmul.f32 1.0, %v5980
  %v5982 = vadd.f32 %v5908, %v4923
  %5984 = vrot.lane.b32.xlu0 %v5982, 64
  %v5985 = vpop.permute.xlu0 %5984
  %v5987 = vmul.f32 %v5963, %v5985
  %5989 = vrot.lane.b32.xlu0 %v5987, 64
  %v5990 = vpop.permute.xlu0 %5989
  %v5992 = vadd.f32 %v5861, %v5990
  %v5993 = vtanh.pop %v5992
  %v5994 = vadd.f32 %v5952, %v4943
  %5996 = vrot.lane.b32.xlu0 %v5994, 32
  %v5997 = vpop.permute.xlu0 %5996
  %v5999 = vmul.f32 %v5979, %v5997
  %6001 = vrot.lane.b32.xlu0 %v5999, 64
  %v6002 = vpop.permute.xlu0 %6001
  %v6004 = vadd.f32 %v5865, %v6002
  %v6005 = vtanh.pop %v6004
  %v6006 = vsub.f32 1.0, %v5963
  %6008 = vrot.lane.b32.xlu0 %v5993, 96
  %v6009 = vpop.permute.xlu0 %6008
  %v6011 = vmul.f32 %v6006, %v6009
  %v6012 = vmul.f32 %v5963, %v5838
  %v6013 = vadd.f32 %v6011, %v6012
  %v6014 = vsub.f32 1.0, %v5981
  %6016 = vrot.lane.b32.xlu0 %v6005, 96
  %v6017 = vpop.permute.xlu0 %6016
  %v6019 = vmul.f32 %v6014, %v6017
  %v6020 = vmul.f32 %v5981, %v5846
  %v6021 = vadd.f32 %v6019, %v6020
  %6023 = vrot.lane.b32.xlu0 %v6013, 96
  %v6024 = vpop.permute.xlu0 %6023
  %s6026 = scalar_lea.vmem [#allocation7], 48
  %6027 = vst.msk [vmem:[%s6026] sm:$0xff] %vm635, %v6024
  %6029 = vrot.lane.b32.xlu0 %v6021, 32
  %v6030 = vpop.permute.xlu0 %6029
  %s6032 = scalar_lea.vmem [#allocation7], 72
  %6033 = vst.msk [vmem:[%s6032] sm:$0xff] %vm1763, %v6030
  %s6034 = scalar_lea.vmem [#allocation6], 56
  %v6035 = vld [vmem:[%s6034] sm:$0xff]
  %v6036 = vunpack.c.l.bf16 %v6035
  %s6037 = scalar_lea.vmem [#allocation6], 64
  %v6038 = vld [vmem:[%s6037] sm:$0xff]
  %v6039 = vunpack.c.l.bf16 %v6038
  %v6040 = vunpack.c.h.bf16 %v6038
  %v6041 = vpack.c.bf16 %v6013, %v6013
  %6043 = vrot.lane.b32.xlu0 %v6041, 96
  %v6044 = vpop.permute.xlu0 %6043
  %v6046 = vsel %vm635, %v6044, 0
  %6048 = vmatprep.subr.bf16.mxu0 0
  %6049 = vmatpush1.bf16.msra.mxu0 %v4796
  %6050 = vmatprep.subr.bf16.mxu0 0
  %6051 = vmatpush1.bf16.msra.mxu0 %v4797
  %6052 = vmatprep.subr.bf16.mxu0 0
  %6053 = vmatpush1.bf16.msra.mxu0 0
  %6054 = vmatprep.subr.bf16.mxu0 0
  %6055 = vmatpush1.bf16.msra.mxu0 0
  %6056 = vmatprep.subr.bf16.mxu0 0
  %6057 = vmatpush1.bf16.msra.mxu0 0
  %6058 = vmatprep.subr.bf16.mxu0 0
  %6059 = vmatpush1.bf16.msra.mxu0 0
  %6060 = vmatprep.subr.bf16.mxu0 0
  %6061 = vmatpush1.bf16.msra.mxu0 0
  %6062 = vmatprep.subr.bf16.mxu0 0
  %6063 = vmatpush1.bf16.msra.mxu0 0
  %6064 = vmatprep.subr.bf16.mxu0 0
  %6065 = vmatpush1.bf16.msra.mxu0 0
  %6066 = vmatprep.subr.bf16.mxu0 0
  %6067 = vmatpush1.bf16.msra.mxu0 0
  %6068 = vmatprep.subr.bf16.mxu0 0
  %6069 = vmatpush1.bf16.msra.mxu0 0
  %6070 = vmatprep.subr.bf16.mxu0 0
  %6071 = vmatpush1.bf16.msra.mxu0 0
  %6072 = vmatprep.subr.bf16.mxu0 0
  %6073 = vmatpush1.bf16.msra.mxu0 0
  %6074 = vmatprep.subr.bf16.mxu0 0
  %6075 = vmatpush1.bf16.msra.mxu0 0
  %6076 = vmatprep.subr.bf16.mxu0 0
  %6077 = vmatpush1.bf16.msra.mxu0 0
  %6078 = vmatprep.subr.bf16.mxu0 0
  %6079 = vmatpush1.bf16.msra.mxu0 0
  %6080 = vmatprep.mubr.bf16.mxu0 0
  %6081 = vmatmul.mubr.bf16.gmra.mrb[0].mxu0 %v6046
  %v6082 = vpop.f32.mrb[0].mxu0
  %v6083 = vadd.f32 0.0, %v6082
  %v6084 = vpop.f32.mrb[0].mxu0
  %v6085 = vpop.f32.mrb[0].mxu0
  %v6086 = vpop.f32.mrb[0].mxu0
  %6087 = vdwg.mxu0
  %v6088 = vpack.c.bf16 %v6021, %v6021
  %v6090 = vsel %vm635, %v6088, 0
  %6092 = vmatprep.subr.bf16.mxu0 0
  %6093 = vmatpush1.bf16.msra.mxu0 %v4848
  %6094 = vmatprep.subr.bf16.mxu0 0
  %6095 = vmatpush1.bf16.msra.mxu0 %v4849
  %6096 = vmatprep.subr.bf16.mxu0 0
  %6097 = vmatpush1.bf16.msra.mxu0 0
  %6098 = vmatprep.subr.bf16.mxu0 0
  %6099 = vmatpush1.bf16.msra.mxu0 0
  %6100 = vmatprep.subr.bf16.mxu0 0
  %6101 = vmatpush1.bf16.msra.mxu0 0
  %6102 = vmatprep.subr.bf16.mxu0 0
  %6103 = vmatpush1.bf16.msra.mxu0 0
  %6104 = vmatprep.subr.bf16.mxu0 0
  %6105 = vmatpush1.bf16.msra.mxu0 0
  %6106 = vmatprep.subr.bf16.mxu0 0
  %6107 = vmatpush1.bf16.msra.mxu0 0
  %6108 = vmatprep.subr.bf16.mxu0 0
  %6109 = vmatpush1.bf16.msra.mxu0 0
  %6110 = vmatprep.subr.bf16.mxu0 0
  %6111 = vmatpush1.bf16.msra.mxu0 0
  %6112 = vmatprep.subr.bf16.mxu0 0
  %6113 = vmatpush1.bf16.msra.mxu0 0
  %6114 = vmatprep.subr.bf16.mxu0 0
  %6115 = vmatpush1.bf16.msra.mxu0 0
  %6116 = vmatprep.subr.bf16.mxu0 0
  %6117 = vmatpush1.bf16.msra.mxu0 0
  %6118 = vmatprep.subr.bf16.mxu0 0
  %6119 = vmatpush1.bf16.msra.mxu0 0
  %6120 = vmatprep.subr.bf16.mxu0 0
  %6121 = vmatpush1.bf16.msra.mxu0 0
  %6122 = vmatprep.subr.bf16.mxu0 0
  %6123 = vmatpush1.bf16.msra.mxu0 0
  %6124 = vmatprep.mubr.bf16.mxu0 0
  %6125 = vmatmul.mubr.bf16.gmra.mrb[0].mxu0 %v6090
  %v6126 = vpop.f32.mrb[0].mxu0
  %v6127 = vadd.f32 0.0, %v6126
  %v6128 = vpop.f32.mrb[0].mxu0
  %v6129 = vpop.f32.mrb[0].mxu0
  %v6130 = vpop.f32.mrb[0].mxu0
  %6131 = vdwg.mxu0
  %v6132 = vadd.f32 %v6036, %v6083
  %v6133 = vxor.u32 %v6132, 2147483648
  %v6134 = vmul.f32 %v6133, 1.442695
  %v6135 = vpow.pop %v6134
  %v6136 = vadd.f32 %v6135, 1.0
  %v6137 = vrcp.pop %v6136
  %v6138 = vmul.f32 1.0, %v6137
  %6140 = vrot.lane.b32.xlu0 %v6127, 96
  %v6141 = vpop.permute.xlu0 %6140
  %v6143 = vadd.f32 %v6039, %v6141
  %v6144 = vadd.f32 %v6040, %v6141
  %v6145 = vxor.u32 %v6143, 2147483648
  %v6146 = vxor.u32 %v6144, 2147483648
  %v6147 = vmul.f32 %v6145, 1.442695
  %v6148 = vpow.pop %v6147
  %v6149 = vmul.f32 %v6146, 1.442695
  %v6150 = vpow.pop %v6149
  %v6151 = vadd.f32 %v6148, 1.0
  %v6152 = vadd.f32 %v6150, 1.0
  %v6153 = vrcp.pop %v6151
  %v6154 = vmul.f32 1.0, %v6153
  %v6155 = vrcp.pop %v6152
  %v6156 = vmul.f32 1.0, %v6155
  %v6157 = vadd.f32 %v6083, %v4923
  %6159 = vrot.lane.b32.xlu0 %v6157, 64
  %v6160 = vpop.permute.xlu0 %6159
  %v6162 = vmul.f32 %v6138, %v6160
  %6164 = vrot.lane.b32.xlu0 %v6162, 64
  %v6165 = vpop.permute.xlu0 %6164
  %v6167 = vadd.f32 %v6036, %v6165
  %v6168 = vtanh.pop %v6167
  %v6169 = vadd.f32 %v6127, %v4943
  %6171 = vrot.lane.b32.xlu0 %v6169, 32
  %v6172 = vpop.permute.xlu0 %6171
  %v6174 = vmul.f32 %v6154, %v6172
  %6176 = vrot.lane.b32.xlu0 %v6174, 64
  %v6177 = vpop.permute.xlu0 %6176
  %v6179 = vadd.f32 %v6040, %v6177
  %v6180 = vtanh.pop %v6179
  %v6181 = vsub.f32 1.0, %v6138
  %6183 = vrot.lane.b32.xlu0 %v6168, 96
  %v6184 = vpop.permute.xlu0 %6183
  %v6186 = vmul.f32 %v6181, %v6184
  %v6187 = vmul.f32 %v6138, %v6013
  %v6188 = vadd.f32 %v6186, %v6187
  %v6189 = vsub.f32 1.0, %v6156
  %6191 = vrot.lane.b32.xlu0 %v6180, 96
  %v6192 = vpop.permute.xlu0 %6191
  %v6194 = vmul.f32 %v6189, %v6192
  %v6195 = vmul.f32 %v6156, %v6021
  %v6196 = vadd.f32 %v6194, %v6195
  %6198 = vrot.lane.b32.xlu0 %v6188, 96
  %v6199 = vpop.permute.xlu0 %6198
  %s6201 = scalar_lea.vmem [#allocation7], 56
  %6202 = vst.msk [vmem:[%s6201] sm:$0xff] %vm635, %v6199
  %6204 = vrot.lane.b32.xlu0 %v6196, 32
  %v6205 = vpop.permute.xlu0 %6204
  %s6207 = scalar_lea.vmem [#allocation7], 64
  %6208 = vst.msk [vmem:[%s6207] sm:$0xff] %vm1763, %v6205
  %v6209 = vld [vmem:[%s6037] sm:$0xff]
  %v6210 = vunpack.c.l.bf16 %v6209
  %v6211 = vld [vmem:[%s6034] sm:$0xff]
  %v6212 = vunpack.c.l.bf16 %v6211
  %v6213 = vunpack.c.h.bf16 %v6211
  %v6214 = vpack.c.bf16 %v6188, %v6188
  %6216 = vrot.lane.b32.xlu0 %v6214, 96
  %v6217 = vpop.permute.xlu0 %6216
  %v6219 = vsel %vm635, %v6217, 0
  %6221 = vmatprep.subr.bf16.mxu0 0
  %6222 = vmatpush1.bf16.msra.mxu0 %v4796
  %6223 = vmatprep.subr.bf16.mxu0 0
  %6224 = vmatpush1.bf16.msra.mxu0 %v4797
  %6225 = vmatprep.subr.bf16.mxu0 0
  %6226 = vmatpush1.bf16.msra.mxu0 0
  %6227 = vmatprep.subr.bf16.mxu0 0
  %6228 = vmatpush1.bf16.msra.mxu0 0
  %6229 = vmatprep.subr.bf16.mxu0 0
  %6230 = vmatpush1.bf16.msra.mxu0 0
  %6231 = vmatprep.subr.bf16.mxu0 0
  %6232 = vmatpush1.bf16.msra.mxu0 0
  %6233 = vmatprep.subr.bf16.mxu0 0
  %6234 = vmatpush1.bf16.msra.mxu0 0
  %6235 = vmatprep.subr.bf16.mxu0 0
  %6236 = vmatpush1.bf16.msra.mxu0 0
  %6237 = vmatprep.subr.bf16.mxu0 0
  %6238 = vmatpush1.bf16.msra.mxu0 0
  %6239 = vmatprep.subr.bf16.mxu0 0
  %6240 = vmatpush1.bf16.msra.mxu0 0
  %6241 = vmatprep.subr.bf16.mxu0 0
  %6242 = vmatpush1.bf16.msra.mxu0 0
  %6243 = vmatprep.subr.bf16.mxu0 0
  %6244 = vmatpush1.bf16.msra.mxu0 0
  %6245 = vmatprep.subr.bf16.mxu0 0
  %6246 = vmatpush1.bf16.msra.mxu0 0
  %6247 = vmatprep.subr.bf16.mxu0 0
  %6248 = vmatpush1.bf16.msra.mxu0 0
  %6249 = vmatprep.subr.bf16.mxu0 0
  %6250 = vmatpush1.bf16.msra.mxu0 0
  %6251 = vmatprep.subr.bf16.mxu0 0
  %6252 = vmatpush1.bf16.msra.mxu0 0
  %6253 = vmatprep.mubr.bf16.mxu0 0
  %6254 = vmatmul.mubr.bf16.gmra.mrb[0].mxu0 %v6219
  %v6255 = vpop.f32.mrb[0].mxu0
  %v6256 = vadd.f32 0.0, %v6255
  %v6257 = vpop.f32.mrb[0].mxu0
  %v6258 = vpop.f32.mrb[0].mxu0
  %v6259 = vpop.f32.mrb[0].mxu0
  %6260 = vdwg.mxu0
  %v6261 = vpack.c.bf16 %v6196, %v6196
  %v6263 = vsel %vm635, %v6261, 0
  %6265 = vmatprep.subr.bf16.mxu0 0
  %6266 = vmatpush1.bf16.msra.mxu0 %v4848
  %6267 = vmatprep.subr.bf16.mxu0 0
  %6268 = vmatpush1.bf16.msra.mxu0 %v4849
  %6269 = vmatprep.subr.bf16.mxu0 0
  %6270 = vmatpush1.bf16.msra.mxu0 0
  %6271 = vmatprep.subr.bf16.mxu0 0
  %6272 = vmatpush1.bf16.msra.mxu0 0
  %6273 = vmatprep.subr.bf16.mxu0 0
  %6274 = vmatpush1.bf16.msra.mxu0 0
  %6275 = vmatprep.subr.bf16.mxu0 0
  %6276 = vmatpush1.bf16.msra.mxu0 0
  %6277 = vmatprep.subr.bf16.mxu0 0
  %6278 = vmatpush1.bf16.msra.mxu0 0
  %6279 = vmatprep.subr.bf16.mxu0 0
  %6280 = vmatpush1.bf16.msra.mxu0 0
  %6281 = vmatprep.subr.bf16.mxu0 0
  %6282 = vmatpush1.bf16.msra.mxu0 0
  %6283 = vmatprep.subr.bf16.mxu0 0
  %6284 = vmatpush1.bf16.msra.mxu0 0
  %6285 = vmatprep.subr.bf16.mxu0 0
  %6286 = vmatpush1.bf16.msra.mxu0 0
  %6287 = vmatprep.subr.bf16.mxu0 0
  %6288 = vmatpush1.bf16.msra.mxu0 0
  %6289 = vmatprep.subr.bf16.mxu0 0
  %6290 = vmatpush1.bf16.msra.mxu0 0
  %6291 = vmatprep.subr.bf16.mxu0 0
  %6292 = vmatpush1.bf16.msra.mxu0 0
  %6293 = vmatprep.subr.bf16.mxu0 0
  %6294 = vmatpush1.bf16.msra.mxu0 0
  %6295 = vmatprep.subr.bf16.mxu0 0
  %6296 = vmatpush1.bf16.msra.mxu0 0
  %6297 = vmatprep.mubr.bf16.mxu0 0
  %6298 = vmatmul.mubr.bf16.gmra.mrb[0].mxu0 %v6263
  %v6299 = vpop.f32.mrb[0].mxu0
  %v6300 = vadd.f32 0.0, %v6299
  %v6301 = vpop.f32.mrb[0].mxu0
  %v6302 = vpop.f32.mrb[0].mxu0
  %v6303 = vpop.f32.mrb[0].mxu0
  %6304 = vdwg.mxu0
  %v6305 = vadd.f32 %v6210, %v6256
  %v6306 = vxor.u32 %v6305, 2147483648
  %v6307 = vmul.f32 %v6306, 1.442695
  %v6308 = vpow.pop %v6307
  %v6309 = vadd.f32 %v6308, 1.0
  %v6310 = vrcp.pop %v6309
  %v6311 = vmul.f32 1.0, %v6310
  %6313 = vrot.lane.b32.xlu0 %v6300, 96
  %v6314 = vpop.permute.xlu0 %6313
  %v6316 = vadd.f32 %v6212, %v6314
  %v6317 = vadd.f32 %v6213, %v6314
  %v6318 = vxor.u32 %v6316, 2147483648
  %v6319 = vxor.u32 %v6317, 2147483648
  %v6320 = vmul.f32 %v6318, 1.442695
  %v6321 = vpow.pop %v6320
  %v6322 = vmul.f32 %v6319, 1.442695
  %v6323 = vpow.pop %v6322
  %v6324 = vadd.f32 %v6321, 1.0
  %v6325 = vadd.f32 %v6323, 1.0
  %v6326 = vrcp.pop %v6324
  %v6327 = vmul.f32 1.0, %v6326
  %v6328 = vrcp.pop %v6325
  %v6329 = vmul.f32 1.0, %v6328
  %v6330 = vadd.f32 %v6256, %v4923
  %6332 = vrot.lane.b32.xlu0 %v6330, 64
  %v6333 = vpop.permute.xlu0 %6332
  %v6335 = vmul.f32 %v6311, %v6333
  %6337 = vrot.lane.b32.xlu0 %v6335, 64
  %v6338 = vpop.permute.xlu0 %6337
  %v6340 = vadd.f32 %v6210, %v6338
  %v6341 = vtanh.pop %v6340
  %v6342 = vadd.f32 %v6300, %v4943
  %6344 = vrot.lane.b32.xlu0 %v6342, 32
  %v6345 = vpop.permute.xlu0 %6344
  %v6347 = vmul.f32 %v6327, %v6345
  %6349 = vrot.lane.b32.xlu0 %v6347, 64
  %v6350 = vpop.permute.xlu0 %6349
  %v6352 = vadd.f32 %v6213, %v6350
  %v6353 = vtanh.pop %v6352
  %v6354 = vsub.f32 1.0, %v6311
  %6356 = vrot.lane.b32.xlu0 %v6341, 96
  %v6357 = vpop.permute.xlu0 %6356
  %v6359 = vmul.f32 %v6354, %v6357
  %v6360 = vmul.f32 %v6311, %v6188
  %v6361 = vadd.f32 %v6359, %v6360
  %v6362 = vsub.f32 1.0, %v6329
  %6364 = vrot.lane.b32.xlu0 %v6353, 96
  %v6365 = vpop.permute.xlu0 %6364
  %v6367 = vmul.f32 %v6362, %v6365
  %v6368 = vmul.f32 %v6329, %v6196
  %v6369 = vadd.f32 %v6367, %v6368
  %6371 = vrot.lane.b32.xlu0 %v6361, 96
  %v6372 = vpop.permute.xlu0 %6371
  %6374 = vst.msk [vmem:[%s6207] sm:$0xff] %vm635, %v6372
  %6376 = vrot.lane.b32.xlu0 %v6369, 32
  %v6377 = vpop.permute.xlu0 %6376
  %6379 = vst.msk [vmem:[%s6201] sm:$0xff] %vm1763, %v6377
  %v6380 = vld [vmem:[%s5862] sm:$0xff]
  %v6381 = vunpack.c.l.bf16 %v6380
  %v6382 = vld [vmem:[%s5859] sm:$0xff]
  %v6383 = vunpack.c.l.bf16 %v6382
  %v6384 = vunpack.c.h.bf16 %v6382
  %v6385 = vpack.c.bf16 %v6361, %v6361
  %6387 = vrot.lane.b32.xlu0 %v6385, 96
  %v6388 = vpop.permute.xlu0 %6387
  %v6390 = vsel %vm635, %v6388, 0
  %6392 = vmatprep.subr.bf16.mxu0 0
  %6393 = vmatpush1.bf16.msra.mxu0 %v4796
  %6394 = vmatprep.subr.bf16.mxu0 0
  %6395 = vmatpush1.bf16.msra.mxu0 %v4797
  %6396 = vmatprep.subr.bf16.mxu0 0
  %6397 = vmatpush1.bf16.msra.mxu0 0
  %6398 = vmatprep.subr.bf16.mxu0 0
  %6399 = vmatpush1.bf16.msra.mxu0 0
  %6400 = vmatprep.subr.bf16.mxu0 0
  %6401 = vmatpush1.bf16.msra.mxu0 0
  %6402 = vmatprep.subr.bf16.mxu0 0
  %6403 = vmatpush1.bf16.msra.mxu0 0
  %6404 = vmatprep.subr.bf16.mxu0 0
  %6405 = vmatpush1.bf16.msra.mxu0 0
  %6406 = vmatprep.subr.bf16.mxu0 0
  %6407 = vmatpush1.bf16.msra.mxu0 0
  %6408 = vmatprep.subr.bf16.mxu0 0
  %6409 = vmatpush1.bf16.msra.mxu0 0
  %6410 = vmatprep.subr.bf16.mxu0 0
  %6411 = vmatpush1.bf16.msra.mxu0 0
  %6412 = vmatprep.subr.bf16.mxu0 0
  %6413 = vmatpush1.bf16.msra.mxu0 0
  %6414 = vmatprep.subr.bf16.mxu0 0
  %6415 = vmatpush1.bf16.msra.mxu0 0
  %6416 = vmatprep.subr.bf16.mxu0 0
  %6417 = vmatpush1.bf16.msra.mxu0 0
  %6418 = vmatprep.subr.bf16.mxu0 0
  %6419 = vmatpush1.bf16.msra.mxu0 0
  %6420 = vmatprep.subr.bf16.mxu0 0
  %6421 = vmatpush1.bf16.msra.mxu0 0
  %6422 = vmatprep.subr.bf16.mxu0 0
  %6423 = vmatpush1.bf16.msra.mxu0 0
  %6424 = vmatprep.mubr.bf16.mxu0 0
  %6425 = vmatmul.mubr.bf16.gmra.mrb[0].mxu0 %v6390
  %v6426 = vpop.f32.mrb[0].mxu0
  %v6427 = vadd.f32 0.0, %v6426
  %v6428 = vpop.f32.mrb[0].mxu0
  %v6429 = vpop.f32.mrb[0].mxu0
  %v6430 = vpop.f32.mrb[0].mxu0
  %6431 = vdwg.mxu0
  %v6432 = vpack.c.bf16 %v6369, %v6369
  %v6434 = vsel %vm635, %v6432, 0
  %6436 = vmatprep.subr.bf16.mxu0 0
  %6437 = vmatpush1.bf16.msra.mxu0 %v4848
  %6438 = vmatprep.subr.bf16.mxu0 0
  %6439 = vmatpush1.bf16.msra.mxu0 %v4849
  %6440 = vmatprep.subr.bf16.mxu0 0
  %6441 = vmatpush1.bf16.msra.mxu0 0
  %6442 = vmatprep.subr.bf16.mxu0 0
  %6443 = vmatpush1.bf16.msra.mxu0 0
  %6444 = vmatprep.subr.bf16.mxu0 0
  %6445 = vmatpush1.bf16.msra.mxu0 0
  %6446 = vmatprep.subr.bf16.mxu0 0
  %6447 = vmatpush1.bf16.msra.mxu0 0
  %6448 = vmatprep.subr.bf16.mxu0 0
  %6449 = vmatpush1.bf16.msra.mxu0 0
  %6450 = vmatprep.subr.bf16.mxu0 0
  %6451 = vmatpush1.bf16.msra.mxu0 0
  %6452 = vmatprep.subr.bf16.mxu0 0
  %6453 = vmatpush1.bf16.msra.mxu0 0
  %6454 = vmatprep.subr.bf16.mxu0 0
  %6455 = vmatpush1.bf16.msra.mxu0 0
  %6456 = vmatprep.subr.bf16.mxu0 0
  %6457 = vmatpush1.bf16.msra.mxu0 0
  %6458 = vmatprep.subr.bf16.mxu0 0
  %6459 = vmatpush1.bf16.msra.mxu0 0
  %6460 = vmatprep.subr.bf16.mxu0 0
  %6461 = vmatpush1.bf16.msra.mxu0 0
  %6462 = vmatprep.subr.bf16.mxu0 0
  %6463 = vmatpush1.bf16.msra.mxu0 0
  %6464 = vmatprep.subr.bf16.mxu0 0
  %6465 = vmatpush1.bf16.msra.mxu0 0
  %6466 = vmatprep.subr.bf16.mxu0 0
  %6467 = vmatpush1.bf16.msra.mxu0 0
  %6468 = vmatprep.mubr.bf16.mxu0 0
  %6469 = vmatmul.mubr.bf16.gmra.mrb[0].mxu0 %v6434
  %v6470 = vpop.f32.mrb[0].mxu0
  %v6471 = vadd.f32 0.0, %v6470
  %v6472 = vpop.f32.mrb[0].mxu0
  %v6473 = vpop.f32.mrb[0].mxu0
  %v6474 = vpop.f32.mrb[0].mxu0
  %6475 = vdwg.mxu0
  %v6476 = vadd.f32 %v6381, %v6427
  %v6477 = vxor.u32 %v6476, 2147483648
  %v6478 = vmul.f32 %v6477, 1.442695
  %v6479 = vpow.pop %v6478
  %v6480 = vadd.f32 %v6479, 1.0
  %v6481 = vrcp.pop %v6480
  %v6482 = vmul.f32 1.0, %v6481
  %6484 = vrot.lane.b32.xlu0 %v6471, 96
  %v6485 = vpop.permute.xlu0 %6484
  %v6487 = vadd.f32 %v6383, %v6485
  %v6488 = vadd.f32 %v6384, %v6485
  %v6489 = vxor.u32 %v6487, 2147483648
  %v6490 = vxor.u32 %v6488, 2147483648
  %v6491 = vmul.f32 %v6489, 1.442695
  %v6492 = vpow.pop %v6491
  %v6493 = vmul.f32 %v6490, 1.442695
  %v6494 = vpow.pop %v6493
  %v6495 = vadd.f32 %v6492, 1.0
  %v6496 = vadd.f32 %v6494, 1.0
  %v6497 = vrcp.pop %v6495
  %v6498 = vmul.f32 1.0, %v6497
  %v6499 = vrcp.pop %v6496
  %v6500 = vmul.f32 1.0, %v6499
  %v6501 = vadd.f32 %v6427, %v4923
  %6503 = vrot.lane.b32.xlu0 %v6501, 64
  %v6504 = vpop.permute.xlu0 %6503
  %v6506 = vmul.f32 %v6482, %v6504
  %6508 = vrot.lane.b32.xlu0 %v6506, 64
  %v6509 = vpop.permute.xlu0 %6508
  %v6511 = vadd.f32 %v6381, %v6509
  %v6512 = vtanh.pop %v6511
  %v6513 = vadd.f32 %v6471, %v4943
  %6515 = vrot.lane.b32.xlu0 %v6513, 32
  %v6516 = vpop.permute.xlu0 %6515
  %v6518 = vmul.f32 %v6498, %v6516
  %6520 = vrot.lane.b32.xlu0 %v6518, 64
  %v6521 = vpop.permute.xlu0 %6520
  %v6523 = vadd.f32 %v6384, %v6521
  %v6524 = vtanh.pop %v6523
  %v6525 = vsub.f32 1.0, %v6482
  %6527 = vrot.lane.b32.xlu0 %v6512, 96
  %v6528 = vpop.permute.xlu0 %6527
  %v6530 = vmul.f32 %v6525, %v6528
  %v6531 = vmul.f32 %v6482, %v6361
  %v6532 = vadd.f32 %v6530, %v6531
  %v6533 = vsub.f32 1.0, %v6500
  %6535 = vrot.lane.b32.xlu0 %v6524, 96
  %v6536 = vpop.permute.xlu0 %6535
  %v6538 = vmul.f32 %v6533, %v6536
  %v6539 = vmul.f32 %v6500, %v6369
  %v6540 = vadd.f32 %v6538, %v6539
  %6542 = vrot.lane.b32.xlu0 %v6532, 96
  %v6543 = vpop.permute.xlu0 %6542
  %6545 = vst.msk [vmem:[%s6032] sm:$0xff] %vm635, %v6543
  %6547 = vrot.lane.b32.xlu0 %v6540, 32
  %v6548 = vpop.permute.xlu0 %6547
  %6550 = vst.msk [vmem:[%s6026] sm:$0xff] %vm1763, %v6548
  %v6551 = vld [vmem:[%s5687] sm:$0xff]
  %v6552 = vunpack.c.l.bf16 %v6551
  %v6553 = vld [vmem:[%s5684] sm:$0xff]
  %v6554 = vunpack.c.l.bf16 %v6553
  %v6555 = vunpack.c.h.bf16 %v6553
  %v6556 = vpack.c.bf16 %v6532, %v6532
  %6558 = vrot.lane.b32.xlu0 %v6556, 96
  %v6559 = vpop.permute.xlu0 %6558
  %v6561 = vsel %vm635, %v6559, 0
  %6563 = vmatprep.subr.bf16.mxu0 0
  %6564 = vmatpush1.bf16.msra.mxu0 %v4796
  %6565 = vmatprep.subr.bf16.mxu0 0
  %6566 = vmatpush1.bf16.msra.mxu0 %v4797
  %6567 = vmatprep.subr.bf16.mxu0 0
  %6568 = vmatpush1.bf16.msra.mxu0 0
  %6569 = vmatprep.subr.bf16.mxu0 0
  %6570 = vmatpush1.bf16.msra.mxu0 0
  %6571 = vmatprep.subr.bf16.mxu0 0
  %6572 = vmatpush1.bf16.msra.mxu0 0
  %6573 = vmatprep.subr.bf16.mxu0 0
  %6574 = vmatpush1.bf16.msra.mxu0 0
  %6575 = vmatprep.subr.bf16.mxu0 0
  %6576 = vmatpush1.bf16.msra.mxu0 0
  %6577 = vmatprep.subr.bf16.mxu0 0
  %6578 = vmatpush1.bf16.msra.mxu0 0
  %6579 = vmatprep.subr.bf16.mxu0 0
  %6580 = vmatpush1.bf16.msra.mxu0 0
  %6581 = vmatprep.subr.bf16.mxu0 0
  %6582 = vmatpush1.bf16.msra.mxu0 0
  %6583 = vmatprep.subr.bf16.mxu0 0
  %6584 = vmatpush1.bf16.msra.mxu0 0
  %6585 = vmatprep.subr.bf16.mxu0 0
  %6586 = vmatpush1.bf16.msra.mxu0 0
  %6587 = vmatprep.subr.bf16.mxu0 0
  %6588 = vmatpush1.bf16.msra.mxu0 0
  %6589 = vmatprep.subr.bf16.mxu0 0
  %6590 = vmatpush1.bf16.msra.mxu0 0
  %6591 = vmatprep.subr.bf16.mxu0 0
  %6592 = vmatpush1.bf16.msra.mxu0 0
  %6593 = vmatprep.subr.bf16.mxu0 0
  %6594 = vmatpush1.bf16.msra.mxu0 0
  %6595 = vmatprep.mubr.bf16.mxu0 0
  %6596 = vmatmul.mubr.bf16.gmra.mrb[0].mxu0 %v6561
  %v6597 = vpop.f32.mrb[0].mxu0
  %v6598 = vadd.f32 0.0, %v6597
  %v6599 = vpop.f32.mrb[0].mxu0
  %v6600 = vpop.f32.mrb[0].mxu0
  %v6601 = vpop.f32.mrb[0].mxu0
  %6602 = vdwg.mxu0
  %v6603 = vpack.c.bf16 %v6540, %v6540
  %v6605 = vsel %vm635, %v6603, 0
  %6607 = vmatprep.subr.bf16.mxu0 0
  %6608 = vmatpush1.bf16.msra.mxu0 %v4848
  %6609 = vmatprep.subr.bf16.mxu0 0
  %6610 = vmatpush1.bf16.msra.mxu0 %v4849
  %6611 = vmatprep.subr.bf16.mxu0 0
  %6612 = vmatpush1.bf16.msra.mxu0 0
  %6613 = vmatprep.subr.bf16.mxu0 0
  %6614 = vmatpush1.bf16.msra.mxu0 0
  %6615 = vmatprep.subr.bf16.mxu0 0
  %6616 = vmatpush1.bf16.msra.mxu0 0
  %6617 = vmatprep.subr.bf16.mxu0 0
  %6618 = vmatpush1.bf16.msra.mxu0 0
  %6619 = vmatprep.subr.bf16.mxu0 0
  %6620 = vmatpush1.bf16.msra.mxu0 0
  %6621 = vmatprep.subr.bf16.mxu0 0
  %6622 = vmatpush1.bf16.msra.mxu0 0
  %6623 = vmatprep.subr.bf16.mxu0 0
  %6624 = vmatpush1.bf16.msra.mxu0 0
  %6625 = vmatprep.subr.bf16.mxu0 0
  %6626 = vmatpush1.bf16.msra.mxu0 0
  %6627 = vmatprep.subr.bf16.mxu0 0
  %6628 = vmatpush1.bf16.msra.mxu0 0
  %6629 = vmatprep.subr.bf16.mxu0 0
  %6630 = vmatpush1.bf16.msra.mxu0 0
  %6631 = vmatprep.subr.bf16.mxu0 0
  %6632 = vmatpush1.bf16.msra.mxu0 0
  %6633 = vmatprep.subr.bf16.mxu0 0
  %6634 = vmatpush1.bf16.msra.mxu0 0
  %6635 = vmatprep.subr.bf16.mxu0 0
  %6636 = vmatpush1.bf16.msra.mxu0 0
  %6637 = vmatprep.subr.bf16.mxu0 0
  %6638 = vmatpush1.bf16.msra.mxu0 0
  %6639 = vmatprep.mubr.bf16.mxu0 0
  %6640 = vmatmul.mubr.bf16.gmra.mrb[0].mxu0 %v6605
  %v6641 = vpop.f32.mrb[0].mxu0
  %v6642 = vadd.f32 0.0, %v6641
  %v6643 = vpop.f32.mrb[0].mxu0
  %v6644 = vpop.f32.mrb[0].mxu0
  %v6645 = vpop.f32.mrb[0].mxu0
  %6646 = vdwg.mxu0
  %v6647 = vadd.f32 %v6552, %v6598
  %v6648 = vxor.u32 %v6647, 2147483648
  %v6649 = vmul.f32 %v6648, 1.442695
  %v6650 = vpow.pop %v6649
  %v6651 = vadd.f32 %v6650, 1.0
  %v6652 = vrcp.pop %v6651
  %v6653 = vmul.f32 1.0, %v6652
  %6655 = vrot.lane.b32.xlu0 %v6642, 96
  %v6656 = vpop.permute.xlu0 %6655
  %v6658 = vadd.f32 %v6554, %v6656
  %v6659 = vadd.f32 %v6555, %v6656
  %v6660 = vxor.u32 %v6658, 2147483648
  %v6661 = vxor.u32 %v6659, 2147483648
  %v6662 = vmul.f32 %v6660, 1.442695
  %v6663 = vpow.pop %v6662
  %v6664 = vmul.f32 %v6661, 1.442695
  %v6665 = vpow.pop %v6664
  %v6666 = vadd.f32 %v6663, 1.0
  %v6667 = vadd.f32 %v6665, 1.0
  %v6668 = vrcp.pop %v6666
  %v6669 = vmul.f32 1.0, %v6668
  %v6670 = vrcp.pop %v6667
  %v6671 = vmul.f32 1.0, %v6670
  %v6672 = vadd.f32 %v6598, %v4923
  %6674 = vrot.lane.b32.xlu0 %v6672, 64
  %v6675 = vpop.permute.xlu0 %6674
  %v6677 = vmul.f32 %v6653, %v6675
  %6679 = vrot.lane.b32.xlu0 %v6677, 64
  %v6680 = vpop.permute.xlu0 %6679
  %v6682 = vadd.f32 %v6552, %v6680
  %v6683 = vtanh.pop %v6682
  %v6684 = vadd.f32 %v6642, %v4943
  %6686 = vrot.lane.b32.xlu0 %v6684, 32
  %v6687 = vpop.permute.xlu0 %6686
  %v6689 = vmul.f32 %v6669, %v6687
  %6691 = vrot.lane.b32.xlu0 %v6689, 64
  %v6692 = vpop.permute.xlu0 %6691
  %v6694 = vadd.f32 %v6555, %v6692
  %v6695 = vtanh.pop %v6694
  %v6696 = vsub.f32 1.0, %v6653
  %6698 = vrot.lane.b32.xlu0 %v6683, 96
  %v6699 = vpop.permute.xlu0 %6698
  %v6701 = vmul.f32 %v6696, %v6699
  %v6702 = vmul.f32 %v6653, %v6532
  %v6703 = vadd.f32 %v6701, %v6702
  %v6704 = vsub.f32 1.0, %v6671
  %6706 = vrot.lane.b32.xlu0 %v6695, 96
  %v6707 = vpop.permute.xlu0 %6706
  %v6709 = vmul.f32 %v6704, %v6707
  %v6710 = vmul.f32 %v6671, %v6540
  %v6711 = vadd.f32 %v6709, %v6710
  %6713 = vrot.lane.b32.xlu0 %v6703, 96
  %v6714 = vpop.permute.xlu0 %6713
  %6716 = vst.msk [vmem:[%s5857] sm:$0xff] %vm635, %v6714
  %6718 = vrot.lane.b32.xlu0 %v6711, 32
  %v6719 = vpop.permute.xlu0 %6718
  %6721 = vst.msk [vmem:[%s5851] sm:$0xff] %vm1763, %v6719
  %v6722 = vld [vmem:[%s5512] sm:$0xff]
  %v6723 = vunpack.c.l.bf16 %v6722
  %v6724 = vld [vmem:[%s5509] sm:$0xff]
  %v6725 = vunpack.c.l.bf16 %v6724
  %v6726 = vunpack.c.h.bf16 %v6724
  %v6727 = vpack.c.bf16 %v6703, %v6703
  %6729 = vrot.lane.b32.xlu0 %v6727, 96
  %v6730 = vpop.permute.xlu0 %6729
  %v6732 = vsel %vm635, %v6730, 0
  %6734 = vmatprep.subr.bf16.mxu0 0
  %6735 = vmatpush1.bf16.msra.mxu0 %v4796
  %6736 = vmatprep.subr.bf16.mxu0 0
  %6737 = vmatpush1.bf16.msra.mxu0 %v4797
  %6738 = vmatprep.subr.bf16.mxu0 0
  %6739 = vmatpush1.bf16.msra.mxu0 0
  %6740 = vmatprep.subr.bf16.mxu0 0
  %6741 = vmatpush1.bf16.msra.mxu0 0
  %6742 = vmatprep.subr.bf16.mxu0 0
  %6743 = vmatpush1.bf16.msra.mxu0 0
  %6744 = vmatprep.subr.bf16.mxu0 0
  %6745 = vmatpush1.bf16.msra.mxu0 0
  %6746 = vmatprep.subr.bf16.mxu0 0
  %6747 = vmatpush1.bf16.msra.mxu0 0
  %6748 = vmatprep.subr.bf16.mxu0 0
  %6749 = vmatpush1.bf16.msra.mxu0 0
  %6750 = vmatprep.subr.bf16.mxu0 0
  %6751 = vmatpush1.bf16.msra.mxu0 0
  %6752 = vmatprep.subr.bf16.mxu0 0
  %6753 = vmatpush1.bf16.msra.mxu0 0
  %6754 = vmatprep.subr.bf16.mxu0 0
  %6755 = vmatpush1.bf16.msra.mxu0 0
  %6756 = vmatprep.subr.bf16.mxu0 0
  %6757 = vmatpush1.bf16.msra.mxu0 0
  %6758 = vmatprep.subr.bf16.mxu0 0
  %6759 = vmatpush1.bf16.msra.mxu0 0
  %6760 = vmatprep.subr.bf16.mxu0 0
  %6761 = vmatpush1.bf16.msra.mxu0 0
  %6762 = vmatprep.subr.bf16.mxu0 0
  %6763 = vmatpush1.bf16.msra.mxu0 0
  %6764 = vmatprep.subr.bf16.mxu0 0
  %6765 = vmatpush1.bf16.msra.mxu0 0
  %6766 = vmatprep.mubr.bf16.mxu0 0
  %6767 = vmatmul.mubr.bf16.gmra.mrb[0].mxu0 %v6732
  %v6768 = vpop.f32.mrb[0].mxu0
  %v6769 = vadd.f32 0.0, %v6768
  %v6770 = vpop.f32.mrb[0].mxu0
  %v6771 = vpop.f32.mrb[0].mxu0
  %v6772 = vpop.f32.mrb[0].mxu0
  %6773 = vdwg.mxu0
  %v6774 = vpack.c.bf16 %v6711, %v6711
  %v6776 = vsel %vm635, %v6774, 0
  %6778 = vmatprep.subr.bf16.mxu0 0
  %6779 = vmatpush1.bf16.msra.mxu0 %v4848
  %6780 = vmatprep.subr.bf16.mxu0 0
  %6781 = vmatpush1.bf16.msra.mxu0 %v4849
  %6782 = vmatprep.subr.bf16.mxu0 0
  %6783 = vmatpush1.bf16.msra.mxu0 0
  %6784 = vmatprep.subr.bf16.mxu0 0
  %6785 = vmatpush1.bf16.msra.mxu0 0
  %6786 = vmatprep.subr.bf16.mxu0 0
  %6787 = vmatpush1.bf16.msra.mxu0 0
  %6788 = vmatprep.subr.bf16.mxu0 0
  %6789 = vmatpush1.bf16.msra.mxu0 0
  %6790 = vmatprep.subr.bf16.mxu0 0
  %6791 = vmatpush1.bf16.msra.mxu0 0
  %6792 = vmatprep.subr.bf16.mxu0 0
  %6793 = vmatpush1.bf16.msra.mxu0 0
  %6794 = vmatprep.subr.bf16.mxu0 0
  %6795 = vmatpush1.bf16.msra.mxu0 0
  %6796 = vmatprep.subr.bf16.mxu0 0
  %6797 = vmatpush1.bf16.msra.mxu0 0
  %6798 = vmatprep.subr.bf16.mxu0 0
  %6799 = vmatpush1.bf16.msra.mxu0 0
  %6800 = vmatprep.subr.bf16.mxu0 0
  %6801 = vmatpush1.bf16.msra.mxu0 0
  %6802 = vmatprep.subr.bf16.mxu0 0
  %6803 = vmatpush1.bf16.msra.mxu0 0
  %6804 = vmatprep.subr.bf16.mxu0 0
  %6805 = vmatpush1.bf16.msra.mxu0 0
  %6806 = vmatprep.subr.bf16.mxu0 0
  %6807 = vmatpush1.bf16.msra.mxu0 0
  %6808 = vmatprep.subr.bf16.mxu0 0
  %6809 = vmatpush1.bf16.msra.mxu0 0
  %6810 = vmatprep.mubr.bf16.mxu0 0
  %6811 = vmatmul.mubr.bf16.gmra.mrb[0].mxu0 %v6776
  %v6812 = vpop.f32.mrb[0].mxu0
  %v6813 = vadd.f32 0.0, %v6812
  %v6814 = vpop.f32.mrb[0].mxu0
  %v6815 = vpop.f32.mrb[0].mxu0
  %v6816 = vpop.f32.mrb[0].mxu0
  %6817 = vdwg.mxu0
  %v6818 = vadd.f32 %v6723, %v6769
  %v6819 = vxor.u32 %v6818, 2147483648
  %v6820 = vmul.f32 %v6819, 1.442695
  %v6821 = vpow.pop %v6820
  %v6822 = vadd.f32 %v6821, 1.0
  %v6823 = vrcp.pop %v6822
  %v6824 = vmul.f32 1.0, %v6823
  %6826 = vrot.lane.b32.xlu0 %v6813, 96
  %v6827 = vpop.permute.xlu0 %6826
  %v6829 = vadd.f32 %v6725, %v6827
  %v6830 = vadd.f32 %v6726, %v6827
  %v6831 = vxor.u32 %v6829, 2147483648
  %v6832 = vxor.u32 %v6830, 2147483648
  %v6833 = vmul.f32 %v6831, 1.442695
  %v6834 = vpow.pop %v6833
  %v6835 = vmul.f32 %v6832, 1.442695
  %v6836 = vpow.pop %v6835
  %v6837 = vadd.f32 %v6834, 1.0
  %v6838 = vadd.f32 %v6836, 1.0
  %v6839 = vrcp.pop %v6837
  %v6840 = vmul.f32 1.0, %v6839
  %v6841 = vrcp.pop %v6838
  %v6842 = vmul.f32 1.0, %v6841
  %v6843 = vadd.f32 %v6769, %v4923
  %6845 = vrot.lane.b32.xlu0 %v6843, 64
  %v6846 = vpop.permute.xlu0 %6845
  %v6848 = vmul.f32 %v6824, %v6846
  %6850 = vrot.lane.b32.xlu0 %v6848, 64
  %v6851 = vpop.permute.xlu0 %6850
  %v6853 = vadd.f32 %v6723, %v6851
  %v6854 = vtanh.pop %v6853
  %v6855 = vadd.f32 %v6813, %v4943
  %6857 = vrot.lane.b32.xlu0 %v6855, 32
  %v6858 = vpop.permute.xlu0 %6857
  %v6860 = vmul.f32 %v6840, %v6858
  %6862 = vrot.lane.b32.xlu0 %v6860, 64
  %v6863 = vpop.permute.xlu0 %6862
  %v6865 = vadd.f32 %v6726, %v6863
  %v6866 = vtanh.pop %v6865
  %v6867 = vsub.f32 1.0, %v6824
  %6869 = vrot.lane.b32.xlu0 %v6854, 96
  %v6870 = vpop.permute.xlu0 %6869
  %v6872 = vmul.f32 %v6867, %v6870
  %v6873 = vmul.f32 %v6824, %v6703
  %v6874 = vadd.f32 %v6872, %v6873
  %v6875 = vsub.f32 1.0, %v6842
  %6877 = vrot.lane.b32.xlu0 %v6866, 96
  %v6878 = vpop.permute.xlu0 %6877
  %v6880 = vmul.f32 %v6875, %v6878
  %v6881 = vmul.f32 %v6842, %v6711
  %v6882 = vadd.f32 %v6880, %v6881
  %6884 = vrot.lane.b32.xlu0 %v6874, 96
  %v6885 = vpop.permute.xlu0 %6884
  %6887 = vst.msk [vmem:[%s5682] sm:$0xff] %vm635, %v6885
  %6889 = vrot.lane.b32.xlu0 %v6882, 32
  %v6890 = vpop.permute.xlu0 %6889
  %6892 = vst.msk [vmem:[%s5676] sm:$0xff] %vm1763, %v6890
  %v6893 = vld [vmem:[%s5337] sm:$0xff]
  %v6894 = vunpack.c.l.bf16 %v6893
  %v6895 = vld [vmem:[%s5334] sm:$0xff]
  %v6896 = vunpack.c.l.bf16 %v6895
  %v6897 = vunpack.c.h.bf16 %v6895
  %v6898 = vpack.c.bf16 %v6874, %v6874
  %6900 = vrot.lane.b32.xlu0 %v6898, 96
  %v6901 = vpop.permute.xlu0 %6900
  %v6903 = vsel %vm635, %v6901, 0
  %6905 = vmatprep.subr.bf16.mxu0 0
  %6906 = vmatpush1.bf16.msra.mxu0 %v4796
  %6907 = vmatprep.subr.bf16.mxu0 0
  %6908 = vmatpush1.bf16.msra.mxu0 %v4797
  %6909 = vmatprep.subr.bf16.mxu0 0
  %6910 = vmatpush1.bf16.msra.mxu0 0
  %6911 = vmatprep.subr.bf16.mxu0 0
  %6912 = vmatpush1.bf16.msra.mxu0 0
  %6913 = vmatprep.subr.bf16.mxu0 0
  %6914 = vmatpush1.bf16.msra.mxu0 0
  %6915 = vmatprep.subr.bf16.mxu0 0
  %6916 = vmatpush1.bf16.msra.mxu0 0
  %6917 = vmatprep.subr.bf16.mxu0 0
  %6918 = vmatpush1.bf16.msra.mxu0 0
  %6919 = vmatprep.subr.bf16.mxu0 0
  %6920 = vmatpush1.bf16.msra.mxu0 0
  %6921 = vmatprep.subr.bf16.mxu0 0
  %6922 = vmatpush1.bf16.msra.mxu0 0
  %6923 = vmatprep.subr.bf16.mxu0 0
  %6924 = vmatpush1.bf16.msra.mxu0 0
  %6925 = vmatprep.subr.bf16.mxu0 0
  %6926 = vmatpush1.bf16.msra.mxu0 0
  %6927 = vmatprep.subr.bf16.mxu0 0
  %6928 = vmatpush1.bf16.msra.mxu0 0
  %6929 = vmatprep.subr.bf16.mxu0 0
  %6930 = vmatpush1.bf16.msra.mxu0 0
  %6931 = vmatprep.subr.bf16.mxu0 0
  %6932 = vmatpush1.bf16.msra.mxu0 0
  %6933 = vmatprep.subr.bf16.mxu0 0
  %6934 = vmatpush1.bf16.msra.mxu0 0
  %6935 = vmatprep.subr.bf16.mxu0 0
  %6936 = vmatpush1.bf16.msra.mxu0 0
  %6937 = vmatprep.mubr.bf16.mxu0 0
  %6938 = vmatmul.mubr.bf16.gmra.mrb[0].mxu0 %v6903
  %v6939 = vpop.f32.mrb[0].mxu0
  %v6940 = vadd.f32 0.0, %v6939
  %v6941 = vpop.f32.mrb[0].mxu0
  %v6942 = vpop.f32.mrb[0].mxu0
  %v6943 = vpop.f32.mrb[0].mxu0
  %6944 = vdwg.mxu0
  %v6945 = vpack.c.bf16 %v6882, %v6882
  %v6947 = vsel %vm635, %v6945, 0
  %6949 = vmatprep.subr.bf16.mxu0 0
  %6950 = vmatpush1.bf16.msra.mxu0 %v4848
  %6951 = vmatprep.subr.bf16.mxu0 0
  %6952 = vmatpush1.bf16.msra.mxu0 %v4849
  %6953 = vmatprep.subr.bf16.mxu0 0
  %6954 = vmatpush1.bf16.msra.mxu0 0
  %6955 = vmatprep.subr.bf16.mxu0 0
  %6956 = vmatpush1.bf16.msra.mxu0 0
  %6957 = vmatprep.subr.bf16.mxu0 0
  %6958 = vmatpush1.bf16.msra.mxu0 0
  %6959 = vmatprep.subr.bf16.mxu0 0
  %6960 = vmatpush1.bf16.msra.mxu0 0
  %6961 = vmatprep.subr.bf16.mxu0 0
  %6962 = vmatpush1.bf16.msra.mxu0 0
  %6963 = vmatprep.subr.bf16.mxu0 0
  %6964 = vmatpush1.bf16.msra.mxu0 0
  %6965 = vmatprep.subr.bf16.mxu0 0
  %6966 = vmatpush1.bf16.msra.mxu0 0
  %6967 = vmatprep.subr.bf16.mxu0 0
  %6968 = vmatpush1.bf16.msra.mxu0 0
  %6969 = vmatprep.subr.bf16.mxu0 0
  %6970 = vmatpush1.bf16.msra.mxu0 0
  %6971 = vmatprep.subr.bf16.mxu0 0
  %6972 = vmatpush1.bf16.msra.mxu0 0
  %6973 = vmatprep.subr.bf16.mxu0 0
  %6974 = vmatpush1.bf16.msra.mxu0 0
  %6975 = vmatprep.subr.bf16.mxu0 0
  %6976 = vmatpush1.bf16.msra.mxu0 0
  %6977 = vmatprep.subr.bf16.mxu0 0
  %6978 = vmatpush1.bf16.msra.mxu0 0
  %6979 = vmatprep.subr.bf16.mxu0 0
  %6980 = vmatpush1.bf16.msra.mxu0 0
  %6981 = vmatprep.mubr.bf16.mxu0 0
  %6982 = vmatmul.mubr.bf16.gmra.mrb[0].mxu0 %v6947
  %v6983 = vpop.f32.mrb[0].mxu0
  %v6984 = vadd.f32 0.0, %v6983
  %v6985 = vpop.f32.mrb[0].mxu0
  %v6986 = vpop.f32.mrb[0].mxu0
  %v6987 = vpop.f32.mrb[0].mxu0
  %6988 = vdwg.mxu0
  %v6989 = vadd.f32 %v6894, %v6940
  %v6990 = vxor.u32 %v6989, 2147483648
  %v6991 = vmul.f32 %v6990, 1.442695
  %v6992 = vpow.pop %v6991
  %v6993 = vadd.f32 %v6992, 1.0
  %v6994 = vrcp.pop %v6993
  %v6995 = vmul.f32 1.0, %v6994
  %6997 = vrot.lane.b32.xlu0 %v6984, 96
  %v6998 = vpop.permute.xlu0 %6997
  %v7000 = vadd.f32 %v6896, %v6998
  %v7001 = vadd.f32 %v6897, %v6998
  %v7002 = vxor.u32 %v7000, 2147483648
  %v7003 = vxor.u32 %v7001, 2147483648
  %v7004 = vmul.f32 %v7002, 1.442695
  %v7005 = vpow.pop %v7004
  %v7006 = vmul.f32 %v7003, 1.442695
  %v7007 = vpow.pop %v7006
  %v7008 = vadd.f32 %v7005, 1.0
  %v7009 = vadd.f32 %v7007, 1.0
  %v7010 = vrcp.pop %v7008
  %v7011 = vmul.f32 1.0, %v7010
  %v7012 = vrcp.pop %v7009
  %v7013 = vmul.f32 1.0, %v7012
  %v7014 = vadd.f32 %v6940, %v4923
  %7016 = vrot.lane.b32.xlu0 %v7014, 64
  %v7017 = vpop.permute.xlu0 %7016
  %v7019 = vmul.f32 %v6995, %v7017
  %7021 = vrot.lane.b32.xlu0 %v7019, 64
  %v7022 = vpop.permute.xlu0 %7021
  %v7024 = vadd.f32 %v6894, %v7022
  %v7025 = vtanh.pop %v7024
  %v7026 = vadd.f32 %v6984, %v4943
  %7028 = vrot.lane.b32.xlu0 %v7026, 32
  %v7029 = vpop.permute.xlu0 %7028
  %v7031 = vmul.f32 %v7011, %v7029
  %7033 = vrot.lane.b32.xlu0 %v7031, 64
  %v7034 = vpop.permute.xlu0 %7033
  %v7036 = vadd.f32 %v6897, %v7034
  %v7037 = vtanh.pop %v7036
  %v7038 = vsub.f32 1.0, %v6995
  %7040 = vrot.lane.b32.xlu0 %v7025, 96
  %v7041 = vpop.permute.xlu0 %7040
  %v7043 = vmul.f32 %v7038, %v7041
  %v7044 = vmul.f32 %v6995, %v6874
  %v7045 = vadd.f32 %v7043, %v7044
  %v7046 = vsub.f32 1.0, %v7013
  %7048 = vrot.lane.b32.xlu0 %v7037, 96
  %v7049 = vpop.permute.xlu0 %7048
  %v7051 = vmul.f32 %v7046, %v7049
  %v7052 = vmul.f32 %v7013, %v6882
  %v7053 = vadd.f32 %v7051, %v7052
  %7055 = vrot.lane.b32.xlu0 %v7045, 96
  %v7056 = vpop.permute.xlu0 %7055
  %7058 = vst.msk [vmem:[%s5507] sm:$0xff] %vm635, %v7056
  %7060 = vrot.lane.b32.xlu0 %v7053, 32
  %v7061 = vpop.permute.xlu0 %7060
  %7063 = vst.msk [vmem:[%s5501] sm:$0xff] %vm1763, %v7061
  %v7064 = vld [vmem:[%s5162] sm:$0xff]
  %v7065 = vunpack.c.l.bf16 %v7064
  %v7066 = vld [vmem:[%s5159] sm:$0xff]
  %v7067 = vunpack.c.l.bf16 %v7066
  %v7068 = vunpack.c.h.bf16 %v7066
  %v7069 = vpack.c.bf16 %v7045, %v7045
  %7071 = vrot.lane.b32.xlu0 %v7069, 96
  %v7072 = vpop.permute.xlu0 %7071
  %v7074 = vsel %vm635, %v7072, 0
  %7076 = vmatprep.subr.bf16.mxu0 0
  %7077 = vmatpush1.bf16.msra.mxu0 %v4796
  %7078 = vmatprep.subr.bf16.mxu0 0
  %7079 = vmatpush1.bf16.msra.mxu0 %v4797
  %7080 = vmatprep.subr.bf16.mxu0 0
  %7081 = vmatpush1.bf16.msra.mxu0 0
  %7082 = vmatprep.subr.bf16.mxu0 0
  %7083 = vmatpush1.bf16.msra.mxu0 0
  %7084 = vmatprep.subr.bf16.mxu0 0
  %7085 = vmatpush1.bf16.msra.mxu0 0
  %7086 = vmatprep.subr.bf16.mxu0 0
  %7087 = vmatpush1.bf16.msra.mxu0 0
  %7088 = vmatprep.subr.bf16.mxu0 0
  %7089 = vmatpush1.bf16.msra.mxu0 0
  %7090 = vmatprep.subr.bf16.mxu0 0
  %7091 = vmatpush1.bf16.msra.mxu0 0
  %7092 = vmatprep.subr.bf16.mxu0 0
  %7093 = vmatpush1.bf16.msra.mxu0 0
  %7094 = vmatprep.subr.bf16.mxu0 0
  %7095 = vmatpush1.bf16.msra.mxu0 0
  %7096 = vmatprep.subr.bf16.mxu0 0
  %7097 = vmatpush1.bf16.msra.mxu0 0
  %7098 = vmatprep.subr.bf16.mxu0 0
  %7099 = vmatpush1.bf16.msra.mxu0 0
  %7100 = vmatprep.subr.bf16.mxu0 0
  %7101 = vmatpush1.bf16.msra.mxu0 0
  %7102 = vmatprep.subr.bf16.mxu0 0
  %7103 = vmatpush1.bf16.msra.mxu0 0
  %7104 = vmatprep.subr.bf16.mxu0 0
  %7105 = vmatpush1.bf16.msra.mxu0 0
  %7106 = vmatprep.subr.bf16.mxu0 0
  %7107 = vmatpush1.bf16.msra.mxu0 0
  %7108 = vmatprep.mubr.bf16.mxu0 0
  %7109 = vmatmul.mubr.bf16.gmra.mrb[0].mxu0 %v7074
  %v7110 = vpop.f32.mrb[0].mxu0
  %v7111 = vadd.f32 0.0, %v7110
  %v7112 = vpop.f32.mrb[0].mxu0
  %v7113 = vpop.f32.mrb[0].mxu0
  %v7114 = vpop.f32.mrb[0].mxu0
  %7115 = vdwg.mxu0
  %v7116 = vpack.c.bf16 %v7053, %v7053
  %v7118 = vsel %vm635, %v7116, 0
  %7120 = vmatprep.subr.bf16.mxu0 0
  %7121 = vmatpush1.bf16.msra.mxu0 %v4848
  %7122 = vmatprep.subr.bf16.mxu0 0
  %7123 = vmatpush1.bf16.msra.mxu0 %v4849
  %7124 = vmatprep.subr.bf16.mxu0 0
  %7125 = vmatpush1.bf16.msra.mxu0 0
  %7126 = vmatprep.subr.bf16.mxu0 0
  %7127 = vmatpush1.bf16.msra.mxu0 0
  %7128 = vmatprep.subr.bf16.mxu0 0
  %7129 = vmatpush1.bf16.msra.mxu0 0
  %7130 = vmatprep.subr.bf16.mxu0 0
  %7131 = vmatpush1.bf16.msra.mxu0 0
  %7132 = vmatprep.subr.bf16.mxu0 0
  %7133 = vmatpush1.bf16.msra.mxu0 0
  %7134 = vmatprep.subr.bf16.mxu0 0
  %7135 = vmatpush1.bf16.msra.mxu0 0
  %7136 = vmatprep.subr.bf16.mxu0 0
  %7137 = vmatpush1.bf16.msra.mxu0 0
  %7138 = vmatprep.subr.bf16.mxu0 0
  %7139 = vmatpush1.bf16.msra.mxu0 0
  %7140 = vmatprep.subr.bf16.mxu0 0
  %7141 = vmatpush1.bf16.msra.mxu0 0
  %7142 = vmatprep.subr.bf16.mxu0 0
  %7143 = vmatpush1.bf16.msra.mxu0 0
  %7144 = vmatprep.subr.bf16.mxu0 0
  %7145 = vmatpush1.bf16.msra.mxu0 0
  %7146 = vmatprep.subr.bf16.mxu0 0
  %7147 = vmatpush1.bf16.msra.mxu0 0
  %7148 = vmatprep.subr.bf16.mxu0 0
  %7149 = vmatpush1.bf16.msra.mxu0 0
  %7150 = vmatprep.subr.bf16.mxu0 0
  %7151 = vmatpush1.bf16.msra.mxu0 0
  %7152 = vmatprep.mubr.bf16.mxu0 0
  %7153 = vmatmul.mubr.bf16.gmra.mrb[0].mxu0 %v7118
  %v7154 = vpop.f32.mrb[0].mxu0
  %v7155 = vadd.f32 0.0, %v7154
  %v7156 = vpop.f32.mrb[0].mxu0
  %v7157 = vpop.f32.mrb[0].mxu0
  %v7158 = vpop.f32.mrb[0].mxu0
  %7159 = vdwg.mxu0
  %v7160 = vadd.f32 %v7065, %v7111
  %v7161 = vxor.u32 %v7160, 2147483648
  %v7162 = vmul.f32 %v7161, 1.442695
  %v7163 = vpow.pop %v7162
  %v7164 = vadd.f32 %v7163, 1.0
  %v7165 = vrcp.pop %v7164
  %v7166 = vmul.f32 1.0, %v7165
  %7168 = vrot.lane.b32.xlu0 %v7155, 96
  %v7169 = vpop.permute.xlu0 %7168
  %v7171 = vadd.f32 %v7067, %v7169
  %v7172 = vadd.f32 %v7068, %v7169
  %v7173 = vxor.u32 %v7171, 2147483648
  %v7174 = vxor.u32 %v7172, 2147483648
  %v7175 = vmul.f32 %v7173, 1.442695
  %v7176 = vpow.pop %v7175
  %v7177 = vmul.f32 %v7174, 1.442695
  %v7178 = vpow.pop %v7177
  %v7179 = vadd.f32 %v7176, 1.0
  %v7180 = vadd.f32 %v7178, 1.0
  %v7181 = vrcp.pop %v7179
  %v7182 = vmul.f32 1.0, %v7181
  %v7183 = vrcp.pop %v7180
  %v7184 = vmul.f32 1.0, %v7183
  %v7185 = vadd.f32 %v7111, %v4923
  %7187 = vrot.lane.b32.xlu0 %v7185, 64
  %v7188 = vpop.permute.xlu0 %7187
  %v7190 = vmul.f32 %v7166, %v7188
  %7192 = vrot.lane.b32.xlu0 %v7190, 64
  %v7193 = vpop.permute.xlu0 %7192
  %v7195 = vadd.f32 %v7065, %v7193
  %v7196 = vtanh.pop %v7195
  %v7197 = vadd.f32 %v7155, %v4943
  %7199 = vrot.lane.b32.xlu0 %v7197, 32
  %v7200 = vpop.permute.xlu0 %7199
  %v7202 = vmul.f32 %v7182, %v7200
  %7204 = vrot.lane.b32.xlu0 %v7202, 64
  %v7205 = vpop.permute.xlu0 %7204
  %v7207 = vadd.f32 %v7068, %v7205
  %v7208 = vtanh.pop %v7207
  %v7209 = vsub.f32 1.0, %v7166
  %7211 = vrot.lane.b32.xlu0 %v7196, 96
  %v7212 = vpop.permute.xlu0 %7211
  %v7214 = vmul.f32 %v7209, %v7212
  %v7215 = vmul.f32 %v7166, %v7045
  %v7216 = vadd.f32 %v7214, %v7215
  %v7217 = vsub.f32 1.0, %v7184
  %7219 = vrot.lane.b32.xlu0 %v7208, 96
  %v7220 = vpop.permute.xlu0 %7219
  %v7222 = vmul.f32 %v7217, %v7220
  %v7223 = vmul.f32 %v7184, %v7053
  %v7224 = vadd.f32 %v7222, %v7223
  %7226 = vrot.lane.b32.xlu0 %v7216, 96
  %v7227 = vpop.permute.xlu0 %7226
  %7229 = vst.msk [vmem:[%s5332] sm:$0xff] %vm635, %v7227
  %7231 = vrot.lane.b32.xlu0 %v7224, 32
  %v7232 = vpop.permute.xlu0 %7231
  %7234 = vst.msk [vmem:[%s5326] sm:$0xff] %vm1763, %v7232
  %v7235 = vld [vmem:[%s4987] sm:$0xff]
  %v7236 = vunpack.c.l.bf16 %v7235
  %v7237 = vld [vmem:[%s4984] sm:$0xff]
  %v7238 = vunpack.c.l.bf16 %v7237
  %v7239 = vunpack.c.h.bf16 %v7237
  %v7240 = vpack.c.bf16 %v7216, %v7216
  %7242 = vrot.lane.b32.xlu0 %v7240, 96
  %v7243 = vpop.permute.xlu0 %7242
  %v7245 = vsel %vm635, %v7243, 0
  %7247 = vmatprep.subr.bf16.mxu0 0
  %7248 = vmatpush1.bf16.msra.mxu0 %v4796
  %7249 = vmatprep.subr.bf16.mxu0 0
  %7250 = vmatpush1.bf16.msra.mxu0 %v4797
  %7251 = vmatprep.subr.bf16.mxu0 0
  %7252 = vmatpush1.bf16.msra.mxu0 0
  %7253 = vmatprep.subr.bf16.mxu0 0
  %7254 = vmatpush1.bf16.msra.mxu0 0
  %7255 = vmatprep.subr.bf16.mxu0 0
  %7256 = vmatpush1.bf16.msra.mxu0 0
  %7257 = vmatprep.subr.bf16.mxu0 0
  %7258 = vmatpush1.bf16.msra.mxu0 0
  %7259 = vmatprep.subr.bf16.mxu0 0
  %7260 = vmatpush1.bf16.msra.mxu0 0
  %7261 = vmatprep.subr.bf16.mxu0 0
  %7262 = vmatpush1.bf16.msra.mxu0 0
  %7263 = vmatprep.subr.bf16.mxu0 0
  %7264 = vmatpush1.bf16.msra.mxu0 0
  %7265 = vmatprep.subr.bf16.mxu0 0
  %7266 = vmatpush1.bf16.msra.mxu0 0
  %7267 = vmatprep.subr.bf16.mxu0 0
  %7268 = vmatpush1.bf16.msra.mxu0 0
  %7269 = vmatprep.subr.bf16.mxu0 0
  %7270 = vmatpush1.bf16.msra.mxu0 0
  %7271 = vmatprep.subr.bf16.mxu0 0
  %7272 = vmatpush1.bf16.msra.mxu0 0
  %7273 = vmatprep.subr.bf16.mxu0 0
  %7274 = vmatpush1.bf16.msra.mxu0 0
  %7275 = vmatprep.subr.bf16.mxu0 0
  %7276 = vmatpush1.bf16.msra.mxu0 0
  %7277 = vmatprep.subr.bf16.mxu0 0
  %7278 = vmatpush1.bf16.msra.mxu0 0
  %7279 = vmatprep.mubr.bf16.mxu0 0
  %7280 = vmatmul.mubr.bf16.gmra.mrb[0].mxu0 %v7245
  %v7281 = vpop.f32.mrb[0].mxu0
  %v7282 = vadd.f32 0.0, %v7281
  %v7283 = vpop.f32.mrb[0].mxu0
  %v7284 = vpop.f32.mrb[0].mxu0
  %v7285 = vpop.f32.mrb[0].mxu0
  %7286 = vdwg.mxu0
  %v7287 = vpack.c.bf16 %v7224, %v7224
  %v7289 = vsel %vm635, %v7287, 0
  %7291 = vmatprep.subr.bf16.mxu0 0
  %7292 = vmatpush1.bf16.msra.mxu0 %v4848
  %7293 = vmatprep.subr.bf16.mxu0 0
  %7294 = vmatpush1.bf16.msra.mxu0 %v4849
  %7295 = vmatprep.subr.bf16.mxu0 0
  %7296 = vmatpush1.bf16.msra.mxu0 0
  %7297 = vmatprep.subr.bf16.mxu0 0
  %7298 = vmatpush1.bf16.msra.mxu0 0
  %7299 = vmatprep.subr.bf16.mxu0 0
  %7300 = vmatpush1.bf16.msra.mxu0 0
  %7301 = vmatprep.subr.bf16.mxu0 0
  %7302 = vmatpush1.bf16.msra.mxu0 0
  %7303 = vmatprep.subr.bf16.mxu0 0
  %7304 = vmatpush1.bf16.msra.mxu0 0
  %7305 = vmatprep.subr.bf16.mxu0 0
  %7306 = vmatpush1.bf16.msra.mxu0 0
  %7307 = vmatprep.subr.bf16.mxu0 0
  %7308 = vmatpush1.bf16.msra.mxu0 0
  %7309 = vmatprep.subr.bf16.mxu0 0
  %7310 = vmatpush1.bf16.msra.mxu0 0
  %7311 = vmatprep.subr.bf16.mxu0 0
  %7312 = vmatpush1.bf16.msra.mxu0 0
  %7313 = vmatprep.subr.bf16.mxu0 0
  %7314 = vmatpush1.bf16.msra.mxu0 0
  %7315 = vmatprep.subr.bf16.mxu0 0
  %7316 = vmatpush1.bf16.msra.mxu0 0
  %7317 = vmatprep.subr.bf16.mxu0 0
  %7318 = vmatpush1.bf16.msra.mxu0 0
  %7319 = vmatprep.subr.bf16.mxu0 0
  %7320 = vmatpush1.bf16.msra.mxu0 0
  %7321 = vmatprep.subr.bf16.mxu0 0
  %7322 = vmatpush1.bf16.msra.mxu0 0
  %7323 = vmatprep.mubr.bf16.mxu0 0
  %7324 = vmatmul.mubr.bf16.gmra.mrb[0].mxu0 %v7289
  %v7325 = vpop.f32.mrb[0].mxu0
  %v7326 = vadd.f32 0.0, %v7325
  %v7327 = vpop.f32.mrb[0].mxu0
  %v7328 = vpop.f32.mrb[0].mxu0
  %v7329 = vpop.f32.mrb[0].mxu0
  %7330 = vdwg.mxu0
  %v7331 = vadd.f32 %v7236, %v7282
  %v7332 = vxor.u32 %v7331, 2147483648
  %v7333 = vmul.f32 %v7332, 1.442695
  %v7334 = vpow.pop %v7333
  %v7335 = vadd.f32 %v7334, 1.0
  %v7336 = vrcp.pop %v7335
  %v7337 = vmul.f32 1.0, %v7336
  %7339 = vrot.lane.b32.xlu0 %v7326, 96
  %v7340 = vpop.permute.xlu0 %7339
  %v7342 = vadd.f32 %v7238, %v7340
  %v7343 = vadd.f32 %v7239, %v7340
  %v7344 = vxor.u32 %v7342, 2147483648
  %v7345 = vxor.u32 %v7343, 2147483648
  %v7346 = vmul.f32 %v7344, 1.442695
  %v7347 = vpow.pop %v7346
  %v7348 = vmul.f32 %v7345, 1.442695
  %v7349 = vpow.pop %v7348
  %v7350 = vadd.f32 %v7347, 1.0
  %v7351 = vadd.f32 %v7349, 1.0
  %v7352 = vrcp.pop %v7350
  %v7353 = vmul.f32 1.0, %v7352
  %v7354 = vrcp.pop %v7351
  %v7355 = vmul.f32 1.0, %v7354
  %v7356 = vadd.f32 %v7282, %v4923
  %7358 = vrot.lane.b32.xlu0 %v7356, 64
  %v7359 = vpop.permute.xlu0 %7358
  %v7361 = vmul.f32 %v7337, %v7359
  %7363 = vrot.lane.b32.xlu0 %v7361, 64
  %v7364 = vpop.permute.xlu0 %7363
  %v7366 = vadd.f32 %v7236, %v7364
  %v7367 = vtanh.pop %v7366
  %v7368 = vadd.f32 %v7326, %v4943
  %7370 = vrot.lane.b32.xlu0 %v7368, 32
  %v7371 = vpop.permute.xlu0 %7370
  %v7373 = vmul.f32 %v7353, %v7371
  %7375 = vrot.lane.b32.xlu0 %v7373, 64
  %v7376 = vpop.permute.xlu0 %7375
  %v7378 = vadd.f32 %v7239, %v7376
  %v7379 = vtanh.pop %v7378
  %v7380 = vsub.f32 1.0, %v7337
  %7382 = vrot.lane.b32.xlu0 %v7367, 96
  %v7383 = vpop.permute.xlu0 %7382
  %v7385 = vmul.f32 %v7380, %v7383
  %v7386 = vmul.f32 %v7337, %v7216
  %v7387 = vadd.f32 %v7385, %v7386
  %v7388 = vsub.f32 1.0, %v7355
  %7390 = vrot.lane.b32.xlu0 %v7379, 96
  %v7391 = vpop.permute.xlu0 %7390
  %v7393 = vmul.f32 %v7388, %v7391
  %v7394 = vmul.f32 %v7355, %v7224
  %v7395 = vadd.f32 %v7393, %v7394
  %7397 = vrot.lane.b32.xlu0 %v7387, 96
  %v7398 = vpop.permute.xlu0 %7397
  %7400 = vst.msk [vmem:[%s5157] sm:$0xff] %vm635, %v7398
  %7402 = vrot.lane.b32.xlu0 %v7395, 32
  %v7403 = vpop.permute.xlu0 %7402
  %7405 = vst.msk [vmem:[%s5151] sm:$0xff] %vm1763, %v7403
  %v7406 = vld [vmem:[%s4784] sm:$0xff]
  %v7407 = vunpack.c.l.bf16 %v7406
  %v7408 = vld [vmem:[#allocation6] sm:$0xff]
  %v7409 = vunpack.c.l.bf16 %v7408
  %v7410 = vunpack.c.h.bf16 %v7408
  %v7411 = vpack.c.bf16 %v7387, %v7387
  %7413 = vrot.lane.b32.xlu0 %v7411, 96
  %v7414 = vpop.permute.xlu0 %7413
  %v7416 = vsel %vm635, %v7414, 0
  %7418 = vmatprep.subr.bf16.mxu0 0
  %7419 = vmatpush1.bf16.msra.mxu0 %v4796
  %7420 = vmatprep.subr.bf16.mxu0 0
  %7421 = vmatpush1.bf16.msra.mxu0 %v4797
  %7422 = vmatprep.subr.bf16.mxu0 0
  %7423 = vmatpush1.bf16.msra.mxu0 0
  %7424 = vmatprep.subr.bf16.mxu0 0
  %7425 = vmatpush1.bf16.msra.mxu0 0
  %7426 = vmatprep.subr.bf16.mxu0 0
  %7427 = vmatpush1.bf16.msra.mxu0 0
  %7428 = vmatprep.subr.bf16.mxu0 0
  %7429 = vmatpush1.bf16.msra.mxu0 0
  %7430 = vmatprep.subr.bf16.mxu0 0
  %7431 = vmatpush1.bf16.msra.mxu0 0
  %7432 = vmatprep.subr.bf16.mxu0 0
  %7433 = vmatpush1.bf16.msra.mxu0 0
  %7434 = vmatprep.subr.bf16.mxu0 0
  %7435 = vmatpush1.bf16.msra.mxu0 0
  %7436 = vmatprep.subr.bf16.mxu0 0
  %7437 = vmatpush1.bf16.msra.mxu0 0
  %7438 = vmatprep.subr.bf16.mxu0 0
  %7439 = vmatpush1.bf16.msra.mxu0 0
  %7440 = vmatprep.subr.bf16.mxu0 0
  %7441 = vmatpush1.bf16.msra.mxu0 0
  %7442 = vmatprep.subr.bf16.mxu0 0
  %7443 = vmatpush1.bf16.msra.mxu0 0
  %7444 = vmatprep.subr.bf16.mxu0 0
  %7445 = vmatpush1.bf16.msra.mxu0 0
  %7446 = vmatprep.subr.bf16.mxu0 0
  %7447 = vmatpush1.bf16.msra.mxu0 0
  %7448 = vmatprep.subr.bf16.mxu0 0
  %7449 = vmatpush1.bf16.msra.mxu0 0
  %7450 = vmatprep.mubr.bf16.mxu0 0
  %7451 = vmatmul.mubr.bf16.gmra.mrb[0].mxu0 %v7416
  %v7452 = vpop.f32.mrb[0].mxu0
  %v7453 = vadd.f32 0.0, %v7452
  %v7454 = vpop.f32.mrb[0].mxu0
  %v7455 = vpop.f32.mrb[0].mxu0
  %v7456 = vpop.f32.mrb[0].mxu0
  %7457 = vdwg.mxu0
  %v7458 = vpack.c.bf16 %v7395, %v7395
  %v7460 = vsel %vm635, %v7458, 0
  %7462 = vmatprep.subr.bf16.mxu0 0
  %7463 = vmatpush1.bf16.msra.mxu0 %v4848
  %7464 = vmatprep.subr.bf16.mxu0 0
  %7465 = vmatpush1.bf16.msra.mxu0 %v4849
  %7466 = vmatprep.subr.bf16.mxu0 0
  %7467 = vmatpush1.bf16.msra.mxu0 0
  %7468 = vmatprep.subr.bf16.mxu0 0
  %7469 = vmatpush1.bf16.msra.mxu0 0
  %7470 = vmatprep.subr.bf16.mxu0 0
  %7471 = vmatpush1.bf16.msra.mxu0 0
  %7472 = vmatprep.subr.bf16.mxu0 0
  %7473 = vmatpush1.bf16.msra.mxu0 0
  %7474 = vmatprep.subr.bf16.mxu0 0
  %7475 = vmatpush1.bf16.msra.mxu0 0
  %7476 = vmatprep.subr.bf16.mxu0 0
  %7477 = vmatpush1.bf16.msra.mxu0 0
  %7478 = vmatprep.subr.bf16.mxu0 0
  %7479 = vmatpush1.bf16.msra.mxu0 0
  %7480 = vmatprep.subr.bf16.mxu0 0
  %7481 = vmatpush1.bf16.msra.mxu0 0
  %7482 = vmatprep.subr.bf16.mxu0 0
  %7483 = vmatpush1.bf16.msra.mxu0 0
  %7484 = vmatprep.subr.bf16.mxu0 0
  %7485 = vmatpush1.bf16.msra.mxu0 0
  %7486 = vmatprep.subr.bf16.mxu0 0
  %7487 = vmatpush1.bf16.msra.mxu0 0
  %7488 = vmatprep.subr.bf16.mxu0 0
  %7489 = vmatpush1.bf16.msra.mxu0 0
  %7490 = vmatprep.subr.bf16.mxu0 0
  %7491 = vmatpush1.bf16.msra.mxu0 0
  %7492 = vmatprep.subr.bf16.mxu0 0
  %7493 = vmatpush1.bf16.msra.mxu0 0
  %7494 = vmatprep.mubr.bf16.mxu0 0
  %7495 = vmatmul.mubr.bf16.gmra.mrb[0].mxu0 %v7460
  %v7496 = vpop.f32.mrb[0].mxu0
  %v7497 = vadd.f32 0.0, %v7496
  %v7498 = vpop.f32.mrb[0].mxu0
  %v7499 = vpop.f32.mrb[0].mxu0
  %v7500 = vpop.f32.mrb[0].mxu0
  %7501 = vdwg.mxu0
  %v7502 = vadd.f32 %v7407, %v7453
  %v7503 = vxor.u32 %v7502, 2147483648
  %v7504 = vmul.f32 %v7503, 1.442695
  %v7505 = vpow.pop %v7504
  %v7506 = vadd.f32 %v7505, 1.0
  %v7507 = vrcp.pop %v7506
  %v7508 = vmul.f32 1.0, %v7507
  %7510 = vrot.lane.b32.xlu0 %v7497, 96
  %v7511 = vpop.permute.xlu0 %7510
  %v7513 = vadd.f32 %v7409, %v7511
  %v7514 = vadd.f32 %v7410, %v7511
  %v7515 = vxor.u32 %v7513, 2147483648
  %v7516 = vxor.u32 %v7514, 2147483648
  %v7517 = vmul.f32 %v7515, 1.442695
  %v7518 = vpow.pop %v7517
  %v7519 = vmul.f32 %v7516, 1.442695
  %v7520 = vpow.pop %v7519
  %v7521 = vadd.f32 %v7518, 1.0
  %v7522 = vadd.f32 %v7520, 1.0
  %v7523 = vrcp.pop %v7521
  %v7524 = vmul.f32 1.0, %v7523
  %v7525 = vrcp.pop %v7522
  %v7526 = vmul.f32 1.0, %v7525
  %v7527 = vadd.f32 %v7453, %v4923
  %7529 = vrot.lane.b32.xlu0 %v7527, 64
  %v7530 = vpop.permute.xlu0 %7529
  %v7532 = vmul.f32 %v7508, %v7530
  %7534 = vrot.lane.b32.xlu0 %v7532, 64
  %v7535 = vpop.permute.xlu0 %7534
  %v7537 = vadd.f32 %v7407, %v7535
  %v7538 = vtanh.pop %v7537
  %v7539 = vadd.f32 %v7497, %v4943
  %7541 = vrot.lane.b32.xlu0 %v7539, 32
  %v7542 = vpop.permute.xlu0 %7541
  %v7544 = vmul.f32 %v7524, %v7542
  %7546 = vrot.lane.b32.xlu0 %v7544, 64
  %v7547 = vpop.permute.xlu0 %7546
  %v7549 = vadd.f32 %v7410, %v7547
  %v7550 = vtanh.pop %v7549
  %v7551 = vsub.f32 1.0, %v7508
  %7553 = vrot.lane.b32.xlu0 %v7538, 96
  %v7554 = vpop.permute.xlu0 %7553
  %v7556 = vmul.f32 %v7551, %v7554
  %v7557 = vmul.f32 %v7508, %v7387
  %v7558 = vadd.f32 %v7556, %v7557
  %v7559 = vsub.f32 1.0, %v7526
  %7561 = vrot.lane.b32.xlu0 %v7550, 96
  %v7562 = vpop.permute.xlu0 %7561
  %v7564 = vmul.f32 %v7559, %v7562
  %v7565 = vmul.f32 %v7526, %v7395
  %v7566 = vadd.f32 %v7564, %v7565
  %7568 = vrot.lane.b32.xlu0 %v7558, 96
  %v7569 = vpop.permute.xlu0 %7568
  %7571 = vst.msk [vmem:[%s4982] sm:$0xff] %vm635, %v7569
  %7573 = vrot.lane.b32.xlu0 %v7566, 32
  %v7574 = vpop.permute.xlu0 %7573
  %7576 = vst.msk [vmem:[#allocation7] sm:$0xff] %vm1763, %v7574
  %v7577 = vld [vmem:[#allocation7] sm:$0xff]
  %v7578 = vld [vmem:[#allocation7 + $0x8] sm:$0xff]
  %v7579 = vld [vmem:[#allocation7 + $0x10] sm:$0xff]
  %v7580 = vld [vmem:[#allocation7 + $0x18] sm:$0xff]
  %v7581 = vld [vmem:[#allocation7 + $0x20] sm:$0xff]
  %v7582 = vld [vmem:[#allocation7 + $0x28] sm:$0xff]
  %v7583 = vld [vmem:[#allocation7 + $0x30] sm:$0xff]
  %v7584 = vld [vmem:[#allocation7 + $0x38] sm:$0xff]
  %v7585 = vld [vmem:[#allocation7 + $0x40] sm:$0xff]
  %v7586 = vld [vmem:[#allocation7 + $0x48] sm:$0xff]
  %v7587 = vld [vmem:[#allocation7 + $0x50] sm:$0xff]
  %v7588 = vld [vmem:[#allocation7 + $0x58] sm:$0xff]
  %v7589 = vld [vmem:[#allocation7 + $0x60] sm:$0xff]
  %v7590 = vld [vmem:[#allocation7 + $0x68] sm:$0xff]
  %v7591 = vld [vmem:[#allocation7 + $0x70] sm:$0xff]
  %v7592 = vld [vmem:[#allocation7 + $0x78] sm:$0xff]
  %v7593 = vpack.c.bf16 %v7577, %v7577
  %v7594 = vpack.c.bf16 %v7578, %v7578
  %v7595 = vpack.c.bf16 %v7579, %v7579
  %v7596 = vpack.c.bf16 %v7580, %v7580
  %v7597 = vpack.c.bf16 %v7581, %v7581
  %v7598 = vpack.c.bf16 %v7582, %v7582
  %v7599 = vpack.c.bf16 %v7583, %v7583
  %v7600 = vpack.c.bf16 %v7584, %v7584
  %v7601 = vpack.c.bf16 %v7585, %v7585
  %v7602 = vpack.c.bf16 %v7586, %v7586
  %v7603 = vpack.c.bf16 %v7587, %v7587
  %v7604 = vpack.c.bf16 %v7588, %v7588
  %v7605 = vpack.c.bf16 %v7589, %v7589
  %v7606 = vpack.c.bf16 %v7590, %v7590
  %v7607 = vpack.c.bf16 %v7591, %v7591
  %v7608 = vpack.c.bf16 %v7592, %v7592
  %v7609 = vld [vmem:[%s19] sm:$0xf]
  %v7610 = vld [vmem:[%s19 + $0x4] sm:$0xf]
  %v7611 = vld [vmem:[%s19 + $0x8] sm:$0xf]
  %v7612 = vld [vmem:[%s19 + $0xc] sm:$0xf]
  %v7613 = vld [vmem:[%s19 + $0x10] sm:$0xf]
  %v7614 = vld [vmem:[%s19 + $0x14] sm:$0xf]
  %v7615 = vld [vmem:[%s19 + $0x18] sm:$0xf]
  %v7616 = vld [vmem:[%s19 + $0x1c] sm:$0xf]
  %v7633 = vunpack.c.l.b16 %v7593
  %v7634 = vunpack.c.l.b16 %v7594
  %v7635 = vunpack.c.l.b16 %v7595
  %v7636 = vunpack.c.l.b16 %v7596
  %v7637 = vunpack.c.l.b16 %v7597
  %v7638 = vunpack.c.l.b16 %v7598
  %v7639 = vunpack.c.l.b16 %v7599
  %v7640 = vunpack.c.l.b16 %v7600
  %v7641 = vunpack.c.l.b16 %v7601
  %v7642 = vunpack.c.l.b16 %v7602
  %v7643 = vunpack.c.l.b16 %v7603
  %v7644 = vunpack.c.l.b16 %v7604
  %v7645 = vunpack.c.l.b16 %v7605
  %v7646 = vunpack.c.l.b16 %v7606
  %v7647 = vunpack.c.l.b16 %v7607
  %v7648 = vunpack.c.l.b16 %v7608
  %v7649 = vpack.c.b16 %v7634, %v7633
  %v7650 = vpack.c.b16 %v7636, %v7635
  %v7651 = vpack.c.b16 %v7638, %v7637
  %v7652 = vpack.c.b16 %v7640, %v7639
  %v7653 = vpack.c.b16 %v7642, %v7641
  %v7654 = vpack.c.b16 %v7644, %v7643
  %v7655 = vpack.c.b16 %v7646, %v7645
  %v7656 = vpack.c.b16 %v7648, %v7647
  %v7665 = vunpack.c.l.b16 %v7609
  %v7666 = vunpack.c.l.b16 %v7610
  %v7667 = vunpack.c.l.b16 %v7611
  %v7668 = vunpack.c.l.b16 %v7612
  %v7669 = vunpack.c.l.b16 %v7613
  %v7670 = vunpack.c.l.b16 %v7614
  %v7671 = vunpack.c.l.b16 %v7615
  %v7672 = vunpack.c.l.b16 %v7616
  %v7673 = vpack.c.b16 %v7666, %v7665
  %v7674 = vpack.c.b16 %v7668, %v7667
  %v7675 = vpack.c.b16 %v7670, %v7669
  %v7676 = vpack.c.b16 %v7672, %v7671
  %v7682 = vsel %vm4490, %v7649, 0
  %v7685 = vsel %vm4490, %v7650, 0
  %v7688 = vsel %vm4490, %v7651, 0
  %v7691 = vsel %vm4490, %v7652, 0
  %v7694 = vsel %vm4490, %v7653, 0
  %v7697 = vsel %vm4490, %v7654, 0
  %v7700 = vsel %vm4490, %v7655, 0
  %v7703 = vsel %vm4490, %v7656, 0
  %7705 = vmatprep.subr.bf16.mxu0 0
  %7706 = vmatpush1.bf16.msra.mxu0 %v7673
  %7707 = vmatprep.subr.bf16.mxu0 0
  %7708 = vmatpush1.bf16.msra.mxu0 %v7674
  %7709 = vmatprep.subr.bf16.mxu0 0
  %7710 = vmatpush1.bf16.msra.mxu0 %v7675
  %7711 = vmatprep.subr.bf16.mxu0 0
  %7712 = vmatpush1.bf16.msra.mxu0 %v7676
  %7713 = vmatprep.subr.bf16.mxu0 0
  %7714 = vmatpush1.bf16.msra.mxu0 0
  %7715 = vmatprep.subr.bf16.mxu0 0
  %7716 = vmatpush1.bf16.msra.mxu0 0
  %7717 = vmatprep.subr.bf16.mxu0 0
  %7718 = vmatpush1.bf16.msra.mxu0 0
  %7719 = vmatprep.subr.bf16.mxu0 0
  %7720 = vmatpush1.bf16.msra.mxu0 0
  %7721 = vmatprep.subr.bf16.mxu0 0
  %7722 = vmatpush1.bf16.msra.mxu0 0
  %7723 = vmatprep.subr.bf16.mxu0 0
  %7724 = vmatpush1.bf16.msra.mxu0 0
  %7725 = vmatprep.subr.bf16.mxu0 0
  %7726 = vmatpush1.bf16.msra.mxu0 0
  %7727 = vmatprep.subr.bf16.mxu0 0
  %7728 = vmatpush1.bf16.msra.mxu0 0
  %7729 = vmatprep.subr.bf16.mxu0 0
  %7730 = vmatpush1.bf16.msra.mxu0 0
  %7731 = vmatprep.subr.bf16.mxu0 0
  %7732 = vmatpush1.bf16.msra.mxu0 0
  %7733 = vmatprep.subr.bf16.mxu0 0
  %7734 = vmatpush1.bf16.msra.mxu0 0
  %7735 = vmatprep.subr.bf16.mxu0 0
  %7736 = vmatpush1.bf16.msra.mxu0 0
  %7737 = vmatprep.mubr.bf16.mxu0 0
  %7738 = vmatmul.mubr.bf16.gmra.mrb[0].mxu0 %v7682
  %v7739 = vpop.f32.mrb[0].mxu0
  %v7740 = vadd.f32 0.0, %v7739
  %v7741 = vpop.f32.mrb[0].mxu0
  %v7742 = vpop.f32.mrb[0].mxu0
  %v7743 = vadd.f32 0.0, %v7742
  %v7744 = vpop.f32.mrb[0].mxu0
  %7745 = vmatprep.mubr.bf16.mxu0 0
  %7746 = vmatmul.mubr.bf16.gmra.mrb[0].mxu0 %v7685
  %v7747 = vpop.f32.mrb[0].mxu0
  %v7748 = vadd.f32 0.0, %v7747
  %v7749 = vpop.f32.mrb[0].mxu0
  %v7750 = vpop.f32.mrb[0].mxu0
  %v7751 = vadd.f32 0.0, %v7750
  %v7752 = vpop.f32.mrb[0].mxu0
  %7753 = vmatprep.mubr.bf16.mxu0 0
  %7754 = vmatmul.mubr.bf16.gmra.mrb[0].mxu0 %v7688
  %v7755 = vpop.f32.mrb[0].mxu0
  %v7756 = vadd.f32 0.0, %v7755
  %v7757 = vpop.f32.mrb[0].mxu0
  %v7758 = vpop.f32.mrb[0].mxu0
  %v7759 = vadd.f32 0.0, %v7758
  %v7760 = vpop.f32.mrb[0].mxu0
  %7761 = vmatprep.mubr.bf16.mxu0 0
  %7762 = vmatmul.mubr.bf16.gmra.mrb[0].mxu0 %v7691
  %v7763 = vpop.f32.mrb[0].mxu0
  %v7764 = vadd.f32 0.0, %v7763
  %v7765 = vpop.f32.mrb[0].mxu0
  %v7766 = vpop.f32.mrb[0].mxu0
  %v7767 = vadd.f32 0.0, %v7766
  %v7768 = vpop.f32.mrb[0].mxu0
  %7769 = vmatprep.mubr.bf16.mxu0 0
  %7770 = vmatmul.mubr.bf16.gmra.mrb[0].mxu0 %v7694
  %v7771 = vpop.f32.mrb[0].mxu0
  %v7772 = vadd.f32 0.0, %v7771
  %v7773 = vpop.f32.mrb[0].mxu0
  %v7774 = vpop.f32.mrb[0].mxu0
  %v7775 = vadd.f32 0.0, %v7774
  %v7776 = vpop.f32.mrb[0].mxu0
  %7777 = vmatprep.mubr.bf16.mxu0 0
  %7778 = vmatmul.mubr.bf16.gmra.mrb[0].mxu0 %v7697
  %v7779 = vpop.f32.mrb[0].mxu0
  %v7780 = vadd.f32 0.0, %v7779
  %v7781 = vpop.f32.mrb[0].mxu0
  %v7782 = vpop.f32.mrb[0].mxu0
  %v7783 = vadd.f32 0.0, %v7782
  %v7784 = vpop.f32.mrb[0].mxu0
  %7785 = vmatprep.mubr.bf16.mxu0 0
  %7786 = vmatmul.mubr.bf16.gmra.mrb[0].mxu0 %v7700
  %v7787 = vpop.f32.mrb[0].mxu0
  %v7788 = vadd.f32 0.0, %v7787
  %v7789 = vpop.f32.mrb[0].mxu0
  %v7790 = vpop.f32.mrb[0].mxu0
  %v7791 = vadd.f32 0.0, %v7790
  %v7792 = vpop.f32.mrb[0].mxu0
  %7793 = vmatprep.mubr.bf16.mxu0 0
  %7794 = vmatmul.mubr.bf16.gmra.mrb[0].mxu0 %v7703
  %v7795 = vpop.f32.mrb[0].mxu0
  %v7796 = vadd.f32 0.0, %v7795
  %v7797 = vpop.f32.mrb[0].mxu0
  %v7798 = vpop.f32.mrb[0].mxu0
  %v7799 = vadd.f32 0.0, %v7798
  %v7800 = vpop.f32.mrb[0].mxu0
  %7801 = vdwg.mxu0
  %v7802 = vld [vmem:[%s20] sm:$0x1]
  %v7804 = vlaneseq
  %v7805 = vshrl.u32 %v7804, 7
  %v7806 = vsub.s32 0, %v7805
  %v7807 = vrot.slane %v7802, %v7806
  %v7809 = vadd.f32 %v7740, %v7807
  %v7810 = vadd.f32 %v7743, %v7807
  %v7811 = vadd.f32 %v7748, %v7807
  %v7812 = vadd.f32 %v7751, %v7807
  %v7813 = vadd.f32 %v7756, %v7807
  %v7814 = vadd.f32 %v7759, %v7807
  %v7815 = vadd.f32 %v7764, %v7807
  %v7816 = vadd.f32 %v7767, %v7807
  %v7817 = vadd.f32 %v7772, %v7807
  %v7818 = vadd.f32 %v7775, %v7807
  %v7819 = vadd.f32 %v7780, %v7807
  %v7820 = vadd.f32 %v7783, %v7807
  %v7821 = vadd.f32 %v7788, %v7807
  %v7822 = vadd.f32 %v7791, %v7807
  %v7823 = vadd.f32 %v7796, %v7807
  %v7824 = vadd.f32 %v7799, %v7807
  %vm7825 = vcmask 31744
  %7826 = vst.msk [vmem:[%s21] sm:$0xff] %vm7825, %v7809
  %7827 = vst.msk [vmem:[%s21 + $0x8] sm:$0xff] %vm7825, %v7810
  %7828 = vst.msk [vmem:[%s21 + $0x10] sm:$0xff] %vm7825, %v7811
  %7829 = vst.msk [vmem:[%s21 + $0x18] sm:$0xff] %vm7825, %v7812
  %7830 = vst.msk [vmem:[%s21 + $0x20] sm:$0xff] %vm7825, %v7813
  %7831 = vst.msk [vmem:[%s21 + $0x28] sm:$0xff] %vm7825, %v7814
  %7832 = vst.msk [vmem:[%s21 + $0x30] sm:$0xff] %vm7825, %v7815
  %7833 = vst.msk [vmem:[%s21 + $0x38] sm:$0xff] %vm7825, %v7816
  %7834 = vst.msk [vmem:[%s21 + $0x40] sm:$0xff] %vm7825, %v7817
  %7835 = vst.msk [vmem:[%s21 + $0x48] sm:$0xff] %vm7825, %v7818
  %7836 = vst.msk [vmem:[%s21 + $0x50] sm:$0xff] %vm7825, %v7819
  %7837 = vst.msk [vmem:[%s21 + $0x58] sm:$0xff] %vm7825, %v7820
  %7838 = vst.msk [vmem:[%s21 + $0x60] sm:$0xff] %vm7825, %v7821
  %7839 = vst.msk [vmem:[%s21 + $0x68] sm:$0xff] %vm7825, %v7822
  %7840 = vst.msk [vmem:[%s21 + $0x70] sm:$0xff] %vm7825, %v7823
  %7841 = vst.msk [vmem:[%s21 + $0x78] sm:$0xff] %vm7825, %v7824
  // Predicated region
  $region86: #{classifier_forward.1} parent=0 // pred_check
    _
  $region87: #{classifier_forward.1} parent=0 // pred_check_branch
    %7843 = sbr.rel (0) target = $region89
  $region88: #{classifier_forward.1} parent=0 // pred_region
    _
  $region89: #{classifier_forward.1} parent=0 // pred_fallthru
    _
  // Predicated region
  $region90: #{classifier_forward.1} parent=0 // pred_check
    _
  $region91: #{classifier_forward.1} parent=0 // pred_check_branch
    %7845 = sbr.rel (0) target = $region93
  $region92: #{classifier_forward.1} parent=0 // pred_region
    _
  $region93: #{classifier_forward.1} parent=0 // pred_fallthru
    _

</llo_original>
